<compile_context>
chip_gen: v5e
topology: v5e:2x2
jax: 0.10.0
libtpu: 0.0.40
codegen_flags: <defaults>
</compile_context>

<pallas_src>
import functools
import math

import jax
import jax.numpy as jnp
from jax import lax
from jax.experimental import pallas as pl
from jax.experimental.pallas import tpu as pltpu

_INV_SQRT2 = 1.0 / math.sqrt(2.0)


# ------------------------------------------------------------------
# In-kernel helpers (all float32)
# ------------------------------------------------------------------

def _ln(x, g, b, eps=1e-5):
    mu = jnp.mean(x, axis=-1, keepdims=True)
    var = jnp.mean(jnp.square(x - mu), axis=-1, keepdims=True)
    return (x - mu) * lax.rsqrt(var + eps) * g + b


def _gelu(x):  # exact GELU (matches torch.nn.GELU default)
    return 0.5 * x * (1.0 + lax.erf(x * _INV_SQRT2))


def _mm(a, b):
    return jnp.dot(a, b, preferred_element_type=jnp.float32)


def _split_heads(x, heads, dim_head):
    """(N, heads*dh) -> (heads, N, dh): static lane slices stacked on a new
    leading (head/batch) axis so every downstream matmul is a single
    head-batched dot_general instead of a per-head loop."""
    return jnp.stack(
        [x[:, h * dim_head:(h + 1) * dim_head] for h in range(heads)], axis=0)


def _mha_project(q, segments, wo_h, heads, dim_head, scale):
    """Multi-head softmax attention over a list of (K, V) segments (logically
    concatenated along the key axis), fused with the output projection.
    All matmuls are batched over heads; the per-head outputs are folded into
    wo (pre-reshaped (H, dh, D)) and summed - no lane-axis concat."""
    qh = _split_heads(q, heads, dim_head)                          # (H, Nq, dh)
    scores = []
    for k, _ in segments:
        kh = _split_heads(k, heads, dim_head)
        scores.append(jnp.einsum('hqd,hkd->hqk', qh, kh,
                                 preferred_element_type=jnp.float32) * scale)
    mx = scores[0].max(axis=-1, keepdims=True)
    for s in scores[1:]:
        mx = jnp.maximum(mx, s.max(axis=-1, keepdims=True))
    exps = [jnp.exp(s - mx) for s in scores]
    denom = exps[0].sum(axis=-1, keepdims=True)
    for e in exps[1:]:
        denom = denom + e.sum(axis=-1, keepdims=True)
    num = None
    for e, (_, v) in zip(exps, segments):
        vh = _split_heads(v, heads, dim_head)
        t = jnp.einsum('hqk,hkd->hqd', e, vh,
                       preferred_element_type=jnp.float32)         # (H, Nq, dh)
        num = t if num is None else num + t
    o = num / denom                                                # exact softmax
    proj = jnp.einsum('hqd,hdo->hqo', o, wo_h,
                      preferred_element_type=jnp.float32)          # (H, Nq, D)
    return proj.sum(axis=0)                                        # (Nq, D)


# ------------------------------------------------------------------
# Fused encoder-stack kernel: grid = (B, n_layers)
# ------------------------------------------------------------------

def _encoder_stack_kernel(*refs, heads, dim_head, n_layers, has_embed):
    it = iter(refs)
    x_ref = next(it)
    if has_embed:
        cls_ref = next(it)
        pos_ref = next(it)
    ln1_g = next(it); ln1_b = next(it)
    wqkv = next(it); wo_h = next(it); bo = next(it)
    ln2_g = next(it); ln2_b = next(it)
    w1 = next(it); b1 = next(it); w2 = next(it); b2 = next(it)
    norm_g = next(it); norm_b = next(it)
    o_ref = next(it)
    tok = next(it)                       # VMEM scratch: resident token state

    d = pl.program_id(1)
    inner = heads * dim_head
    scale = dim_head ** -0.5

    @pl.when(d == 0)
    def _init():
        if has_embed:
            # fused embedding: [cls ; x] + pos, built directly in VMEM
            tok[0:1, :] = cls_ref[...] + pos_ref[0:1, :]
            tok[1:, :] = x_ref[...] + pos_ref[1:, :]
        else:
            tok[...] = x_ref[...]

    # --- one encoder layer (weights of layer `d`, streamed by the grid) ---
    x = tok[...]
    xn = _ln(x, ln1_g[...], ln1_b[...])
    qkv = _mm(xn, wqkv[...])                               # (N, 3*inner)
    q = qkv[:, :inner]
    k = qkv[:, inner:2 * inner]
    v = qkv[:, 2 * inner:]
    attn = _mha_project(q, [(k, v)], wo_h[...], heads, dim_head, scale)
    x = x + attn + bo[...]
    xn2 = _ln(x, ln2_g[...], ln2_b[...])
    hmid = _gelu(_mm(xn2, w1[...]) + b1[...])
    x = x + _mm(hmid, w2[...]) + b2[...]
    tok[...] = x

    @pl.when(d == n_layers - 1)
    def _finalize():
        o_ref[...] = _ln(x, norm_g[...], norm_b[...])      # fused final norm


def encoder_stack_fwd(x, p, embed=None):
    """All layers of one Transformer (plus optional fused token embedding and
    the final LayerNorm) in ONE pallas_call."""
    B = x.shape[0]
    heads, dim_head = p['heads'], p['dim_head']
    L, _, D = p['ln1_g'].shape
    inner = heads * dim_head
    Hm = p['w1'].shape[-1]
    has_embed = embed is not None
    N_in = x.shape[1]
    N1 = N_in + 1 if has_embed else N_in

    args = [x]
    in_specs = [pl.BlockSpec((None, N_in, D), lambda b, d: (b, 0, 0))]
    if has_embed:
        args += [embed['cls'], embed['pos'][:, :N1]]
        in_specs += [pl.BlockSpec((None, 1, D), lambda b, d: (0, 0, 0)),
                     pl.BlockSpec((None, N1, D), lambda b, d: (0, 0, 0))]

    # Stacked per-layer weights, streamed by the depth grid coordinate only
    # (double-buffered prefetch of layer d+1 under layer d compute).
    stacked = [
        (p['ln1_g'], (1, D)), (p['ln1_b'], (1, D)),
        (p['wqkv'], (D, 3 * inner)),
        (p['wo_h'], (heads, dim_head, D)),
        (p['bo'], (1, D)),
        (p['ln2_g'], (1, D)), (p['ln2_b'], (1, D)),
        (p['w1'], (D, Hm)), (p['b1'], (1, Hm)),
        (p['w2'], (Hm, D)), (p['b2'], (1, D)),
    ]
    for arr, blk in stacked:
        nd = len(blk)
        args.append(arr)
        in_specs.append(pl.BlockSpec((None,) + blk,
                                     lambda b, d, _nd=nd: (d,) + (0,) * _nd))
    # final-stack LayerNorm params (constant block -> fetched once, stays in VMEM)
    args += [p['norm_g'], p['norm_b']]
    in_specs += [pl.BlockSpec((1, D), lambda b, d: (0, 0)),
                 pl.BlockSpec((1, D), lambda b, d: (0, 0))]

    kern = functools.partial(_encoder_stack_kernel, heads=heads,
                             dim_head=dim_head, n_layers=L, has_embed=has_embed)
    return pl.pallas_call(
        kern,
        out_shape=jax.ShapeDtypeStruct((B, N1, D), jnp.float32),
        grid=(B, L),
        in_specs=in_specs,
        out_specs=pl.BlockSpec((None, N1, D), lambda b, d: (b, 0, 0)),
        scratch_shapes=[pltpu.VMEM((N1, D), jnp.float32)],
        compiler_params=pltpu.CompilerParams(
            dimension_semantics=("parallel", "arbitrary")),
    )(*args)


# ------------------------------------------------------------------
# Fused cross-attention (+ dual MLP head) kernel: grid = (B, cross_depth)
# ------------------------------------------------------------------

def _cross_param_names(has_proj):
    names = ['wpi', 'bpi'] if has_proj else []
    names += ['ln_g', 'ln_b', 'wq', 'wkv', 'wo_h', 'bo']
    if has_proj:
        names += ['wpo', 'bpo']
    return names


def _cross_block(x0, ctx, p, heads, dim_head, scale, has_proj):
    """ProjectInOut(PreNorm(Attention))(x, context, kv_include_self=True) + x.
    Self/context K,V are two softmax segments (== softmax over the concat)."""
    inner = heads * dim_head
    xp = x0
    if has_proj:
        xp = _mm(x0, p['wpi'][...]) + p['bpi'][...]
    xn = _ln(xp, p['ln_g'][...], p['ln_b'][...])
    q = _mm(xn, p['wq'][...])
    kv_s = _mm(xn, p['wkv'][...])          # self keys/values (normed cls)
    kv_c = _mm(ctx, p['wkv'][...])         # context keys/values (un-normed)
    segments = [(kv_s[:, :inner], kv_s[:, inner:]),
                (kv_c[:, :inner], kv_c[:, inner:])]
    attn = _mha_project(q, segments, p['wo_h'][...], heads, dim_head, scale)
    out = attn + p['bo'][...]
    if has_proj:
        out = _mm(out, p['wpo'][...]) + p['bpo'][...]
    return out + x0                        # residual (in dim_in)


def _cross_stack_kernel(*refs, heads, dim_head, n_layers,
                        has_proj_sm, has_proj_lg, with_head):
    it = iter(refs)
    sm_tok = next(it)
    lg_tok = next(it)
    sm_p = {n: next(it) for n in _cross_param_names(has_proj_sm)}
    lg_p = {n: next(it) for n in _cross_param_names(has_proj_lg)}
    if with_head:
        smh_g = next(it); smh_b = next(it); smh_w = next(it); smh_bias = next(it)
        lgh_g = next(it); lgh_b = next(it); lgh_w = next(it); lgh_bias = next(it)
        logits_ref = next(it)
    else:
        sm_out = next(it)
        lg_out = next(it)
    sm_cls_scr = next(it)
    lg_cls_scr = next(it)

    l = pl.program_id(1)
    scale = dim_head ** -0.5

    @pl.when(l == 0)
    def _init():
        # cls/patch split happens in-kernel; cls state lives in VMEM scratch.
        sm_cls_scr[...] = sm_tok[0:1, :]
        lg_cls_scr[...] = lg_tok[0:1, :]

    sm_patch = sm_tok[1:, :]               # original patches, never modified
    lg_patch = lg_tok[1:, :]

    sm_cls = _cross_block(sm_cls_scr[...], lg_patch, sm_p, heads, dim_head,
                          scale, has_proj_sm)
    sm_cls_scr[...] = sm_cls
    lg_cls = _cross_block(lg_cls_scr[...], sm_patch, lg_p, heads, dim_head,
                          scale, has_proj_lg)
    lg_cls_scr[...] = lg_cls

    @pl.when(l == n_layers - 1)
    def _finalize():
        if with_head:
            sm_n = _ln(sm_cls, smh_g[...], smh_b[...])
            lg_n = _ln(lg_cls, lgh_g[...], lgh_b[...])
            logits_ref[...] = (_mm(sm_n, smh_w[...]) + smh_bias[...]
                               + _mm(lg_n, lgh_w[...]) + lgh_bias[...])
        else:
            # re-merge cls + patches in-kernel (no wrapper concat)
            sm_out[0:1, :] = sm_cls
            sm_out[1:, :] = sm_patch
            lg_out[0:1, :] = lg_cls
            lg_out[1:, :] = lg_patch


def cross_stack_fwd(p, sm_tokens, lg_tokens, sm_head=None, lg_head=None):
    B, Nsm1, sm_dim = sm_tokens.shape
    _, Nlg1, lg_dim = lg_tokens.shape
    heads, dim_head = p['heads'], p['dim_head']
    sm_p, lg_p = p['sm_attend_lg'], p['lg_attend_sm']
    has_proj_sm = 'wpi' in sm_p
    has_proj_lg = 'wpi' in lg_p
    Lc = sm_p['ln_g'].shape[0]
    with_head = sm_head is not None

    args = [sm_tokens, lg_tokens]
    in_specs = [pl.BlockSpec((None, Nsm1, sm_dim), lambda b, l: (b, 0, 0)),
                pl.BlockSpec((None, Nlg1, lg_dim), lambda b, l: (b, 0, 0))]

    def add_stacked(arr):
        blk = tuple(arr.shape[1:])
        nd = len(blk)
        args.append(arr)
        in_specs.append(pl.BlockSpec((None,) + blk,
                                     lambda b, l, _nd=nd: (l,) + (0,) * _nd))

    for name in _cross_param_names(has_proj_sm):
        add_stacked(sm_p[name])
    for name in _cross_param_names(has_proj_lg):
        add_stacked(lg_p[name])

    if with_head:
        C = sm_head['w'].shape[-1]
        for hp in (sm_head, lg_head):
            D = hp['w'].shape[0]
            args += [hp['ln_g'], hp['ln_b'], hp['w'], hp['b']]
            in_specs += [pl.BlockSpec((1, D), lambda b, l: (0, 0)),
                         pl.BlockSpec((1, D), lambda b, l: (0, 0)),
                         pl.BlockSpec((D, C), lambda b, l: (0, 0)),
                         pl.BlockSpec((1, C), lambda b, l: (0, 0))]
        out_shape = jax.ShapeDtypeStruct((B, 1, C), jnp.float32)
        out_specs = pl.BlockSpec((None, 1, C), lambda b, l: (b, 0, 0))
    else:
        out_shape = (jax.ShapeDtypeStruct((B, Nsm1, sm_dim), jnp.float32),
                     jax.ShapeDtypeStruct((B, Nlg1, lg_dim), jnp.float32))
        out_specs = (pl.BlockSpec((None, Nsm1, sm_dim), lambda b, l: (b, 0, 0)),
                     pl.BlockSpec((None, Nlg1, lg_dim), lambda b, l: (b, 0, 0)))

    kern = functools.partial(_cross_stack_kernel, heads=heads, dim_head=dim_head,
                             n_layers=Lc, has_proj_sm=has_proj_sm,
                             has_proj_lg=has_proj_lg, with_head=with_head)
    return pl.pallas_call(
        kern,
        out_shape=out_shape,
        grid=(B, Lc),
        in_specs=in_specs,
        out_specs=out_specs,
        scratch_shapes=[pltpu.VMEM((1, sm_dim), jnp.float32),
                        pltpu.VMEM((1, lg_dim), jnp.float32)],
        compiler_params=pltpu.CompilerParams(
            dimension_semantics=("parallel", "arbitrary")),
    )(*args)


# ------------------------------------------------------------------
# Whole CrossViT forward: 3 pallas_calls (sm encoder, lg encoder, cross+heads)
# ------------------------------------------------------------------

def crossvit_fwd(params, face_features, img2):
    sm_in, lg_in = face_features, img2
    n_outer = len(params['encoder'])
    logits = None
    for i, layer in enumerate(params['encoder']):
        sm_tokens = encoder_stack_fwd(
            sm_in, layer['sm_enc'],
            embed=params['sm_embed'] if i == 0 else None)
        lg_tokens = encoder_stack_fwd(
            lg_in, layer['lg_enc'],
            embed=params['lg_embed'] if i == 0 else None)
        if i == n_outer - 1:
            logits = cross_stack_fwd(layer['cross'], sm_tokens, lg_tokens,
                                     sm_head=params['sm_head'],
                                     lg_head=params['lg_head'])
        else:
            sm_in, lg_in = cross_stack_fwd(layer['cross'], sm_tokens, lg_tokens)
    return logits.reshape(face_features.shape[0], -1)


# ------------------------------------------------------------------
# Deterministic parameter initialization (synthetic, no checkpoint)
# ------------------------------------------------------------------

class KeyGen:
    def __init__(self, key):
        self.key = key

    def __call__(self):
        self.key, sub = jax.random.split(self.key)
        return sub


def _uni(kg, shape, fan_in):
    lim = 1.0 / math.sqrt(fan_in)
    return jax.random.uniform(kg(), shape, jnp.float32, -lim, lim)


def init_encoder_stack(kg, dim, depth, heads, dim_head, mlp_dim):
    inner = heads * dim_head

    def stack(fn):
        return jnp.stack([fn() for _ in range(depth)], axis=0)

    return {
        'heads': heads, 'dim_head': dim_head,
        'ln1_g': jnp.ones((depth, 1, dim), jnp.float32),
        'ln1_b': jnp.zeros((depth, 1, dim), jnp.float32),
        'wqkv': stack(lambda: jnp.concatenate(
            [_uni(kg, (dim, inner), dim),          # to_q  (bias=False)
             _uni(kg, (dim, 2 * inner), dim)],     # to_kv (bias=False)
            axis=1)),
        'wo_h': stack(lambda: _uni(kg, (inner, dim), inner)
                      .reshape(heads, dim_head, dim)),
        'bo': stack(lambda: _uni(kg, (1, dim), inner)),
        'ln2_g': jnp.ones((depth, 1, dim), jnp.float32),
        'ln2_b': jnp.zeros((depth, 1, dim), jnp.float32),
        'w1': stack(lambda: _uni(kg, (dim, mlp_dim), dim)),
        'b1': stack(lambda: _uni(kg, (1, mlp_dim), dim)),
        'w2': stack(lambda: _uni(kg, (mlp_dim, dim), mlp_dim)),
        'b2': stack(lambda: _uni(kg, (1, dim), mlp_dim)),
        'norm_g': jnp.ones((1, dim), jnp.float32),
        'norm_b': jnp.zeros((1, dim), jnp.float32),
    }


def init_cross_role(kg, dim_in, dim_attn, heads, dim_head, depth):
    inner = heads * dim_head
    need_proj = dim_in != dim_attn

    def stack(fn):
        return jnp.stack([fn() for _ in range(depth)], axis=0)

    p = {
        'ln_g': jnp.ones((depth, 1, dim_attn), jnp.float32),
        'ln_b': jnp.zeros((depth, 1, dim_attn), jnp.float32),
        'wq': stack(lambda: _uni(kg, (dim_attn, inner), dim_attn)),
        'wkv': stack(lambda: _uni(kg, (dim_attn, 2 * inner), dim_attn)),
        'wo_h': stack(lambda: _uni(kg, (inner, dim_attn), inner)
                      .reshape(heads, dim_head, dim_attn)),
        'bo': stack(lambda: _uni(kg, (1, dim_attn), inner)),
    }
    if need_proj:
        p['wpi'] = stack(lambda: _uni(kg, (dim_in, dim_attn), dim_in))
        p['bpi'] = stack(lambda: _uni(kg, (1, dim_attn), dim_in))
        p['wpo'] = stack(lambda: _uni(kg, (dim_attn, dim_in), dim_attn))
        p['bpo'] = stack(lambda: _uni(kg, (1, dim_in), dim_attn))
    return p


def init_head(kg, dim, num_classes):
    return {'ln_g': jnp.ones((1, dim), jnp.float32),
            'ln_b': jnp.zeros((1, dim), jnp.float32),
            'w': _uni(kg, (dim, num_classes), dim),
            'b': _uni(kg, (1, num_classes), dim)}


def init_crossvit(key, cfg):
    kg = KeyGen(key)
    sm_dim, lg_dim = cfg['sm_dim'], cfg['lg_dim']
    n_sm = (cfg['image_size'] // cfg['sm_patch_size']) ** 2
    n_lg = (cfg['image_size'] // cfg['lg_patch_size']) ** 2
    params = {
        'sm_embed': {'pos': 0.02 * jax.random.normal(kg(), (1, n_sm + 1, sm_dim), jnp.float32),
                     'cls': 0.02 * jax.random.normal(kg(), (1, 1, sm_dim), jnp.float32)},
        'lg_embed': {'pos': 0.02 * jax.random.normal(kg(), (1, n_lg + 1, lg_dim), jnp.float32),
                     'cls': 0.02 * jax.random.normal(kg(), (1, 1, lg_dim), jnp.float32)},
    }
    encoder = []
    for _ in range(cfg['depth']):
        sm_enc = init_encoder_stack(kg, sm_dim, cfg['sm_enc_depth'],
                                    cfg['sm_enc_heads'], cfg['sm_enc_dim_head'],
                                    cfg['sm_enc_mlp_dim'])
        lg_enc = init_encoder_stack(kg, lg_dim, cfg['lg_enc_depth'],
                                    cfg['lg_enc_heads'], cfg['lg_enc_dim_head'],
                                    cfg['lg_enc_mlp_dim'])
        cross = {
            'heads': cfg['cross_attn_heads'],
            'dim_head': cfg['cross_attn_dim_head'],
            'sm_attend_lg': init_cross_role(kg, sm_dim, lg_dim,
                                            cfg['cross_attn_heads'],
                                            cfg['cross_attn_dim_head'],
                                            cfg['cross_attn_depth']),
            'lg_attend_sm': init_cross_role(kg, lg_dim, sm_dim,
                                            cfg['cross_attn_heads'],
                                            cfg['cross_attn_dim_head'],
                                            cfg['cross_attn_depth']),
        }
        encoder.append({'sm_enc': sm_enc, 'lg_enc': lg_enc, 'cross': cross})
    params['encoder'] = encoder
    params['sm_head'] = init_head(kg, sm_dim, cfg['num_classes'])
    params['lg_head'] = init_head(kg, lg_dim, cfg['num_classes'])
    # TODO(synk): the reference file also defines an unused nn.Linear(256, 3)
    # next to the crossvit definition; it never participates in forward and is
    # intentionally omitted.
    return params


# ------------------------------------------------------------------
# Main
# ------------------------------------------------------------------

CFG = dict(
    image_size=16,
    num_classes=16,
    sm_dim=32, lg_dim=64,
    sm_patch_size=4,    # -> 16 small patches (pos-emb length 17)
    lg_patch_size=16,   # -> 1 large patch  (pos-emb length 2)
    sm_enc_depth=1, sm_enc_heads=2, sm_enc_mlp_dim=64, sm_enc_dim_head=8,
    lg_enc_depth=2, lg_enc_heads=2, lg_enc_mlp_dim=64, lg_enc_dim_head=8,
    cross_attn_depth=2, cross_attn_heads=2, cross_attn_dim_head=8,
    depth=1,
)


if __name__ == "__main__":
    key = jax.random.PRNGKey(0)
    kp, kf, ki = jax.random.split(key, 3)
    params = init_crossvit(kp, CFG)

    B = 2
    # face_features: (B, n_sm_tokens, sm_dim) ; img2: (B, 1, lg_dim)
    face_features = jax.random.normal(kf, (B, 8, CFG['sm_dim']), jnp.float32)
    img2 = jax.random.normal(ki, (B, 1, CFG['lg_dim']), jnp.float32)

    fwd = jax.jit(functools.partial(crossvit_fwd, params))
    out = jax.block_until_ready(fwd(face_features, img2))
    assert out.shape == (B, CFG['num_classes'])
    assert bool(jnp.all(jnp.isfinite(out)))
    print("KERNEL_OK")
</pallas_src>

<mosaic_0001>
module attributes {stable_mosaic.version = 11 : i64} {
  func.func @_encoder_stack_kernel(%arg0: i32, %arg1: i32, %arg2: memref<1x1x64xf32, #tpu.memory_space<vmem>>, %arg3: memref<1x1x64xf32, #tpu.memory_space<vmem>>, %arg4: memref<1x2x64xf32, #tpu.memory_space<vmem>>, %arg5: memref<1x1x64xf32, #tpu.memory_space<vmem>>, %arg6: memref<1x1x64xf32, #tpu.memory_space<vmem>>, %arg7: memref<1x64x48xf32, #tpu.memory_space<vmem>>, %arg8: memref<1x2x8x64xf32, #tpu.memory_space<vmem>>, %arg9: memref<1x1x64xf32, #tpu.memory_space<vmem>>, %arg10: memref<1x1x64xf32, #tpu.memory_space<vmem>>, %arg11: memref<1x1x64xf32, #tpu.memory_space<vmem>>, %arg12: memref<1x64x64xf32, #tpu.memory_space<vmem>>, %arg13: memref<1x1x64xf32, #tpu.memory_space<vmem>>, %arg14: memref<1x64x64xf32, #tpu.memory_space<vmem>>, %arg15: memref<1x1x64xf32, #tpu.memory_space<vmem>>, %arg16: memref<1x64xf32, #tpu.memory_space<vmem>>, %arg17: memref<1x64xf32, #tpu.memory_space<vmem>>, %arg18: memref<1x2x64xf32, #tpu.memory_space<vmem>>, %arg19: memref<2x64xf32, #tpu.memory_space<vmem>>) attributes {dimension_semantics = [#tpu.dimension_semantics<parallel>, #tpu.dimension_semantics<arbitrary>], iteration_bounds = array<i64: 2, 2>, scalar_prefetch = 0 : i64, scratch_operands = 1 : i64, tpu.core_type = #tpu.core_type<tc>, window_params = [{transform_indices = @transform_0, window_bounds = array<i64: 1, 1, 64>}, {pipeline_mode = #tpu.pipeline_mode<synchronous>, transform_indices = @transform_1, window_bounds = array<i64: 1, 1, 64>}, {pipeline_mode = #tpu.pipeline_mode<synchronous>, transform_indices = @transform_2, window_bounds = array<i64: 1, 2, 64>}, {transform_indices = @transform_3, window_bounds = array<i64: 1, 1, 64>}, {transform_indices = @transform_4, window_bounds = array<i64: 1, 1, 64>}, {transform_indices = @transform_5, window_bounds = array<i64: 1, 64, 48>}, {transform_indices = @transform_6, window_bounds = array<i64: 1, 2, 8, 64>}, {transform_indices = @transform_7, window_bounds = array<i64: 1, 1, 64>}, {transform_indices = @transform_8, window_bounds = array<i64: 1, 1, 64>}, {transform_indices = @transform_9, window_bounds = array<i64: 1, 1, 64>}, {transform_indices = @transform_10, window_bounds = array<i64: 1, 64, 64>}, {transform_indices = @transform_11, window_bounds = array<i64: 1, 1, 64>}, {transform_indices = @transform_12, window_bounds = array<i64: 1, 64, 64>}, {transform_indices = @transform_13, window_bounds = array<i64: 1, 1, 64>}, {pipeline_mode = #tpu.pipeline_mode<synchronous>, transform_indices = @transform_14, window_bounds = array<i64: 1, 64>}, {pipeline_mode = #tpu.pipeline_mode<synchronous>, transform_indices = @transform_15, window_bounds = array<i64: 1, 64>}, {transform_indices = @transform_16, window_bounds = array<i64: 1, 2, 64>}]} {
    %c0_i32 = arith.constant 0 : i32
    %0 = arith.cmpi eq, %arg1, %c0_i32 : i32
    %1 = arith.extui %0 : i1 to i32
    %c0_i32_0 = arith.constant 0 : i32
    %2 = arith.cmpi ne, %1, %c0_i32_0 : i32
    scf.if %2 {
      %c0_61 = arith.constant 0 : index
      %c0_62 = arith.constant 0 : index
      %c0_63 = arith.constant 0 : index
      %126 = vector.load %arg3[%c0_61, %c0_62, %c0_63] : memref<1x1x64xf32, #tpu.memory_space<vmem>>, vector<1x1x64xf32>
      %127 = vector.shape_cast %126 : vector<1x1x64xf32> to vector<1x64xf32>
      %c0_64 = arith.constant 0 : index
      %c0_65 = arith.constant 0 : index
      %c0_66 = arith.constant 0 : index
      %128 = vector.load %arg4[%c0_64, %c0_65, %c0_66] : memref<1x2x64xf32, #tpu.memory_space<vmem>>, vector<1x1x64xf32>
      %129 = vector.shape_cast %128 : vector<1x1x64xf32> to vector<1x64xf32>
      %130 = arith.addf %127, %129 : vector<1x64xf32>
      %c0_67 = arith.constant 0 : index
      %c0_68 = arith.constant 0 : index
      %131 = vector.load %arg19[%c0_67, %c0_68] : memref<2x64xf32, #tpu.memory_space<vmem>>, vector<1x64xf32>
      tpu.vector_store %arg19[%c0_67, %c0_68], %130 {strides = array<i32>} : memref<2x64xf32, #tpu.memory_space<vmem>>, vector<1x64xf32>,
      %c0_69 = arith.constant 0 : index
      %c0_70 = arith.constant 0 : index
      %c0_71 = arith.constant 0 : index
      %132 = vector.load %arg2[%c0_69, %c0_70, %c0_71] : memref<1x1x64xf32, #tpu.memory_space<vmem>>, vector<1x1x64xf32>
      %133 = vector.shape_cast %132 : vector<1x1x64xf32> to vector<1x64xf32>
      %c0_72 = arith.constant 0 : index
      %c1 = arith.constant 1 : index
      %c0_73 = arith.constant 0 : index
      %134 = vector.load %arg4[%c0_72, %c1, %c0_73] : memref<1x2x64xf32, #tpu.memory_space<vmem>>, vector<1x1x64xf32>
      %135 = vector.shape_cast %134 : vector<1x1x64xf32> to vector<1x64xf32>
      %136 = arith.addf %133, %135 : vector<1x64xf32>
      %c1_74 = arith.constant 1 : index
      %c0_75 = arith.constant 0 : index
      %137 = vector.load %arg19[%c1_74, %c0_75] : memref<2x64xf32, #tpu.memory_space<vmem>>, vector<1x64xf32>
      tpu.vector_store %arg19[%c1_74, %c0_75], %136 {strides = array<i32>} : memref<2x64xf32, #tpu.memory_space<vmem>>, vector<1x64xf32>,
    } else {
    }
    %c0 = arith.constant 0 : index
    %c0_1 = arith.constant 0 : index
    %3 = vector.load %arg19[%c0, %c0_1] : memref<2x64xf32, #tpu.memory_space<vmem>>, vector<2x64xf32>
    %c0_2 = arith.constant 0 : index
    %c0_3 = arith.constant 0 : index
    %c0_4 = arith.constant 0 : index
    %4 = vector.load %arg5[%c0_2, %c0_3, %c0_4] : memref<1x1x64xf32, #tpu.memory_space<vmem>>, vector<1x1x64xf32>
    %5 = vector.shape_cast %4 : vector<1x1x64xf32> to vector<1x64xf32>
    %c0_5 = arith.constant 0 : index
    %c0_6 = arith.constant 0 : index
    %c0_7 = arith.constant 0 : index
    %6 = vector.load %arg6[%c0_5, %c0_6, %c0_7] : memref<1x1x64xf32, #tpu.memory_space<vmem>>, vector<1x1x64xf32>
    %7 = vector.shape_cast %6 : vector<1x1x64xf32> to vector<1x64xf32>
    %cst = arith.constant dense<0.000000e+00> : vector<2xf32>
    %8 = vector.multi_reduction <add>, %3, %cst [1] : vector<2x64xf32> to vector<2xf32>
    %9 = vector.shape_cast %8 : vector<2xf32> to vector<2x1xf32>
    %cst_8 = arith.constant 6.400000e+01 : f32
    %10 = vector.broadcast %cst_8 : f32 to vector<2x1xf32>
    %11 = arith.divf %9, %10 : vector<2x1xf32>
    %12 = vector.broadcast %11 : vector<2x1xf32> to vector<2x64xf32>
    %13 = arith.subf %3, %12 : vector<2x64xf32>
    %14 = arith.mulf %13, %13 : vector<2x64xf32>
    %cst_9 = arith.constant dense<0.000000e+00> : vector<2xf32>
    %15 = vector.multi_reduction <add>, %14, %cst_9 [1] : vector<2x64xf32> to vector<2xf32>
    %16 = vector.shape_cast %15 : vector<2xf32> to vector<2x1xf32>
    %cst_10 = arith.constant 6.400000e+01 : f32
    %17 = vector.broadcast %cst_10 : f32 to vector<2x1xf32>
    %18 = arith.divf %16, %17 : vector<2x1xf32>
    %19 = vector.broadcast %11 : vector<2x1xf32> to vector<2x64xf32>
    %20 = arith.subf %3, %19 : vector<2x64xf32>
    %cst_11 = arith.constant 9.99999974E-6 : f32
    %21 = vector.broadcast %cst_11 : f32 to vector<2x1xf32>
    %22 = arith.addf %18, %21 : vector<2x1xf32>
    %23 = math.rsqrt %22 : vector<2x1xf32>
    %24 = vector.broadcast %23 : vector<2x1xf32> to vector<2x64xf32>
    %25 = arith.mulf %20, %24 : vector<2x64xf32>
    %26 = vector.broadcast %5 : vector<1x64xf32> to vector<2x64xf32>
    %27 = arith.mulf %25, %26 : vector<2x64xf32>
    %28 = vector.broadcast %7 : vector<1x64xf32> to vector<2x64xf32>
    %29 = arith.addf %27, %28 : vector<2x64xf32>
    %c0_12 = arith.constant 0 : index
    %c0_13 = arith.constant 0 : index
    %c0_14 = arith.constant 0 : index
    %30 = vector.load %arg7[%c0_12, %c0_13, %c0_14] : memref<1x64x48xf32, #tpu.memory_space<vmem>>, vector<1x64x48xf32>
    %31 = vector.shape_cast %30 : vector<1x64x48xf32> to vector<64x48xf32>
    %cst_15 = arith.constant dense<0.000000e+00> : vector<2x48xf32>
    %32 = tpu.matmul %29, %31, %cst_15 {dimension_numbers = #tpu.dot_dimension_numbers<[1], [0], [0], [1], [0, 0, 1, 1], [], []>} : vector<2x64xf32>, vector<64x48xf32>, vector<2x48xf32> -> vector<2x48xf32>
    %33 = vector.extract_strided_slice %32 {offsets = [0, 0], sizes = [2, 16], strides = [1, 1]} : vector<2x48xf32> to vector<2x16xf32>
    %34 = vector.extract_strided_slice %32 {offsets = [0, 16], sizes = [2, 16], strides = [1, 1]} : vector<2x48xf32> to vector<2x16xf32>
    %35 = vector.extract_strided_slice %32 {offsets = [0, 32], sizes = [2, 16], strides = [1, 1]} : vector<2x48xf32> to vector<2x16xf32>
    %c0_16 = arith.constant 0 : index
    %c0_17 = arith.constant 0 : index
    %c0_18 = arith.constant 0 : index
    %c0_19 = arith.constant 0 : index
    %36 = vector.load %arg8[%c0_16, %c0_17, %c0_18, %c0_19] : memref<1x2x8x64xf32, #tpu.memory_space<vmem>>, vector<1x2x8x64xf32>
    %37 = vector.shape_cast %36 : vector<1x2x8x64xf32> to vector<2x8x64xf32>
    %38 = vector.extract_strided_slice %33 {offsets = [0, 0], sizes = [2, 8], strides = [1, 1]} : vector<2x16xf32> to vector<2x8xf32>
    %39 = vector.extract_strided_slice %33 {offsets = [0, 8], sizes = [2, 8], strides = [1, 1]} : vector<2x16xf32> to vector<2x8xf32>
    %40 = vector.shape_cast %38 : vector<2x8xf32> to vector<1x2x8xf32>
    %41 = vector.shape_cast %39 : vector<2x8xf32> to vector<1x2x8xf32>
    %42 = tpu.concatenate %40, %41 in 0 : vector<1x2x8xf32>, vector<1x2x8xf32> -> vector<2x2x8xf32>
    %43 = vector.extract_strided_slice %34 {offsets = [0, 0], sizes = [2, 8], strides = [1, 1]} : vector<2x16xf32> to vector<2x8xf32>
    %44 = vector.extract_strided_slice %34 {offsets = [0, 8], sizes = [2, 8], strides = [1, 1]} : vector<2x16xf32> to vector<2x8xf32>
    %45 = vector.shape_cast %43 : vector<2x8xf32> to vector<1x2x8xf32>
    %46 = vector.shape_cast %44 : vector<2x8xf32> to vector<1x2x8xf32>
    %47 = tpu.concatenate %45, %46 in 0 : vector<1x2x8xf32>, vector<1x2x8xf32> -> vector<2x2x8xf32>
    "tpu.trace_start"() <{level = 10 : i32, message = "hqd,hkd->hqk"}> : () -> ()
    %cst_20 = arith.constant dense<0.000000e+00> : vector<2x2x2xf32>
    %48 = tpu.matmul %42, %47, %cst_20 {dimension_numbers = #tpu.dot_dimension_numbers<[2], [2], [1], [1], [0, 0, 0, 1, 1, 1], [0], [0]>} : vector<2x2x8xf32>, vector<2x2x8xf32>, vector<2x2x2xf32> -> vector<2x2x2xf32>
    "tpu.trace_stop"() : () -> ()
    %cst_21 = arith.constant 0.353553385 : f32
    %49 = vector.broadcast %cst_21 : f32 to vector<2x2x2xf32>
    %50 = arith.mulf %48, %49 : vector<2x2x2xf32>
    %cst_22 = arith.constant dense<0xFF800000> : vector<2x2xf32>
    %51 = vector.multi_reduction <maximumf>, %50, %cst_22 [2] : vector<2x2x2xf32> to vector<2x2xf32>
    %52 = vector.shape_cast %51 : vector<2x2xf32> to vector<2x2x1xf32>
    %53 = vector.broadcast %52 : vector<2x2x1xf32> to vector<2x2x2xf32>
    %54 = arith.subf %50, %53 : vector<2x2x2xf32>
    %55 = math.exp %54 : vector<2x2x2xf32>
    %cst_23 = arith.constant dense<0.000000e+00> : vector<2x2xf32>
    %56 = vector.multi_reduction <add>, %55, %cst_23 [2] : vector<2x2x2xf32> to vector<2x2xf32>
    %57 = vector.shape_cast %56 : vector<2x2xf32> to vector<2x2x1xf32>
    %58 = vector.extract_strided_slice %35 {offsets = [0, 0], sizes = [2, 8], strides = [1, 1]} : vector<2x16xf32> to vector<2x8xf32>
    %59 = vector.extract_strided_slice %35 {offsets = [0, 8], sizes = [2, 8], strides = [1, 1]} : vector<2x16xf32> to vector<2x8xf32>
    %60 = vector.shape_cast %58 : vector<2x8xf32> to vector<1x2x8xf32>
    %61 = vector.shape_cast %59 : vector<2x8xf32> to vector<1x2x8xf32>
    %62 = tpu.concatenate %60, %61 in 0 : vector<1x2x8xf32>, vector<1x2x8xf32> -> vector<2x2x8xf32>
    "tpu.trace_start"() <{level = 10 : i32, message = "hqk,hkd->hqd"}> : () -> ()
    %cst_24 = arith.constant dense<0.000000e+00> : vector<2x2x8xf32>
    %63 = tpu.matmul %55, %62, %cst_24 {dimension_numbers = #tpu.dot_dimension_numbers<[2], [1], [1], [2], [0, 0, 0, 1, 1, 2], [0], [0]>} : vector<2x2x2xf32>, vector<2x2x8xf32>, vector<2x2x8xf32> -> vector<2x2x8xf32>
    "tpu.trace_stop"() : () -> ()
    %64 = vector.broadcast %57 : vector<2x2x1xf32> to vector<2x2x8xf32>
    %65 = arith.divf %63, %64 : vector<2x2x8xf32>
    "tpu.trace_start"() <{level = 10 : i32, message = "hqd,hdo->hqo"}> : () -> ()
    %cst_25 = arith.constant dense<0.000000e+00> : vector<2x2x64xf32>
    %66 = tpu.matmul %65, %37, %cst_25 {dimension_numbers = #tpu.dot_dimension_numbers<[2], [1], [1], [2], [0, 0, 0, 1, 1, 2], [0], [0]>} : vector<2x2x8xf32>, vector<2x8x64xf32>, vector<2x2x64xf32> -> vector<2x2x64xf32>
    "tpu.trace_stop"() : () -> ()
    %cst_26 = arith.constant dense<0.000000e+00> : vector<2x64xf32>
    %67 = vector.multi_reduction <add>, %66, %cst_26 [0] : vector<2x2x64xf32> to vector<2x64xf32>
    %68 = arith.addf %3, %67 : vector<2x64xf32>
    %c0_27 = arith.constant 0 : index
    %c0_28 = arith.constant 0 : index
    %c0_29 = arith.constant 0 : index
    %69 = vector.load %arg9[%c0_27, %c0_28, %c0_29] : memref<1x1x64xf32, #tpu.memory_space<vmem>>, vector<1x1x64xf32>
    %70 = vector.shape_cast %69 : vector<1x1x64xf32> to vector<1x64xf32>
    %71 = vector.broadcast %70 : vector<1x64xf32> to vector<2x64xf32>
    %72 = arith.addf %68, %71 : vector<2x64xf32>
    %c0_30 = arith.constant 0 : index
    %c0_31 = arith.constant 0 : index
    %c0_32 = arith.constant 0 : index
    %73 = vector.load %arg10[%c0_30, %c0_31, %c0_32] : memref<1x1x64xf32, #tpu.memory_space<vmem>>, vector<1x1x64xf32>
    %74 = vector.shape_cast %73 : vector<1x1x64xf32> to vector<1x64xf32>
    %c0_33 = arith.constant 0 : index
    %c0_34 = arith.constant 0 : index
    %c0_35 = arith.constant 0 : index
    %75 = vector.load %arg11[%c0_33, %c0_34, %c0_35] : memref<1x1x64xf32, #tpu.memory_space<vmem>>, vector<1x1x64xf32>
    %76 = vector.shape_cast %75 : vector<1x1x64xf32> to vector<1x64xf32>
    %cst_36 = arith.constant dense<0.000000e+00> : vector<2xf32>
    %77 = vector.multi_reduction <add>, %72, %cst_36 [1] : vector<2x64xf32> to vector<2xf32>
    %78 = vector.shape_cast %77 : vector<2xf32> to vector<2x1xf32>
    %cst_37 = arith.constant 6.400000e+01 : f32
    %79 = vector.broadcast %cst_37 : f32 to vector<2x1xf32>
    %80 = arith.divf %78, %79 : vector<2x1xf32>
    %81 = vector.broadcast %80 : vector<2x1xf32> to vector<2x64xf32>
    %82 = arith.subf %72, %81 : vector<2x64xf32>
    %83 = arith.mulf %82, %82 : vector<2x64xf32>
    %cst_38 = arith.constant dense<0.000000e+00> : vector<2xf32>
    %84 = vector.multi_reduction <add>, %83, %cst_38 [1] : vector<2x64xf32> to vector<2xf32>
    %85 = vector.shape_cast %84 : vector<2xf32> to vector<2x1xf32>
    %cst_39 = arith.constant 6.400000e+01 : f32
    %86 = vector.broadcast %cst_39 : f32 to vector<2x1xf32>
    %87 = arith.divf %85, %86 : vector<2x1xf32>
    %88 = vector.broadcast %80 : vector<2x1xf32> to vector<2x64xf32>
    %89 = arith.subf %72, %88 : vector<2x64xf32>
    %cst_40 = arith.constant 9.99999974E-6 : f32
    %90 = vector.broadcast %cst_40 : f32 to vector<2x1xf32>
    %91 = arith.addf %87, %90 : vector<2x1xf32>
    %92 = math.rsqrt %91 : vector<2x1xf32>
    %93 = vector.broadcast %92 : vector<2x1xf32> to vector<2x64xf32>
    %94 = arith.mulf %89, %93 : vector<2x64xf32>
    %95 = vector.broadcast %74 : vector<1x64xf32> to vector<2x64xf32>
    %96 = arith.mulf %94, %95 : vector<2x64xf32>
    %97 = vector.broadcast %76 : vector<1x64xf32> to vector<2x64xf32>
    %98 = arith.addf %96, %97 : vector<2x64xf32>
    %c0_41 = arith.constant 0 : index
    %c0_42 = arith.constant 0 : index
    %c0_43 = arith.constant 0 : index
    %99 = vector.load %arg12[%c0_41, %c0_42, %c0_43] : memref<1x64x64xf32, #tpu.memory_space<vmem>>, vector<1x64x64xf32>
    %100 = vector.shape_cast %99 : vector<1x64x64xf32> to vector<64x64xf32>
    %cst_44 = arith.constant dense<0.000000e+00> : vector<2x64xf32>
    %101 = tpu.matmul %98, %100, %cst_44 {dimension_numbers = #tpu.dot_dimension_numbers<[1], [0], [0], [1], [0, 0, 1, 1], [], []>} : vector<2x64xf32>, vector<64x64xf32>, vector<2x64xf32> -> vector<2x64xf32>
    %c0_45 = arith.constant 0 : index
    %c0_46 = arith.constant 0 : index
    %c0_47 = arith.constant 0 : index
    %102 = vector.load %arg13[%c0_45, %c0_46, %c0_47] : memref<1x1x64xf32, #tpu.memory_space<vmem>>, vector<1x1x64xf32>
    %103 = vector.shape_cast %102 : vector<1x1x64xf32> to vector<1x64xf32>
    %104 = vector.broadcast %103 : vector<1x64xf32> to vector<2x64xf32>
    %105 = arith.addf %101, %104 : vector<2x64xf32>
    %cst_48 = arith.constant 5.000000e-01 : f32
    %106 = vector.broadcast %cst_48 : f32 to vector<2x64xf32>
    %107 = arith.mulf %106, %105 : vector<2x64xf32>
    %cst_49 = arith.constant 0.707106769 : f32
    %108 = vector.broadcast %cst_49 : f32 to vector<2x64xf32>
    %109 = arith.mulf %105, %108 : vector<2x64xf32>
    %110 = math.erf %109 : vector<2x64xf32>
    %cst_50 = arith.constant 1.000000e+00 : f32
    %111 = vector.broadcast %cst_50 : f32 to vector<2x64xf32>
    %112 = arith.addf %111, %110 : vector<2x64xf32>
    %113 = arith.mulf %107, %112 : vector<2x64xf32>
    %c0_51 = arith.constant 0 : index
    %c0_52 = arith.constant 0 : index
    %c0_53 = arith.constant 0 : index
    %114 = vector.load %arg14[%c0_51, %c0_52, %c0_53] : memref<1x64x64xf32, #tpu.memory_space<vmem>>, vector<1x64x64xf32>
    %115 = vector.shape_cast %114 : vector<1x64x64xf32> to vector<64x64xf32>
    %cst_54 = arith.constant dense<0.000000e+00> : vector<2x64xf32>
    %116 = tpu.matmul %113, %115, %cst_54 {dimension_numbers = #tpu.dot_dimension_numbers<[1], [0], [0], [1], [0, 0, 1, 1], [], []>} : vector<2x64xf32>, vector<64x64xf32>, vector<2x64xf32> -> vector<2x64xf32>
    %117 = arith.addf %72, %116 : vector<2x64xf32>
    %c0_55 = arith.constant 0 : index
    %c0_56 = arith.constant 0 : index
    %c0_57 = arith.constant 0 : index
    %118 = vector.load %arg15[%c0_55, %c0_56, %c0_57] : memref<1x1x64xf32, #tpu.memory_space<vmem>>, vector<1x1x64xf32>
    %119 = vector.shape_cast %118 : vector<1x1x64xf32> to vector<1x64xf32>
    %120 = vector.broadcast %119 : vector<1x64xf32> to vector<2x64xf32>
    %121 = arith.addf %117, %120 : vector<2x64xf32>
    %c0_58 = arith.constant 0 : index
    %c0_59 = arith.constant 0 : index
    %122 = vector.load %arg19[%c0_58, %c0_59] : memref<2x64xf32, #tpu.memory_space<vmem>>, vector<2x64xf32>
    tpu.vector_store %arg19[%c0_58, %c0_59], %121 {strides = array<i32>} : memref<2x64xf32, #tpu.memory_space<vmem>>, vector<2x64xf32>,
    %c1_i32 = arith.constant 1 : i32
    %123 = arith.cmpi eq, %arg1, %c1_i32 : i32
    %124 = arith.extui %123 : i1 to i32
    %c0_i32_60 = arith.constant 0 : i32
    %125 = arith.cmpi ne, %124, %c0_i32_60 : i32
    scf.if %125 {
      %c0_61 = arith.constant 0 : index
      %c0_62 = arith.constant 0 : index
      %126 = vector.load %arg16[%c0_61, %c0_62] : memref<1x64xf32, #tpu.memory_space<vmem>>, vector<1x64xf32>
      %c0_63 = arith.constant 0 : index
      %c0_64 = arith.constant 0 : index
      %127 = vector.load %arg17[%c0_63, %c0_64] : memref<1x64xf32, #tpu.memory_space<vmem>>, vector<1x64xf32>
      %cst_65 = arith.constant dense<0.000000e+00> : vector<2xf32>
      %128 = vector.multi_reduction <add>, %121, %cst_65 [1] : vector<2x64xf32> to vector<2xf32>
      %129 = vector.shape_cast %128 : vector<2xf32> to vector<2x1xf32>
      %cst_66 = arith.constant 6.400000e+01 : f32
      %130 = vector.broadcast %cst_66 : f32 to vector<2x1xf32>
      %131 = arith.divf %129, %130 : vector<2x1xf32>
      %132 = vector.broadcast %131 : vector<2x1xf32> to vector<2x64xf32>
      %133 = arith.subf %121, %132 : vector<2x64xf32>
      %134 = arith.mulf %133, %133 : vector<2x64xf32>
      %cst_67 = arith.constant dense<0.000000e+00> : vector<2xf32>
      %135 = vector.multi_reduction <add>, %134, %cst_67 [1] : vector<2x64xf32> to vector<2xf32>
      %136 = vector.shape_cast %135 : vector<2xf32> to vector<2x1xf32>
      %cst_68 = arith.constant 6.400000e+01 : f32
      %137 = vector.broadcast %cst_68 : f32 to vector<2x1xf32>
      %138 = arith.divf %136, %137 : vector<2x1xf32>
      %139 = vector.broadcast %131 : vector<2x1xf32> to vector<2x64xf32>
      %140 = arith.subf %121, %139 : vector<2x64xf32>
      %cst_69 = arith.constant 9.99999974E-6 : f32
      %141 = vector.broadcast %cst_69 : f32 to vector<2x1xf32>
      %142 = arith.addf %138, %141 : vector<2x1xf32>
      %143 = math.rsqrt %142 : vector<2x1xf32>
      %144 = vector.broadcast %143 : vector<2x1xf32> to vector<2x64xf32>
      %145 = arith.mulf %140, %144 : vector<2x64xf32>
      %146 = vector.broadcast %126 : vector<1x64xf32> to vector<2x64xf32>
      %147 = arith.mulf %145, %146 : vector<2x64xf32>
      %148 = vector.broadcast %127 : vector<1x64xf32> to vector<2x64xf32>
      %149 = arith.addf %147, %148 : vector<2x64xf32>
      %c0_70 = arith.constant 0 : index
      %c0_71 = arith.constant 0 : index
      %c0_72 = arith.constant 0 : index
      %150 = vector.load %arg18[%c0_70, %c0_71, %c0_72] : memref<1x2x64xf32, #tpu.memory_space<vmem>>, vector<1x2x64xf32>
      %151 = vector.shape_cast %150 : vector<1x2x64xf32> to vector<2x64xf32>
      %152 = vector.shape_cast %149 : vector<2x64xf32> to vector<1x2x64xf32>
      tpu.vector_store %arg18[%c0_70, %c0_71, %c0_72], %152 {strides = array<i32>} : memref<1x2x64xf32, #tpu.memory_space<vmem>>, vector<1x2x64xf32>,
    } else {
    }
    return
  }
  func.func @transform_0(%arg0: i32, %arg1: i32) -> (i32, i32, i32) {
    %c0_i32 = arith.constant 0 : i32
    %c0_i32_0 = arith.constant 0 : i32
    %c0_i32_1 = arith.constant 0 : i32
    return %arg0, %c0_i32, %c0_i32_0 : i32, i32, i32
  }
  func.func @transform_1(%arg0: i32, %arg1: i32) -> (i32, i32, i32) {
    %c0_i32 = arith.constant 0 : i32
    %c0_i32_0 = arith.constant 0 : i32
    %c0_i32_1 = arith.constant 0 : i32
    %c0_i32_2 = arith.constant 0 : i32
    return %c0_i32, %c0_i32_0, %c0_i32_1 : i32, i32, i32
  }
  func.func @transform_2(%arg0: i32, %arg1: i32) -> (i32, i32, i32) {
    %c0_i32 = arith.constant 0 : i32
    %c0_i32_0 = arith.constant 0 : i32
    %c0_i32_1 = arith.constant 0 : i32
    %c0_i32_2 = arith.constant 0 : i32
    return %c0_i32, %c0_i32_0, %c0_i32_1 : i32, i32, i32
  }
  func.func @transform_3(%arg0: i32, %arg1: i32) -> (i32, i32, i32) {
    %c0_i32 = arith.constant 0 : i32
    %c0_i32_0 = arith.constant 0 : i32
    %c0_i32_1 = arith.constant 0 : i32
    return %arg1, %c0_i32, %c0_i32_0 : i32, i32, i32
  }
  func.func @transform_4(%arg0: i32, %arg1: i32) -> (i32, i32, i32) {
    %c0_i32 = arith.constant 0 : i32
    %c0_i32_0 = arith.constant 0 : i32
    %c0_i32_1 = arith.constant 0 : i32
    return %arg1, %c0_i32, %c0_i32_0 : i32, i32, i32
  }
  func.func @transform_5(%arg0: i32, %arg1: i32) -> (i32, i32, i32) {
    %c0_i32 = arith.constant 0 : i32
    %c0_i32_0 = arith.constant 0 : i32
    %c0_i32_1 = arith.constant 0 : i32
    return %arg1, %c0_i32, %c0_i32_0 : i32, i32, i32
  }
  func.func @transform_6(%arg0: i32, %arg1: i32) -> (i32, i32, i32, i32) {
    %c0_i32 = arith.constant 0 : i32
    %c0_i32_0 = arith.constant 0 : i32
    %c0_i32_1 = arith.constant 0 : i32
    %c0_i32_2 = arith.constant 0 : i32
    return %arg1, %c0_i32, %c0_i32_0, %c0_i32_1 : i32, i32, i32, i32
  }
  func.func @transform_7(%arg0: i32, %arg1: i32) -> (i32, i32, i32) {
    %c0_i32 = arith.constant 0 : i32
    %c0_i32_0 = arith.constant 0 : i32
    %c0_i32_1 = arith.constant 0 : i32
    return %arg1, %c0_i32, %c0_i32_0 : i32, i32, i32
  }
  func.func @transform_8(%arg0: i32, %arg1: i32) -> (i32, i32, i32) {
    %c0_i32 = arith.constant 0 : i32
    %c0_i32_0 = arith.constant 0 : i32
    %c0_i32_1 = arith.constant 0 : i32
    return %arg1, %c0_i32, %c0_i32_0 : i32, i32, i32
  }
  func.func @transform_9(%arg0: i32, %arg1: i32) -> (i32, i32, i32) {
    %c0_i32 = arith.constant 0 : i32
    %c0_i32_0 = arith.constant 0 : i32
    %c0_i32_1 = arith.constant 0 : i32
    return %arg1, %c0_i32, %c0_i32_0 : i32, i32, i32
  }
  func.func @transform_10(%arg0: i32, %arg1: i32) -> (i32, i32, i32) {
    %c0_i32 = arith.constant 0 : i32
    %c0_i32_0 = arith.constant 0 : i32
    %c0_i32_1 = arith.constant 0 : i32
    return %arg1, %c0_i32, %c0_i32_0 : i32, i32, i32
  }
  func.func @transform_11(%arg0: i32, %arg1: i32) -> (i32, i32, i32) {
    %c0_i32 = arith.constant 0 : i32
    %c0_i32_0 = arith.constant 0 : i32
    %c0_i32_1 = arith.constant 0 : i32
    return %arg1, %c0_i32, %c0_i32_0 : i32, i32, i32
  }
  func.func @transform_12(%arg0: i32, %arg1: i32) -> (i32, i32, i32) {
    %c0_i32 = arith.constant 0 : i32
    %c0_i32_0 = arith.constant 0 : i32
    %c0_i32_1 = arith.constant 0 : i32
    return %arg1, %c0_i32, %c0_i32_0 : i32, i32, i32
  }
  func.func @transform_13(%arg0: i32, %arg1: i32) -> (i32, i32, i32) {
    %c0_i32 = arith.constant 0 : i32
    %c0_i32_0 = arith.constant 0 : i32
    %c0_i32_1 = arith.constant 0 : i32
    return %arg1, %c0_i32, %c0_i32_0 : i32, i32, i32
  }
  func.func @transform_14(%arg0: i32, %arg1: i32) -> (i32, i32) {
    %c0_i32 = arith.constant 0 : i32
    %c0_i32_0 = arith.constant 0 : i32
    %c0_i32_1 = arith.constant 0 : i32
    return %c0_i32, %c0_i32_0 : i32, i32
  }
  func.func @transform_15(%arg0: i32, %arg1: i32) -> (i32, i32) {
    %c0_i32 = arith.constant 0 : i32
    %c0_i32_0 = arith.constant 0 : i32
    %c0_i32_1 = arith.constant 0 : i32
    return %c0_i32, %c0_i32_0 : i32, i32
  }
  func.func @transform_16(%arg0: i32, %arg1: i32) -> (i32, i32, i32) {
    %c0_i32 = arith.constant 0 : i32
    %c0_i32_0 = arith.constant 0 : i32
    %c0_i32_1 = arith.constant 0 : i32
    return %arg0, %c0_i32, %c0_i32_0 : i32, i32, i32
  }
}

module attributes {stable_mosaic.version = 11 : i64} {
  func.func @_encoder_stack_kernel(%arg0: i32, %arg1: i32, %arg2: memref<1x8x32xf32, #tpu.memory_space<vmem>>, %arg3: memref<1x1x32xf32, #tpu.memory_space<vmem>>, %arg4: memref<1x9x32xf32, #tpu.memory_space<vmem>>, %arg5: memref<1x1x32xf32, #tpu.memory_space<vmem>>, %arg6: memref<1x1x32xf32, #tpu.memory_space<vmem>>, %arg7: memref<1x32x48xf32, #tpu.memory_space<vmem>>, %arg8: memref<1x2x8x32xf32, #tpu.memory_space<vmem>>, %arg9: memref<1x1x32xf32, #tpu.memory_space<vmem>>, %arg10: memref<1x1x32xf32, #tpu.memory_space<vmem>>, %arg11: memref<1x1x32xf32, #tpu.memory_space<vmem>>, %arg12: memref<1x32x64xf32, #tpu.memory_space<vmem>>, %arg13: memref<1x1x64xf32, #tpu.memory_space<vmem>>, %arg14: memref<1x64x32xf32, #tpu.memory_space<vmem>>, %arg15: memref<1x1x32xf32, #tpu.memory_space<vmem>>, %arg16: memref<1x32xf32, #tpu.memory_space<vmem>>, %arg17: memref<1x32xf32, #tpu.memory_space<vmem>>, %arg18: memref<1x9x32xf32, #tpu.memory_space<vmem>>, %arg19: memref<9x32xf32, #tpu.memory_space<vmem>>) attributes {dimension_semantics = [#tpu.dimension_semantics<parallel>, #tpu.dimension_semantics<arbitrary>], iteration_bounds = array<i64: 2, 1>, scalar_prefetch = 0 : i64, scratch_operands = 1 : i64, tpu.core_type = #tpu.core_type<tc>, window_params = [{transform_indices = @transform_0, window_bounds = array<i64: 1, 8, 32>}, {pipeline_mode = #tpu.pipeline_mode<synchronous>, transform_indices = @transform_1, window_bounds = array<i64: 1, 1, 32>}, {pipeline_mode = #tpu.pipeline_mode<synchronous>, transform_indices = @transform_2, window_bounds = array<i64: 1, 9, 32>}, {transform_indices = @transform_3, window_bounds = array<i64: 1, 1, 32>}, {transform_indices = @transform_4, window_bounds = array<i64: 1, 1, 32>}, {transform_indices = @transform_5, window_bounds = array<i64: 1, 32, 48>}, {transform_indices = @transform_6, window_bounds = array<i64: 1, 2, 8, 32>}, {transform_indices = @transform_7, window_bounds = array<i64: 1, 1, 32>}, {transform_indices = @transform_8, window_bounds = array<i64: 1, 1, 32>}, {transform_indices = @transform_9, window_bounds = array<i64: 1, 1, 32>}, {transform_indices = @transform_10, window_bounds = array<i64: 1, 32, 64>}, {transform_indices = @transform_11, window_bounds = array<i64: 1, 1, 64>}, {transform_indices = @transform_12, window_bounds = array<i64: 1, 64, 32>}, {transform_indices = @transform_13, window_bounds = array<i64: 1, 1, 32>}, {pipeline_mode = #tpu.pipeline_mode<synchronous>, transform_indices = @transform_14, window_bounds = array<i64: 1, 32>}, {pipeline_mode = #tpu.pipeline_mode<synchronous>, transform_indices = @transform_15, window_bounds = array<i64: 1, 32>}, {transform_indices = @transform_16, window_bounds = array<i64: 1, 9, 32>}]} {
    %c0_i32 = arith.constant 0 : i32
    %0 = arith.cmpi eq, %arg1, %c0_i32 : i32
    %1 = arith.extui %0 : i1 to i32
    %c0_i32_0 = arith.constant 0 : i32
    %2 = arith.cmpi ne, %1, %c0_i32_0 : i32
    scf.if %2 {
      %c0_62 = arith.constant 0 : index
      %c0_63 = arith.constant 0 : index
      %c0_64 = arith.constant 0 : index
      %126 = vector.load %arg3[%c0_62, %c0_63, %c0_64] : memref<1x1x32xf32, #tpu.memory_space<vmem>>, vector<1x1x32xf32>
      %127 = vector.shape_cast %126 : vector<1x1x32xf32> to vector<1x32xf32>
      %c0_65 = arith.constant 0 : index
      %c0_66 = arith.constant 0 : index
      %c0_67 = arith.constant 0 : index
      %128 = vector.load %arg4[%c0_65, %c0_66, %c0_67] : memref<1x9x32xf32, #tpu.memory_space<vmem>>, vector<1x1x32xf32>
      %129 = vector.shape_cast %128 : vector<1x1x32xf32> to vector<1x32xf32>
      %130 = arith.addf %127, %129 : vector<1x32xf32>
      %c0_68 = arith.constant 0 : index
      %c0_69 = arith.constant 0 : index
      %131 = vector.load %arg19[%c0_68, %c0_69] : memref<9x32xf32, #tpu.memory_space<vmem>>, vector<1x32xf32>
      tpu.vector_store %arg19[%c0_68, %c0_69], %130 {strides = array<i32>} : memref<9x32xf32, #tpu.memory_space<vmem>>, vector<1x32xf32>,
      %c0_70 = arith.constant 0 : index
      %c0_71 = arith.constant 0 : index
      %c0_72 = arith.constant 0 : index
      %132 = vector.load %arg2[%c0_70, %c0_71, %c0_72] : memref<1x8x32xf32, #tpu.memory_space<vmem>>, vector<1x8x32xf32>
      %133 = vector.shape_cast %132 : vector<1x8x32xf32> to vector<8x32xf32>
      %c0_73 = arith.constant 0 : index
      %c1 = arith.constant 1 : index
      %c0_74 = arith.constant 0 : index
      %134 = vector.load %arg4[%c0_73, %c1, %c0_74] : memref<1x9x32xf32, #tpu.memory_space<vmem>>, vector<1x8x32xf32>
      %135 = vector.shape_cast %134 : vector<1x8x32xf32> to vector<8x32xf32>
      %136 = arith.addf %133, %135 : vector<8x32xf32>
      %c1_75 = arith.constant 1 : index
      %c0_76 = arith.constant 0 : index
      %137 = vector.load %arg19[%c1_75, %c0_76] : memref<9x32xf32, #tpu.memory_space<vmem>>, vector<8x32xf32>
      tpu.vector_store %arg19[%c1_75, %c0_76], %136 {strides = array<i32>} : memref<9x32xf32, #tpu.memory_space<vmem>>, vector<8x32xf32>,
    } else {
    }
    %c0 = arith.constant 0 : index
    %c0_1 = arith.constant 0 : index
    %3 = vector.load %arg19[%c0, %c0_1] : memref<9x32xf32, #tpu.memory_space<vmem>>, vector<9x32xf32>
    %c0_2 = arith.constant 0 : index
    %c0_3 = arith.constant 0 : index
    %c0_4 = arith.constant 0 : index
    %4 = vector.load %arg5[%c0_2, %c0_3, %c0_4] : memref<1x1x32xf32, #tpu.memory_space<vmem>>, vector<1x1x32xf32>
    %5 = vector.shape_cast %4 : vector<1x1x32xf32> to vector<1x32xf32>
    %c0_5 = arith.constant 0 : index
    %c0_6 = arith.constant 0 : index
    %c0_7 = arith.constant 0 : index
    %6 = vector.load %arg6[%c0_5, %c0_6, %c0_7] : memref<1x1x32xf32, #tpu.memory_space<vmem>>, vector<1x1x32xf32>
    %7 = vector.shape_cast %6 : vector<1x1x32xf32> to vector<1x32xf32>
    %cst = arith.constant dense<0.000000e+00> : vector<9xf32>
    %8 = vector.multi_reduction <add>, %3, %cst [1] : vector<9x32xf32> to vector<9xf32>
    %9 = vector.shape_cast %8 : vector<9xf32> to vector<9x1xf32>
    %cst_8 = arith.constant 3.200000e+01 : f32
    %10 = vector.broadcast %cst_8 : f32 to vector<9x1xf32>
    %11 = arith.divf %9, %10 : vector<9x1xf32>
    %12 = vector.broadcast %11 : vector<9x1xf32> to vector<9x32xf32>
    %13 = arith.subf %3, %12 : vector<9x32xf32>
    %14 = arith.mulf %13, %13 : vector<9x32xf32>
    %cst_9 = arith.constant dense<0.000000e+00> : vector<9xf32>
    %15 = vector.multi_reduction <add>, %14, %cst_9 [1] : vector<9x32xf32> to vector<9xf32>
    %16 = vector.shape_cast %15 : vector<9xf32> to vector<9x1xf32>
    %cst_10 = arith.constant 3.200000e+01 : f32
    %17 = vector.broadcast %cst_10 : f32 to vector<9x1xf32>
    %18 = arith.divf %16, %17 : vector<9x1xf32>
    %19 = vector.broadcast %11 : vector<9x1xf32> to vector<9x32xf32>
    %20 = arith.subf %3, %19 : vector<9x32xf32>
    %cst_11 = arith.constant 9.99999974E-6 : f32
    %21 = vector.broadcast %cst_11 : f32 to vector<9x1xf32>
    %22 = arith.addf %18, %21 : vector<9x1xf32>
    %23 = math.rsqrt %22 : vector<9x1xf32>
    %24 = vector.broadcast %23 : vector<9x1xf32> to vector<9x32xf32>
    %25 = arith.mulf %20, %24 : vector<9x32xf32>
    %26 = vector.broadcast %5 : vector<1x32xf32> to vector<9x32xf32>
    %27 = arith.mulf %25, %26 : vector<9x32xf32>
    %28 = vector.broadcast %7 : vector<1x32xf32> to vector<9x32xf32>
    %29 = arith.addf %27, %28 : vector<9x32xf32>
    %c0_12 = arith.constant 0 : index
    %c0_13 = arith.constant 0 : index
    %c0_14 = arith.constant 0 : index
    %30 = vector.load %arg7[%c0_12, %c0_13, %c0_14] : memref<1x32x48xf32, #tpu.memory_space<vmem>>, vector<1x32x48xf32>
    %31 = vector.shape_cast %30 : vector<1x32x48xf32> to vector<32x48xf32>
    %cst_15 = arith.constant dense<0.000000e+00> : vector<9x48xf32>
    %32 = tpu.matmul %29, %31, %cst_15 {dimension_numbers = #tpu.dot_dimension_numbers<[1], [0], [0], [1], [0, 0, 1, 1], [], []>} : vector<9x32xf32>, vector<32x48xf32>, vector<9x48xf32> -> vector<9x48xf32>
    %33 = vector.extract_strided_slice %32 {offsets = [0, 0], sizes = [9, 16], strides = [1, 1]} : vector<9x48xf32> to vector<9x16xf32>
    %34 = vector.extract_strided_slice %32 {offsets = [0, 16], sizes = [9, 16], strides = [1, 1]} : vector<9x48xf32> to vector<9x16xf32>
    %35 = vector.extract_strided_slice %32 {offsets = [0, 32], sizes = [9, 16], strides = [1, 1]} : vector<9x48xf32> to vector<9x16xf32>
    %c0_16 = arith.constant 0 : index
    %c0_17 = arith.constant 0 : index
    %c0_18 = arith.constant 0 : index
    %c0_19 = arith.constant 0 : index
    %36 = vector.load %arg8[%c0_16, %c0_17, %c0_18, %c0_19] : memref<1x2x8x32xf32, #tpu.memory_space<vmem>>, vector<1x2x8x32xf32>
    %37 = vector.shape_cast %36 : vector<1x2x8x32xf32> to vector<2x8x32xf32>
    %38 = vector.extract_strided_slice %33 {offsets = [0, 0], sizes = [9, 8], strides = [1, 1]} : vector<9x16xf32> to vector<9x8xf32>
    %39 = vector.extract_strided_slice %33 {offsets = [0, 8], sizes = [9, 8], strides = [1, 1]} : vector<9x16xf32> to vector<9x8xf32>
    %40 = vector.shape_cast %38 : vector<9x8xf32> to vector<1x9x8xf32>
    %41 = vector.shape_cast %39 : vector<9x8xf32> to vector<1x9x8xf32>
    %42 = tpu.concatenate %40, %41 in 0 : vector<1x9x8xf32>, vector<1x9x8xf32> -> vector<2x9x8xf32>
    %43 = vector.extract_strided_slice %34 {offsets = [0, 0], sizes = [9, 8], strides = [1, 1]} : vector<9x16xf32> to vector<9x8xf32>
    %44 = vector.extract_strided_slice %34 {offsets = [0, 8], sizes = [9, 8], strides = [1, 1]} : vector<9x16xf32> to vector<9x8xf32>
    %45 = vector.shape_cast %43 : vector<9x8xf32> to vector<1x9x8xf32>
    %46 = vector.shape_cast %44 : vector<9x8xf32> to vector<1x9x8xf32>
    %47 = tpu.concatenate %45, %46 in 0 : vector<1x9x8xf32>, vector<1x9x8xf32> -> vector<2x9x8xf32>
    "tpu.trace_start"() <{level = 10 : i32, message = "hqd,hkd->hqk"}> : () -> ()
    %cst_20 = arith.constant dense<0.000000e+00> : vector<2x9x9xf32>
    %48 = tpu.matmul %42, %47, %cst_20 {dimension_numbers = #tpu.dot_dimension_numbers<[2], [2], [1], [1], [0, 0, 0, 1, 1, 1], [0], [0]>} : vector<2x9x8xf32>, vector<2x9x8xf32>, vector<2x9x9xf32> -> vector<2x9x9xf32>
    "tpu.trace_stop"() : () -> ()
    %cst_21 = arith.constant 0.353553385 : f32
    %49 = vector.broadcast %cst_21 : f32 to vector<2x9x9xf32>
    %50 = arith.mulf %48, %49 : vector<2x9x9xf32>
    %cst_22 = arith.constant dense<0xFF800000> : vector<2x9xf32>
    %51 = vector.multi_reduction <maximumf>, %50, %cst_22 [2] : vector<2x9x9xf32> to vector<2x9xf32>
    %52 = vector.shape_cast %51 : vector<2x9xf32> to vector<2x9x1xf32>
    %53 = vector.broadcast %52 : vector<2x9x1xf32> to vector<2x9x9xf32>
    %54 = arith.subf %50, %53 : vector<2x9x9xf32>
    %55 = math.exp %54 : vector<2x9x9xf32>
    %cst_23 = arith.constant dense<0.000000e+00> : vector<2x9xf32>
    %56 = vector.multi_reduction <add>, %55, %cst_23 [2] : vector<2x9x9xf32> to vector<2x9xf32>
    %57 = vector.shape_cast %56 : vector<2x9xf32> to vector<2x9x1xf32>
    %58 = vector.extract_strided_slice %35 {offsets = [0, 0], sizes = [9, 8], strides = [1, 1]} : vector<9x16xf32> to vector<9x8xf32>
    %59 = vector.extract_strided_slice %35 {offsets = [0, 8], sizes = [9, 8], strides = [1, 1]} : vector<9x16xf32> to vector<9x8xf32>
    %60 = vector.shape_cast %58 : vector<9x8xf32> to vector<1x9x8xf32>
    %61 = vector.shape_cast %59 : vector<9x8xf32> to vector<1x9x8xf32>
    %62 = tpu.concatenate %60, %61 in 0 : vector<1x9x8xf32>, vector<1x9x8xf32> -> vector<2x9x8xf32>
    "tpu.trace_start"() <{level = 10 : i32, message = "hqk,hkd->hqd"}> : () -> ()
    %cst_24 = arith.constant dense<0.000000e+00> : vector<2x9x8xf32>
    %63 = tpu.matmul %55, %62, %cst_24 {dimension_numbers = #tpu.dot_dimension_numbers<[2], [1], [1], [2], [0, 0, 0, 1, 1, 2], [0], [0]>} : vector<2x9x9xf32>, vector<2x9x8xf32>, vector<2x9x8xf32> -> vector<2x9x8xf32>
    "tpu.trace_stop"() : () -> ()
    %64 = vector.broadcast %57 : vector<2x9x1xf32> to vector<2x9x8xf32>
    %65 = arith.divf %63, %64 : vector<2x9x8xf32>
    "tpu.trace_start"() <{level = 10 : i32, message = "hqd,hdo->hqo"}> : () -> ()
    %cst_25 = arith.constant dense<0.000000e+00> : vector<2x9x32xf32>
    %66 = tpu.matmul %65, %37, %cst_25 {dimension_numbers = #tpu.dot_dimension_numbers<[2], [1], [1], [2], [0, 0, 0, 1, 1, 2], [0], [0]>} : vector<2x9x8xf32>, vector<2x8x32xf32>, vector<2x9x32xf32> -> vector<2x9x32xf32>
    "tpu.trace_stop"() : () -> ()
    %cst_26 = arith.constant dense<0.000000e+00> : vector<9x32xf32>
    %67 = vector.multi_reduction <add>, %66, %cst_26 [0] : vector<2x9x32xf32> to vector<9x32xf32>
    %68 = arith.addf %3, %67 : vector<9x32xf32>
    %c0_27 = arith.constant 0 : index
    %c0_28 = arith.constant 0 : index
    %c0_29 = arith.constant 0 : index
    %69 = vector.load %arg9[%c0_27, %c0_28, %c0_29] : memref<1x1x32xf32, #tpu.memory_space<vmem>>, vector<1x1x32xf32>
    %70 = vector.shape_cast %69 : vector<1x1x32xf32> to vector<1x32xf32>
    %71 = vector.broadcast %70 : vector<1x32xf32> to vector<9x32xf32>
    %72 = arith.addf %68, %71 : vector<9x32xf32>
    %c0_30 = arith.constant 0 : index
    %c0_31 = arith.constant 0 : index
    %c0_32 = arith.constant 0 : index
    %73 = vector.load %arg10[%c0_30, %c0_31, %c0_32] : memref<1x1x32xf32, #tpu.memory_space<vmem>>, vector<1x1x32xf32>
    %74 = vector.shape_cast %73 : vector<1x1x32xf32> to vector<1x32xf32>
    %c0_33 = arith.constant 0 : index
    %c0_34 = arith.constant 0 : index
    %c0_35 = arith.constant 0 : index
    %75 = vector.load %arg11[%c0_33, %c0_34, %c0_35] : memref<1x1x32xf32, #tpu.memory_space<vmem>>, vector<1x1x32xf32>
    %76 = vector.shape_cast %75 : vector<1x1x32xf32> to vector<1x32xf32>
    %cst_36 = arith.constant dense<0.000000e+00> : vector<9xf32>
    %77 = vector.multi_reduction <add>, %72, %cst_36 [1] : vector<9x32xf32> to vector<9xf32>
    %78 = vector.shape_cast %77 : vector<9xf32> to vector<9x1xf32>
    %cst_37 = arith.constant 3.200000e+01 : f32
    %79 = vector.broadcast %cst_37 : f32 to vector<9x1xf32>
    %80 = arith.divf %78, %79 : vector<9x1xf32>
    %81 = vector.broadcast %80 : vector<9x1xf32> to vector<9x32xf32>
    %82 = arith.subf %72, %81 : vector<9x32xf32>
    %83 = arith.mulf %82, %82 : vector<9x32xf32>
    %cst_38 = arith.constant dense<0.000000e+00> : vector<9xf32>
    %84 = vector.multi_reduction <add>, %83, %cst_38 [1] : vector<9x32xf32> to vector<9xf32>
    %85 = vector.shape_cast %84 : vector<9xf32> to vector<9x1xf32>
    %cst_39 = arith.constant 3.200000e+01 : f32
    %86 = vector.broadcast %cst_39 : f32 to vector<9x1xf32>
    %87 = arith.divf %85, %86 : vector<9x1xf32>
    %88 = vector.broadcast %80 : vector<9x1xf32> to vector<9x32xf32>
    %89 = arith.subf %72, %88 : vector<9x32xf32>
    %cst_40 = arith.constant 9.99999974E-6 : f32
    %90 = vector.broadcast %cst_40 : f32 to vector<9x1xf32>
    %91 = arith.addf %87, %90 : vector<9x1xf32>
    %92 = math.rsqrt %91 : vector<9x1xf32>
    %93 = vector.broadcast %92 : vector<9x1xf32> to vector<9x32xf32>
    %94 = arith.mulf %89, %93 : vector<9x32xf32>
    %95 = vector.broadcast %74 : vector<1x32xf32> to vector<9x32xf32>
    %96 = arith.mulf %94, %95 : vector<9x32xf32>
    %97 = vector.broadcast %76 : vector<1x32xf32> to vector<9x32xf32>
    %98 = arith.addf %96, %97 : vector<9x32xf32>
    %c0_41 = arith.constant 0 : index
    %c0_42 = arith.constant 0 : index
    %c0_43 = arith.constant 0 : index
    %99 = vector.load %arg12[%c0_41, %c0_42, %c0_43] : memref<1x32x64xf32, #tpu.memory_space<vmem>>, vector<1x32x64xf32>
    %100 = vector.shape_cast %99 : vector<1x32x64xf32> to vector<32x64xf32>
    %cst_44 = arith.constant dense<0.000000e+00> : vector<9x64xf32>
    %101 = tpu.matmul %98, %100, %cst_44 {dimension_numbers = #tpu.dot_dimension_numbers<[1], [0], [0], [1], [0, 0, 1, 1], [], []>} : vector<9x32xf32>, vector<32x64xf32>, vector<9x64xf32> -> vector<9x64xf32>
    %c0_45 = arith.constant 0 : index
    %c0_46 = arith.constant 0 : index
    %c0_47 = arith.constant 0 : index
    %102 = vector.load %arg13[%c0_45, %c0_46, %c0_47] : memref<1x1x64xf32, #tpu.memory_space<vmem>>, vector<1x1x64xf32>
    %103 = vector.shape_cast %102 : vector<1x1x64xf32> to vector<1x64xf32>
    %104 = vector.broadcast %103 : vector<1x64xf32> to vector<9x64xf32>
    %105 = arith.addf %101, %104 : vector<9x64xf32>
    %cst_48 = arith.constant 5.000000e-01 : f32
    %106 = vector.broadcast %cst_48 : f32 to vector<9x64xf32>
    %107 = arith.mulf %106, %105 : vector<9x64xf32>
    %cst_49 = arith.constant 0.707106769 : f32
    %108 = vector.broadcast %cst_49 : f32 to vector<9x64xf32>
    %109 = arith.mulf %105, %108 : vector<9x64xf32>
    %110 = math.erf %109 : vector<9x64xf32>
    %cst_50 = arith.constant 1.000000e+00 : f32
    %111 = vector.broadcast %cst_50 : f32 to vector<9x64xf32>
    %112 = arith.addf %111, %110 : vector<9x64xf32>
    %113 = arith.mulf %107, %112 : vector<9x64xf32>
    %c0_51 = arith.constant 0 : index
    %c0_52 = arith.constant 0 : index
    %c0_53 = arith.constant 0 : index
    %114 = vector.load %arg14[%c0_51, %c0_52, %c0_53] : memref<1x64x32xf32, #tpu.memory_space<vmem>>, vector<1x64x32xf32>
    %115 = vector.shape_cast %114 : vector<1x64x32xf32> to vector<64x32xf32>
    %cst_54 = arith.constant dense<0.000000e+00> : vector<9x32xf32>
    %116 = tpu.matmul %113, %115, %cst_54 {dimension_numbers = #tpu.dot_dimension_numbers<[1], [0], [0], [1], [0, 0, 1, 1], [], []>} : vector<9x64xf32>, vector<64x32xf32>, vector<9x32xf32> -> vector<9x32xf32>
    %117 = arith.addf %72, %116 : vector<9x32xf32>
    %c0_55 = arith.constant 0 : index
    %c0_56 = arith.constant 0 : index
    %c0_57 = arith.constant 0 : index
    %118 = vector.load %arg15[%c0_55, %c0_56, %c0_57] : memref<1x1x32xf32, #tpu.memory_space<vmem>>, vector<1x1x32xf32>
    %119 = vector.shape_cast %118 : vector<1x1x32xf32> to vector<1x32xf32>
    %120 = vector.broadcast %119 : vector<1x32xf32> to vector<9x32xf32>
    %121 = arith.addf %117, %120 : vector<9x32xf32>
    %c0_58 = arith.constant 0 : index
    %c0_59 = arith.constant 0 : index
    %122 = vector.load %arg19[%c0_58, %c0_59] : memref<9x32xf32, #tpu.memory_space<vmem>>, vector<9x32xf32>
    tpu.vector_store %arg19[%c0_58, %c0_59], %121 {strides = array<i32>} : memref<9x32xf32, #tpu.memory_space<vmem>>, vector<9x32xf32>,
    %c0_i32_60 = arith.constant 0 : i32
    %123 = arith.cmpi eq, %arg1, %c0_i32_60 : i32
    %124 = arith.extui %123 : i1 to i32
    %c0_i32_61 = arith.constant 0 : i32
    %125 = arith.cmpi ne, %124, %c0_i32_61 : i32
    scf.if %125 {
      %c0_62 = arith.constant 0 : index
      %c0_63 = arith.constant 0 : index
      %126 = vector.load %arg16[%c0_62, %c0_63] : memref<1x32xf32, #tpu.memory_space<vmem>>, vector<1x32xf32>
      %c0_64 = arith.constant 0 : index
      %c0_65 = arith.constant 0 : index
      %127 = vector.load %arg17[%c0_64, %c0_65] : memref<1x32xf32, #tpu.memory_space<vmem>>, vector<1x32xf32>
      %cst_66 = arith.constant dense<0.000000e+00> : vector<9xf32>
      %128 = vector.multi_reduction <add>, %121, %cst_66 [1] : vector<9x32xf32> to vector<9xf32>
      %129 = vector.shape_cast %128 : vector<9xf32> to vector<9x1xf32>
      %cst_67 = arith.constant 3.200000e+01 : f32
      %130 = vector.broadcast %cst_67 : f32 to vector<9x1xf32>
      %131 = arith.divf %129, %130 : vector<9x1xf32>
      %132 = vector.broadcast %131 : vector<9x1xf32> to vector<9x32xf32>
      %133 = arith.subf %121, %132 : vector<9x32xf32>
      %134 = arith.mulf %133, %133 : vector<9x32xf32>
      %cst_68 = arith.constant dense<0.000000e+00> : vector<9xf32>
      %135 = vector.multi_reduction <add>, %134, %cst_68 [1] : vector<9x32xf32> to vector<9xf32>
      %136 = vector.shape_cast %135 : vector<9xf32> to vector<9x1xf32>
      %cst_69 = arith.constant 3.200000e+01 : f32
      %137 = vector.broadcast %cst_69 : f32 to vector<9x1xf32>
      %138 = arith.divf %136, %137 : vector<9x1xf32>
      %139 = vector.broadcast %131 : vector<9x1xf32> to vector<9x32xf32>
      %140 = arith.subf %121, %139 : vector<9x32xf32>
      %cst_70 = arith.constant 9.99999974E-6 : f32
      %141 = vector.broadcast %cst_70 : f32 to vector<9x1xf32>
      %142 = arith.addf %138, %141 : vector<9x1xf32>
      %143 = math.rsqrt %142 : vector<9x1xf32>
      %144 = vector.broadcast %143 : vector<9x1xf32> to vector<9x32xf32>
      %145 = arith.mulf %140, %144 : vector<9x32xf32>
      %146 = vector.broadcast %126 : vector<1x32xf32> to vector<9x32xf32>
      %147 = arith.mulf %145, %146 : vector<9x32xf32>
      %148 = vector.broadcast %127 : vector<1x32xf32> to vector<9x32xf32>
      %149 = arith.addf %147, %148 : vector<9x32xf32>
      %c0_71 = arith.constant 0 : index
      %c0_72 = arith.constant 0 : index
      %c0_73 = arith.constant 0 : index
      %150 = vector.load %arg18[%c0_71, %c0_72, %c0_73] : memref<1x9x32xf32, #tpu.memory_space<vmem>>, vector<1x9x32xf32>
      %151 = vector.shape_cast %150 : vector<1x9x32xf32> to vector<9x32xf32>
      %152 = vector.shape_cast %149 : vector<9x32xf32> to vector<1x9x32xf32>
      tpu.vector_store %arg18[%c0_71, %c0_72, %c0_73], %152 {strides = array<i32>} : memref<1x9x32xf32, #tpu.memory_space<vmem>>, vector<1x9x32xf32>,
    } else {
    }
    return
  }
  func.func @transform_0(%arg0: i32, %arg1: i32) -> (i32, i32, i32) {
    %c0_i32 = arith.constant 0 : i32
    %c0_i32_0 = arith.constant 0 : i32
    %c0_i32_1 = arith.constant 0 : i32
    return %arg0, %c0_i32, %c0_i32_0 : i32, i32, i32
  }
  func.func @transform_1(%arg0: i32, %arg1: i32) -> (i32, i32, i32) {
    %c0_i32 = arith.constant 0 : i32
    %c0_i32_0 = arith.constant 0 : i32
    %c0_i32_1 = arith.constant 0 : i32
    %c0_i32_2 = arith.constant 0 : i32
    return %c0_i32, %c0_i32_0, %c0_i32_1 : i32, i32, i32
  }
  func.func @transform_2(%arg0: i32, %arg1: i32) -> (i32, i32, i32) {
    %c0_i32 = arith.constant 0 : i32
    %c0_i32_0 = arith.constant 0 : i32
    %c0_i32_1 = arith.constant 0 : i32
    %c0_i32_2 = arith.constant 0 : i32
    return %c0_i32, %c0_i32_0, %c0_i32_1 : i32, i32, i32
  }
  func.func @transform_3(%arg0: i32, %arg1: i32) -> (i32, i32, i32) {
    %c0_i32 = arith.constant 0 : i32
    %c0_i32_0 = arith.constant 0 : i32
    %c0_i32_1 = arith.constant 0 : i32
    return %arg1, %c0_i32, %c0_i32_0 : i32, i32, i32
  }
  func.func @transform_4(%arg0: i32, %arg1: i32) -> (i32, i32, i32) {
    %c0_i32 = arith.constant 0 : i32
    %c0_i32_0 = arith.constant 0 : i32
    %c0_i32_1 = arith.constant 0 : i32
    return %arg1, %c0_i32, %c0_i32_0 : i32, i32, i32
  }
  func.func @transform_5(%arg0: i32, %arg1: i32) -> (i32, i32, i32) {
    %c0_i32 = arith.constant 0 : i32
    %c0_i32_0 = arith.constant 0 : i32
    %c0_i32_1 = arith.constant 0 : i32
    return %arg1, %c0_i32, %c0_i32_0 : i32, i32, i32
  }
  func.func @transform_6(%arg0: i32, %arg1: i32) -> (i32, i32, i32, i32) {
    %c0_i32 = arith.constant 0 : i32
    %c0_i32_0 = arith.constant 0 : i32
    %c0_i32_1 = arith.constant 0 : i32
    %c0_i32_2 = arith.constant 0 : i32
    return %arg1, %c0_i32, %c0_i32_0, %c0_i32_1 : i32, i32, i32, i32
  }
  func.func @transform_7(%arg0: i32, %arg1: i32) -> (i32, i32, i32) {
    %c0_i32 = arith.constant 0 : i32
    %c0_i32_0 = arith.constant 0 : i32
    %c0_i32_1 = arith.constant 0 : i32
    return %arg1, %c0_i32, %c0_i32_0 : i32, i32, i32
  }
  func.func @transform_8(%arg0: i32, %arg1: i32) -> (i32, i32, i32) {
    %c0_i32 = arith.constant 0 : i32
    %c0_i32_0 = arith.constant 0 : i32
    %c0_i32_1 = arith.constant 0 : i32
    return %arg1, %c0_i32, %c0_i32_0 : i32, i32, i32
  }
  func.func @transform_9(%arg0: i32, %arg1: i32) -> (i32, i32, i32) {
    %c0_i32 = arith.constant 0 : i32
    %c0_i32_0 = arith.constant 0 : i32
    %c0_i32_1 = arith.constant 0 : i32
    return %arg1, %c0_i32, %c0_i32_0 : i32, i32, i32
  }
  func.func @transform_10(%arg0: i32, %arg1: i32) -> (i32, i32, i32) {
    %c0_i32 = arith.constant 0 : i32
    %c0_i32_0 = arith.constant 0 : i32
    %c0_i32_1 = arith.constant 0 : i32
    return %arg1, %c0_i32, %c0_i32_0 : i32, i32, i32
  }
  func.func @transform_11(%arg0: i32, %arg1: i32) -> (i32, i32, i32) {
    %c0_i32 = arith.constant 0 : i32
    %c0_i32_0 = arith.constant 0 : i32
    %c0_i32_1 = arith.constant 0 : i32
    return %arg1, %c0_i32, %c0_i32_0 : i32, i32, i32
  }
  func.func @transform_12(%arg0: i32, %arg1: i32) -> (i32, i32, i32) {
    %c0_i32 = arith.constant 0 : i32
    %c0_i32_0 = arith.constant 0 : i32
    %c0_i32_1 = arith.constant 0 : i32
    return %arg1, %c0_i32, %c0_i32_0 : i32, i32, i32
  }
  func.func @transform_13(%arg0: i32, %arg1: i32) -> (i32, i32, i32) {
    %c0_i32 = arith.constant 0 : i32
    %c0_i32_0 = arith.constant 0 : i32
    %c0_i32_1 = arith.constant 0 : i32
    return %arg1, %c0_i32, %c0_i32_0 : i32, i32, i32
  }
  func.func @transform_14(%arg0: i32, %arg1: i32) -> (i32, i32) {
    %c0_i32 = arith.constant 0 : i32
    %c0_i32_0 = arith.constant 0 : i32
    %c0_i32_1 = arith.constant 0 : i32
    return %c0_i32, %c0_i32_0 : i32, i32
  }
  func.func @transform_15(%arg0: i32, %arg1: i32) -> (i32, i32) {
    %c0_i32 = arith.constant 0 : i32
    %c0_i32_0 = arith.constant 0 : i32
    %c0_i32_1 = arith.constant 0 : i32
    return %c0_i32, %c0_i32_0 : i32, i32
  }
  func.func @transform_16(%arg0: i32, %arg1: i32) -> (i32, i32, i32) {
    %c0_i32 = arith.constant 0 : i32
    %c0_i32_0 = arith.constant 0 : i32
    %c0_i32_1 = arith.constant 0 : i32
    return %arg0, %c0_i32, %c0_i32_0 : i32, i32, i32
  }
}

module attributes {stable_mosaic.version = 11 : i64} {
  func.func @_cross_stack_kernel(%arg0: i32, %arg1: i32, %arg2: memref<1x9x32xf32, #tpu.memory_space<vmem>>, %arg3: memref<1x2x64xf32, #tpu.memory_space<vmem>>, %arg4: memref<1x32x64xf32, #tpu.memory_space<vmem>>, %arg5: memref<1x1x64xf32, #tpu.memory_space<vmem>>, %arg6: memref<1x1x64xf32, #tpu.memory_space<vmem>>, %arg7: memref<1x1x64xf32, #tpu.memory_space<vmem>>, %arg8: memref<1x64x16xf32, #tpu.memory_space<vmem>>, %arg9: memref<1x64x32xf32, #tpu.memory_space<vmem>>, %arg10: memref<1x2x8x64xf32, #tpu.memory_space<vmem>>, %arg11: memref<1x1x64xf32, #tpu.memory_space<vmem>>, %arg12: memref<1x64x32xf32, #tpu.memory_space<vmem>>, %arg13: memref<1x1x32xf32, #tpu.memory_space<vmem>>, %arg14: memref<1x64x32xf32, #tpu.memory_space<vmem>>, %arg15: memref<1x1x32xf32, #tpu.memory_space<vmem>>, %arg16: memref<1x1x32xf32, #tpu.memory_space<vmem>>, %arg17: memref<1x1x32xf32, #tpu.memory_space<vmem>>, %arg18: memref<1x32x16xf32, #tpu.memory_space<vmem>>, %arg19: memref<1x32x32xf32, #tpu.memory_space<vmem>>, %arg20: memref<1x2x8x32xf32, #tpu.memory_space<vmem>>, %arg21: memref<1x1x32xf32, #tpu.memory_space<vmem>>, %arg22: memref<1x32x64xf32, #tpu.memory_space<vmem>>, %arg23: memref<1x1x64xf32, #tpu.memory_space<vmem>>, %arg24: memref<1x32xf32, #tpu.memory_space<vmem>>, %arg25: memref<1x32xf32, #tpu.memory_space<vmem>>, %arg26: memref<32x16xf32, #tpu.memory_space<vmem>>, %arg27: memref<1x16xf32, #tpu.memory_space<vmem>>, %arg28: memref<1x64xf32, #tpu.memory_space<vmem>>, %arg29: memref<1x64xf32, #tpu.memory_space<vmem>>, %arg30: memref<64x16xf32, #tpu.memory_space<vmem>>, %arg31: memref<1x16xf32, #tpu.memory_space<vmem>>, %arg32: memref<1x1x16xf32, #tpu.memory_space<vmem>>, %arg33: memref<1x32xf32, #tpu.memory_space<vmem>>, %arg34: memref<1x64xf32, #tpu.memory_space<vmem>>) attributes {dimension_semantics = [#tpu.dimension_semantics<parallel>, #tpu.dimension_semantics<arbitrary>], iteration_bounds = array<i64: 2, 2>, scalar_prefetch = 0 : i64, scratch_operands = 2 : i64, tpu.core_type = #tpu.core_type<tc>, window_params = [{transform_indices = @transform_0, window_bounds = array<i64: 1, 9, 32>}, {transform_indices = @transform_1, window_bounds = array<i64: 1, 2, 64>}, {transform_indices = @transform_2, window_bounds = array<i64: 1, 32, 64>}, {transform_indices = @transform_3, window_bounds = array<i64: 1, 1, 64>}, {transform_indices = @transform_4, window_bounds = array<i64: 1, 1, 64>}, {transform_indices = @transform_5, window_bounds = array<i64: 1, 1, 64>}, {transform_indices = @transform_6, window_bounds = array<i64: 1, 64, 16>}, {transform_indices = @transform_7, window_bounds = array<i64: 1, 64, 32>}, {transform_indices = @transform_8, window_bounds = array<i64: 1, 2, 8, 64>}, {transform_indices = @transform_9, window_bounds = array<i64: 1, 1, 64>}, {transform_indices = @transform_10, window_bounds = array<i64: 1, 64, 32>}, {transform_indices = @transform_11, window_bounds = array<i64: 1, 1, 32>}, {transform_indices = @transform_12, window_bounds = array<i64: 1, 64, 32>}, {transform_indices = @transform_13, window_bounds = array<i64: 1, 1, 32>}, {transform_indices = @transform_14, window_bounds = array<i64: 1, 1, 32>}, {transform_indices = @transform_15, window_bounds = array<i64: 1, 1, 32>}, {transform_indices = @transform_16, window_bounds = array<i64: 1, 32, 16>}, {transform_indices = @transform_17, window_bounds = array<i64: 1, 32, 32>}, {transform_indices = @transform_18, window_bounds = array<i64: 1, 2, 8, 32>}, {transform_indices = @transform_19, window_bounds = array<i64: 1, 1, 32>}, {transform_indices = @transform_20, window_bounds = array<i64: 1, 32, 64>}, {transform_indices = @transform_21, window_bounds = array<i64: 1, 1, 64>}, {pipeline_mode = #tpu.pipeline_mode<synchronous>, transform_indices = @transform_22, window_bounds = array<i64: 1, 32>}, {pipeline_mode = #tpu.pipeline_mode<synchronous>, transform_indices = @transform_23, window_bounds = array<i64: 1, 32>}, {pipeline_mode = #tpu.pipeline_mode<synchronous>, transform_indices = @transform_24, window_bounds = array<i64: 32, 16>}, {pipeline_mode = #tpu.pipeline_mode<synchronous>, transform_indices = @transform_25, window_bounds = array<i64: 1, 16>}, {pipeline_mode = #tpu.pipeline_mode<synchronous>, transform_indices = @transform_26, window_bounds = array<i64: 1, 64>}, {pipeline_mode = #tpu.pipeline_mode<synchronous>, transform_indices = @transform_27, window_bounds = array<i64: 1, 64>}, {pipeline_mode = #tpu.pipeline_mode<synchronous>, transform_indices = @transform_28, window_bounds = array<i64: 64, 16>}, {pipeline_mode = #tpu.pipeline_mode<synchronous>, transform_indices = @transform_29, window_bounds = array<i64: 1, 16>}, {transform_indices = @transform_30, window_bounds = array<i64: 1, 1, 16>}]} {
    %c0_i32 = arith.constant 0 : i32
    %0 = arith.cmpi eq, %arg1, %c0_i32 : i32
    %1 = arith.extui %0 : i1 to i32
    %c0_i32_0 = arith.constant 0 : i32
    %2 = arith.cmpi ne, %1, %c0_i32_0 : i32
    scf.if %2 {
      %c0_125 = arith.constant 0 : index
      %c0_126 = arith.constant 0 : index
      %c0_127 = arith.constant 0 : index
      %229 = vector.load %arg2[%c0_125, %c0_126, %c0_127] : memref<1x9x32xf32, #tpu.memory_space<vmem>>, vector<1x1x32xf32>
      %230 = vector.shape_cast %229 : vector<1x1x32xf32> to vector<1x32xf32>
      %c0_128 = arith.constant 0 : index
      %c0_129 = arith.constant 0 : index
      %231 = vector.load %arg33[%c0_128, %c0_129] : memref<1x32xf32, #tpu.memory_space<vmem>>, vector<1x32xf32>
      tpu.vector_store %arg33[%c0_128, %c0_129], %230 {strides = array<i32>} : memref<1x32xf32, #tpu.memory_space<vmem>>, vector<1x32xf32>,
      %c0_130 = arith.constant 0 : index
      %c0_131 = arith.constant 0 : index
      %c0_132 = arith.constant 0 : index
      %232 = vector.load %arg3[%c0_130, %c0_131, %c0_132] : memref<1x2x64xf32, #tpu.memory_space<vmem>>, vector<1x1x64xf32>
      %233 = vector.shape_cast %232 : vector<1x1x64xf32> to vector<1x64xf32>
      %c0_133 = arith.constant 0 : index
      %c0_134 = arith.constant 0 : index
      %234 = vector.load %arg34[%c0_133, %c0_134] : memref<1x64xf32, #tpu.memory_space<vmem>>, vector<1x64xf32>
      tpu.vector_store %arg34[%c0_133, %c0_134], %233 {strides = array<i32>} : memref<1x64xf32, #tpu.memory_space<vmem>>, vector<1x64xf32>,
    } else {
    }
    %c0 = arith.constant 0 : index
    %c1 = arith.constant 1 : index
    %c0_1 = arith.constant 0 : index
    %3 = vector.load %arg2[%c0, %c1, %c0_1] : memref<1x9x32xf32, #tpu.memory_space<vmem>>, vector<1x8x32xf32>
    %4 = vector.shape_cast %3 : vector<1x8x32xf32> to vector<8x32xf32>
    %c0_2 = arith.constant 0 : index
    %c1_3 = arith.constant 1 : index
    %c0_4 = arith.constant 0 : index
    %5 = vector.load %arg3[%c0_2, %c1_3, %c0_4] : memref<1x2x64xf32, #tpu.memory_space<vmem>>, vector<1x1x64xf32>
    %6 = vector.shape_cast %5 : vector<1x1x64xf32> to vector<1x64xf32>
    %c0_5 = arith.constant 0 : index
    %c0_6 = arith.constant 0 : index
    %7 = vector.load %arg33[%c0_5, %c0_6] : memref<1x32xf32, #tpu.memory_space<vmem>>, vector<1x32xf32>
    %c0_7 = arith.constant 0 : index
    %c0_8 = arith.constant 0 : index
    %c0_9 = arith.constant 0 : index
    %8 = vector.load %arg4[%c0_7, %c0_8, %c0_9] : memref<1x32x64xf32, #tpu.memory_space<vmem>>, vector<1x32x64xf32>
    %9 = vector.shape_cast %8 : vector<1x32x64xf32> to vector<32x64xf32>
    %cst = arith.constant dense<0.000000e+00> : vector<1x64xf32>
    %10 = tpu.matmul %7, %9, %cst {dimension_numbers = #tpu.dot_dimension_numbers<[1], [0], [0], [1], [0, 0, 1, 1], [], []>} : vector<1x32xf32>, vector<32x64xf32>, vector<1x64xf32> -> vector<1x64xf32>
    %c0_10 = arith.constant 0 : index
    %c0_11 = arith.constant 0 : index
    %c0_12 = arith.constant 0 : index
    %11 = vector.load %arg5[%c0_10, %c0_11, %c0_12] : memref<1x1x64xf32, #tpu.memory_space<vmem>>, vector<1x1x64xf32>
    %12 = vector.shape_cast %11 : vector<1x1x64xf32> to vector<1x64xf32>
    %13 = arith.addf %10, %12 : vector<1x64xf32>
    %c0_13 = arith.constant 0 : index
    %c0_14 = arith.constant 0 : index
    %c0_15 = arith.constant 0 : index
    %14 = vector.load %arg6[%c0_13, %c0_14, %c0_15] : memref<1x1x64xf32, #tpu.memory_space<vmem>>, vector<1x1x64xf32>
    %15 = vector.shape_cast %14 : vector<1x1x64xf32> to vector<1x64xf32>
    %c0_16 = arith.constant 0 : index
    %c0_17 = arith.constant 0 : index
    %c0_18 = arith.constant 0 : index
    %16 = vector.load %arg7[%c0_16, %c0_17, %c0_18] : memref<1x1x64xf32, #tpu.memory_space<vmem>>, vector<1x1x64xf32>
    %17 = vector.shape_cast %16 : vector<1x1x64xf32> to vector<1x64xf32>
    %cst_19 = arith.constant dense<0.000000e+00> : vector<1xf32>
    %18 = vector.multi_reduction <add>, %13, %cst_19 [1] : vector<1x64xf32> to vector<1xf32>
    %19 = vector.shape_cast %18 : vector<1xf32> to vector<1x1xf32>
    %cst_20 = arith.constant 6.400000e+01 : f32
    %20 = vector.broadcast %cst_20 : f32 to vector<1x1xf32>
    %21 = arith.divf %19, %20 : vector<1x1xf32>
    %22 = vector.broadcast %21 : vector<1x1xf32> to vector<1x64xf32>
    %23 = arith.subf %13, %22 : vector<1x64xf32>
    %24 = arith.mulf %23, %23 : vector<1x64xf32>
    %cst_21 = arith.constant dense<0.000000e+00> : vector<1xf32>
    %25 = vector.multi_reduction <add>, %24, %cst_21 [1] : vector<1x64xf32> to vector<1xf32>
    %26 = vector.shape_cast %25 : vector<1xf32> to vector<1x1xf32>
    %cst_22 = arith.constant 6.400000e+01 : f32
    %27 = vector.broadcast %cst_22 : f32 to vector<1x1xf32>
    %28 = arith.divf %26, %27 : vector<1x1xf32>
    %29 = vector.broadcast %21 : vector<1x1xf32> to vector<1x64xf32>
    %30 = arith.subf %13, %29 : vector<1x64xf32>
    %cst_23 = arith.constant 9.99999974E-6 : f32
    %31 = vector.broadcast %cst_23 : f32 to vector<1x1xf32>
    %32 = arith.addf %28, %31 : vector<1x1xf32>
    %33 = math.rsqrt %32 : vector<1x1xf32>
    %34 = vector.broadcast %33 : vector<1x1xf32> to vector<1x64xf32>
    %35 = arith.mulf %30, %34 : vector<1x64xf32>
    %36 = arith.mulf %35, %15 : vector<1x64xf32>
    %37 = arith.addf %36, %17 : vector<1x64xf32>
    %c0_24 = arith.constant 0 : index
    %c0_25 = arith.constant 0 : index
    %c0_26 = arith.constant 0 : index
    %38 = vector.load %arg8[%c0_24, %c0_25, %c0_26] : memref<1x64x16xf32, #tpu.memory_space<vmem>>, vector<1x64x16xf32>
    %39 = vector.shape_cast %38 : vector<1x64x16xf32> to vector<64x16xf32>
    %cst_27 = arith.constant dense<0.000000e+00> : vector<1x16xf32>
    %40 = tpu.matmul %37, %39, %cst_27 {dimension_numbers = #tpu.dot_dimension_numbers<[1], [0], [0], [1], [0, 0, 1, 1], [], []>} : vector<1x64xf32>, vector<64x16xf32>, vector<1x16xf32> -> vector<1x16xf32>
    %c0_28 = arith.constant 0 : index
    %c0_29 = arith.constant 0 : index
    %c0_30 = arith.constant 0 : index
    %41 = vector.load %arg9[%c0_28, %c0_29, %c0_30] : memref<1x64x32xf32, #tpu.memory_space<vmem>>, vector<1x64x32xf32>
    %42 = vector.shape_cast %41 : vector<1x64x32xf32> to vector<64x32xf32>
    %cst_31 = arith.constant dense<0.000000e+00> : vector<1x32xf32>
    %43 = tpu.matmul %37, %42, %cst_31 {dimension_numbers = #tpu.dot_dimension_numbers<[1], [0], [0], [1], [0, 0, 1, 1], [], []>} : vector<1x64xf32>, vector<64x32xf32>, vector<1x32xf32> -> vector<1x32xf32>
    %c0_32 = arith.constant 0 : index
    %c0_33 = arith.constant 0 : index
    %c0_34 = arith.constant 0 : index
    %44 = vector.load %arg9[%c0_32, %c0_33, %c0_34] : memref<1x64x32xf32, #tpu.memory_space<vmem>>, vector<1x64x32xf32>
    %45 = vector.shape_cast %44 : vector<1x64x32xf32> to vector<64x32xf32>
    %cst_35 = arith.constant dense<0.000000e+00> : vector<1x32xf32>
    %46 = tpu.matmul %6, %45, %cst_35 {dimension_numbers = #tpu.dot_dimension_numbers<[1], [0], [0], [1], [0, 0, 1, 1], [], []>} : vector<1x64xf32>, vector<64x32xf32>, vector<1x32xf32> -> vector<1x32xf32>
    %47 = vector.extract_strided_slice %43 {offsets = [0, 0], sizes = [1, 16], strides = [1, 1]} : vector<1x32xf32> to vector<1x16xf32>
    %48 = vector.extract_strided_slice %43 {offsets = [0, 16], sizes = [1, 16], strides = [1, 1]} : vector<1x32xf32> to vector<1x16xf32>
    %49 = vector.extract_strided_slice %46 {offsets = [0, 0], sizes = [1, 16], strides = [1, 1]} : vector<1x32xf32> to vector<1x16xf32>
    %50 = vector.extract_strided_slice %46 {offsets = [0, 16], sizes = [1, 16], strides = [1, 1]} : vector<1x32xf32> to vector<1x16xf32>
    %c0_36 = arith.constant 0 : index
    %c0_37 = arith.constant 0 : index
    %c0_38 = arith.constant 0 : index
    %c0_39 = arith.constant 0 : index
    %51 = vector.load %arg10[%c0_36, %c0_37, %c0_38, %c0_39] : memref<1x2x8x64xf32, #tpu.memory_space<vmem>>, vector<1x2x8x64xf32>
    %52 = vector.shape_cast %51 : vector<1x2x8x64xf32> to vector<2x8x64xf32>
    %53 = vector.extract_strided_slice %40 {offsets = [0, 0], sizes = [1, 8], strides = [1, 1]} : vector<1x16xf32> to vector<1x8xf32>
    %54 = vector.extract_strided_slice %40 {offsets = [0, 8], sizes = [1, 8], strides = [1, 1]} : vector<1x16xf32> to vector<1x8xf32>
    %55 = vector.shape_cast %53 : vector<1x8xf32> to vector<1x1x8xf32>
    %56 = vector.shape_cast %54 : vector<1x8xf32> to vector<1x1x8xf32>
    %57 = tpu.concatenate %55, %56 in 0 : vector<1x1x8xf32>, vector<1x1x8xf32> -> vector<2x1x8xf32>
    %58 = vector.extract_strided_slice %47 {offsets = [0, 0], sizes = [1, 8], strides = [1, 1]} : vector<1x16xf32> to vector<1x8xf32>
    %59 = vector.extract_strided_slice %47 {offsets = [0, 8], sizes = [1, 8], strides = [1, 1]} : vector<1x16xf32> to vector<1x8xf32>
    %60 = vector.shape_cast %58 : vector<1x8xf32> to vector<1x1x8xf32>
    %61 = vector.shape_cast %59 : vector<1x8xf32> to vector<1x1x8xf32>
    %62 = tpu.concatenate %60, %61 in 0 : vector<1x1x8xf32>, vector<1x1x8xf32> -> vector<2x1x8xf32>
    "tpu.trace_start"() <{level = 10 : i32, message = "hqd,hkd->hqk"}> : () -> ()
    %cst_40 = arith.constant dense<0.000000e+00> : vector<2x1x1xf32>
    %63 = tpu.matmul %57, %62, %cst_40 {dimension_numbers = #tpu.dot_dimension_numbers<[2], [2], [1], [1], [0, 0, 0, 1, 1, 1], [0], [0]>} : vector<2x1x8xf32>, vector<2x1x8xf32>, vector<2x1x1xf32> -> vector<2x1x1xf32>
    "tpu.trace_stop"() : () -> ()
    %cst_41 = arith.constant 0.353553385 : f32
    %64 = vector.broadcast %cst_41 : f32 to vector<2x1x1xf32>
    %65 = arith.mulf %63, %64 : vector<2x1x1xf32>
    %66 = vector.extract_strided_slice %49 {offsets = [0, 0], sizes = [1, 8], strides = [1, 1]} : vector<1x16xf32> to vector<1x8xf32>
    %67 = vector.extract_strided_slice %49 {offsets = [0, 8], sizes = [1, 8], strides = [1, 1]} : vector<1x16xf32> to vector<1x8xf32>
    %68 = vector.shape_cast %66 : vector<1x8xf32> to vector<1x1x8xf32>
    %69 = vector.shape_cast %67 : vector<1x8xf32> to vector<1x1x8xf32>
    %70 = tpu.concatenate %68, %69 in 0 : vector<1x1x8xf32>, vector<1x1x8xf32> -> vector<2x1x8xf32>
    "tpu.trace_start"() <{level = 10 : i32, message = "hqd,hkd->hqk"}> : () -> ()
    %cst_42 = arith.constant dense<0.000000e+00> : vector<2x1x1xf32>
    %71 = tpu.matmul %57, %70, %cst_42 {dimension_numbers = #tpu.dot_dimension_numbers<[2], [2], [1], [1], [0, 0, 0, 1, 1, 1], [0], [0]>} : vector<2x1x8xf32>, vector<2x1x8xf32>, vector<2x1x1xf32> -> vector<2x1x1xf32>
    "tpu.trace_stop"() : () -> ()
    %cst_43 = arith.constant 0.353553385 : f32
    %72 = vector.broadcast %cst_43 : f32 to vector<2x1x1xf32>
    %73 = arith.mulf %71, %72 : vector<2x1x1xf32>
    %cst_44 = arith.constant dense<0xFF800000> : vector<2x1xf32>
    %74 = vector.multi_reduction <maximumf>, %65, %cst_44 [2] : vector<2x1x1xf32> to vector<2x1xf32>
    %75 = vector.shape_cast %74 : vector<2x1xf32> to vector<2x1x1xf32>
    %cst_45 = arith.constant dense<0xFF800000> : vector<2x1xf32>
    %76 = vector.multi_reduction <maximumf>, %73, %cst_45 [2] : vector<2x1x1xf32> to vector<2x1xf32>
    %77 = vector.shape_cast %76 : vector<2x1xf32> to vector<2x1x1xf32>
    %78 = arith.maximumf %75, %77 : vector<2x1x1xf32>
    %79 = arith.subf %65, %78 : vector<2x1x1xf32>
    %80 = math.exp %79 : vector<2x1x1xf32>
    %81 = arith.subf %73, %78 : vector<2x1x1xf32>
    %82 = math.exp %81 : vector<2x1x1xf32>
    %cst_46 = arith.constant dense<0.000000e+00> : vector<2x1xf32>
    %83 = vector.multi_reduction <add>, %80, %cst_46 [2] : vector<2x1x1xf32> to vector<2x1xf32>
    %84 = vector.shape_cast %83 : vector<2x1xf32> to vector<2x1x1xf32>
    %cst_47 = arith.constant dense<0.000000e+00> : vector<2x1xf32>
    %85 = vector.multi_reduction <add>, %82, %cst_47 [2] : vector<2x1x1xf32> to vector<2x1xf32>
    %86 = vector.shape_cast %85 : vector<2x1xf32> to vector<2x1x1xf32>
    %87 = arith.addf %84, %86 : vector<2x1x1xf32>
    %88 = vector.extract_strided_slice %48 {offsets = [0, 0], sizes = [1, 8], strides = [1, 1]} : vector<1x16xf32> to vector<1x8xf32>
    %89 = vector.extract_strided_slice %48 {offsets = [0, 8], sizes = [1, 8], strides = [1, 1]} : vector<1x16xf32> to vector<1x8xf32>
    %90 = vector.shape_cast %88 : vector<1x8xf32> to vector<1x1x8xf32>
    %91 = vector.shape_cast %89 : vector<1x8xf32> to vector<1x1x8xf32>
    %92 = tpu.concatenate %90, %91 in 0 : vector<1x1x8xf32>, vector<1x1x8xf32> -> vector<2x1x8xf32>
    "tpu.trace_start"() <{level = 10 : i32, message = "hqk,hkd->hqd"}> : () -> ()
    %cst_48 = arith.constant dense<0.000000e+00> : vector<2x1x8xf32>
    %93 = tpu.matmul %80, %92, %cst_48 {dimension_numbers = #tpu.dot_dimension_numbers<[2], [1], [1], [2], [0, 0, 0, 1, 1, 2], [0], [0]>} : vector<2x1x1xf32>, vector<2x1x8xf32>, vector<2x1x8xf32> -> vector<2x1x8xf32>
    "tpu.trace_stop"() : () -> ()
    %94 = vector.extract_strided_slice %50 {offsets = [0, 0], sizes = [1, 8], strides = [1, 1]} : vector<1x16xf32> to vector<1x8xf32>
    %95 = vector.extract_strided_slice %50 {offsets = [0, 8], sizes = [1, 8], strides = [1, 1]} : vector<1x16xf32> to vector<1x8xf32>
    %96 = vector.shape_cast %94 : vector<1x8xf32> to vector<1x1x8xf32>
    %97 = vector.shape_cast %95 : vector<1x8xf32> to vector<1x1x8xf32>
    %98 = tpu.concatenate %96, %97 in 0 : vector<1x1x8xf32>, vector<1x1x8xf32> -> vector<2x1x8xf32>
    "tpu.trace_start"() <{level = 10 : i32, message = "hqk,hkd->hqd"}> : () -> ()
    %cst_49 = arith.constant dense<0.000000e+00> : vector<2x1x8xf32>
    %99 = tpu.matmul %82, %98, %cst_49 {dimension_numbers = #tpu.dot_dimension_numbers<[2], [1], [1], [2], [0, 0, 0, 1, 1, 2], [0], [0]>} : vector<2x1x1xf32>, vector<2x1x8xf32>, vector<2x1x8xf32> -> vector<2x1x8xf32>
    "tpu.trace_stop"() : () -> ()
    %100 = arith.addf %93, %99 : vector<2x1x8xf32>
    %101 = vector.broadcast %87 : vector<2x1x1xf32> to vector<2x1x8xf32>
    %102 = arith.divf %100, %101 : vector<2x1x8xf32>
    "tpu.trace_start"() <{level = 10 : i32, message = "hqd,hdo->hqo"}> : () -> ()
    %cst_50 = arith.constant dense<0.000000e+00> : vector<2x1x64xf32>
    %103 = tpu.matmul %102, %52, %cst_50 {dimension_numbers = #tpu.dot_dimension_numbers<[2], [1], [1], [2], [0, 0, 0, 1, 1, 2], [0], [0]>} : vector<2x1x8xf32>, vector<2x8x64xf32>, vector<2x1x64xf32> -> vector<2x1x64xf32>
    "tpu.trace_stop"() : () -> ()
    %cst_51 = arith.constant dense<0.000000e+00> : vector<1x64xf32>
    %104 = vector.multi_reduction <add>, %103, %cst_51 [0] : vector<2x1x64xf32> to vector<1x64xf32>
    %c0_52 = arith.constant 0 : index
    %c0_53 = arith.constant 0 : index
    %c0_54 = arith.constant 0 : index
    %105 = vector.load %arg11[%c0_52, %c0_53, %c0_54] : memref<1x1x64xf32, #tpu.memory_space<vmem>>, vector<1x1x64xf32>
    %106 = vector.shape_cast %105 : vector<1x1x64xf32> to vector<1x64xf32>
    %107 = arith.addf %104, %106 : vector<1x64xf32>
    %c0_55 = arith.constant 0 : index
    %c0_56 = arith.constant 0 : index
    %c0_57 = arith.constant 0 : index
    %108 = vector.load %arg12[%c0_55, %c0_56, %c0_57] : memref<1x64x32xf32, #tpu.memory_space<vmem>>, vector<1x64x32xf32>
    %109 = vector.shape_cast %108 : vector<1x64x32xf32> to vector<64x32xf32>
    %cst_58 = arith.constant dense<0.000000e+00> : vector<1x32xf32>
    %110 = tpu.matmul %107, %109, %cst_58 {dimension_numbers = #tpu.dot_dimension_numbers<[1], [0], [0], [1], [0, 0, 1, 1], [], []>} : vector<1x64xf32>, vector<64x32xf32>, vector<1x32xf32> -> vector<1x32xf32>
    %c0_59 = arith.constant 0 : index
    %c0_60 = arith.constant 0 : index
    %c0_61 = arith.constant 0 : index
    %111 = vector.load %arg13[%c0_59, %c0_60, %c0_61] : memref<1x1x32xf32, #tpu.memory_space<vmem>>, vector<1x1x32xf32>
    %112 = vector.shape_cast %111 : vector<1x1x32xf32> to vector<1x32xf32>
    %113 = arith.addf %110, %112 : vector<1x32xf32>
    %114 = arith.addf %113, %7 : vector<1x32xf32>
    %c0_62 = arith.constant 0 : index
    %c0_63 = arith.constant 0 : index
    %115 = vector.load %arg33[%c0_62, %c0_63] : memref<1x32xf32, #tpu.memory_space<vmem>>, vector<1x32xf32>
    tpu.vector_store %arg33[%c0_62, %c0_63], %114 {strides = array<i32>} : memref<1x32xf32, #tpu.memory_space<vmem>>, vector<1x32xf32>,
    %c0_64 = arith.constant 0 : index
    %c0_65 = arith.constant 0 : index
    %116 = vector.load %arg34[%c0_64, %c0_65] : memref<1x64xf32, #tpu.memory_space<vmem>>, vector<1x64xf32>
    %c0_66 = arith.constant 0 : index
    %c0_67 = arith.constant 0 : index
    %c0_68 = arith.constant 0 : index
    %117 = vector.load %arg14[%c0_66, %c0_67, %c0_68] : memref<1x64x32xf32, #tpu.memory_space<vmem>>, vector<1x64x32xf32>
    %118 = vector.shape_cast %117 : vector<1x64x32xf32> to vector<64x32xf32>
    %cst_69 = arith.constant dense<0.000000e+00> : vector<1x32xf32>
    %119 = tpu.matmul %116, %118, %cst_69 {dimension_numbers = #tpu.dot_dimension_numbers<[1], [0], [0], [1], [0, 0, 1, 1], [], []>} : vector<1x64xf32>, vector<64x32xf32>, vector<1x32xf32> -> vector<1x32xf32>
    %c0_70 = arith.constant 0 : index
    %c0_71 = arith.constant 0 : index
    %c0_72 = arith.constant 0 : index
    %120 = vector.load %arg15[%c0_70, %c0_71, %c0_72] : memref<1x1x32xf32, #tpu.memory_space<vmem>>, vector<1x1x32xf32>
    %121 = vector.shape_cast %120 : vector<1x1x32xf32> to vector<1x32xf32>
    %122 = arith.addf %119, %121 : vector<1x32xf32>
    %c0_73 = arith.constant 0 : index
    %c0_74 = arith.constant 0 : index
    %c0_75 = arith.constant 0 : index
    %123 = vector.load %arg16[%c0_73, %c0_74, %c0_75] : memref<1x1x32xf32, #tpu.memory_space<vmem>>, vector<1x1x32xf32>
    %124 = vector.shape_cast %123 : vector<1x1x32xf32> to vector<1x32xf32>
    %c0_76 = arith.constant 0 : index
    %c0_77 = arith.constant 0 : index
    %c0_78 = arith.constant 0 : index
    %125 = vector.load %arg17[%c0_76, %c0_77, %c0_78] : memref<1x1x32xf32, #tpu.memory_space<vmem>>, vector<1x1x32xf32>
    %126 = vector.shape_cast %125 : vector<1x1x32xf32> to vector<1x32xf32>
    %cst_79 = arith.constant dense<0.000000e+00> : vector<1xf32>
    %127 = vector.multi_reduction <add>, %122, %cst_79 [1] : vector<1x32xf32> to vector<1xf32>
    %128 = vector.shape_cast %127 : vector<1xf32> to vector<1x1xf32>
    %cst_80 = arith.constant 3.200000e+01 : f32
    %129 = vector.broadcast %cst_80 : f32 to vector<1x1xf32>
    %130 = arith.divf %128, %129 : vector<1x1xf32>
    %131 = vector.broadcast %130 : vector<1x1xf32> to vector<1x32xf32>
    %132 = arith.subf %122, %131 : vector<1x32xf32>
    %133 = arith.mulf %132, %132 : vector<1x32xf32>
    %cst_81 = arith.constant dense<0.000000e+00> : vector<1xf32>
    %134 = vector.multi_reduction <add>, %133, %cst_81 [1] : vector<1x32xf32> to vector<1xf32>
    %135 = vector.shape_cast %134 : vector<1xf32> to vector<1x1xf32>
    %cst_82 = arith.constant 3.200000e+01 : f32
    %136 = vector.broadcast %cst_82 : f32 to vector<1x1xf32>
    %137 = arith.divf %135, %136 : vector<1x1xf32>
    %138 = vector.broadcast %130 : vector<1x1xf32> to vector<1x32xf32>
    %139 = arith.subf %122, %138 : vector<1x32xf32>
    %cst_83 = arith.constant 9.99999974E-6 : f32
    %140 = vector.broadcast %cst_83 : f32 to vector<1x1xf32>
    %141 = arith.addf %137, %140 : vector<1x1xf32>
    %142 = math.rsqrt %141 : vector<1x1xf32>
    %143 = vector.broadcast %142 : vector<1x1xf32> to vector<1x32xf32>
    %144 = arith.mulf %139, %143 : vector<1x32xf32>
    %145 = arith.mulf %144, %124 : vector<1x32xf32>
    %146 = arith.addf %145, %126 : vector<1x32xf32>
    %c0_84 = arith.constant 0 : index
    %c0_85 = arith.constant 0 : index
    %c0_86 = arith.constant 0 : index
    %147 = vector.load %arg18[%c0_84, %c0_85, %c0_86] : memref<1x32x16xf32, #tpu.memory_space<vmem>>, vector<1x32x16xf32>
    %148 = vector.shape_cast %147 : vector<1x32x16xf32> to vector<32x16xf32>
    %cst_87 = arith.constant dense<0.000000e+00> : vector<1x16xf32>
    %149 = tpu.matmul %146, %148, %cst_87 {dimension_numbers = #tpu.dot_dimension_numbers<[1], [0], [0], [1], [0, 0, 1, 1], [], []>} : vector<1x32xf32>, vector<32x16xf32>, vector<1x16xf32> -> vector<1x16xf32>
    %c0_88 = arith.constant 0 : index
    %c0_89 = arith.constant 0 : index
    %c0_90 = arith.constant 0 : index
    %150 = vector.load %arg19[%c0_88, %c0_89, %c0_90] : memref<1x32x32xf32, #tpu.memory_space<vmem>>, vector<1x32x32xf32>
    %151 = vector.shape_cast %150 : vector<1x32x32xf32> to vector<32x32xf32>
    %cst_91 = arith.constant dense<0.000000e+00> : vector<1x32xf32>
    %152 = tpu.matmul %146, %151, %cst_91 {dimension_numbers = #tpu.dot_dimension_numbers<[1], [0], [0], [1], [0, 0, 1, 1], [], []>} : vector<1x32xf32>, vector<32x32xf32>, vector<1x32xf32> -> vector<1x32xf32>
    %c0_92 = arith.constant 0 : index
    %c0_93 = arith.constant 0 : index
    %c0_94 = arith.constant 0 : index
    %153 = vector.load %arg19[%c0_92, %c0_93, %c0_94] : memref<1x32x32xf32, #tpu.memory_space<vmem>>, vector<1x32x32xf32>
    %154 = vector.shape_cast %153 : vector<1x32x32xf32> to vector<32x32xf32>
    %cst_95 = arith.constant dense<0.000000e+00> : vector<8x32xf32>
    %155 = tpu.matmul %4, %154, %cst_95 {dimension_numbers = #tpu.dot_dimension_numbers<[1], [0], [0], [1], [0, 0, 1, 1], [], []>} : vector<8x32xf32>, vector<32x32xf32>, vector<8x32xf32> -> vector<8x32xf32>
    %156 = vector.extract_strided_slice %152 {offsets = [0, 0], sizes = [1, 16], strides = [1, 1]} : vector<1x32xf32> to vector<1x16xf32>
    %157 = vector.extract_strided_slice %152 {offsets = [0, 16], sizes = [1, 16], strides = [1, 1]} : vector<1x32xf32> to vector<1x16xf32>
    %158 = vector.extract_strided_slice %155 {offsets = [0, 0], sizes = [8, 16], strides = [1, 1]} : vector<8x32xf32> to vector<8x16xf32>
    %159 = vector.extract_strided_slice %155 {offsets = [0, 16], sizes = [8, 16], strides = [1, 1]} : vector<8x32xf32> to vector<8x16xf32>
    %c0_96 = arith.constant 0 : index
    %c0_97 = arith.constant 0 : index
    %c0_98 = arith.constant 0 : index
    %c0_99 = arith.constant 0 : index
    %160 = vector.load %arg20[%c0_96, %c0_97, %c0_98, %c0_99] : memref<1x2x8x32xf32, #tpu.memory_space<vmem>>, vector<1x2x8x32xf32>
    %161 = vector.shape_cast %160 : vector<1x2x8x32xf32> to vector<2x8x32xf32>
    %162 = vector.extract_strided_slice %149 {offsets = [0, 0], sizes = [1, 8], strides = [1, 1]} : vector<1x16xf32> to vector<1x8xf32>
    %163 = vector.extract_strided_slice %149 {offsets = [0, 8], sizes = [1, 8], strides = [1, 1]} : vector<1x16xf32> to vector<1x8xf32>
    %164 = vector.shape_cast %162 : vector<1x8xf32> to vector<1x1x8xf32>
    %165 = vector.shape_cast %163 : vector<1x8xf32> to vector<1x1x8xf32>
    %166 = tpu.concatenate %164, %165 in 0 : vector<1x1x8xf32>, vector<1x1x8xf32> -> vector<2x1x8xf32>
    %167 = vector.extract_strided_slice %156 {offsets = [0, 0], sizes = [1, 8], strides = [1, 1]} : vector<1x16xf32> to vector<1x8xf32>
    %168 = vector.extract_strided_slice %156 {offsets = [0, 8], sizes = [1, 8], strides = [1, 1]} : vector<1x16xf32> to vector<1x8xf32>
    %169 = vector.shape_cast %167 : vector<1x8xf32> to vector<1x1x8xf32>
    %170 = vector.shape_cast %168 : vector<1x8xf32> to vector<1x1x8xf32>
    %171 = tpu.concatenate %169, %170 in 0 : vector<1x1x8xf32>, vector<1x1x8xf32> -> vector<2x1x8xf32>
    "tpu.trace_start"() <{level = 10 : i32, message = "hqd,hkd->hqk"}> : () -> ()
    %cst_100 = arith.constant dense<0.000000e+00> : vector<2x1x1xf32>
    %172 = tpu.matmul %166, %171, %cst_100 {dimension_numbers = #tpu.dot_dimension_numbers<[2], [2], [1], [1], [0, 0, 0, 1, 1, 1], [0], [0]>} : vector<2x1x8xf32>, vector<2x1x8xf32>, vector<2x1x1xf32> -> vector<2x1x1xf32>
    "tpu.trace_stop"() : () -> ()
    %cst_101 = arith.constant 0.353553385 : f32
    %173 = vector.broadcast %cst_101 : f32 to vector<2x1x1xf32>
    %174 = arith.mulf %172, %173 : vector<2x1x1xf32>
    %175 = vector.extract_strided_slice %158 {offsets = [0, 0], sizes = [8, 8], strides = [1, 1]} : vector<8x16xf32> to vector<8x8xf32>
    %176 = vector.extract_strided_slice %158 {offsets = [0, 8], sizes = [8, 8], strides = [1, 1]} : vector<8x16xf32> to vector<8x8xf32>
    %177 = vector.shape_cast %175 : vector<8x8xf32> to vector<1x8x8xf32>
    %178 = vector.shape_cast %176 : vector<8x8xf32> to vector<1x8x8xf32>
    %179 = tpu.concatenate %177, %178 in 0 : vector<1x8x8xf32>, vector<1x8x8xf32> -> vector<2x8x8xf32>
    "tpu.trace_start"() <{level = 10 : i32, message = "hqd,hkd->hqk"}> : () -> ()
    %cst_102 = arith.constant dense<0.000000e+00> : vector<2x1x8xf32>
    %180 = tpu.matmul %166, %179, %cst_102 {dimension_numbers = #tpu.dot_dimension_numbers<[2], [2], [1], [1], [0, 0, 0, 1, 1, 1], [0], [0]>} : vector<2x1x8xf32>, vector<2x8x8xf32>, vector<2x1x8xf32> -> vector<2x1x8xf32>
    "tpu.trace_stop"() : () -> ()
    %cst_103 = arith.constant 0.353553385 : f32
    %181 = vector.broadcast %cst_103 : f32 to vector<2x1x8xf32>
    %182 = arith.mulf %180, %181 : vector<2x1x8xf32>
    %cst_104 = arith.constant dense<0xFF800000> : vector<2x1xf32>
    %183 = vector.multi_reduction <maximumf>, %174, %cst_104 [2] : vector<2x1x1xf32> to vector<2x1xf32>
    %184 = vector.shape_cast %183 : vector<2x1xf32> to vector<2x1x1xf32>
    %cst_105 = arith.constant dense<0xFF800000> : vector<2x1xf32>
    %185 = vector.multi_reduction <maximumf>, %182, %cst_105 [2] : vector<2x1x8xf32> to vector<2x1xf32>
    %186 = vector.shape_cast %185 : vector<2x1xf32> to vector<2x1x1xf32>
    %187 = arith.maximumf %184, %186 : vector<2x1x1xf32>
    %188 = arith.subf %174, %187 : vector<2x1x1xf32>
    %189 = math.exp %188 : vector<2x1x1xf32>
    %190 = vector.broadcast %187 : vector<2x1x1xf32> to vector<2x1x8xf32>
    %191 = arith.subf %182, %190 : vector<2x1x8xf32>
    %192 = math.exp %191 : vector<2x1x8xf32>
    %cst_106 = arith.constant dense<0.000000e+00> : vector<2x1xf32>
    %193 = vector.multi_reduction <add>, %189, %cst_106 [2] : vector<2x1x1xf32> to vector<2x1xf32>
    %194 = vector.shape_cast %193 : vector<2x1xf32> to vector<2x1x1xf32>
    %cst_107 = arith.constant dense<0.000000e+00> : vector<2x1xf32>
    %195 = vector.multi_reduction <add>, %192, %cst_107 [2] : vector<2x1x8xf32> to vector<2x1xf32>
    %196 = vector.shape_cast %195 : vector<2x1xf32> to vector<2x1x1xf32>
    %197 = arith.addf %194, %196 : vector<2x1x1xf32>
    %198 = vector.extract_strided_slice %157 {offsets = [0, 0], sizes = [1, 8], strides = [1, 1]} : vector<1x16xf32> to vector<1x8xf32>
    %199 = vector.extract_strided_slice %157 {offsets = [0, 8], sizes = [1, 8], strides = [1, 1]} : vector<1x16xf32> to vector<1x8xf32>
    %200 = vector.shape_cast %198 : vector<1x8xf32> to vector<1x1x8xf32>
    %201 = vector.shape_cast %199 : vector<1x8xf32> to vector<1x1x8xf32>
    %202 = tpu.concatenate %200, %201 in 0 : vector<1x1x8xf32>, vector<1x1x8xf32> -> vector<2x1x8xf32>
    "tpu.trace_start"() <{level = 10 : i32, message = "hqk,hkd->hqd"}> : () -> ()
    %cst_108 = arith.constant dense<0.000000e+00> : vector<2x1x8xf32>
    %203 = tpu.matmul %189, %202, %cst_108 {dimension_numbers = #tpu.dot_dimension_numbers<[2], [1], [1], [2], [0, 0, 0, 1, 1, 2], [0], [0]>} : vector<2x1x1xf32>, vector<2x1x8xf32>, vector<2x1x8xf32> -> vector<2x1x8xf32>
    "tpu.trace_stop"() : () -> ()
    %204 = vector.extract_strided_slice %159 {offsets = [0, 0], sizes = [8, 8], strides = [1, 1]} : vector<8x16xf32> to vector<8x8xf32>
    %205 = vector.extract_strided_slice %159 {offsets = [0, 8], sizes = [8, 8], strides = [1, 1]} : vector<8x16xf32> to vector<8x8xf32>
    %206 = vector.shape_cast %204 : vector<8x8xf32> to vector<1x8x8xf32>
    %207 = vector.shape_cast %205 : vector<8x8xf32> to vector<1x8x8xf32>
    %208 = tpu.concatenate %206, %207 in 0 : vector<1x8x8xf32>, vector<1x8x8xf32> -> vector<2x8x8xf32>
    "tpu.trace_start"() <{level = 10 : i32, message = "hqk,hkd->hqd"}> : () -> ()
    %cst_109 = arith.constant dense<0.000000e+00> : vector<2x1x8xf32>
    %209 = tpu.matmul %192, %208, %cst_109 {dimension_numbers = #tpu.dot_dimension_numbers<[2], [1], [1], [2], [0, 0, 0, 1, 1, 2], [0], [0]>} : vector<2x1x8xf32>, vector<2x8x8xf32>, vector<2x1x8xf32> -> vector<2x1x8xf32>
    "tpu.trace_stop"() : () -> ()
    %210 = arith.addf %203, %209 : vector<2x1x8xf32>
    %211 = vector.broadcast %197 : vector<2x1x1xf32> to vector<2x1x8xf32>
    %212 = arith.divf %210, %211 : vector<2x1x8xf32>
    "tpu.trace_start"() <{level = 10 : i32, message = "hqd,hdo->hqo"}> : () -> ()
    %cst_110 = arith.constant dense<0.000000e+00> : vector<2x1x32xf32>
    %213 = tpu.matmul %212, %161, %cst_110 {dimension_numbers = #tpu.dot_dimension_numbers<[2], [1], [1], [2], [0, 0, 0, 1, 1, 2], [0], [0]>} : vector<2x1x8xf32>, vector<2x8x32xf32>, vector<2x1x32xf32> -> vector<2x1x32xf32>
    "tpu.trace_stop"() : () -> ()
    %cst_111 = arith.constant dense<0.000000e+00> : vector<1x32xf32>
    %214 = vector.multi_reduction <add>, %213, %cst_111 [0] : vector<2x1x32xf32> to vector<1x32xf32>
    %c0_112 = arith.constant 0 : index
    %c0_113 = arith.constant 0 : index
    %c0_114 = arith.constant 0 : index
    %215 = vector.load %arg21[%c0_112, %c0_113, %c0_114] : memref<1x1x32xf32, #tpu.memory_space<vmem>>, vector<1x1x32xf32>
    %216 = vector.shape_cast %215 : vector<1x1x32xf32> to vector<1x32xf32>
    %217 = arith.addf %214, %216 : vector<1x32xf32>
    %c0_115 = arith.constant 0 : index
    %c0_116 = arith.constant 0 : index
    %c0_117 = arith.constant 0 : index
    %218 = vector.load %arg22[%c0_115, %c0_116, %c0_117] : memref<1x32x64xf32, #tpu.memory_space<vmem>>, vector<1x32x64xf32>
    %219 = vector.shape_cast %218 : vector<1x32x64xf32> to vector<32x64xf32>
    %cst_118 = arith.constant dense<0.000000e+00> : vector<1x64xf32>
    %220 = tpu.matmul %217, %219, %cst_118 {dimension_numbers = #tpu.dot_dimension_numbers<[1], [0], [0], [1], [0, 0, 1, 1], [], []>} : vector<1x32xf32>, vector<32x64xf32>, vector<1x64xf32> -> vector<1x64xf32>
    %c0_119 = arith.constant 0 : index
    %c0_120 = arith.constant 0 : index
    %c0_121 = arith.constant 0 : index
    %221 = vector.load %arg23[%c0_119, %c0_120, %c0_121] : memref<1x1x64xf32, #tpu.memory_space<vmem>>, vector<1x1x64xf32>
    %222 = vector.shape_cast %221 : vector<1x1x64xf32> to vector<1x64xf32>
    %223 = arith.addf %220, %222 : vector<1x64xf32>
    %224 = arith.addf %223, %116 : vector<1x64xf32>
    %c0_122 = arith.constant 0 : index
    %c0_123 = arith.constant 0 : index
    %225 = vector.load %arg34[%c0_122, %c0_123] : memref<1x64xf32, #tpu.memory_space<vmem>>, vector<1x64xf32>
    tpu.vector_store %arg34[%c0_122, %c0_123], %224 {strides = array<i32>} : memref<1x64xf32, #tpu.memory_space<vmem>>, vector<1x64xf32>,
    %c1_i32 = arith.constant 1 : i32
    %226 = arith.cmpi eq, %arg1, %c1_i32 : i32
    %227 = arith.extui %226 : i1 to i32
    %c0_i32_124 = arith.constant 0 : i32
    %228 = arith.cmpi ne, %227, %c0_i32_124 : i32
    scf.if %228 {
      %c0_125 = arith.constant 0 : index
      %c0_126 = arith.constant 0 : index
      %229 = vector.load %arg24[%c0_125, %c0_126] : memref<1x32xf32, #tpu.memory_space<vmem>>, vector<1x32xf32>
      %c0_127 = arith.constant 0 : index
      %c0_128 = arith.constant 0 : index
      %230 = vector.load %arg25[%c0_127, %c0_128] : memref<1x32xf32, #tpu.memory_space<vmem>>, vector<1x32xf32>
      %cst_129 = arith.constant dense<0.000000e+00> : vector<1xf32>
      %231 = vector.multi_reduction <add>, %114, %cst_129 [1] : vector<1x32xf32> to vector<1xf32>
      %232 = vector.shape_cast %231 : vector<1xf32> to vector<1x1xf32>
      %cst_130 = arith.constant 3.200000e+01 : f32
      %233 = vector.broadcast %cst_130 : f32 to vector<1x1xf32>
      %234 = arith.divf %232, %233 : vector<1x1xf32>
      %235 = vector.broadcast %234 : vector<1x1xf32> to vector<1x32xf32>
      %236 = arith.subf %114, %235 : vector<1x32xf32>
      %237 = arith.mulf %236, %236 : vector<1x32xf32>
      %cst_131 = arith.constant dense<0.000000e+00> : vector<1xf32>
      %238 = vector.multi_reduction <add>, %237, %cst_131 [1] : vector<1x32xf32> to vector<1xf32>
      %239 = vector.shape_cast %238 : vector<1xf32> to vector<1x1xf32>
      %cst_132 = arith.constant 3.200000e+01 : f32
      %240 = vector.broadcast %cst_132 : f32 to vector<1x1xf32>
      %241 = arith.divf %239, %240 : vector<1x1xf32>
      %242 = vector.broadcast %234 : vector<1x1xf32> to vector<1x32xf32>
      %243 = arith.subf %114, %242 : vector<1x32xf32>
      %cst_133 = arith.constant 9.99999974E-6 : f32
      %244 = vector.broadcast %cst_133 : f32 to vector<1x1xf32>
      %245 = arith.addf %241, %244 : vector<1x1xf32>
      %246 = math.rsqrt %245 : vector<1x1xf32>
      %247 = vector.broadcast %246 : vector<1x1xf32> to vector<1x32xf32>
      %248 = arith.mulf %243, %247 : vector<1x32xf32>
      %249 = arith.mulf %248, %229 : vector<1x32xf32>
      %250 = arith.addf %249, %230 : vector<1x32xf32>
      %c0_134 = arith.constant 0 : index
      %c0_135 = arith.constant 0 : index
      %251 = vector.load %arg28[%c0_134, %c0_135] : memref<1x64xf32, #tpu.memory_space<vmem>>, vector<1x64xf32>
      %c0_136 = arith.constant 0 : index
      %c0_137 = arith.constant 0 : index
      %252 = vector.load %arg29[%c0_136, %c0_137] : memref<1x64xf32, #tpu.memory_space<vmem>>, vector<1x64xf32>
      %cst_138 = arith.constant dense<0.000000e+00> : vector<1xf32>
      %253 = vector.multi_reduction <add>, %224, %cst_138 [1] : vector<1x64xf32> to vector<1xf32>
      %254 = vector.shape_cast %253 : vector<1xf32> to vector<1x1xf32>
      %cst_139 = arith.constant 6.400000e+01 : f32
      %255 = vector.broadcast %cst_139 : f32 to vector<1x1xf32>
      %256 = arith.divf %254, %255 : vector<1x1xf32>
      %257 = vector.broadcast %256 : vector<1x1xf32> to vector<1x64xf32>
      %258 = arith.subf %224, %257 : vector<1x64xf32>
      %259 = arith.mulf %258, %258 : vector<1x64xf32>
      %cst_140 = arith.constant dense<0.000000e+00> : vector<1xf32>
      %260 = vector.multi_reduction <add>, %259, %cst_140 [1] : vector<1x64xf32> to vector<1xf32>
      %261 = vector.shape_cast %260 : vector<1xf32> to vector<1x1xf32>
      %cst_141 = arith.constant 6.400000e+01 : f32
      %262 = vector.broadcast %cst_141 : f32 to vector<1x1xf32>
      %263 = arith.divf %261, %262 : vector<1x1xf32>
      %264 = vector.broadcast %256 : vector<1x1xf32> to vector<1x64xf32>
      %265 = arith.subf %224, %264 : vector<1x64xf32>
      %cst_142 = arith.constant 9.99999974E-6 : f32
      %266 = vector.broadcast %cst_142 : f32 to vector<1x1xf32>
      %267 = arith.addf %263, %266 : vector<1x1xf32>
      %268 = math.rsqrt %267 : vector<1x1xf32>
      %269 = vector.broadcast %268 : vector<1x1xf32> to vector<1x64xf32>
      %270 = arith.mulf %265, %269 : vector<1x64xf32>
      %271 = arith.mulf %270, %251 : vector<1x64xf32>
      %272 = arith.addf %271, %252 : vector<1x64xf32>
      %c0_143 = arith.constant 0 : index
      %c0_144 = arith.constant 0 : index
      %273 = vector.load %arg26[%c0_143, %c0_144] : memref<32x16xf32, #tpu.memory_space<vmem>>, vector<32x16xf32>
      %cst_145 = arith.constant dense<0.000000e+00> : vector<1x16xf32>
      %274 = tpu.matmul %250, %273, %cst_145 {dimension_numbers = #tpu.dot_dimension_numbers<[1], [0], [0], [1], [0, 0, 1, 1], [], []>} : vector<1x32xf32>, vector<32x16xf32>, vector<1x16xf32> -> vector<1x16xf32>
      %c0_146 = arith.constant 0 : index
      %c0_147 = arith.constant 0 : index
      %275 = vector.load %arg27[%c0_146, %c0_147] : memref<1x16xf32, #tpu.memory_space<vmem>>, vector<1x16xf32>
      %276 = arith.addf %274, %275 : vector<1x16xf32>
      %c0_148 = arith.constant 0 : index
      %c0_149 = arith.constant 0 : index
      %277 = vector.load %arg30[%c0_148, %c0_149] : memref<64x16xf32, #tpu.memory_space<vmem>>, vector<64x16xf32>
      %cst_150 = arith.constant dense<0.000000e+00> : vector<1x16xf32>
      %278 = tpu.matmul %272, %277, %cst_150 {dimension_numbers = #tpu.dot_dimension_numbers<[1], [0], [0], [1], [0, 0, 1, 1], [], []>} : vector<1x64xf32>, vector<64x16xf32>, vector<1x16xf32> -> vector<1x16xf32>
      %279 = arith.addf %276, %278 : vector<1x16xf32>
      %c0_151 = arith.constant 0 : index
      %c0_152 = arith.constant 0 : index
      %280 = vector.load %arg31[%c0_151, %c0_152] : memref<1x16xf32, #tpu.memory_space<vmem>>, vector<1x16xf32>
      %281 = arith.addf %279, %280 : vector<1x16xf32>
      %c0_153 = arith.constant 0 : index
      %c0_154 = arith.constant 0 : index
      %c0_155 = arith.constant 0 : index
      %282 = vector.load %arg32[%c0_153, %c0_154, %c0_155] : memref<1x1x16xf32, #tpu.memory_space<vmem>>, vector<1x1x16xf32>
      %283 = vector.shape_cast %282 : vector<1x1x16xf32> to vector<1x16xf32>
      %284 = vector.shape_cast %281 : vector<1x16xf32> to vector<1x1x16xf32>
      tpu.vector_store %arg32[%c0_153, %c0_154, %c0_155], %284 {strides = array<i32>} : memref<1x1x16xf32, #tpu.memory_space<vmem>>, vector<1x1x16xf32>,
    } else {
    }
    return
  }
  func.func @transform_0(%arg0: i32, %arg1: i32) -> (i32, i32, i32) {
    %c0_i32 = arith.constant 0 : i32
    %c0_i32_0 = arith.constant 0 : i32
    %c0_i32_1 = arith.constant 0 : i32
    return %arg0, %c0_i32, %c0_i32_0 : i32, i32, i32
  }
  func.func @transform_1(%arg0: i32, %arg1: i32) -> (i32, i32, i32) {
    %c0_i32 = arith.constant 0 : i32
    %c0_i32_0 = arith.constant 0 : i32
    %c0_i32_1 = arith.constant 0 : i32
    return %arg0, %c0_i32, %c0_i32_0 : i32, i32, i32
  }
  func.func @transform_2(%arg0: i32, %arg1: i32) -> (i32, i32, i32) {
    %c0_i32 = arith.constant 0 : i32
    %c0_i32_0 = arith.constant 0 : i32
    %c0_i32_1 = arith.constant 0 : i32
    return %arg1, %c0_i32, %c0_i32_0 : i32, i32, i32
  }
  func.func @transform_3(%arg0: i32, %arg1: i32) -> (i32, i32, i32) {
    %c0_i32 = arith.constant 0 : i32
    %c0_i32_0 = arith.constant 0 : i32
    %c0_i32_1 = arith.constant 0 : i32
    return %arg1, %c0_i32, %c0_i32_0 : i32, i32, i32
  }
  func.func @transform_4(%arg0: i32, %arg1: i32) -> (i32, i32, i32) {
    %c0_i32 = arith.constant 0 : i32
    %c0_i32_0 = arith.constant 0 : i32
    %c0_i32_1 = arith.constant 0 : i32
    return %arg1, %c0_i32, %c0_i32_0 : i32, i32, i32
  }
  func.func @transform_5(%arg0: i32, %arg1: i32) -> (i32, i32, i32) {
    %c0_i32 = arith.constant 0 : i32
    %c0_i32_0 = arith.constant 0 : i32
    %c0_i32_1 = arith.constant 0 : i32
    return %arg1, %c0_i32, %c0_i32_0 : i32, i32, i32
  }
  func.func @transform_6(%arg0: i32, %arg1: i32) -> (i32, i32, i32) {
    %c0_i32 = arith.constant 0 : i32
    %c0_i32_0 = arith.constant 0 : i32
    %c0_i32_1 = arith.constant 0 : i32
    return %arg1, %c0_i32, %c0_i32_0 : i32, i32, i32
  }
  func.func @transform_7(%arg0: i32, %arg1: i32) -> (i32, i32, i32) {
    %c0_i32 = arith.constant 0 : i32
    %c0_i32_0 = arith.constant 0 : i32
    %c0_i32_1 = arith.constant 0 : i32
    return %arg1, %c0_i32, %c0_i32_0 : i32, i32, i32
  }
  func.func @transform_8(%arg0: i32, %arg1: i32) -> (i32, i32, i32, i32) {
    %c0_i32 = arith.constant 0 : i32
    %c0_i32_0 = arith.constant 0 : i32
    %c0_i32_1 = arith.constant 0 : i32
    %c0_i32_2 = arith.constant 0 : i32
    return %arg1, %c0_i32, %c0_i32_0, %c0_i32_1 : i32, i32, i32, i32
  }
  func.func @transform_9(%arg0: i32, %arg1: i32) -> (i32, i32, i32) {
    %c0_i32 = arith.constant 0 : i32
    %c0_i32_0 = arith.constant 0 : i32
    %c0_i32_1 = arith.constant 0 : i32
    return %arg1, %c0_i32, %c0_i32_0 : i32, i32, i32
  }
  func.func @transform_10(%arg0: i32, %arg1: i32) -> (i32, i32, i32) {
    %c0_i32 = arith.constant 0 : i32
    %c0_i32_0 = arith.constant 0 : i32
    %c0_i32_1 = arith.constant 0 : i32
    return %arg1, %c0_i32, %c0_i32_0 : i32, i32, i32
  }
  func.func @transform_11(%arg0: i32, %arg1: i32) -> (i32, i32, i32) {
    %c0_i32 = arith.constant 0 : i32
    %c0_i32_0 = arith.constant 0 : i32
    %c0_i32_1 = arith.constant 0 : i32
    return %arg1, %c0_i32, %c0_i32_0 : i32, i32, i32
  }
  func.func @transform_12(%arg0: i32, %arg1: i32) -> (i32, i32, i32) {
    %c0_i32 = arith.constant 0 : i32
    %c0_i32_0 = arith.constant 0 : i32
    %c0_i32_1 = arith.constant 0 : i32
    return %arg1, %c0_i32, %c0_i32_0 : i32, i32, i32
  }
  func.func @transform_13(%arg0: i32, %arg1: i32) -> (i32, i32, i32) {
    %c0_i32 = arith.constant 0 : i32
    %c0_i32_0 = arith.constant 0 : i32
    %c0_i32_1 = arith.constant 0 : i32
    return %arg1, %c0_i32, %c0_i32_0 : i32, i32, i32
  }
  func.func @transform_14(%arg0: i32, %arg1: i32) -> (i32, i32, i32) {
    %c0_i32 = arith.constant 0 : i32
    %c0_i32_0 = arith.constant 0 : i32
    %c0_i32_1 = arith.constant 0 : i32
    return %arg1, %c0_i32, %c0_i32_0 : i32, i32, i32
  }
  func.func @transform_15(%arg0: i32, %arg1: i32) -> (i32, i32, i32) {
    %c0_i32 = arith.constant 0 : i32
    %c0_i32_0 = arith.constant 0 : i32
    %c0_i32_1 = arith.constant 0 : i32
    return %arg1, %c0_i32, %c0_i32_0 : i32, i32, i32
  }
  func.func @transform_16(%arg0: i32, %arg1: i32) -> (i32, i32, i32) {
    %c0_i32 = arith.constant 0 : i32
    %c0_i32_0 = arith.constant 0 : i32
    %c0_i32_1 = arith.constant 0 : i32
    return %arg1, %c0_i32, %c0_i32_0 : i32, i32, i32
  }
  func.func @transform_17(%arg0: i32, %arg1: i32) -> (i32, i32, i32) {
    %c0_i32 = arith.constant 0 : i32
    %c0_i32_0 = arith.constant 0 : i32
    %c0_i32_1 = arith.constant 0 : i32
    return %arg1, %c0_i32, %c0_i32_0 : i32, i32, i32
  }
  func.func @transform_18(%arg0: i32, %arg1: i32) -> (i32, i32, i32, i32) {
    %c0_i32 = arith.constant 0 : i32
    %c0_i32_0 = arith.constant 0 : i32
    %c0_i32_1 = arith.constant 0 : i32
    %c0_i32_2 = arith.constant 0 : i32
    return %arg1, %c0_i32, %c0_i32_0, %c0_i32_1 : i32, i32, i32, i32
  }
  func.func @transform_19(%arg0: i32, %arg1: i32) -> (i32, i32, i32) {
    %c0_i32 = arith.constant 0 : i32
    %c0_i32_0 = arith.constant 0 : i32
    %c0_i32_1 = arith.constant 0 : i32
    return %arg1, %c0_i32, %c0_i32_0 : i32, i32, i32
  }
  func.func @transform_20(%arg0: i32, %arg1: i32) -> (i32, i32, i32) {
    %c0_i32 = arith.constant 0 : i32
    %c0_i32_0 = arith.constant 0 : i32
    %c0_i32_1 = arith.constant 0 : i32
    return %arg1, %c0_i32, %c0_i32_0 : i32, i32, i32
  }
  func.func @transform_21(%arg0: i32, %arg1: i32) -> (i32, i32, i32) {
    %c0_i32 = arith.constant 0 : i32
    %c0_i32_0 = arith.constant 0 : i32
    %c0_i32_1 = arith.constant 0 : i32
    return %arg1, %c0_i32, %c0_i32_0 : i32, i32, i32
  }
  func.func @transform_22(%arg0: i32, %arg1: i32) -> (i32, i32) {
    %c0_i32 = arith.constant 0 : i32
    %c0_i32_0 = arith.constant 0 : i32
    %c0_i32_1 = arith.constant 0 : i32
    return %c0_i32, %c0_i32_0 : i32, i32
  }
  func.func @transform_23(%arg0: i32, %arg1: i32) -> (i32, i32) {
    %c0_i32 = arith.constant 0 : i32
    %c0_i32_0 = arith.constant 0 : i32
    %c0_i32_1 = arith.constant 0 : i32
    return %c0_i32, %c0_i32_0 : i32, i32
  }
  func.func @transform_24(%arg0: i32, %arg1: i32) -> (i32, i32) {
    %c0_i32 = arith.constant 0 : i32
    %c0_i32_0 = arith.constant 0 : i32
    %c0_i32_1 = arith.constant 0 : i32
    return %c0_i32, %c0_i32_0 : i32, i32
  }
  func.func @transform_25(%arg0: i32, %arg1: i32) -> (i32, i32) {
    %c0_i32 = arith.constant 0 : i32
    %c0_i32_0 = arith.constant 0 : i32
    %c0_i32_1 = arith.constant 0 : i32
    return %c0_i32, %c0_i32_0 : i32, i32
  }
  func.func @transform_26(%arg0: i32, %arg1: i32) -> (i32, i32) {
    %c0_i32 = arith.constant 0 : i32
    %c0_i32_0 = arith.constant 0 : i32
    %c0_i32_1 = arith.constant 0 : i32
    return %c0_i32, %c0_i32_0 : i32, i32
  }
  func.func @transform_27(%arg0: i32, %arg1: i32) -> (i32, i32) {
    %c0_i32 = arith.constant 0 : i32
    %c0_i32_0 = arith.constant 0 : i32
    %c0_i32_1 = arith.constant 0 : i32
    return %c0_i32, %c0_i32_0 : i32, i32
  }
  func.func @transform_28(%arg0: i32, %arg1: i32) -> (i32, i32) {
    %c0_i32 = arith.constant 0 : i32
    %c0_i32_0 = arith.constant 0 : i32
    %c0_i32_1 = arith.constant 0 : i32
    return %c0_i32, %c0_i32_0 : i32, i32
  }
  func.func @transform_29(%arg0: i32, %arg1: i32) -> (i32, i32) {
    %c0_i32 = arith.constant 0 : i32
    %c0_i32_0 = arith.constant 0 : i32
    %c0_i32_1 = arith.constant 0 : i32
    return %c0_i32, %c0_i32_0 : i32, i32
  }
  func.func @transform_30(%arg0: i32, %arg1: i32) -> (i32, i32, i32) {
    %c0_i32 = arith.constant 0 : i32
    %c0_i32_0 = arith.constant 0 : i32
    %c0_i32_1 = arith.constant 0 : i32
    return %arg0, %c0_i32, %c0_i32_0 : i32, i32, i32
  }
}

</mosaic_0001>

<llo_original>
// kernel: crossvit_fwd.3
$region0: #{crossvit_fwd.3}
  #allocation0 [shape = 'u32[]', space=smem, size = 0x4, offset = 0x4, fixed_abs, tag = 'smem constant byte address 0x4 - core index']
  #allocation1 [shape = 'u32[72,128]{1,0:T(1,128)}', space=vmem, size = 0x9000, scoped, tag = 'internal scratch']
  #allocation2 [shape = 'f32[9,32]{1,0:T(8,128)}', space=vmem, size = 0x2000, scoped, tag = 'scratch operand']
  %s0 = inlined_call_operand.hbm [shape: f32[2,8,32], index: 0, kind: input, shape index: {}]
  %s1 = inlined_call_operand.hbm [shape: f32[1,1,32], index: 1, kind: input, shape index: {}]
  %s2 = inlined_call_operand.vmem [shape: f32[1,9,32], index: 2, kind: input, shape index: {}]
  %s3 = inlined_call_operand.vmem [shape: f32[1,1,32], index: 3, kind: input, shape index: {}, may-alias: {3,8}]
  %s4 = inlined_call_operand.vmem [shape: f32[1,1,32], index: 4, kind: input, shape index: {}, may-alias: {4,9}]
  %s5 = inlined_call_operand.hbm [shape: f32[1,32,48], index: 5, kind: input, shape index: {}]
  %s6 = inlined_call_operand.hbm [shape: f32[1,2,8,32], index: 6, kind: input, shape index: {}]
  %s7 = inlined_call_operand.hbm [shape: f32[1,1,32], index: 7, kind: input, shape index: {}]
  %s8 = inlined_call_operand.vmem [shape: f32[1,1,32], index: 8, kind: input, shape index: {}, may-alias: {3,8}]
  %s9 = inlined_call_operand.vmem [shape: f32[1,1,32], index: 9, kind: input, shape index: {}, may-alias: {4,9}]
  %s10 = inlined_call_operand.hbm [shape: f32[1,32,64], index: 10, kind: input, shape index: {}]
  %s11 = inlined_call_operand.hbm [shape: f32[1,1,64], index: 11, kind: input, shape index: {}]
  %s12 = inlined_call_operand.hbm [shape: f32[1,64,32], index: 12, kind: input, shape index: {}]
  %s13 = inlined_call_operand.hbm [shape: f32[1,1,32], index: 13, kind: input, shape index: {}]
  %s14 = inlined_call_operand.vmem [shape: f32[1,32], index: 14, kind: input, shape index: {}]
  %s15 = inlined_call_operand.vmem [shape: f32[1,32], index: 15, kind: input, shape index: {}]
  %s16 = inlined_call_operand.vmem [shape: f32[2,9,32], index: 16, kind: output, shape index: {}]
  %s17 = sld [smem:[#allocation0]]
  $region141: #{crossvit_fwd.3} parent=0
    _
  %s19 = ssub.s32 1, %s17
  %s20 = scalar_select 0, %s19, %s17
  $region1: #{crossvit_fwd.3} parent=0
    #allocation3 [shape = 'u8[8192]{0}', space=vmem, size = 0x2000, scoped, tag = 'input window, operand 0']
    #allocation4 [shape = 's32[2]{0}', space=sflag, size = 0x8, scoped, tag = 'scoped memory for crossvit_fwd.3']
    #allocation5 [shape = 'u8[512]{0}', space=vmem, size = 0x400, scoped, tag = 'input window, operand 1, single buffered']
    #allocation6 [shape = 's32[1]{0}', space=sflag, size = 0x4, scoped, tag = 'scoped memory for crossvit_fwd.3']
    #allocation7 [shape = 'u8[16384]{0}', space=vmem, size = 0x4000, scoped, tag = 'input window, operand 5, single buffered']
    #allocation8 [shape = 'u8[8192]{0}', space=vmem, size = 0x2000, scoped, tag = 'input window, operand 6, single buffered']
    #allocation9 [shape = 's32[1]{0}', space=sflag, size = 0x4, scoped, tag = 'scoped memory for crossvit_fwd.3']
    #allocation10 [shape = 'u8[512]{0}', space=vmem, size = 0x400, scoped, tag = 'input window, operand 7, single buffered']
    #allocation11 [shape = 'u8[16384]{0}', space=vmem, size = 0x4000, scoped, tag = 'input window, operand 10, single buffered']
    #allocation12 [shape = 's32[1]{0}', space=sflag, size = 0x4, scoped, tag = 'scoped memory for crossvit_fwd.3']
    #allocation13 [shape = 'u8[512]{0}', space=vmem, size = 0x400, scoped, tag = 'input window, operand 11, single buffered']
    #allocation14 [shape = 'u8[32768]{0}', space=vmem, size = 0x8000, scoped, tag = 'input window, operand 12, single buffered']
    #allocation15 [shape = 's32[1]{0}', space=sflag, size = 0x4, scoped, tag = 'scoped memory for crossvit_fwd.3']
    #allocation16 [shape = 'u8[512]{0}', space=vmem, size = 0x400, scoped, tag = 'input window, operand 13, single buffered']
    %21 = vsyncpa [#allocation4], 0
    %s22 = scalar_lea.sflag [#allocation4], 1
    %23 = vsyncpa %s22, 0
    %24 = vsyncpa [#allocation6], 0
    %25 = vsyncpa [#allocation9], 0
    %26 = vsyncpa [#allocation12], 0
    %27 = vsyncpa [#allocation15], 0
    loop: start=0, step=1, limit=4
    $region2: #{crossvit_fwd.3} parent=1 // loop_pre_header
      _
    $region3: #{crossvit_fwd.3} parent=1 // loop_header
      %s29 = sphi 0, %s33
      %p30 = scmp.ge.s32.totalorder %s29, 4
      %s36 = sphi 0, %s48
      %s37 = sphi 0, %s44
      %s38 = sphi 0, %s36
      %s39 = sphi 0, %s37
      %s40 = sphi 0, %s38
      %s41 = sphi 0, %s39
      %s51 = sphi 0, %s53
      %s54 = sphi 0, %s51
      %s55 = sphi 0, %s54
      %s71 = sphi 0, %s55
      %s75 = sphi 0, %s75
      %s77 = sphi 0, %s75
      %s78 = sphi 0, %s77
      %s92 = sphi 0, %s78
      %s96 = sphi 0, %s96
      %s98 = sphi 0, %s96
      %s99 = sphi 0, %s98
      %s113 = sphi 0, %s99
      %s119 = sphi 0, %s121
      %s122 = sphi 0, %s119
      %s123 = sphi 0, %s122
      %s139 = sphi 0, %s123
      %s145 = sphi 0, %s147
      %s148 = sphi 0, %s145
      %s149 = sphi 0, %s148
      %s165 = sphi 0, %s149
      %s171 = sphi 0, %s173
      %s174 = sphi 0, %s171
      %s175 = sphi 0, %s174
      %s191 = sphi 0, %s175
      %s197 = sphi 0, %s199
      %s200 = sphi 0, %s197
      %s201 = sphi 0, %s200
      %s217 = sphi 0, %s201
      %s223 = sphi 0, %s225
      %s226 = sphi 0, %s223
      %s227 = sphi 0, %s226
      %s243 = sphi 0, %s227
      %s249 = sphi 0, %s251
      %s252 = sphi 0, %s249
      %s253 = sphi 0, %s252
      %s269 = sphi 0, %s253
      %s275 = sphi 0, %s277
      %s278 = sphi 0, %s275
      %s279 = sphi 0, %s278
      %s295 = sphi 0, %s279
      %s301 = sphi 0, %s303
      %s304 = sphi 0, %s301
      %s305 = sphi 0, %s304
      %s321 = sphi 0, %s305
      %s327 = sphi 0, %s329
      %s330 = sphi 0, %s327
      %s331 = sphi 0, %s330
      %s347 = sphi 0, %s331
      %s353 = sphi 0, %s355
      %s356 = sphi 0, %s353
      %s357 = sphi 0, %s356
      %s373 = sphi 0, %s357
      %s379 = sphi 0, %s381
      %s382 = sphi 0, %s379
      %s383 = sphi 0, %s382
      %s399 = sphi 0, %s383
      %s403 = sphi 0, %s403
      %s405 = sphi 0, %s403
      %s406 = sphi 0, %s405
      %s420 = sphi 0, %s406
      %s424 = sphi 0, %s424
      %s426 = sphi 0, %s424
      %s427 = sphi 0, %s426
      %s441 = sphi 0, %s427
      %s447 = sphi 0, %s449
      %s450 = sphi 0, %s447
      %s451 = sphi 0, %s450
      %s467 = sphi 0, %s451
    $region4: #{crossvit_fwd.3} parent=1 // loop_header_branch
      %32 = sbr.rel (%p30) target = $region8
    $region5: #{crossvit_fwd.3} parent=1 // loop_body
      %s34 = ssub.s32 %s29, 1
      %s35 = ssub.s32 %s29, 2
      %s42 = sadd.s32 1, %s37
      %p43 = scmp.ge.s32.totalorder %s42, 1
      %s44 = scalar_select %p43, 0, %s42
      %s45 = sadd.s32 1, %s36
      %s46 = scalar_select %p43, %s45, %s36
      %p47 = scmp.ge.s32.totalorder %s46, 2
      %s48 = scalar_select %p47, 0, %s46
      %s49 = ssub.s32 %s36, %s48
      %p50 = scmp.eq.s32.totalorder %s49, 0
      %s52 = sadd.s32 %s51, 1
      %s53 = scalar_select %p50, %s51, %s52
      %p56 = pneg %p50
      %p57 = scmp.eq.s32.totalorder %s29, 1
      %p58 = por %p56, %p57
      %p59 = scmp.ne.s32.totalorder %s51, %s54
      %p60 = scmp.eq.s32.totalorder %s29, 0
      %p61 = por %p59, %p60
      %p62 = scmp.ne.s32.totalorder %s51, %s54
      %p63 = scmp.eq.s32.totalorder %s34, 1
      %p64 = por %p62, %p63
      %p65 = scmp.ne.s32.totalorder %s54, %s55
      %p66 = scmp.eq.s32.totalorder %s34, 0
      %p67 = por %p65, %p66
      %p68 = scmp.ne.s32.totalorder %s54, %s55
      %p69 = scmp.eq.s32.totalorder %s35, 1
      %p70 = por %p68, %p69
      %p72 = scmp.ne.s32.totalorder %s55, %s71
      %p73 = scmp.eq.s32.totalorder %s35, 0
      %p74 = por %p72, %p73
      %s76 = sadd.s32 %s75, 1
      %p79 = scmp.eq.s32.totalorder %s29, 1
      %p80 = scmp.ne.s32.totalorder %s75, %s77
      %p81 = scmp.eq.s32.totalorder %s29, 0
      %p82 = por %p80, %p81
      %p83 = scmp.ne.s32.totalorder %s75, %s77
      %p84 = scmp.eq.s32.totalorder %s34, 1
      %p85 = por %p83, %p84
      %p86 = scmp.ne.s32.totalorder %s77, %s78
      %p87 = scmp.eq.s32.totalorder %s34, 0
      %p88 = por %p86, %p87
      %p89 = scmp.ne.s32.totalorder %s77, %s78
      %p90 = scmp.eq.s32.totalorder %s35, 1
      %p91 = por %p89, %p90
      %p93 = scmp.ne.s32.totalorder %s78, %s92
      %p94 = scmp.eq.s32.totalorder %s35, 0
      %p95 = por %p93, %p94
      %s97 = sadd.s32 %s96, 1
      %p100 = scmp.eq.s32.totalorder %s29, 1
      %p101 = scmp.ne.s32.totalorder %s96, %s98
      %p102 = scmp.eq.s32.totalorder %s29, 0
      %p103 = por %p101, %p102
      %p104 = scmp.ne.s32.totalorder %s96, %s98
      %p105 = scmp.eq.s32.totalorder %s34, 1
      %p106 = por %p104, %p105
      %p107 = scmp.ne.s32.totalorder %s98, %s99
      %p108 = scmp.eq.s32.totalorder %s34, 0
      %p109 = por %p107, %p108
      %p110 = scmp.ne.s32.totalorder %s98, %s99
      %p111 = scmp.eq.s32.totalorder %s35, 1
      %p112 = por %p110, %p111
      %p114 = scmp.ne.s32.totalorder %s99, %s113
      %p115 = scmp.eq.s32.totalorder %s35, 0
      %p116 = por %p114, %p115
      %s117 = ssub.s32 %s37, %s44
      %p118 = scmp.eq.s32.totalorder %s117, 0
      %s120 = sadd.s32 %s119, 1
      %s121 = scalar_select %p118, %s119, %s120
      %p124 = pneg %p118
      %p125 = scmp.eq.s32.totalorder %s29, 1
      %p126 = por %p124, %p125
      %p127 = scmp.ne.s32.totalorder %s119, %s122
      %p128 = scmp.eq.s32.totalorder %s29, 0
      %p129 = por %p127, %p128
      %p130 = scmp.ne.s32.totalorder %s119, %s122
      %p131 = scmp.eq.s32.totalorder %s34, 1
      %p132 = por %p130, %p131
      %p133 = scmp.ne.s32.totalorder %s122, %s123
      %p134 = scmp.eq.s32.totalorder %s34, 0
      %p135 = por %p133, %p134
      %p136 = scmp.ne.s32.totalorder %s122, %s123
      %p137 = scmp.eq.s32.totalorder %s35, 1
      %p138 = por %p136, %p137
      %p140 = scmp.ne.s32.totalorder %s123, %s139
      %p141 = scmp.eq.s32.totalorder %s35, 0
      %p142 = por %p140, %p141
      %s143 = ssub.s32 %s37, %s44
      %p144 = scmp.eq.s32.totalorder %s143, 0
      %s146 = sadd.s32 %s145, 1
      %s147 = scalar_select %p144, %s145, %s146
      %p150 = pneg %p144
      %p151 = scmp.eq.s32.totalorder %s29, 1
      %p152 = por %p150, %p151
      %p153 = scmp.ne.s32.totalorder %s145, %s148
      %p154 = scmp.eq.s32.totalorder %s29, 0
      %p155 = por %p153, %p154
      %p156 = scmp.ne.s32.totalorder %s145, %s148
      %p157 = scmp.eq.s32.totalorder %s34, 1
      %p158 = por %p156, %p157
      %p159 = scmp.ne.s32.totalorder %s148, %s149
      %p160 = scmp.eq.s32.totalorder %s34, 0
      %p161 = por %p159, %p160
      %p162 = scmp.ne.s32.totalorder %s148, %s149
      %p163 = scmp.eq.s32.totalorder %s35, 1
      %p164 = por %p162, %p163
      %p166 = scmp.ne.s32.totalorder %s149, %s165
      %p167 = scmp.eq.s32.totalorder %s35, 0
      %p168 = por %p166, %p167
      %s169 = ssub.s32 %s37, %s44
      %p170 = scmp.eq.s32.totalorder %s169, 0
      %s172 = sadd.s32 %s171, 1
      %s173 = scalar_select %p170, %s171, %s172
      %p176 = pneg %p170
      %p177 = scmp.eq.s32.totalorder %s29, 1
      %p178 = por %p176, %p177
      %p179 = scmp.ne.s32.totalorder %s171, %s174
      %p180 = scmp.eq.s32.totalorder %s29, 0
      %p181 = por %p179, %p180
      %p182 = scmp.ne.s32.totalorder %s171, %s174
      %p183 = scmp.eq.s32.totalorder %s34, 1
      %p184 = por %p182, %p183
      %p185 = scmp.ne.s32.totalorder %s174, %s175
      %p186 = scmp.eq.s32.totalorder %s34, 0
      %p187 = por %p185, %p186
      %p188 = scmp.ne.s32.totalorder %s174, %s175
      %p189 = scmp.eq.s32.totalorder %s35, 1
      %p190 = por %p188, %p189
      %p192 = scmp.ne.s32.totalorder %s175, %s191
      %p193 = scmp.eq.s32.totalorder %s35, 0
      %p194 = por %p192, %p193
      %s195 = ssub.s32 %s37, %s44
      %p196 = scmp.eq.s32.totalorder %s195, 0
      %s198 = sadd.s32 %s197, 1
      %s199 = scalar_select %p196, %s197, %s198
      %p202 = pneg %p196
      %p203 = scmp.eq.s32.totalorder %s29, 1
      %p204 = por %p202, %p203
      %p205 = scmp.ne.s32.totalorder %s197, %s200
      %p206 = scmp.eq.s32.totalorder %s29, 0
      %p207 = por %p205, %p206
      %p208 = scmp.ne.s32.totalorder %s197, %s200
      %p209 = scmp.eq.s32.totalorder %s34, 1
      %p210 = por %p208, %p209
      %p211 = scmp.ne.s32.totalorder %s200, %s201
      %p212 = scmp.eq.s32.totalorder %s34, 0
      %p213 = por %p211, %p212
      %p214 = scmp.ne.s32.totalorder %s200, %s201
      %p215 = scmp.eq.s32.totalorder %s35, 1
      %p216 = por %p214, %p215
      %p218 = scmp.ne.s32.totalorder %s201, %s217
      %p219 = scmp.eq.s32.totalorder %s35, 0
      %p220 = por %p218, %p219
      %s221 = ssub.s32 %s37, %s44
      %p222 = scmp.eq.s32.totalorder %s221, 0
      %s224 = sadd.s32 %s223, 1
      %s225 = scalar_select %p222, %s223, %s224
      %p228 = pneg %p222
      %p229 = scmp.eq.s32.totalorder %s29, 1
      %p230 = por %p228, %p229
      %p231 = scmp.ne.s32.totalorder %s223, %s226
      %p232 = scmp.eq.s32.totalorder %s29, 0
      %p233 = por %p231, %p232
      %p234 = scmp.ne.s32.totalorder %s223, %s226
      %p235 = scmp.eq.s32.totalorder %s34, 1
      %p236 = por %p234, %p235
      %p237 = scmp.ne.s32.totalorder %s226, %s227
      %p238 = scmp.eq.s32.totalorder %s34, 0
      %p239 = por %p237, %p238
      %p240 = scmp.ne.s32.totalorder %s226, %s227
      %p241 = scmp.eq.s32.totalorder %s35, 1
      %p242 = por %p240, %p241
      %p244 = scmp.ne.s32.totalorder %s227, %s243
      %p245 = scmp.eq.s32.totalorder %s35, 0
      %p246 = por %p244, %p245
      %s247 = ssub.s32 %s37, %s44
      %p248 = scmp.eq.s32.totalorder %s247, 0
      %s250 = sadd.s32 %s249, 1
      %s251 = scalar_select %p248, %s249, %s250
      %p254 = pneg %p248
      %p255 = scmp.eq.s32.totalorder %s29, 1
      %p256 = por %p254, %p255
      %p257 = scmp.ne.s32.totalorder %s249, %s252
      %p258 = scmp.eq.s32.totalorder %s29, 0
      %p259 = por %p257, %p258
      %p260 = scmp.ne.s32.totalorder %s249, %s252
      %p261 = scmp.eq.s32.totalorder %s34, 1
      %p262 = por %p260, %p261
      %p263 = scmp.ne.s32.totalorder %s252, %s253
      %p264 = scmp.eq.s32.totalorder %s34, 0
      %p265 = por %p263, %p264
      %p266 = scmp.ne.s32.totalorder %s252, %s253
      %p267 = scmp.eq.s32.totalorder %s35, 1
      %p268 = por %p266, %p267
      %p270 = scmp.ne.s32.totalorder %s253, %s269
      %p271 = scmp.eq.s32.totalorder %s35, 0
      %p272 = por %p270, %p271
      %s273 = ssub.s32 %s37, %s44
      %p274 = scmp.eq.s32.totalorder %s273, 0
      %s276 = sadd.s32 %s275, 1
      %s277 = scalar_select %p274, %s275, %s276
      %p280 = pneg %p274
      %p281 = scmp.eq.s32.totalorder %s29, 1
      %p282 = por %p280, %p281
      %p283 = scmp.ne.s32.totalorder %s275, %s278
      %p284 = scmp.eq.s32.totalorder %s29, 0
      %p285 = por %p283, %p284
      %p286 = scmp.ne.s32.totalorder %s275, %s278
      %p287 = scmp.eq.s32.totalorder %s34, 1
      %p288 = por %p286, %p287
      %p289 = scmp.ne.s32.totalorder %s278, %s279
      %p290 = scmp.eq.s32.totalorder %s34, 0
      %p291 = por %p289, %p290
      %p292 = scmp.ne.s32.totalorder %s278, %s279
      %p293 = scmp.eq.s32.totalorder %s35, 1
      %p294 = por %p292, %p293
      %p296 = scmp.ne.s32.totalorder %s279, %s295
      %p297 = scmp.eq.s32.totalorder %s35, 0
      %p298 = por %p296, %p297
      %s299 = ssub.s32 %s37, %s44
      %p300 = scmp.eq.s32.totalorder %s299, 0
      %s302 = sadd.s32 %s301, 1
      %s303 = scalar_select %p300, %s301, %s302
      %p306 = pneg %p300
      %p307 = scmp.eq.s32.totalorder %s29, 1
      %p308 = por %p306, %p307
      %p309 = scmp.ne.s32.totalorder %s301, %s304
      %p310 = scmp.eq.s32.totalorder %s29, 0
      %p311 = por %p309, %p310
      %p312 = scmp.ne.s32.totalorder %s301, %s304
      %p313 = scmp.eq.s32.totalorder %s34, 1
      %p314 = por %p312, %p313
      %p315 = scmp.ne.s32.totalorder %s304, %s305
      %p316 = scmp.eq.s32.totalorder %s34, 0
      %p317 = por %p315, %p316
      %p318 = scmp.ne.s32.totalorder %s304, %s305
      %p319 = scmp.eq.s32.totalorder %s35, 1
      %p320 = por %p318, %p319
      %p322 = scmp.ne.s32.totalorder %s305, %s321
      %p323 = scmp.eq.s32.totalorder %s35, 0
      %p324 = por %p322, %p323
      %s325 = ssub.s32 %s37, %s44
      %p326 = scmp.eq.s32.totalorder %s325, 0
      %s328 = sadd.s32 %s327, 1
      %s329 = scalar_select %p326, %s327, %s328
      %p332 = pneg %p326
      %p333 = scmp.eq.s32.totalorder %s29, 1
      %p334 = por %p332, %p333
      %p335 = scmp.ne.s32.totalorder %s327, %s330
      %p336 = scmp.eq.s32.totalorder %s29, 0
      %p337 = por %p335, %p336
      %p338 = scmp.ne.s32.totalorder %s327, %s330
      %p339 = scmp.eq.s32.totalorder %s34, 1
      %p340 = por %p338, %p339
      %p341 = scmp.ne.s32.totalorder %s330, %s331
      %p342 = scmp.eq.s32.totalorder %s34, 0
      %p343 = por %p341, %p342
      %p344 = scmp.ne.s32.totalorder %s330, %s331
      %p345 = scmp.eq.s32.totalorder %s35, 1
      %p346 = por %p344, %p345
      %p348 = scmp.ne.s32.totalorder %s331, %s347
      %p349 = scmp.eq.s32.totalorder %s35, 0
      %p350 = por %p348, %p349
      %s351 = ssub.s32 %s37, %s44
      %p352 = scmp.eq.s32.totalorder %s351, 0
      %s354 = sadd.s32 %s353, 1
      %s355 = scalar_select %p352, %s353, %s354
      %p358 = pneg %p352
      %p359 = scmp.eq.s32.totalorder %s29, 1
      %p360 = por %p358, %p359
      %p361 = scmp.ne.s32.totalorder %s353, %s356
      %p362 = scmp.eq.s32.totalorder %s29, 0
      %p363 = por %p361, %p362
      %p364 = scmp.ne.s32.totalorder %s353, %s356
      %p365 = scmp.eq.s32.totalorder %s34, 1
      %p366 = por %p364, %p365
      %p367 = scmp.ne.s32.totalorder %s356, %s357
      %p368 = scmp.eq.s32.totalorder %s34, 0
      %p369 = por %p367, %p368
      %p370 = scmp.ne.s32.totalorder %s356, %s357
      %p371 = scmp.eq.s32.totalorder %s35, 1
      %p372 = por %p370, %p371
      %p374 = scmp.ne.s32.totalorder %s357, %s373
      %p375 = scmp.eq.s32.totalorder %s35, 0
      %p376 = por %p374, %p375
      %s377 = ssub.s32 %s37, %s44
      %p378 = scmp.eq.s32.totalorder %s377, 0
      %s380 = sadd.s32 %s379, 1
      %s381 = scalar_select %p378, %s379, %s380
      %p384 = pneg %p378
      %p385 = scmp.eq.s32.totalorder %s29, 1
      %p386 = por %p384, %p385
      %p387 = scmp.ne.s32.totalorder %s379, %s382
      %p388 = scmp.eq.s32.totalorder %s29, 0
      %p389 = por %p387, %p388
      %p390 = scmp.ne.s32.totalorder %s379, %s382
      %p391 = scmp.eq.s32.totalorder %s34, 1
      %p392 = por %p390, %p391
      %p393 = scmp.ne.s32.totalorder %s382, %s383
      %p394 = scmp.eq.s32.totalorder %s34, 0
      %p395 = por %p393, %p394
      %p396 = scmp.ne.s32.totalorder %s382, %s383
      %p397 = scmp.eq.s32.totalorder %s35, 1
      %p398 = por %p396, %p397
      %p400 = scmp.ne.s32.totalorder %s383, %s399
      %p401 = scmp.eq.s32.totalorder %s35, 0
      %p402 = por %p400, %p401
      %s404 = sadd.s32 %s403, 1
      %p407 = scmp.eq.s32.totalorder %s29, 1
      %p408 = scmp.ne.s32.totalorder %s403, %s405
      %p409 = scmp.eq.s32.totalorder %s29, 0
      %p410 = por %p408, %p409
      %p411 = scmp.ne.s32.totalorder %s403, %s405
      %p412 = scmp.eq.s32.totalorder %s34, 1
      %p413 = por %p411, %p412
      %p414 = scmp.ne.s32.totalorder %s405, %s406
      %p415 = scmp.eq.s32.totalorder %s34, 0
      %p416 = por %p414, %p415
      %p417 = scmp.ne.s32.totalorder %s405, %s406
      %p418 = scmp.eq.s32.totalorder %s35, 1
      %p419 = por %p417, %p418
      %p421 = scmp.ne.s32.totalorder %s406, %s420
      %p422 = scmp.eq.s32.totalorder %s35, 0
      %p423 = por %p421, %p422
      %s425 = sadd.s32 %s424, 1
      %p428 = scmp.eq.s32.totalorder %s29, 1
      %p429 = scmp.ne.s32.totalorder %s424, %s426
      %p430 = scmp.eq.s32.totalorder %s29, 0
      %p431 = por %p429, %p430
      %p432 = scmp.ne.s32.totalorder %s424, %s426
      %p433 = scmp.eq.s32.totalorder %s34, 1
      %p434 = por %p432, %p433
      %p435 = scmp.ne.s32.totalorder %s426, %s427
      %p436 = scmp.eq.s32.totalorder %s34, 0
      %p437 = por %p435, %p436
      %p438 = scmp.ne.s32.totalorder %s426, %s427
      %p439 = scmp.eq.s32.totalorder %s35, 1
      %p440 = por %p438, %p439
      %p442 = scmp.ne.s32.totalorder %s427, %s441
      %p443 = scmp.eq.s32.totalorder %s35, 0
      %p444 = por %p442, %p443
      %s445 = ssub.s32 %s36, %s48
      %p446 = scmp.eq.s32.totalorder %s445, 0
      %s448 = sadd.s32 %s447, 1
      %s449 = scalar_select %p446, %s447, %s448
      %p452 = pneg %p446
      %p453 = scmp.eq.s32.totalorder %s29, 1
      %p454 = por %p452, %p453
      %p455 = scmp.ne.s32.totalorder %s447, %s450
      %p456 = scmp.eq.s32.totalorder %s29, 0
      %p457 = por %p455, %p456
      %p458 = scmp.ne.s32.totalorder %s447, %s450
      %p459 = scmp.eq.s32.totalorder %s34, 1
      %p460 = por %p458, %p459
      %p461 = scmp.ne.s32.totalorder %s450, %s451
      %p462 = scmp.eq.s32.totalorder %s34, 0
      %p463 = por %p461, %p462
      %p464 = scmp.ne.s32.totalorder %s450, %s451
      %p465 = scmp.eq.s32.totalorder %s35, 1
      %p466 = por %p464, %p465
      %p468 = scmp.ne.s32.totalorder %s451, %s467
      %p469 = scmp.eq.s32.totalorder %s35, 0
      %p470 = por %p468, %p469
      %p471 = scmp.le.s32.totalorder 1, %s29
      %p472 = scmp.lt.s32.totalorder %s29, 3
      %p473 = pnand %p471, %p472
      %p474 = pneg %p473
      // Predicated region
      $region9: #{crossvit_fwd.3} parent=5 // pred_check
        _
      $region10: #{crossvit_fwd.3} parent=5 // pred_check_branch
        %476 = sbr.rel (%p473) target = $region12
      $region11: #{crossvit_fwd.3} parent=5 // pred_region
        %s477 = ssub.s32 %s29, 1
        // Predicated region
        $region13: #{crossvit_fwd.3} parent=11 // pred_check
          %p478 = pneg %p88
        $region14: #{crossvit_fwd.3} parent=11 // pred_check_branch
          %480 = sbr.rel (%p478) target = $region16
        $region15: #{crossvit_fwd.3} parent=11 // pred_region
          %482 = vsyncadd [#allocation6], 0
          %s484 = sshll.u32 %s1, 4
          %s485 = int_to_ptr.hbm [resolvable:$true] %s484
          %s486 = sshll.u32 [#allocation5], 4
          %s487 = int_to_ptr.vmem [resolvable:$true] %s486
          %489 = dma.hbm_to_vmem [thread:$0]  %s485, 16, %s487, [#allocation6]
        $region16: #{crossvit_fwd.3} parent=11 // pred_fallthru
          _
        // Predicated region
        $region17: #{crossvit_fwd.3} parent=11 // pred_check
          %p490 = pneg %p109
        $region18: #{crossvit_fwd.3} parent=11 // pred_check_branch
          %492 = sbr.rel (%p490) target = $region20
        $region19: #{crossvit_fwd.3} parent=11 // pred_region
          _
        $region20: #{crossvit_fwd.3} parent=11 // pred_fallthru
          _
        // Predicated region
        $region21: #{crossvit_fwd.3} parent=11 // pred_check
          %p493 = pneg %p135
        $region22: #{crossvit_fwd.3} parent=11 // pred_check_branch
          %495 = sbr.rel (%p493) target = $region24
        $region23: #{crossvit_fwd.3} parent=11 // pred_region
          %p496 = scmp.lt.s32.totalorder %s39, 0
          %s497 = scalar_select %p496, %s39, 0
          %s498 = scalar_lea.vmem %s3, %s497
        $region24: #{crossvit_fwd.3} parent=11 // pred_fallthru
          _
        // Predicated region
        $region25: #{crossvit_fwd.3} parent=11 // pred_check
          %p499 = pneg %p161
        $region26: #{crossvit_fwd.3} parent=11 // pred_check_branch
          %501 = sbr.rel (%p499) target = $region28
        $region27: #{crossvit_fwd.3} parent=11 // pred_region
          %p502 = scmp.lt.s32.totalorder %s39, 0
          %s503 = scalar_select %p502, %s39, 0
          %s504 = scalar_lea.vmem %s4, %s503
        $region28: #{crossvit_fwd.3} parent=11 // pred_fallthru
          _
        // Predicated region
        $region29: #{crossvit_fwd.3} parent=11 // pred_check
          %p505 = pneg %p187
        $region30: #{crossvit_fwd.3} parent=11 // pred_check_branch
          %507 = sbr.rel (%p505) target = $region32
        $region31: #{crossvit_fwd.3} parent=11 // pred_region
          %509 = vsyncadd [#allocation6], 0
          %s510 = smul.addr %s39, 4
          %s511 = smul.addr %s510, 8
          %s512 = scalar_lea.hbm %s5, %s511
          %s513 = sshll.u32 %s512, 4
          %s514 = int_to_ptr.hbm [resolvable:$true] %s513
          %s515 = sshll.u32 [#allocation7], 4
          %s516 = int_to_ptr.vmem [resolvable:$true] %s515
          %521 = dma.hbm_to_vmem [thread:$0]  %s514, 512, %s516, [#allocation6], 128, 128, 8
        $region32: #{crossvit_fwd.3} parent=11 // pred_fallthru
          _
        // Predicated region
        $region33: #{crossvit_fwd.3} parent=11 // pred_check
          %p522 = pneg %p213
        $region34: #{crossvit_fwd.3} parent=11 // pred_check_branch
          %524 = sbr.rel (%p522) target = $region36
        $region35: #{crossvit_fwd.3} parent=11 // pred_region
          %526 = vsyncadd [#allocation9], 0
          %s527 = smul.addr %s39, 2
          %s528 = smul.addr %s527, 8
          %s529 = scalar_lea.hbm %s6, %s528
          %s530 = sshll.u32 %s529, 4
          %s531 = int_to_ptr.hbm [resolvable:$true] %s530
          %s532 = sshll.u32 [#allocation8], 4
          %s533 = int_to_ptr.vmem [resolvable:$true] %s532
          %538 = dma.hbm_to_vmem [thread:$0]  %s531, 256, %s533, [#allocation9], 128, 128, 8
        $region36: #{crossvit_fwd.3} parent=11 // pred_fallthru
          _
        // Predicated region
        $region37: #{crossvit_fwd.3} parent=11 // pred_check
          %p539 = pneg %p239
        $region38: #{crossvit_fwd.3} parent=11 // pred_check_branch
          %541 = sbr.rel (%p539) target = $region40
        $region39: #{crossvit_fwd.3} parent=11 // pred_region
          %543 = vsyncadd [#allocation9], 0
          %s544 = scalar_lea.hbm %s7, %s39
          %s546 = sshll.u32 %s544, 4
          %s547 = int_to_ptr.hbm [resolvable:$true] %s546
          %s548 = sshll.u32 [#allocation10], 4
          %s549 = int_to_ptr.vmem [resolvable:$true] %s548
          %551 = dma.hbm_to_vmem [thread:$0]  %s547, 16, %s549, [#allocation9]
        $region40: #{crossvit_fwd.3} parent=11 // pred_fallthru
          _
        // Predicated region
        $region41: #{crossvit_fwd.3} parent=11 // pred_check
          %p552 = pneg %p265
        $region42: #{crossvit_fwd.3} parent=11 // pred_check_branch
          %554 = sbr.rel (%p552) target = $region44
        $region43: #{crossvit_fwd.3} parent=11 // pred_region
          %p555 = scmp.lt.s32.totalorder %s39, 0
          %s556 = scalar_select %p555, %s39, 0
          %s557 = scalar_lea.vmem %s8, %s556
        $region44: #{crossvit_fwd.3} parent=11 // pred_fallthru
          _
        // Predicated region
        $region45: #{crossvit_fwd.3} parent=11 // pred_check
          %p558 = pneg %p291
        $region46: #{crossvit_fwd.3} parent=11 // pred_check_branch
          %560 = sbr.rel (%p558) target = $region48
        $region47: #{crossvit_fwd.3} parent=11 // pred_region
          %p561 = scmp.lt.s32.totalorder %s39, 0
          %s562 = scalar_select %p561, %s39, 0
          %s563 = scalar_lea.vmem %s9, %s562
        $region48: #{crossvit_fwd.3} parent=11 // pred_fallthru
          _
        // Predicated region
        $region49: #{crossvit_fwd.3} parent=11 // pred_check
          %p564 = pneg %p317
        $region50: #{crossvit_fwd.3} parent=11 // pred_check_branch
          %566 = sbr.rel (%p564) target = $region52
        $region51: #{crossvit_fwd.3} parent=11 // pred_region
          %568 = vsyncadd [#allocation12], 0
          %s569 = smul.addr %s39, 4
          %s570 = smul.addr %s569, 8
          %s571 = scalar_lea.hbm %s10, %s570
          %s572 = sshll.u32 %s571, 4
          %s573 = int_to_ptr.hbm [resolvable:$true] %s572
          %s574 = sshll.u32 [#allocation11], 4
          %s575 = int_to_ptr.vmem [resolvable:$true] %s574
          %580 = dma.hbm_to_vmem [thread:$0]  %s573, 512, %s575, [#allocation12], 128, 128, 8
        $region52: #{crossvit_fwd.3} parent=11 // pred_fallthru
          _
        // Predicated region
        $region53: #{crossvit_fwd.3} parent=11 // pred_check
          %p581 = pneg %p343
        $region54: #{crossvit_fwd.3} parent=11 // pred_check_branch
          %583 = sbr.rel (%p581) target = $region56
        $region55: #{crossvit_fwd.3} parent=11 // pred_region
          %585 = vsyncadd [#allocation12], 0
          %s586 = scalar_lea.hbm %s11, %s39
          %s588 = sshll.u32 %s586, 4
          %s589 = int_to_ptr.hbm [resolvable:$true] %s588
          %s590 = sshll.u32 [#allocation13], 4
          %s591 = int_to_ptr.vmem [resolvable:$true] %s590
          %593 = dma.hbm_to_vmem [thread:$0]  %s589, 16, %s591, [#allocation12]
        $region56: #{crossvit_fwd.3} parent=11 // pred_fallthru
          _
        // Predicated region
        $region57: #{crossvit_fwd.3} parent=11 // pred_check
          %p594 = pneg %p369
        $region58: #{crossvit_fwd.3} parent=11 // pred_check_branch
          %596 = sbr.rel (%p594) target = $region60
        $region59: #{crossvit_fwd.3} parent=11 // pred_region
          %598 = vsyncadd [#allocation15], 0
          %s599 = smul.addr %s39, 8
          %s600 = smul.addr %s599, 8
          %s601 = scalar_lea.hbm %s12, %s600
          %s602 = sshll.u32 %s601, 4
          %s603 = int_to_ptr.hbm [resolvable:$true] %s602
          %s604 = sshll.u32 [#allocation14], 4
          %s605 = int_to_ptr.vmem [resolvable:$true] %s604
          %610 = dma.hbm_to_vmem [thread:$0]  %s603, 1024, %s605, [#allocation15], 128, 128, 8
        $region60: #{crossvit_fwd.3} parent=11 // pred_fallthru
          _
        // Predicated region
        $region61: #{crossvit_fwd.3} parent=11 // pred_check
          %p611 = pneg %p395
        $region62: #{crossvit_fwd.3} parent=11 // pred_check_branch
          %613 = sbr.rel (%p611) target = $region64
        $region63: #{crossvit_fwd.3} parent=11 // pred_region
          %615 = vsyncadd [#allocation15], 0
          %s616 = scalar_lea.hbm %s13, %s39
          %s618 = sshll.u32 %s616, 4
          %s619 = int_to_ptr.hbm [resolvable:$true] %s618
          %s620 = sshll.u32 [#allocation16], 4
          %s621 = int_to_ptr.vmem [resolvable:$true] %s620
          %623 = dma.hbm_to_vmem [thread:$0]  %s619, 16, %s621, [#allocation15]
        $region64: #{crossvit_fwd.3} parent=11 // pred_fallthru
          _
        // Predicated region
        $region65: #{crossvit_fwd.3} parent=11 // pred_check
          %p624 = pneg %p416
        $region66: #{crossvit_fwd.3} parent=11 // pred_check_branch
          %626 = sbr.rel (%p624) target = $region68
        $region67: #{crossvit_fwd.3} parent=11 // pred_region
          _
        $region68: #{crossvit_fwd.3} parent=11 // pred_fallthru
          _
        // Predicated region
        $region69: #{crossvit_fwd.3} parent=11 // pred_check
          %p627 = pneg %p437
        $region70: #{crossvit_fwd.3} parent=11 // pred_check_branch
          %629 = sbr.rel (%p627) target = $region72
        $region71: #{crossvit_fwd.3} parent=11 // pred_region
          _
        $region72: #{crossvit_fwd.3} parent=11 // pred_fallthru
          _
      $region12: #{crossvit_fwd.3} parent=5 // pred_fallthru
        _
      %p630 = scmp.lt.s32.totalorder %s29, 2
      // Predicated region
      $region73: #{crossvit_fwd.3} parent=5 // pred_check
        %p631 = pneg %p630
      $region74: #{crossvit_fwd.3} parent=5 // pred_check_branch
        %633 = sbr.rel (%p631) target = $region76
      $region75: #{crossvit_fwd.3} parent=5 // pred_region
        // Predicated region
        $region77: #{crossvit_fwd.3} parent=75 // pred_check
          %p634 = pneg %p61
        $region78: #{crossvit_fwd.3} parent=75 // pred_check_branch
          %636 = sbr.rel (%p634) target = $region80
        $region79: #{crossvit_fwd.3} parent=75 // pred_region
          %s637 = sand.u32 %s51, 1
          %s638 = scalar_lea.sflag [#allocation4], %s637
          %s639 = sand.u32 %s51, 1
          %s640 = smul.addr %s639, 8
          %s641 = scalar_lea.vmem [#allocation3], %s640
          %643 = vsyncadd %s638, 0
          %s644 = smul.addr %s36, 8
          %s645 = scalar_lea.hbm %s0, %s644
          %s647 = sshll.u32 %s645, 4
          %s648 = int_to_ptr.hbm [resolvable:$true] %s647
          %s649 = sshll.u32 %s641, 4
          %s650 = int_to_ptr.vmem [resolvable:$true] %s649
          %652 = dma.hbm_to_vmem [thread:$0]  %s648, 128, %s650, %s638
        $region80: #{crossvit_fwd.3} parent=75 // pred_fallthru
          _
      $region76: #{crossvit_fwd.3} parent=5 // pred_fallthru
        _
      %p653 = scmp.le.s32.totalorder 1, %s29
      %p654 = scmp.lt.s32.totalorder %s29, 3
      %p655 = pnand %p653, %p654
      %p656 = pneg %p655
      // Predicated region
      $region81: #{crossvit_fwd.3} parent=5 // pred_check
        _
      $region82: #{crossvit_fwd.3} parent=5 // pred_check_branch
        %658 = sbr.rel (%p655) target = $region84
      $region83: #{crossvit_fwd.3} parent=5 // pred_region
        %s659 = ssub.s32 %s29, 1
        %s660 = sand.u32 %s54, 1
        %s661 = scalar_lea.sflag [#allocation4], %s660
        %s662 = sand.u32 %s54, 1
        %s663 = smul.addr %s662, 8
        %s664 = scalar_lea.vmem [#allocation3], %s663
        // Predicated region
        $region85: #{crossvit_fwd.3} parent=83 // pred_check
          %p665 = pneg %p67
        $region86: #{crossvit_fwd.3} parent=83 // pred_check_branch
          %667 = sbr.rel (%p665) target = $region88
        $region87: #{crossvit_fwd.3} parent=83 // pred_region
          %669 = dma.done %s661, 128
        $region88: #{crossvit_fwd.3} parent=83 // pred_fallthru
          _
        // Predicated region
        $region89: #{crossvit_fwd.3} parent=83 // pred_check
          %p670 = pneg %p88
        $region90: #{crossvit_fwd.3} parent=83 // pred_check_branch
          %672 = sbr.rel (%p670) target = $region92
        $region91: #{crossvit_fwd.3} parent=83 // pred_region
          %674 = dma.done [#allocation6], 16
        $region92: #{crossvit_fwd.3} parent=83 // pred_fallthru
          _
        // Predicated region
        $region93: #{crossvit_fwd.3} parent=83 // pred_check
          %p675 = pneg %p187
        $region94: #{crossvit_fwd.3} parent=83 // pred_check_branch
          %677 = sbr.rel (%p675) target = $region96
        $region95: #{crossvit_fwd.3} parent=83 // pred_region
          %679 = dma.done [#allocation6], 512
        $region96: #{crossvit_fwd.3} parent=83 // pred_fallthru
          _
        // Predicated region
        $region97: #{crossvit_fwd.3} parent=83 // pred_check
          %p680 = pneg %p213
        $region98: #{crossvit_fwd.3} parent=83 // pred_check_branch
          %682 = sbr.rel (%p680) target = $region100
        $region99: #{crossvit_fwd.3} parent=83 // pred_region
          %684 = dma.done [#allocation9], 256
        $region100: #{crossvit_fwd.3} parent=83 // pred_fallthru
          _
        // Predicated region
        $region101: #{crossvit_fwd.3} parent=83 // pred_check
          %p685 = pneg %p239
        $region102: #{crossvit_fwd.3} parent=83 // pred_check_branch
          %687 = sbr.rel (%p685) target = $region104
        $region103: #{crossvit_fwd.3} parent=83 // pred_region
          %689 = dma.done [#allocation9], 16
        $region104: #{crossvit_fwd.3} parent=83 // pred_fallthru
          _
        // Predicated region
        $region105: #{crossvit_fwd.3} parent=83 // pred_check
          %p690 = pneg %p317
        $region106: #{crossvit_fwd.3} parent=83 // pred_check_branch
          %692 = sbr.rel (%p690) target = $region108
        $region107: #{crossvit_fwd.3} parent=83 // pred_region
          %694 = dma.done [#allocation12], 512
        $region108: #{crossvit_fwd.3} parent=83 // pred_fallthru
          _
        // Predicated region
        $region109: #{crossvit_fwd.3} parent=83 // pred_check
          %p695 = pneg %p343
        $region110: #{crossvit_fwd.3} parent=83 // pred_check_branch
          %697 = sbr.rel (%p695) target = $region112
        $region111: #{crossvit_fwd.3} parent=83 // pred_region
          %699 = dma.done [#allocation12], 16
        $region112: #{crossvit_fwd.3} parent=83 // pred_fallthru
          _
        // Predicated region
        $region113: #{crossvit_fwd.3} parent=83 // pred_check
          %p700 = pneg %p369
        $region114: #{crossvit_fwd.3} parent=83 // pred_check_branch
          %702 = sbr.rel (%p700) target = $region116
        $region115: #{crossvit_fwd.3} parent=83 // pred_region
          %704 = dma.done [#allocation15], 1024
        $region116: #{crossvit_fwd.3} parent=83 // pred_fallthru
          _
        // Predicated region
        $region117: #{crossvit_fwd.3} parent=83 // pred_check
          %p705 = pneg %p395
        $region118: #{crossvit_fwd.3} parent=83 // pred_check_branch
          %707 = sbr.rel (%p705) target = $region120
        $region119: #{crossvit_fwd.3} parent=83 // pred_region
          %709 = dma.done [#allocation15], 16
        $region120: #{crossvit_fwd.3} parent=83 // pred_fallthru
          _
        %s710 = sand.u32 %s54, 1
        %s711 = scalar_lea.sflag [#allocation4], %s710
        %s712 = sand.u32 %s54, 1
        %s713 = smul.addr %s712, 8
        %s714 = scalar_lea.vmem [#allocation3], %s713
        %p715 = pneg %p67
        %p716 = pneg %p64
        %p717 = pneg %p88
        %p718 = pneg %p85
        %p719 = pneg %p109
        %p720 = pneg %p106
        %p721 = scmp.lt.s32.totalorder %s39, 0
        %s722 = scalar_select %p721, %s39, 0
        %s723 = scalar_lea.vmem %s3, %s722
        %p724 = pneg %p135
        %p725 = pneg %p132
        %p726 = scmp.lt.s32.totalorder %s39, 0
        %s727 = scalar_select %p726, %s39, 0
        %s728 = scalar_lea.vmem %s4, %s727
        %p729 = pneg %p161
        %p730 = pneg %p158
        %p731 = pneg %p187
        %p732 = pneg %p184
        %p733 = pneg %p213
        %p734 = pneg %p210
        %p735 = pneg %p239
        %p736 = pneg %p236
        %p737 = scmp.lt.s32.totalorder %s39, 0
        %s738 = scalar_select %p737, %s39, 0
        %s739 = scalar_lea.vmem %s8, %s738
        %p740 = pneg %p265
        %p741 = pneg %p262
        %p742 = scmp.lt.s32.totalorder %s39, 0
        %s743 = scalar_select %p742, %s39, 0
        %s744 = scalar_lea.vmem %s9, %s743
        %p745 = pneg %p291
        %p746 = pneg %p288
        %p747 = pneg %p317
        %p748 = pneg %p314
        %p749 = pneg %p343
        %p750 = pneg %p340
        %p751 = pneg %p369
        %p752 = pneg %p366
        %p753 = pneg %p395
        %p754 = pneg %p392
        %p755 = pneg %p416
        %p756 = pneg %p413
        %p757 = pneg %p437
        %p758 = pneg %p434
        %p759 = pneg %p463
        %p760 = pneg %p460
        %p761 = scmp.lt.s32.totalorder %s38, 1
        %s762 = scalar_select %p761, %s38, 1
        %s763 = smul.addr %s762, 2
        %s764 = smul.addr %s763, 8
        %s765 = scalar_lea.vmem %s16, %s764
        %p766 = scmp.lt.s32.totalorder %s39, 0
        %s767 = scalar_select %p766, %s39, 0
        %s768 = scalar_lea.vmem %s3, %s767
        %p769 = scmp.lt.s32.totalorder %s39, 0
        %s770 = scalar_select %p769, %s39, 0
        %s771 = scalar_lea.vmem %s4, %s770
        %p772 = scmp.lt.s32.totalorder %s39, 0
        %s773 = scalar_select %p772, %s39, 0
        %s774 = scalar_lea.vmem %s8, %s773
        %p775 = scmp.lt.s32.totalorder %s39, 0
        %s776 = scalar_select %p775, %s39, 0
        %s777 = scalar_lea.vmem %s9, %s776
        %p778 = scmp.lt.s32.totalorder %s38, 1
        %s779 = scalar_select %p778, %s38, 1
        %s780 = smul.addr %s779, 2
        %s781 = smul.addr %s780, 8
        %s782 = scalar_lea.vmem %s16, %s781
        %p783 = scmp.eq.s32.totalorder %s39, 0
        // Predicated region
        $region121: #{crossvit_fwd.3} parent=83 // pred_check
          %p784 = pneg %p783
        $region122: #{crossvit_fwd.3} parent=83 // pred_check_branch
          %786 = sbr.rel (%p784) target = $region124
        $region123: #{crossvit_fwd.3} parent=83 // pred_region
          %v787 = vld [vmem:[#allocation5] sm:$0x1]
          %v788 = vld [vmem:[%s2] sm:$0x1]
          %v789 = vadd.f32 %v787, %v788
          %vm790 = vcmask 253952
          %791 = vst.msk [vmem:[#allocation2] sm:$0x1] %vm790, %v789
          %v792 = vld [vmem:[%s664] sm:$0xff]
          %v793 = vld [vmem:[%s2 + $0x1] sm:$0xff]
          %v794 = vadd.f32 %v792, %v793
          %vm795 = vcmask 261120
          %796 = vst.msk [vmem:[#allocation2 + $0x1] sm:$0xff] %vm795, %v794
        $region124: #{crossvit_fwd.3} parent=83 // pred_fallthru
          _
        %v797 = vld [vmem:[#allocation2] sm:$0xff]
        %v798 = vld [vmem:[#allocation2 + $0x8] sm:$0x1]
        %v799 = vld [vmem:[%s768] sm:$0x1]
        %v800 = vld [vmem:[%s771] sm:$0x1]
        %vm801 = vcmask 261120
        %v802 = vsel %vm801, %v797, 0.0
        %803 = vadd.xlane.f32.xlu0 %v802
        %v804 = vpop.xlane.xlu0 %803
        %vm805 = vcmask 253952
        %v806 = vsel %vm805, %v798, 0.0
        %807 = vadd.xlane.f32.xlu0 %v806
        %v808 = vpop.xlane.xlu0 %807
        %v809 = vrcp.pop 32.0
        %v810 = vmul.f32 32.0, %v809
        %v811 = vsub.f32 1.0, %v810
        %v812 = vmul.f32 %v809, %v811
        %v813 = vadd.f32 %v809, %v812
        %vm814 = vweird.f32 %v809
        %v815 = vsel %vm814, %v809, %v813
        %v816 = vmul.f32 %v804, %v815
        %v817 = vmul.f32 %v808, %v815
        %v818 = vsub.f32 %v797, %v816
        %v819 = vsub.f32 %v798, %v817
        %v820 = vmul.f32 %v818, %v818
        %v821 = vmul.f32 %v819, %v819
        %v822 = vsel %vm801, %v820, 0.0
        %823 = vadd.xlane.f32.xlu0 %v822
        %v824 = vpop.xlane.xlu0 %823
        %v825 = vsel %vm805, %v821, 0.0
        %826 = vadd.xlane.f32.xlu0 %v825
        %v827 = vpop.xlane.xlu0 %826
        %v828 = vmul.f32 %v824, %v815
        %v829 = vmul.f32 %v827, %v815
        %v830 = vadd.f32 %v828, 1e-05
        %v831 = vadd.f32 %v829, 1e-05
        %v832 = vrsqrt.pop %v830
        %v833 = vmul.f32 %v832, %v830
        %v834 = vmul.f32 %v833, %v832
        %v835 = vmul.f32 0.5, %v834
        %v836 = vsub.f32 1.5, %v835
        %v837 = vmul.f32 %v832, %v836
        %vm838 = vweird.f32 %v830
        %vm839 = vweird.f32 %v832
        %vm840 = vmor %vm838, %vm839
        %v841 = vsel %vm840, %v832, %v837
        %v842 = vrsqrt.pop %v831
        %v843 = vmul.f32 %v842, %v831
        %v844 = vmul.f32 %v843, %v842
        %v845 = vmul.f32 0.5, %v844
        %v846 = vsub.f32 1.5, %v845
        %v847 = vmul.f32 %v842, %v846
        %vm848 = vweird.f32 %v831
        %vm849 = vweird.f32 %v842
        %vm850 = vmor %vm848, %vm849
        %v851 = vsel %vm850, %v842, %v847
        %v852 = vmul.f32 %v818, %v841
        %v853 = vmul.f32 %v819, %v851
        %v855 = vperm.slane %v799, 0
        %v857 = vmul.f32 %v852, %v855
        %v858 = vmul.f32 %v853, %v855
        %v860 = vperm.slane %v800, 0
        %v862 = vadd.f32 %v857, %v860
        %v863 = vadd.f32 %v858, %v860
        %v864 = vld [vmem:[#allocation7] sm:$0xff]
        %v865 = vld [vmem:[#allocation7 + $0x8] sm:$0xff]
        %v866 = vld [vmem:[#allocation7 + $0x10] sm:$0xff]
        %v867 = vld [vmem:[#allocation7 + $0x18] sm:$0xff]
        %v869 = vsel %vm801, %v862, 0
        %v872 = vsel %vm801, %v863, 0
        %874 = vmatpush.msra.mxu0 0.0
        %875 = vmatpush.msra.mxu0 0.0
        %876 = vmatpush.msra.mxu0 0.0
        %877 = vmatpush.msra.mxu0 0.0
        %878 = vmatpush.msra.mxu0 0.0
        %879 = vmatpush.msra.mxu0 0.0
        %880 = vmatpush.msra.mxu0 0.0
        %881 = vmatpush.msra.mxu0 0.0
        %882 = vmatpush.msra.mxu0 0.0
        %883 = vmatpush.msra.mxu0 0.0
        %884 = vmatpush.msra.mxu0 0.0
        %885 = vmatpush.msra.mxu0 0.0
        %886 = vmatpush.msra.mxu0 %v867
        %887 = vmatpush.msra.mxu0 %v866
        %888 = vmatpush.msra.mxu0 %v865
        %889 = vmatpush.msra.mxu0 %v864
        %890 = vmatmul.f32.gmra.mxu0 %v869
        %v891 = vpop.f32.mrf.mxu0
        %v892 = vadd.f32 0.0, %v891
        %893 = vmatmul.f32.gmra.mxu0 %v872
        %v894 = vpop.f32.mrf.mxu0
        %v895 = vadd.f32 0.0, %v894
        %896 = vdwg.mxu0
        %v897 = vld [vmem:[#allocation8] sm:$0xff]
        %v898 = vld [vmem:[#allocation8 + $0x8] sm:$0xff]
        %901 = vrot.lane.b32.xlu0 %v892, 120
        %v902 = vpop.permute.xlu0 %901
        %903 = vrot.lane.b32.xlu0 %v895, 120
        %v904 = vpop.permute.xlu0 %903
        %905 = vrot.lane.b32.xlu0 %v892, 112
        %v906 = vpop.permute.xlu0 %905
        %907 = vrot.lane.b32.xlu0 %v895, 112
        %v908 = vpop.permute.xlu0 %907
        %vm909 = vcmask 64512
        %v910 = vsel %vm909, %v892, 0
        %v912 = vsel %vm909, %v895, 0
        %v914 = vsel %vm909, %v906, 0
        %v916 = vsel %vm909, %v908, 0
        %918 = vmatpush.xpose.msra.mxu0 0.0
        %919 = vmatpush.xpose.msra.mxu0 0.0
        %920 = vmatpush.xpose.msra.mxu0 0.0
        %921 = vmatpush.xpose.msra.mxu0 0.0
        %922 = vmatpush.xpose.msra.mxu0 0.0
        %923 = vmatpush.xpose.msra.mxu0 0.0
        %924 = vmatpush.xpose.msra.mxu0 0.0
        %925 = vmatpush.xpose.msra.mxu0 0.0
        %926 = vmatpush.xpose.msra.mxu0 0.0
        %927 = vmatpush.xpose.msra.mxu0 0.0
        %928 = vmatpush.xpose.msra.mxu0 0.0
        %929 = vmatpush.xpose.msra.mxu0 0.0
        %930 = vmatpush.xpose.msra.mxu0 0.0
        %931 = vmatpush.xpose.msra.mxu0 0.0
        %932 = vmatpush.xpose.msra.mxu0 %v916
        %933 = vmatpush.xpose.msra.mxu0 %v914
        %934 = vmatmul.f32.gmra.mxu0 %v910
        %v935 = vpop.f32.mrf.mxu0
        %v936 = vadd.f32 0.0, %v935
        %937 = vmatmul.f32.gmra.mxu0 %v912
        %v938 = vpop.f32.mrf.mxu0
        %v939 = vadd.f32 0.0, %v938
        %940 = vdwg.mxu0
        %941 = vrot.lane.b32.xlu0 %v902, 112
        %v942 = vpop.permute.xlu0 %941
        %943 = vrot.lane.b32.xlu0 %v904, 112
        %v944 = vpop.permute.xlu0 %943
        %v945 = vsel %vm909, %v902, 0
        %v947 = vsel %vm909, %v904, 0
        %v949 = vsel %vm909, %v942, 0
        %v951 = vsel %vm909, %v944, 0
        %953 = vmatpush.xpose.msra.mxu0 0.0
        %954 = vmatpush.xpose.msra.mxu0 0.0
        %955 = vmatpush.xpose.msra.mxu0 0.0
        %956 = vmatpush.xpose.msra.mxu0 0.0
        %957 = vmatpush.xpose.msra.mxu0 0.0
        %958 = vmatpush.xpose.msra.mxu0 0.0
        %959 = vmatpush.xpose.msra.mxu0 0.0
        %960 = vmatpush.xpose.msra.mxu0 0.0
        %961 = vmatpush.xpose.msra.mxu0 0.0
        %962 = vmatpush.xpose.msra.mxu0 0.0
        %963 = vmatpush.xpose.msra.mxu0 0.0
        %964 = vmatpush.xpose.msra.mxu0 0.0
        %965 = vmatpush.xpose.msra.mxu0 0.0
        %966 = vmatpush.xpose.msra.mxu0 0.0
        %967 = vmatpush.xpose.msra.mxu0 %v951
        %968 = vmatpush.xpose.msra.mxu0 %v949
        %969 = vmatmul.f32.gmra.mxu0 %v945
        %v970 = vpop.f32.mrf.mxu0
        %v971 = vadd.f32 0.0, %v970
        %972 = vmatmul.f32.gmra.mxu0 %v947
        %v973 = vpop.f32.mrf.mxu0
        %v974 = vadd.f32 0.0, %v973
        %975 = vdwg.mxu0
        %v976 = vmul.f32 %v936, 0.35355338
        %v977 = vmul.f32 %v939, 0.35355338
        %v978 = vmul.f32 %v971, 0.35355338
        %v979 = vmul.f32 %v974, 0.35355338
        %vm980 = vcmask 72704
        %v981 = vsel %vm980, %v976, -inf
        %982 = vmax.xlane.f32.xlu0 %v981
        %v983 = vpop.xlane.xlu0 %982
        %vm984 = vcmask 65536
        %v985 = vsel %vm984, %v977, -inf
        %986 = vmax.xlane.f32.xlu0 %v985
        %v987 = vpop.xlane.xlu0 %986
        %v988 = vsel %vm980, %v978, -inf
        %989 = vmax.xlane.f32.xlu0 %v988
        %v990 = vpop.xlane.xlu0 %989
        %v991 = vsel %vm984, %v979, -inf
        %992 = vmax.xlane.f32.xlu0 %v991
        %v993 = vpop.xlane.xlu0 %992
        %v994 = vsub.f32 %v976, %v983
        %v995 = vsub.f32 %v977, %v987
        %v996 = vsub.f32 %v978, %v990
        %v997 = vsub.f32 %v979, %v993
        %v998 = vmul.f32 %v994, 1.442695
        %v999 = vpow.pop %v998
        %v1000 = vmul.f32 %v995, 1.442695
        %v1001 = vpow.pop %v1000
        %v1002 = vmul.f32 %v996, 1.442695
        %v1003 = vpow.pop %v1002
        %v1004 = vmul.f32 %v997, 1.442695
        %v1005 = vpow.pop %v1004
        %v1006 = vsel %vm980, %v999, 0.0
        %1007 = vadd.xlane.f32.xlu0 %v1006
        %v1008 = vpop.xlane.xlu0 %1007
        %v1009 = vsel %vm984, %v1001, 0.0
        %1010 = vadd.xlane.f32.xlu0 %v1009
        %v1011 = vpop.xlane.xlu0 %1010
        %v1012 = vsel %vm980, %v1003, 0.0
        %1013 = vadd.xlane.f32.xlu0 %v1012
        %v1014 = vpop.xlane.xlu0 %1013
        %v1015 = vsel %vm984, %v1005, 0.0
        %1016 = vadd.xlane.f32.xlu0 %v1015
        %v1017 = vpop.xlane.xlu0 %1016
        %1018 = vrot.lane.b32.xlu0 %v892, 96
        %v1019 = vpop.permute.xlu0 %1018
        %1020 = vrot.lane.b32.xlu0 %v895, 96
        %v1021 = vpop.permute.xlu0 %1020
        %v1024 = vsel %vm980, %v999, 0
        %v1027 = vsel %vm980, %v1001, 0
        %vm1029 = vcmask 1040384
        %v1030 = vsel %vm1029, %v1021, 0
        %1032 = vmatpush.msra.mxu0 0.0
        %1033 = vmatpush.msra.mxu0 0.0
        %1034 = vmatpush.msra.mxu0 0.0
        %1035 = vmatpush.msra.mxu0 0.0
        %1036 = vmatpush.msra.mxu0 0.0
        %1037 = vmatpush.msra.mxu0 0.0
        %1038 = vmatpush.msra.mxu0 0.0
        %1039 = vmatpush.msra.mxu0 0.0
        %1040 = vmatpush.msra.mxu0 0.0
        %1041 = vmatpush.msra.mxu0 0.0
        %1042 = vmatpush.msra.mxu0 0.0
        %1043 = vmatpush.msra.mxu0 0.0
        %1044 = vmatpush.msra.mxu0 0.0
        %1045 = vmatpush.msra.mxu0 0.0
        %1046 = vmatpush.msra.mxu0 %v1030
        %1047 = vmatpush.msra.mxu0 %v1019
        %1048 = vmatmul.f32.gmra.mxu0 %v1024
        %v1049 = vpop.f32.mrf.mxu0
        %v1050 = vadd.f32 0.0, %v1049
        %1051 = vmatmul.f32.gmra.mxu0 %v1027
        %v1052 = vpop.f32.mrf.mxu0
        %v1053 = vadd.f32 0.0, %v1052
        %1054 = vdwg.mxu0
        %1055 = vrot.lane.b32.xlu0 %v902, 96
        %v1056 = vpop.permute.xlu0 %1055
        %1057 = vrot.lane.b32.xlu0 %v904, 96
        %v1058 = vpop.permute.xlu0 %1057
        %v1061 = vsel %vm980, %v1003, 0
        %v1064 = vsel %vm980, %v1005, 0
        %v1066 = vsel %vm1029, %v1058, 0
        %1068 = vmatpush.msra.mxu0 0.0
        %1069 = vmatpush.msra.mxu0 0.0
        %1070 = vmatpush.msra.mxu0 0.0
        %1071 = vmatpush.msra.mxu0 0.0
        %1072 = vmatpush.msra.mxu0 0.0
        %1073 = vmatpush.msra.mxu0 0.0
        %1074 = vmatpush.msra.mxu0 0.0
        %1075 = vmatpush.msra.mxu0 0.0
        %1076 = vmatpush.msra.mxu0 0.0
        %1077 = vmatpush.msra.mxu0 0.0
        %1078 = vmatpush.msra.mxu0 0.0
        %1079 = vmatpush.msra.mxu0 0.0
        %1080 = vmatpush.msra.mxu0 0.0
        %1081 = vmatpush.msra.mxu0 0.0
        %1082 = vmatpush.msra.mxu0 %v1066
        %1083 = vmatpush.msra.mxu0 %v1056
        %1084 = vmatmul.f32.gmra.mxu0 %v1061
        %v1085 = vpop.f32.mrf.mxu0
        %v1086 = vadd.f32 0.0, %v1085
        %1087 = vmatmul.f32.gmra.mxu0 %v1064
        %v1088 = vpop.f32.mrf.mxu0
        %v1089 = vadd.f32 0.0, %v1088
        %1090 = vdwg.mxu0
        %v1091 = vrcp.pop %v1008
        %v1092 = vmul.f32 %v1008, %v1091
        %v1093 = vsub.f32 1.0, %v1092
        %v1094 = vmul.f32 %v1091, %v1093
        %v1095 = vadd.f32 %v1091, %v1094
        %vm1096 = vweird.f32 %v1008
        %vm1097 = vweird.f32 %v1091
        %vm1098 = vmor %vm1096, %vm1097
        %v1099 = vsel %vm1098, %v1091, %v1095
        %v1100 = vand.u32 2147483647, %v1008
        %vm1101 = vcmp.eq.f32.partialorder %v1100, 8.507059e+37
        %v1102 = vand.u32 %v1008, 2147483648
        %v1103 = vor.u32 1.1754944e-38, %v1102
        %v1104 = vsel %vm1101, %v1103, %v1099
        %v1105 = vmul.f32 %v1050, %v1104
        %v1106 = vrcp.pop %v1011
        %v1107 = vmul.f32 %v1011, %v1106
        %v1108 = vsub.f32 1.0, %v1107
        %v1109 = vmul.f32 %v1106, %v1108
        %v1110 = vadd.f32 %v1106, %v1109
        %vm1111 = vweird.f32 %v1011
        %vm1112 = vweird.f32 %v1106
        %vm1113 = vmor %vm1111, %vm1112
        %v1114 = vsel %vm1113, %v1106, %v1110
        %v1115 = vand.u32 2147483647, %v1011
        %vm1116 = vcmp.eq.f32.partialorder %v1115, 8.507059e+37
        %v1117 = vand.u32 %v1011, 2147483648
        %v1118 = vor.u32 1.1754944e-38, %v1117
        %v1119 = vsel %vm1116, %v1118, %v1114
        %v1120 = vmul.f32 %v1053, %v1119
        %v1121 = vrcp.pop %v1014
        %v1122 = vmul.f32 %v1014, %v1121
        %v1123 = vsub.f32 1.0, %v1122
        %v1124 = vmul.f32 %v1121, %v1123
        %v1125 = vadd.f32 %v1121, %v1124
        %vm1126 = vweird.f32 %v1014
        %vm1127 = vweird.f32 %v1121
        %vm1128 = vmor %vm1126, %vm1127
        %v1129 = vsel %vm1128, %v1121, %v1125
        %v1130 = vand.u32 2147483647, %v1014
        %vm1131 = vcmp.eq.f32.partialorder %v1130, 8.507059e+37
        %v1132 = vand.u32 %v1014, 2147483648
        %v1133 = vor.u32 1.1754944e-38, %v1132
        %v1134 = vsel %vm1131, %v1133, %v1129
        %v1135 = vmul.f32 %v1086, %v1134
        %v1136 = vrcp.pop %v1017
        %v1137 = vmul.f32 %v1017, %v1136
        %v1138 = vsub.f32 1.0, %v1137
        %v1139 = vmul.f32 %v1136, %v1138
        %v1140 = vadd.f32 %v1136, %v1139
        %vm1141 = vweird.f32 %v1017
        %vm1142 = vweird.f32 %v1136
        %vm1143 = vmor %vm1141, %vm1142
        %v1144 = vsel %vm1143, %v1136, %v1140
        %v1145 = vand.u32 2147483647, %v1017
        %vm1146 = vcmp.eq.f32.partialorder %v1145, 8.507059e+37
        %v1147 = vand.u32 %v1017, 2147483648
        %v1148 = vor.u32 1.1754944e-38, %v1147
        %v1149 = vsel %vm1146, %v1148, %v1144
        %v1150 = vmul.f32 %v1089, %v1149
        %v1152 = vsel %vm909, %v1105, 0
        %v1155 = vsel %vm909, %v1120, 0
        %1157 = vmatpush.msra.mxu0 0.0
        %1158 = vmatpush.msra.mxu0 0.0
        %1159 = vmatpush.msra.mxu0 0.0
        %1160 = vmatpush.msra.mxu0 0.0
        %1161 = vmatpush.msra.mxu0 0.0
        %1162 = vmatpush.msra.mxu0 0.0
        %1163 = vmatpush.msra.mxu0 0.0
        %1164 = vmatpush.msra.mxu0 0.0
        %1165 = vmatpush.msra.mxu0 0.0
        %1166 = vmatpush.msra.mxu0 0.0
        %1167 = vmatpush.msra.mxu0 0.0
        %1168 = vmatpush.msra.mxu0 0.0
        %1169 = vmatpush.msra.mxu0 0.0
        %1170 = vmatpush.msra.mxu0 0.0
        %1171 = vmatpush.msra.mxu0 0.0
        %1172 = vmatpush.msra.mxu0 %v897
        %1173 = vmatmul.f32.gmra.mxu0 %v1152
        %v1174 = vpop.f32.mrf.mxu0
        %v1175 = vadd.f32 0.0, %v1174
        %1176 = vmatmul.f32.gmra.mxu0 %v1155
        %v1177 = vpop.f32.mrf.mxu0
        %v1178 = vadd.f32 0.0, %v1177
        %1179 = vdwg.mxu0
        %v1181 = vsel %vm909, %v1135, 0
        %v1184 = vsel %vm909, %v1150, 0
        %1186 = vmatpush.msra.mxu0 0.0
        %1187 = vmatpush.msra.mxu0 0.0
        %1188 = vmatpush.msra.mxu0 0.0
        %1189 = vmatpush.msra.mxu0 0.0
        %1190 = vmatpush.msra.mxu0 0.0
        %1191 = vmatpush.msra.mxu0 0.0
        %1192 = vmatpush.msra.mxu0 0.0
        %1193 = vmatpush.msra.mxu0 0.0
        %1194 = vmatpush.msra.mxu0 0.0
        %1195 = vmatpush.msra.mxu0 0.0
        %1196 = vmatpush.msra.mxu0 0.0
        %1197 = vmatpush.msra.mxu0 0.0
        %1198 = vmatpush.msra.mxu0 0.0
        %1199 = vmatpush.msra.mxu0 0.0
        %1200 = vmatpush.msra.mxu0 0.0
        %1201 = vmatpush.msra.mxu0 %v898
        %1202 = vmatmul.f32.gmra.mxu0 %v1181
        %v1203 = vpop.f32.mrf.mxu0
        %v1204 = vadd.f32 0.0, %v1203
        %1205 = vmatmul.f32.gmra.mxu0 %v1184
        %v1206 = vpop.f32.mrf.mxu0
        %v1207 = vadd.f32 0.0, %v1206
        %1208 = vdwg.mxu0
        %v1209 = vsel %vm801, %v1175, 0.0
        %v1210 = vsel %vm801, %v1204, 0.0
        %v1211 = vadd.f32 %v1209, %v1210
        %v1212 = vsel %vm805, %v1178, 0.0
        %v1213 = vsel %vm805, %v1207, 0.0
        %v1214 = vadd.f32 %v1212, %v1213
        %v1215 = vadd.f32 %v797, %v1211
        %v1216 = vadd.f32 %v798, %v1214
        %v1217 = vld [vmem:[#allocation10] sm:$0x1]
        %v1219 = vperm.slane %v1217, 0
        %v1221 = vadd.f32 %v1215, %v1219
        %v1222 = vadd.f32 %v1216, %v1219
        %v1223 = vld [vmem:[%s774] sm:$0x1]
        %v1224 = vld [vmem:[%s777] sm:$0x1]
        %v1225 = vsel %vm801, %v1221, 0.0
        %1226 = vadd.xlane.f32.xlu0 %v1225
        %v1227 = vpop.xlane.xlu0 %1226
        %v1228 = vsel %vm805, %v1222, 0.0
        %1229 = vadd.xlane.f32.xlu0 %v1228
        %v1230 = vpop.xlane.xlu0 %1229
        %v1231 = vmul.f32 %v1227, %v815
        %v1232 = vmul.f32 %v1230, %v815
        %v1233 = vsub.f32 %v1221, %v1231
        %v1234 = vsub.f32 %v1222, %v1232
        %v1235 = vmul.f32 %v1233, %v1233
        %v1236 = vmul.f32 %v1234, %v1234
        %v1237 = vsel %vm801, %v1235, 0.0
        %1238 = vadd.xlane.f32.xlu0 %v1237
        %v1239 = vpop.xlane.xlu0 %1238
        %v1240 = vsel %vm805, %v1236, 0.0
        %1241 = vadd.xlane.f32.xlu0 %v1240
        %v1242 = vpop.xlane.xlu0 %1241
        %v1243 = vmul.f32 %v1239, %v815
        %v1244 = vmul.f32 %v1242, %v815
        %v1245 = vadd.f32 %v1243, 1e-05
        %v1246 = vadd.f32 %v1244, 1e-05
        %v1247 = vrsqrt.pop %v1245
        %v1248 = vmul.f32 %v1247, %v1245
        %v1249 = vmul.f32 %v1248, %v1247
        %v1250 = vmul.f32 0.5, %v1249
        %v1251 = vsub.f32 1.5, %v1250
        %v1252 = vmul.f32 %v1247, %v1251
        %vm1253 = vweird.f32 %v1245
        %vm1254 = vweird.f32 %v1247
        %vm1255 = vmor %vm1253, %vm1254
        %v1256 = vsel %vm1255, %v1247, %v1252
        %v1257 = vrsqrt.pop %v1246
        %v1258 = vmul.f32 %v1257, %v1246
        %v1259 = vmul.f32 %v1258, %v1257
        %v1260 = vmul.f32 0.5, %v1259
        %v1261 = vsub.f32 1.5, %v1260
        %v1262 = vmul.f32 %v1257, %v1261
        %vm1263 = vweird.f32 %v1246
        %vm1264 = vweird.f32 %v1257
        %vm1265 = vmor %vm1263, %vm1264
        %v1266 = vsel %vm1265, %v1257, %v1262
        %v1267 = vmul.f32 %v1233, %v1256
        %v1268 = vmul.f32 %v1234, %v1266
        %v1270 = vperm.slane %v1223, 0
        %v1272 = vmul.f32 %v1267, %v1270
        %v1273 = vmul.f32 %v1268, %v1270
        %v1275 = vperm.slane %v1224, 0
        %v1277 = vadd.f32 %v1272, %v1275
        %v1278 = vadd.f32 %v1273, %v1275
        %v1279 = vld [vmem:[#allocation11] sm:$0xff]
        %v1280 = vld [vmem:[#allocation11 + $0x8] sm:$0xff]
        %v1281 = vld [vmem:[#allocation11 + $0x10] sm:$0xff]
        %v1282 = vld [vmem:[#allocation11 + $0x18] sm:$0xff]
        %v1283 = vld [vmem:[#allocation13] sm:$0x1]
        %v1285 = vperm.slane %v1283, 0
        %v1288 = vsel %vm801, %v1277, 0
        %v1291 = vsel %vm801, %v1278, 0
        %1293 = vmatpush.msra.mxu0 0.0
        %1294 = vmatpush.msra.mxu0 0.0
        %1295 = vmatpush.msra.mxu0 0.0
        %1296 = vmatpush.msra.mxu0 0.0
        %1297 = vmatpush.msra.mxu0 0.0
        %1298 = vmatpush.msra.mxu0 0.0
        %1299 = vmatpush.msra.mxu0 0.0
        %1300 = vmatpush.msra.mxu0 0.0
        %1301 = vmatpush.msra.mxu0 0.0
        %1302 = vmatpush.msra.mxu0 0.0
        %1303 = vmatpush.msra.mxu0 0.0
        %1304 = vmatpush.msra.mxu0 0.0
        %1305 = vmatpush.msra.mxu0 %v1282
        %1306 = vmatpush.msra.mxu0 %v1281
        %1307 = vmatpush.msra.mxu0 %v1280
        %1308 = vmatpush.msra.mxu0 %v1279
        %1309 = vmatmul.f32.gmra.mxu0 %v1288
        %v1310 = vpop.f32.mrf.mxu0
        %v1311 = vadd.f32 %v1285, %v1310
        %1312 = vmatmul.f32.gmra.mxu0 %v1291
        %v1313 = vpop.f32.mrf.mxu0
        %v1314 = vadd.f32 %v1285, %v1313
        %1315 = vdwg.mxu0
        %v1316 = vmul.f32 %v1311, 0.5
        %v1317 = vmul.f32 %v1314, 0.5
        %v1318 = vmul.f32 %v1311, 0.70710677
        %v1319 = vmul.f32 %v1314, 0.70710677
        %v1320 = vmul.f32 %v1318, %v1318
        %v1321 = vmin.f32 16.0, %v1320
        %v1322 = vmul.f32 %v1321, 2.1237322e-06
        %v1323 = vadd.f32 %v1322, 0.00028619796
        %v1324 = vmul.f32 %v1321, %v1323
        %v1325 = vadd.f32 %v1324, 0.0036580483
        %v1326 = vmul.f32 %v1321, %v1325
        %v1327 = vadd.f32 %v1326, 0.05243302
        %v1328 = vmul.f32 %v1321, %v1327
        %v1329 = vadd.f32 %v1328, 0.18741608
        %v1330 = vmul.f32 %v1321, %v1329
        %v1331 = vadd.f32 %v1330, 1.1283791
        %v1332 = vmul.f32 %v1318, %v1331
        %v1333 = vmul.f32 %v1321, 3.8918573e-05
        %v1334 = vadd.f32 %v1333, 0.001143296
        %v1335 = vmul.f32 %v1321, %v1334
        %v1336 = vadd.f32 %v1335, 0.014752088
        %v1337 = vmul.f32 %v1321, %v1336
        %v1338 = vadd.f32 %v1337, 0.112945676
        %v1339 = vmul.f32 %v1321, %v1338
        %v1340 = vadd.f32 %v1339, 0.4994258
        %v1341 = vmul.f32 %v1321, %v1340
        %v1342 = vadd.f32 %v1341, 1.0
        %v1343 = vrcp.pop %v1342
        %v1344 = vmul.f32 %v1342, %v1343
        %v1345 = vsub.f32 1.0, %v1344
        %v1346 = vmul.f32 %v1343, %v1345
        %v1347 = vadd.f32 %v1343, %v1346
        %vm1348 = vweird.f32 %v1342
        %vm1349 = vweird.f32 %v1343
        %vm1350 = vmor %vm1348, %vm1349
        %v1351 = vsel %vm1350, %v1343, %v1347
        %v1352 = vand.u32 2147483647, %v1342
        %vm1353 = vcmp.eq.f32.partialorder %v1352, 8.507059e+37
        %v1354 = vand.u32 %v1342, 2147483648
        %v1355 = vor.u32 1.1754944e-38, %v1354
        %v1356 = vsel %vm1353, %v1355, %v1351
        %v1357 = vmul.f32 %v1332, %v1356
        %v1358 = vmin.f32 %v1357, 1.0
        %v1359 = vmax.f32 %v1358, -1.0
        %v1360 = vmul.f32 %v1319, %v1319
        %v1361 = vmin.f32 16.0, %v1360
        %v1362 = vmul.f32 %v1361, 2.1237322e-06
        %v1363 = vadd.f32 %v1362, 0.00028619796
        %v1364 = vmul.f32 %v1361, %v1363
        %v1365 = vadd.f32 %v1364, 0.0036580483
        %v1366 = vmul.f32 %v1361, %v1365
        %v1367 = vadd.f32 %v1366, 0.05243302
        %v1368 = vmul.f32 %v1361, %v1367
        %v1369 = vadd.f32 %v1368, 0.18741608
        %v1370 = vmul.f32 %v1361, %v1369
        %v1371 = vadd.f32 %v1370, 1.1283791
        %v1372 = vmul.f32 %v1319, %v1371
        %v1373 = vmul.f32 %v1361, 3.8918573e-05
        %v1374 = vadd.f32 %v1373, 0.001143296
        %v1375 = vmul.f32 %v1361, %v1374
        %v1376 = vadd.f32 %v1375, 0.014752088
        %v1377 = vmul.f32 %v1361, %v1376
        %v1378 = vadd.f32 %v1377, 0.112945676
        %v1379 = vmul.f32 %v1361, %v1378
        %v1380 = vadd.f32 %v1379, 0.4994258
        %v1381 = vmul.f32 %v1361, %v1380
        %v1382 = vadd.f32 %v1381, 1.0
        %v1383 = vrcp.pop %v1382
        %v1384 = vmul.f32 %v1382, %v1383
        %v1385 = vsub.f32 1.0, %v1384
        %v1386 = vmul.f32 %v1383, %v1385
        %v1387 = vadd.f32 %v1383, %v1386
        %vm1388 = vweird.f32 %v1382
        %vm1389 = vweird.f32 %v1383
        %vm1390 = vmor %vm1388, %vm1389
        %v1391 = vsel %vm1390, %v1383, %v1387
        %v1392 = vand.u32 2147483647, %v1382
        %vm1393 = vcmp.eq.f32.partialorder %v1392, 8.507059e+37
        %v1394 = vand.u32 %v1382, 2147483648
        %v1395 = vor.u32 1.1754944e-38, %v1394
        %v1396 = vsel %vm1393, %v1395, %v1391
        %v1397 = vmul.f32 %v1372, %v1396
        %v1398 = vmin.f32 %v1397, 1.0
        %v1399 = vmax.f32 %v1398, -1.0
        %v1400 = vadd.f32 %v1359, 1.0
        %v1401 = vadd.f32 %v1399, 1.0
        %v1402 = vmul.f32 %v1316, %v1400
        %v1403 = vmul.f32 %v1317, %v1401
        %v1404 = vld [vmem:[#allocation14] sm:$0xff]
        %v1405 = vld [vmem:[#allocation14 + $0x8] sm:$0xff]
        %v1406 = vld [vmem:[#allocation14 + $0x10] sm:$0xff]
        %v1407 = vld [vmem:[#allocation14 + $0x18] sm:$0xff]
        %v1408 = vld [vmem:[#allocation14 + $0x20] sm:$0xff]
        %v1409 = vld [vmem:[#allocation14 + $0x28] sm:$0xff]
        %v1410 = vld [vmem:[#allocation14 + $0x30] sm:$0xff]
        %v1411 = vld [vmem:[#allocation14 + $0x38] sm:$0xff]
        %vm1412 = vcmask 523264
        %v1414 = vsel %vm1412, %v1402, 0
        %v1417 = vsel %vm1412, %v1403, 0
        %1419 = vmatpush.msra.mxu0 0.0
        %1420 = vmatpush.msra.mxu0 0.0
        %1421 = vmatpush.msra.mxu0 0.0
        %1422 = vmatpush.msra.mxu0 0.0
        %1423 = vmatpush.msra.mxu0 0.0
        %1424 = vmatpush.msra.mxu0 0.0
        %1425 = vmatpush.msra.mxu0 0.0
        %1426 = vmatpush.msra.mxu0 0.0
        %1427 = vmatpush.msra.mxu0 %v1411
        %1428 = vmatpush.msra.mxu0 %v1410
        %1429 = vmatpush.msra.mxu0 %v1409
        %1430 = vmatpush.msra.mxu0 %v1408
        %1431 = vmatpush.msra.mxu0 %v1407
        %1432 = vmatpush.msra.mxu0 %v1406
        %1433 = vmatpush.msra.mxu0 %v1405
        %1434 = vmatpush.msra.mxu0 %v1404
        %1435 = vmatmul.f32.gmra.mxu0 %v1414
        %v1436 = vpop.f32.mrf.mxu0
        %v1437 = vadd.f32 0.0, %v1436
        %1438 = vmatmul.f32.gmra.mxu0 %v1417
        %v1439 = vpop.f32.mrf.mxu0
        %v1440 = vadd.f32 0.0, %v1439
        %1441 = vdwg.mxu0
        %v1442 = vadd.f32 %v1221, %v1437
        %v1443 = vadd.f32 %v1222, %v1440
        %v1444 = vld [vmem:[#allocation16] sm:$0x1]
        %v1446 = vperm.slane %v1444, 0
        %v1448 = vadd.f32 %v1442, %v1446
        %v1449 = vadd.f32 %v1443, %v1446
        %1450 = vst.msk [vmem:[#allocation2] sm:$0xff] %vm801, %v1448
        %1451 = vst.msk [vmem:[#allocation2 + $0x8] sm:$0x1] %vm805, %v1449
        // Predicated region
        $region125: #{crossvit_fwd.3} parent=83 // pred_check
          %p1452 = pneg %p783
        $region126: #{crossvit_fwd.3} parent=83 // pred_check_branch
          %1454 = sbr.rel (%p1452) target = $region128
        $region127: #{crossvit_fwd.3} parent=83 // pred_region
          %v1455 = vld [vmem:[%s14] sm:$0x1]
          %v1456 = vld [vmem:[%s15] sm:$0x1]
          %v1457 = vsel %vm801, %v1448, 0.0
          %1458 = vadd.xlane.f32.xlu0 %v1457
          %v1459 = vpop.xlane.xlu0 %1458
          %v1460 = vsel %vm805, %v1449, 0.0
          %1461 = vadd.xlane.f32.xlu0 %v1460
          %v1462 = vpop.xlane.xlu0 %1461
          %v1463 = vmul.f32 %v1459, %v815
          %v1464 = vmul.f32 %v1462, %v815
          %v1465 = vsub.f32 %v1448, %v1463
          %v1466 = vsub.f32 %v1449, %v1464
          %v1467 = vmul.f32 %v1465, %v1465
          %v1468 = vmul.f32 %v1466, %v1466
          %v1469 = vsel %vm801, %v1467, 0.0
          %1470 = vadd.xlane.f32.xlu0 %v1469
          %v1471 = vpop.xlane.xlu0 %1470
          %v1472 = vsel %vm805, %v1468, 0.0
          %1473 = vadd.xlane.f32.xlu0 %v1472
          %v1474 = vpop.xlane.xlu0 %1473
          %v1475 = vmul.f32 %v1471, %v815
          %v1476 = vmul.f32 %v1474, %v815
          %v1477 = vadd.f32 %v1475, 1e-05
          %v1478 = vadd.f32 %v1476, 1e-05
          %v1479 = vrsqrt.pop %v1477
          %v1480 = vmul.f32 %v1479, %v1477
          %v1481 = vmul.f32 %v1480, %v1479
          %v1482 = vmul.f32 0.5, %v1481
          %v1483 = vsub.f32 1.5, %v1482
          %v1484 = vmul.f32 %v1479, %v1483
          %vm1485 = vweird.f32 %v1477
          %vm1486 = vweird.f32 %v1479
          %vm1487 = vmor %vm1485, %vm1486
          %v1488 = vsel %vm1487, %v1479, %v1484
          %v1489 = vrsqrt.pop %v1478
          %v1490 = vmul.f32 %v1489, %v1478
          %v1491 = vmul.f32 %v1490, %v1489
          %v1492 = vmul.f32 0.5, %v1491
          %v1493 = vsub.f32 1.5, %v1492
          %v1494 = vmul.f32 %v1489, %v1493
          %vm1495 = vweird.f32 %v1478
          %vm1496 = vweird.f32 %v1489
          %vm1497 = vmor %vm1495, %vm1496
          %v1498 = vsel %vm1497, %v1489, %v1494
          %v1499 = vmul.f32 %v1465, %v1488
          %v1500 = vmul.f32 %v1466, %v1498
          %v1502 = vperm.slane %v1455, 0
          %v1504 = vmul.f32 %v1499, %v1502
          %v1505 = vmul.f32 %v1500, %v1502
          %v1507 = vperm.slane %v1456, 0
          %v1509 = vadd.f32 %v1504, %v1507
          %v1510 = vadd.f32 %v1505, %v1507
          %1511 = vst.msk [vmem:[%s782] sm:$0xff] %vm801, %v1509
          %1512 = vst.msk [vmem:[%s782 + $0x8] sm:$0x1] %vm805, %v1510
        $region128: #{crossvit_fwd.3} parent=83 // pred_fallthru
          _
        %p1513 = scmp.lt.s32.totalorder %s38, 1
        %s1514 = scalar_select %p1513, %s38, 1
        %s1515 = smul.addr %s1514, 2
        %s1516 = smul.addr %s1515, 8
        %s1517 = scalar_lea.vmem %s16, %s1516
        // Predicated region
        $region129: #{crossvit_fwd.3} parent=83 // pred_check
          %p1518 = pneg %p460
        $region130: #{crossvit_fwd.3} parent=83 // pred_check_branch
          %1520 = sbr.rel (%p1518) target = $region132
        $region131: #{crossvit_fwd.3} parent=83 // pred_region
          _
        $region132: #{crossvit_fwd.3} parent=83 // pred_fallthru
          _
      $region84: #{crossvit_fwd.3} parent=5 // pred_fallthru
        _
      %p1521 = scmp.le.s32.totalorder 2, %s29
      // Predicated region
      $region133: #{crossvit_fwd.3} parent=5 // pred_check
        %p1522 = pneg %p1521
      $region134: #{crossvit_fwd.3} parent=5 // pred_check_branch
        %1524 = sbr.rel (%p1522) target = $region136
      $region135: #{crossvit_fwd.3} parent=5 // pred_region
        %s1525 = ssub.s32 %s29, 2
        // Predicated region
        $region137: #{crossvit_fwd.3} parent=135 // pred_check
          %p1526 = pneg %p466
        $region138: #{crossvit_fwd.3} parent=135 // pred_check_branch
          %1528 = sbr.rel (%p1526) target = $region140
        $region139: #{crossvit_fwd.3} parent=135 // pred_region
          %p1529 = scmp.lt.s32.totalorder %s40, 1
          %s1530 = scalar_select %p1529, %s40, 1
          %s1531 = smul.addr %s1530, 2
          %s1532 = smul.addr %s1531, 8
          %s1533 = scalar_lea.vmem %s16, %s1532
        $region140: #{crossvit_fwd.3} parent=135 // pred_fallthru
          _
      $region136: #{crossvit_fwd.3} parent=5 // pred_fallthru
        _
    $region6: #{crossvit_fwd.3} parent=1 // loop_footer
      %s33 = sadd.s32 1, %s29
    $region7: #{crossvit_fwd.3} parent=1 // loop_footer_branch
      %28 = sbr.rel target = $region3
    $region8: #{crossvit_fwd.3} parent=1 // loop_exit
      _
    %1534 = vsyncpa [#allocation4], 1
    %s1535 = scalar_lea.sflag [#allocation4], 1
    %1536 = vsyncpa %s1535, 1
    %1537 = vsyncpa [#allocation6], 1
    %1538 = vsyncpa [#allocation9], 1
    %1539 = vsyncpa [#allocation12], 1
    %1540 = vsyncpa [#allocation15], 1

// kernel: crossvit_fwd.4
$region0: #{crossvit_fwd.4}
  #allocation0 [shape = 'u32[]', space=smem, size = 0x4, offset = 0x4, fixed_abs, tag = 'smem constant byte address 0x4 - core index']
  #allocation1 [shape = 'u32[72,128]{1,0:T(1,128)}', space=vmem, size = 0x9000, scoped, tag = 'internal scratch']
  #allocation2 [shape = 'f32[2,64]{1,0:T(2,128)}', space=vmem, size = 0x400, scoped, tag = 'scratch operand']
  %s0 = inlined_call_operand.hbm [shape: f32[2,1,64], index: 0, kind: input, shape index: {}]
  %s1 = inlined_call_operand.vmem [shape: f32[1,1,64], index: 1, kind: input, shape index: {}]
  %s2 = inlined_call_operand.vmem [shape: f32[1,2,64], index: 2, kind: input, shape index: {}]
  %s3 = inlined_call_operand.vmem [shape: f32[2,1,64], index: 3, kind: input, shape index: {}, may-alias: {3,8}]
  %s4 = inlined_call_operand.vmem [shape: f32[2,1,64], index: 4, kind: input, shape index: {}, may-alias: {4,9}]
  %s5 = inlined_call_operand.hbm [shape: f32[2,64,48], index: 5, kind: input, shape index: {}]
  %s6 = inlined_call_operand.hbm [shape: f32[2,2,8,64], index: 6, kind: input, shape index: {}]
  %s7 = inlined_call_operand.vmem [shape: f32[2,1,64], index: 7, kind: input, shape index: {}]
  %s8 = inlined_call_operand.vmem [shape: f32[2,1,64], index: 8, kind: input, shape index: {}, may-alias: {3,8}]
  %s9 = inlined_call_operand.vmem [shape: f32[2,1,64], index: 9, kind: input, shape index: {}, may-alias: {4,9}]
  %s10 = inlined_call_operand.hbm [shape: f32[2,64,64], index: 10, kind: input, shape index: {}]
  %s11 = inlined_call_operand.vmem [shape: f32[2,1,64], index: 11, kind: input, shape index: {}]
  %s12 = inlined_call_operand.hbm [shape: f32[2,64,64], index: 12, kind: input, shape index: {}]
  %s13 = inlined_call_operand.vmem [shape: f32[2,1,64], index: 13, kind: input, shape index: {}]
  %s14 = inlined_call_operand.vmem [shape: f32[1,64], index: 14, kind: input, shape index: {}]
  %s15 = inlined_call_operand.vmem [shape: f32[1,64], index: 15, kind: input, shape index: {}]
  %s16 = inlined_call_operand.vmem [shape: f32[2,2,64], index: 16, kind: output, shape index: {}]
  %s17 = sld [smem:[#allocation0]]
  $region125: #{crossvit_fwd.4} parent=0
    _
  %s19 = ssub.s32 1, %s17
  %s20 = scalar_select 0, %s19, %s17
  $region1: #{crossvit_fwd.4} parent=0
    #allocation3 [shape = 'u8[1024]{0}', space=vmem, size = 0x400, scoped, tag = 'input window, operand 0']
    #allocation4 [shape = 's32[2]{0}', space=sflag, size = 0x8, scoped, tag = 'scoped memory for crossvit_fwd.4']
    #allocation5 [shape = 'u8[65536]{0}', space=vmem, size = 0x10000, scoped, tag = 'input window, operand 5']
    #allocation6 [shape = 's32[2]{0}', space=sflag, size = 0x8, scoped, tag = 'scoped memory for crossvit_fwd.4']
    #allocation7 [shape = 'u8[16384]{0}', space=vmem, size = 0x4000, scoped, tag = 'input window, operand 6']
    #allocation8 [shape = 'u8[65536]{0}', space=vmem, size = 0x10000, scoped, tag = 'input window, operand 10']
    #allocation9 [shape = 's32[2]{0}', space=sflag, size = 0x8, scoped, tag = 'scoped memory for crossvit_fwd.4']
    #allocation10 [shape = 'u8[65536]{0}', space=vmem, size = 0x10000, scoped, tag = 'input window, operand 12']
    %21 = vsyncpa [#allocation4], 0
    %s22 = scalar_lea.sflag [#allocation4], 1
    %23 = vsyncpa %s22, 0
    %24 = vsyncpa [#allocation6], 0
    %s25 = scalar_lea.sflag [#allocation6], 1
    %26 = vsyncpa %s25, 0
    %27 = vsyncpa [#allocation9], 0
    %s28 = scalar_lea.sflag [#allocation9], 1
    %29 = vsyncpa %s28, 0
    loop: start=0, step=1, limit=6
    $region2: #{crossvit_fwd.4} parent=1 // loop_pre_header
      _
    $region3: #{crossvit_fwd.4} parent=1 // loop_header
      %s31 = sphi 0, %s35
      %p32 = scmp.ge.s32.totalorder %s31, 6
      %s38 = sphi 0, %s50
      %s39 = sphi 0, %s46
      %s40 = sphi 0, %s38
      %s41 = sphi 0, %s39
      %s42 = sphi 0, %s40
      %s43 = sphi 0, %s41
      %s53 = sphi 0, %s55
      %s56 = sphi 0, %s53
      %s57 = sphi 0, %s56
      %s73 = sphi 0, %s57
      %s77 = sphi 0, %s77
      %s79 = sphi 0, %s77
      %s80 = sphi 0, %s79
      %s94 = sphi 0, %s80
      %s98 = sphi 0, %s98
      %s100 = sphi 0, %s98
      %s101 = sphi 0, %s100
      %s115 = sphi 0, %s101
      %s121 = sphi 0, %s123
      %s124 = sphi 0, %s121
      %s125 = sphi 0, %s124
      %s141 = sphi 0, %s125
      %s147 = sphi 0, %s149
      %s150 = sphi 0, %s147
      %s151 = sphi 0, %s150
      %s167 = sphi 0, %s151
      %s173 = sphi 0, %s175
      %s176 = sphi 0, %s173
      %s177 = sphi 0, %s176
      %s193 = sphi 0, %s177
      %s199 = sphi 0, %s201
      %s202 = sphi 0, %s199
      %s203 = sphi 0, %s202
      %s219 = sphi 0, %s203
      %s225 = sphi 0, %s227
      %s228 = sphi 0, %s225
      %s229 = sphi 0, %s228
      %s245 = sphi 0, %s229
      %s251 = sphi 0, %s253
      %s254 = sphi 0, %s251
      %s255 = sphi 0, %s254
      %s271 = sphi 0, %s255
      %s277 = sphi 0, %s279
      %s280 = sphi 0, %s277
      %s281 = sphi 0, %s280
      %s297 = sphi 0, %s281
      %s303 = sphi 0, %s305
      %s306 = sphi 0, %s303
      %s307 = sphi 0, %s306
      %s323 = sphi 0, %s307
      %s329 = sphi 0, %s331
      %s332 = sphi 0, %s329
      %s333 = sphi 0, %s332
      %s349 = sphi 0, %s333
      %s355 = sphi 0, %s357
      %s358 = sphi 0, %s355
      %s359 = sphi 0, %s358
      %s375 = sphi 0, %s359
      %s381 = sphi 0, %s383
      %s384 = sphi 0, %s381
      %s385 = sphi 0, %s384
      %s401 = sphi 0, %s385
      %s405 = sphi 0, %s405
      %s407 = sphi 0, %s405
      %s408 = sphi 0, %s407
      %s422 = sphi 0, %s408
      %s426 = sphi 0, %s426
      %s428 = sphi 0, %s426
      %s429 = sphi 0, %s428
      %s443 = sphi 0, %s429
      %s449 = sphi 0, %s451
      %s452 = sphi 0, %s449
      %s453 = sphi 0, %s452
      %s469 = sphi 0, %s453
    $region4: #{crossvit_fwd.4} parent=1 // loop_header_branch
      %34 = sbr.rel (%p32) target = $region8
    $region5: #{crossvit_fwd.4} parent=1 // loop_body
      %s36 = ssub.s32 %s31, 1
      %s37 = ssub.s32 %s31, 2
      %s44 = sadd.s32 1, %s39
      %p45 = scmp.ge.s32.totalorder %s44, 2
      %s46 = scalar_select %p45, 0, %s44
      %s47 = sadd.s32 1, %s38
      %s48 = scalar_select %p45, %s47, %s38
      %p49 = scmp.ge.s32.totalorder %s48, 2
      %s50 = scalar_select %p49, 0, %s48
      %s51 = ssub.s32 %s38, %s50
      %p52 = scmp.eq.s32.totalorder %s51, 0
      %s54 = sadd.s32 %s53, 1
      %s55 = scalar_select %p52, %s53, %s54
      %p58 = pneg %p52
      %p59 = scmp.eq.s32.totalorder %s31, 3
      %p60 = por %p58, %p59
      %p61 = scmp.ne.s32.totalorder %s53, %s56
      %p62 = scmp.eq.s32.totalorder %s31, 0
      %p63 = por %p61, %p62
      %p64 = scmp.ne.s32.totalorder %s53, %s56
      %p65 = scmp.eq.s32.totalorder %s36, 3
      %p66 = por %p64, %p65
      %p67 = scmp.ne.s32.totalorder %s56, %s57
      %p68 = scmp.eq.s32.totalorder %s36, 0
      %p69 = por %p67, %p68
      %p70 = scmp.ne.s32.totalorder %s56, %s57
      %p71 = scmp.eq.s32.totalorder %s37, 3
      %p72 = por %p70, %p71
      %p74 = scmp.ne.s32.totalorder %s57, %s73
      %p75 = scmp.eq.s32.totalorder %s37, 0
      %p76 = por %p74, %p75
      %s78 = sadd.s32 %s77, 1
      %p81 = scmp.eq.s32.totalorder %s31, 3
      %p82 = scmp.ne.s32.totalorder %s77, %s79
      %p83 = scmp.eq.s32.totalorder %s31, 0
      %p84 = por %p82, %p83
      %p85 = scmp.ne.s32.totalorder %s77, %s79
      %p86 = scmp.eq.s32.totalorder %s36, 3
      %p87 = por %p85, %p86
      %p88 = scmp.ne.s32.totalorder %s79, %s80
      %p89 = scmp.eq.s32.totalorder %s36, 0
      %p90 = por %p88, %p89
      %p91 = scmp.ne.s32.totalorder %s79, %s80
      %p92 = scmp.eq.s32.totalorder %s37, 3
      %p93 = por %p91, %p92
      %p95 = scmp.ne.s32.totalorder %s80, %s94
      %p96 = scmp.eq.s32.totalorder %s37, 0
      %p97 = por %p95, %p96
      %s99 = sadd.s32 %s98, 1
      %p102 = scmp.eq.s32.totalorder %s31, 3
      %p103 = scmp.ne.s32.totalorder %s98, %s100
      %p104 = scmp.eq.s32.totalorder %s31, 0
      %p105 = por %p103, %p104
      %p106 = scmp.ne.s32.totalorder %s98, %s100
      %p107 = scmp.eq.s32.totalorder %s36, 3
      %p108 = por %p106, %p107
      %p109 = scmp.ne.s32.totalorder %s100, %s101
      %p110 = scmp.eq.s32.totalorder %s36, 0
      %p111 = por %p109, %p110
      %p112 = scmp.ne.s32.totalorder %s100, %s101
      %p113 = scmp.eq.s32.totalorder %s37, 3
      %p114 = por %p112, %p113
      %p116 = scmp.ne.s32.totalorder %s101, %s115
      %p117 = scmp.eq.s32.totalorder %s37, 0
      %p118 = por %p116, %p117
      %s119 = ssub.s32 %s39, %s46
      %p120 = scmp.eq.s32.totalorder %s119, 0
      %s122 = sadd.s32 %s121, 1
      %s123 = scalar_select %p120, %s121, %s122
      %p126 = pneg %p120
      %p127 = scmp.eq.s32.totalorder %s31, 3
      %p128 = por %p126, %p127
      %p129 = scmp.ne.s32.totalorder %s121, %s124
      %p130 = scmp.eq.s32.totalorder %s31, 0
      %p131 = por %p129, %p130
      %p132 = scmp.ne.s32.totalorder %s121, %s124
      %p133 = scmp.eq.s32.totalorder %s36, 3
      %p134 = por %p132, %p133
      %p135 = scmp.ne.s32.totalorder %s124, %s125
      %p136 = scmp.eq.s32.totalorder %s36, 0
      %p137 = por %p135, %p136
      %p138 = scmp.ne.s32.totalorder %s124, %s125
      %p139 = scmp.eq.s32.totalorder %s37, 3
      %p140 = por %p138, %p139
      %p142 = scmp.ne.s32.totalorder %s125, %s141
      %p143 = scmp.eq.s32.totalorder %s37, 0
      %p144 = por %p142, %p143
      %s145 = ssub.s32 %s39, %s46
      %p146 = scmp.eq.s32.totalorder %s145, 0
      %s148 = sadd.s32 %s147, 1
      %s149 = scalar_select %p146, %s147, %s148
      %p152 = pneg %p146
      %p153 = scmp.eq.s32.totalorder %s31, 3
      %p154 = por %p152, %p153
      %p155 = scmp.ne.s32.totalorder %s147, %s150
      %p156 = scmp.eq.s32.totalorder %s31, 0
      %p157 = por %p155, %p156
      %p158 = scmp.ne.s32.totalorder %s147, %s150
      %p159 = scmp.eq.s32.totalorder %s36, 3
      %p160 = por %p158, %p159
      %p161 = scmp.ne.s32.totalorder %s150, %s151
      %p162 = scmp.eq.s32.totalorder %s36, 0
      %p163 = por %p161, %p162
      %p164 = scmp.ne.s32.totalorder %s150, %s151
      %p165 = scmp.eq.s32.totalorder %s37, 3
      %p166 = por %p164, %p165
      %p168 = scmp.ne.s32.totalorder %s151, %s167
      %p169 = scmp.eq.s32.totalorder %s37, 0
      %p170 = por %p168, %p169
      %s171 = ssub.s32 %s39, %s46
      %p172 = scmp.eq.s32.totalorder %s171, 0
      %s174 = sadd.s32 %s173, 1
      %s175 = scalar_select %p172, %s173, %s174
      %p178 = pneg %p172
      %p179 = scmp.eq.s32.totalorder %s31, 3
      %p180 = por %p178, %p179
      %p181 = scmp.ne.s32.totalorder %s173, %s176
      %p182 = scmp.eq.s32.totalorder %s31, 0
      %p183 = por %p181, %p182
      %p184 = scmp.ne.s32.totalorder %s173, %s176
      %p185 = scmp.eq.s32.totalorder %s36, 3
      %p186 = por %p184, %p185
      %p187 = scmp.ne.s32.totalorder %s176, %s177
      %p188 = scmp.eq.s32.totalorder %s36, 0
      %p189 = por %p187, %p188
      %p190 = scmp.ne.s32.totalorder %s176, %s177
      %p191 = scmp.eq.s32.totalorder %s37, 3
      %p192 = por %p190, %p191
      %p194 = scmp.ne.s32.totalorder %s177, %s193
      %p195 = scmp.eq.s32.totalorder %s37, 0
      %p196 = por %p194, %p195
      %s197 = ssub.s32 %s39, %s46
      %p198 = scmp.eq.s32.totalorder %s197, 0
      %s200 = sadd.s32 %s199, 1
      %s201 = scalar_select %p198, %s199, %s200
      %p204 = pneg %p198
      %p205 = scmp.eq.s32.totalorder %s31, 3
      %p206 = por %p204, %p205
      %p207 = scmp.ne.s32.totalorder %s199, %s202
      %p208 = scmp.eq.s32.totalorder %s31, 0
      %p209 = por %p207, %p208
      %p210 = scmp.ne.s32.totalorder %s199, %s202
      %p211 = scmp.eq.s32.totalorder %s36, 3
      %p212 = por %p210, %p211
      %p213 = scmp.ne.s32.totalorder %s202, %s203
      %p214 = scmp.eq.s32.totalorder %s36, 0
      %p215 = por %p213, %p214
      %p216 = scmp.ne.s32.totalorder %s202, %s203
      %p217 = scmp.eq.s32.totalorder %s37, 3
      %p218 = por %p216, %p217
      %p220 = scmp.ne.s32.totalorder %s203, %s219
      %p221 = scmp.eq.s32.totalorder %s37, 0
      %p222 = por %p220, %p221
      %s223 = ssub.s32 %s39, %s46
      %p224 = scmp.eq.s32.totalorder %s223, 0
      %s226 = sadd.s32 %s225, 1
      %s227 = scalar_select %p224, %s225, %s226
      %p230 = pneg %p224
      %p231 = scmp.eq.s32.totalorder %s31, 3
      %p232 = por %p230, %p231
      %p233 = scmp.ne.s32.totalorder %s225, %s228
      %p234 = scmp.eq.s32.totalorder %s31, 0
      %p235 = por %p233, %p234
      %p236 = scmp.ne.s32.totalorder %s225, %s228
      %p237 = scmp.eq.s32.totalorder %s36, 3
      %p238 = por %p236, %p237
      %p239 = scmp.ne.s32.totalorder %s228, %s229
      %p240 = scmp.eq.s32.totalorder %s36, 0
      %p241 = por %p239, %p240
      %p242 = scmp.ne.s32.totalorder %s228, %s229
      %p243 = scmp.eq.s32.totalorder %s37, 3
      %p244 = por %p242, %p243
      %p246 = scmp.ne.s32.totalorder %s229, %s245
      %p247 = scmp.eq.s32.totalorder %s37, 0
      %p248 = por %p246, %p247
      %s249 = ssub.s32 %s39, %s46
      %p250 = scmp.eq.s32.totalorder %s249, 0
      %s252 = sadd.s32 %s251, 1
      %s253 = scalar_select %p250, %s251, %s252
      %p256 = pneg %p250
      %p257 = scmp.eq.s32.totalorder %s31, 3
      %p258 = por %p256, %p257
      %p259 = scmp.ne.s32.totalorder %s251, %s254
      %p260 = scmp.eq.s32.totalorder %s31, 0
      %p261 = por %p259, %p260
      %p262 = scmp.ne.s32.totalorder %s251, %s254
      %p263 = scmp.eq.s32.totalorder %s36, 3
      %p264 = por %p262, %p263
      %p265 = scmp.ne.s32.totalorder %s254, %s255
      %p266 = scmp.eq.s32.totalorder %s36, 0
      %p267 = por %p265, %p266
      %p268 = scmp.ne.s32.totalorder %s254, %s255
      %p269 = scmp.eq.s32.totalorder %s37, 3
      %p270 = por %p268, %p269
      %p272 = scmp.ne.s32.totalorder %s255, %s271
      %p273 = scmp.eq.s32.totalorder %s37, 0
      %p274 = por %p272, %p273
      %s275 = ssub.s32 %s39, %s46
      %p276 = scmp.eq.s32.totalorder %s275, 0
      %s278 = sadd.s32 %s277, 1
      %s279 = scalar_select %p276, %s277, %s278
      %p282 = pneg %p276
      %p283 = scmp.eq.s32.totalorder %s31, 3
      %p284 = por %p282, %p283
      %p285 = scmp.ne.s32.totalorder %s277, %s280
      %p286 = scmp.eq.s32.totalorder %s31, 0
      %p287 = por %p285, %p286
      %p288 = scmp.ne.s32.totalorder %s277, %s280
      %p289 = scmp.eq.s32.totalorder %s36, 3
      %p290 = por %p288, %p289
      %p291 = scmp.ne.s32.totalorder %s280, %s281
      %p292 = scmp.eq.s32.totalorder %s36, 0
      %p293 = por %p291, %p292
      %p294 = scmp.ne.s32.totalorder %s280, %s281
      %p295 = scmp.eq.s32.totalorder %s37, 3
      %p296 = por %p294, %p295
      %p298 = scmp.ne.s32.totalorder %s281, %s297
      %p299 = scmp.eq.s32.totalorder %s37, 0
      %p300 = por %p298, %p299
      %s301 = ssub.s32 %s39, %s46
      %p302 = scmp.eq.s32.totalorder %s301, 0
      %s304 = sadd.s32 %s303, 1
      %s305 = scalar_select %p302, %s303, %s304
      %p308 = pneg %p302
      %p309 = scmp.eq.s32.totalorder %s31, 3
      %p310 = por %p308, %p309
      %p311 = scmp.ne.s32.totalorder %s303, %s306
      %p312 = scmp.eq.s32.totalorder %s31, 0
      %p313 = por %p311, %p312
      %p314 = scmp.ne.s32.totalorder %s303, %s306
      %p315 = scmp.eq.s32.totalorder %s36, 3
      %p316 = por %p314, %p315
      %p317 = scmp.ne.s32.totalorder %s306, %s307
      %p318 = scmp.eq.s32.totalorder %s36, 0
      %p319 = por %p317, %p318
      %p320 = scmp.ne.s32.totalorder %s306, %s307
      %p321 = scmp.eq.s32.totalorder %s37, 3
      %p322 = por %p320, %p321
      %p324 = scmp.ne.s32.totalorder %s307, %s323
      %p325 = scmp.eq.s32.totalorder %s37, 0
      %p326 = por %p324, %p325
      %s327 = ssub.s32 %s39, %s46
      %p328 = scmp.eq.s32.totalorder %s327, 0
      %s330 = sadd.s32 %s329, 1
      %s331 = scalar_select %p328, %s329, %s330
      %p334 = pneg %p328
      %p335 = scmp.eq.s32.totalorder %s31, 3
      %p336 = por %p334, %p335
      %p337 = scmp.ne.s32.totalorder %s329, %s332
      %p338 = scmp.eq.s32.totalorder %s31, 0
      %p339 = por %p337, %p338
      %p340 = scmp.ne.s32.totalorder %s329, %s332
      %p341 = scmp.eq.s32.totalorder %s36, 3
      %p342 = por %p340, %p341
      %p343 = scmp.ne.s32.totalorder %s332, %s333
      %p344 = scmp.eq.s32.totalorder %s36, 0
      %p345 = por %p343, %p344
      %p346 = scmp.ne.s32.totalorder %s332, %s333
      %p347 = scmp.eq.s32.totalorder %s37, 3
      %p348 = por %p346, %p347
      %p350 = scmp.ne.s32.totalorder %s333, %s349
      %p351 = scmp.eq.s32.totalorder %s37, 0
      %p352 = por %p350, %p351
      %s353 = ssub.s32 %s39, %s46
      %p354 = scmp.eq.s32.totalorder %s353, 0
      %s356 = sadd.s32 %s355, 1
      %s357 = scalar_select %p354, %s355, %s356
      %p360 = pneg %p354
      %p361 = scmp.eq.s32.totalorder %s31, 3
      %p362 = por %p360, %p361
      %p363 = scmp.ne.s32.totalorder %s355, %s358
      %p364 = scmp.eq.s32.totalorder %s31, 0
      %p365 = por %p363, %p364
      %p366 = scmp.ne.s32.totalorder %s355, %s358
      %p367 = scmp.eq.s32.totalorder %s36, 3
      %p368 = por %p366, %p367
      %p369 = scmp.ne.s32.totalorder %s358, %s359
      %p370 = scmp.eq.s32.totalorder %s36, 0
      %p371 = por %p369, %p370
      %p372 = scmp.ne.s32.totalorder %s358, %s359
      %p373 = scmp.eq.s32.totalorder %s37, 3
      %p374 = por %p372, %p373
      %p376 = scmp.ne.s32.totalorder %s359, %s375
      %p377 = scmp.eq.s32.totalorder %s37, 0
      %p378 = por %p376, %p377
      %s379 = ssub.s32 %s39, %s46
      %p380 = scmp.eq.s32.totalorder %s379, 0
      %s382 = sadd.s32 %s381, 1
      %s383 = scalar_select %p380, %s381, %s382
      %p386 = pneg %p380
      %p387 = scmp.eq.s32.totalorder %s31, 3
      %p388 = por %p386, %p387
      %p389 = scmp.ne.s32.totalorder %s381, %s384
      %p390 = scmp.eq.s32.totalorder %s31, 0
      %p391 = por %p389, %p390
      %p392 = scmp.ne.s32.totalorder %s381, %s384
      %p393 = scmp.eq.s32.totalorder %s36, 3
      %p394 = por %p392, %p393
      %p395 = scmp.ne.s32.totalorder %s384, %s385
      %p396 = scmp.eq.s32.totalorder %s36, 0
      %p397 = por %p395, %p396
      %p398 = scmp.ne.s32.totalorder %s384, %s385
      %p399 = scmp.eq.s32.totalorder %s37, 3
      %p400 = por %p398, %p399
      %p402 = scmp.ne.s32.totalorder %s385, %s401
      %p403 = scmp.eq.s32.totalorder %s37, 0
      %p404 = por %p402, %p403
      %s406 = sadd.s32 %s405, 1
      %p409 = scmp.eq.s32.totalorder %s31, 3
      %p410 = scmp.ne.s32.totalorder %s405, %s407
      %p411 = scmp.eq.s32.totalorder %s31, 0
      %p412 = por %p410, %p411
      %p413 = scmp.ne.s32.totalorder %s405, %s407
      %p414 = scmp.eq.s32.totalorder %s36, 3
      %p415 = por %p413, %p414
      %p416 = scmp.ne.s32.totalorder %s407, %s408
      %p417 = scmp.eq.s32.totalorder %s36, 0
      %p418 = por %p416, %p417
      %p419 = scmp.ne.s32.totalorder %s407, %s408
      %p420 = scmp.eq.s32.totalorder %s37, 3
      %p421 = por %p419, %p420
      %p423 = scmp.ne.s32.totalorder %s408, %s422
      %p424 = scmp.eq.s32.totalorder %s37, 0
      %p425 = por %p423, %p424
      %s427 = sadd.s32 %s426, 1
      %p430 = scmp.eq.s32.totalorder %s31, 3
      %p431 = scmp.ne.s32.totalorder %s426, %s428
      %p432 = scmp.eq.s32.totalorder %s31, 0
      %p433 = por %p431, %p432
      %p434 = scmp.ne.s32.totalorder %s426, %s428
      %p435 = scmp.eq.s32.totalorder %s36, 3
      %p436 = por %p434, %p435
      %p437 = scmp.ne.s32.totalorder %s428, %s429
      %p438 = scmp.eq.s32.totalorder %s36, 0
      %p439 = por %p437, %p438
      %p440 = scmp.ne.s32.totalorder %s428, %s429
      %p441 = scmp.eq.s32.totalorder %s37, 3
      %p442 = por %p440, %p441
      %p444 = scmp.ne.s32.totalorder %s429, %s443
      %p445 = scmp.eq.s32.totalorder %s37, 0
      %p446 = por %p444, %p445
      %s447 = ssub.s32 %s38, %s50
      %p448 = scmp.eq.s32.totalorder %s447, 0
      %s450 = sadd.s32 %s449, 1
      %s451 = scalar_select %p448, %s449, %s450
      %p454 = pneg %p448
      %p455 = scmp.eq.s32.totalorder %s31, 3
      %p456 = por %p454, %p455
      %p457 = scmp.ne.s32.totalorder %s449, %s452
      %p458 = scmp.eq.s32.totalorder %s31, 0
      %p459 = por %p457, %p458
      %p460 = scmp.ne.s32.totalorder %s449, %s452
      %p461 = scmp.eq.s32.totalorder %s36, 3
      %p462 = por %p460, %p461
      %p463 = scmp.ne.s32.totalorder %s452, %s453
      %p464 = scmp.eq.s32.totalorder %s36, 0
      %p465 = por %p463, %p464
      %p466 = scmp.ne.s32.totalorder %s452, %s453
      %p467 = scmp.eq.s32.totalorder %s37, 3
      %p468 = por %p466, %p467
      %p470 = scmp.ne.s32.totalorder %s453, %s469
      %p471 = scmp.eq.s32.totalorder %s37, 0
      %p472 = por %p470, %p471
      %p473 = scmp.le.s32.totalorder 1, %s31
      %p474 = scmp.lt.s32.totalorder %s31, 5
      %p475 = pnand %p473, %p474
      %p476 = pneg %p475
      // Predicated region
      $region9: #{crossvit_fwd.4} parent=5 // pred_check
        _
      $region10: #{crossvit_fwd.4} parent=5 // pred_check_branch
        %478 = sbr.rel (%p475) target = $region12
      $region11: #{crossvit_fwd.4} parent=5 // pred_region
        %s479 = ssub.s32 %s31, 1
        // Predicated region
        $region13: #{crossvit_fwd.4} parent=11 // pred_check
          %p480 = pneg %p90
        $region14: #{crossvit_fwd.4} parent=11 // pred_check_branch
          %482 = sbr.rel (%p480) target = $region16
        $region15: #{crossvit_fwd.4} parent=11 // pred_region
          _
        $region16: #{crossvit_fwd.4} parent=11 // pred_fallthru
          _
        // Predicated region
        $region17: #{crossvit_fwd.4} parent=11 // pred_check
          %p483 = pneg %p111
        $region18: #{crossvit_fwd.4} parent=11 // pred_check_branch
          %485 = sbr.rel (%p483) target = $region20
        $region19: #{crossvit_fwd.4} parent=11 // pred_region
          _
        $region20: #{crossvit_fwd.4} parent=11 // pred_fallthru
          _
        // Predicated region
        $region21: #{crossvit_fwd.4} parent=11 // pred_check
          %p486 = pneg %p418
        $region22: #{crossvit_fwd.4} parent=11 // pred_check_branch
          %488 = sbr.rel (%p486) target = $region24
        $region23: #{crossvit_fwd.4} parent=11 // pred_region
          _
        $region24: #{crossvit_fwd.4} parent=11 // pred_fallthru
          _
        // Predicated region
        $region25: #{crossvit_fwd.4} parent=11 // pred_check
          %p489 = pneg %p439
        $region26: #{crossvit_fwd.4} parent=11 // pred_check_branch
          %491 = sbr.rel (%p489) target = $region28
        $region27: #{crossvit_fwd.4} parent=11 // pred_region
          _
        $region28: #{crossvit_fwd.4} parent=11 // pred_fallthru
          _
      $region12: #{crossvit_fwd.4} parent=5 // pred_fallthru
        _
      %p492 = scmp.lt.s32.totalorder %s31, 4
      // Predicated region
      $region29: #{crossvit_fwd.4} parent=5 // pred_check
        %p493 = pneg %p492
      $region30: #{crossvit_fwd.4} parent=5 // pred_check_branch
        %495 = sbr.rel (%p493) target = $region32
      $region31: #{crossvit_fwd.4} parent=5 // pred_region
        // Predicated region
        $region33: #{crossvit_fwd.4} parent=31 // pred_check
          %p496 = pneg %p63
        $region34: #{crossvit_fwd.4} parent=31 // pred_check_branch
          %498 = sbr.rel (%p496) target = $region36
        $region35: #{crossvit_fwd.4} parent=31 // pred_region
          %s499 = sand.u32 %s53, 1
          %s500 = scalar_lea.sflag [#allocation4], %s499
          %s501 = sand.u32 %s53, 1
          %s502 = scalar_lea.vmem [#allocation3], %s501
          %504 = vsyncadd %s500, 0
          %s505 = scalar_lea.hbm %s0, %s38
          %s507 = sshll.u32 %s505, 4
          %s508 = int_to_ptr.hbm [resolvable:$true] %s507
          %s509 = sshll.u32 %s502, 4
          %s510 = int_to_ptr.vmem [resolvable:$true] %s509
          %512 = dma.hbm_to_vmem [thread:$0]  %s508, 16, %s510, %s500
        $region36: #{crossvit_fwd.4} parent=31 // pred_fallthru
          _
        // Predicated region
        $region37: #{crossvit_fwd.4} parent=31 // pred_check
          %p513 = pneg %p131
        $region38: #{crossvit_fwd.4} parent=31 // pred_check_branch
          %515 = sbr.rel (%p513) target = $region40
        $region39: #{crossvit_fwd.4} parent=31 // pred_region
          %p516 = scmp.lt.s32.totalorder %s39, 1
          %s517 = scalar_select %p516, %s39, 1
          %s518 = scalar_lea.vmem %s3, %s517
        $region40: #{crossvit_fwd.4} parent=31 // pred_fallthru
          _
        // Predicated region
        $region41: #{crossvit_fwd.4} parent=31 // pred_check
          %p519 = pneg %p157
        $region42: #{crossvit_fwd.4} parent=31 // pred_check_branch
          %521 = sbr.rel (%p519) target = $region44
        $region43: #{crossvit_fwd.4} parent=31 // pred_region
          %p522 = scmp.lt.s32.totalorder %s39, 1
          %s523 = scalar_select %p522, %s39, 1
          %s524 = scalar_lea.vmem %s4, %s523
        $region44: #{crossvit_fwd.4} parent=31 // pred_fallthru
          _
        // Predicated region
        $region45: #{crossvit_fwd.4} parent=31 // pred_check
          %p525 = pneg %p183
        $region46: #{crossvit_fwd.4} parent=31 // pred_check_branch
          %527 = sbr.rel (%p525) target = $region48
        $region47: #{crossvit_fwd.4} parent=31 // pred_region
          %s528 = sand.u32 %s31, 1
          %s529 = scalar_lea.sflag [#allocation6], %s528
          %s530 = sand.u32 %s173, 1
          %s531 = smul.addr %s530, 64
          %s532 = scalar_lea.vmem [#allocation5], %s531
          %534 = vsyncadd %s529, 0
          %s535 = smul.addr %s39, 8
          %s536 = smul.addr %s535, 8
          %s537 = scalar_lea.hbm %s5, %s536
          %s538 = sshll.u32 %s537, 4
          %s539 = int_to_ptr.hbm [resolvable:$true] %s538
          %s540 = sshll.u32 %s532, 4
          %s541 = int_to_ptr.vmem [resolvable:$true] %s540
          %546 = dma.hbm_to_vmem [thread:$0]  %s539, 1024, %s541, %s529, 128, 128, 8
        $region48: #{crossvit_fwd.4} parent=31 // pred_fallthru
          _
        // Predicated region
        $region49: #{crossvit_fwd.4} parent=31 // pred_check
          %p547 = pneg %p209
        $region50: #{crossvit_fwd.4} parent=31 // pred_check_branch
          %549 = sbr.rel (%p547) target = $region52
        $region51: #{crossvit_fwd.4} parent=31 // pred_region
          %s550 = sand.u32 %s31, 1
          %s551 = scalar_lea.sflag [#allocation6], %s550
          %s552 = sand.u32 %s199, 1
          %s553 = smul.addr %s552, 16
          %s554 = scalar_lea.vmem [#allocation7], %s553
          %556 = vsyncadd %s551, 0
          %s557 = smul.addr %s39, 2
          %s558 = smul.addr %s557, 8
          %s559 = scalar_lea.hbm %s6, %s558
          %s560 = sshll.u32 %s559, 4
          %s561 = int_to_ptr.hbm [resolvable:$true] %s560
          %s562 = sshll.u32 %s554, 4
          %s563 = int_to_ptr.vmem [resolvable:$true] %s562
          %568 = dma.hbm_to_vmem [thread:$0]  %s561, 256, %s563, %s551, 128, 128, 8
        $region52: #{crossvit_fwd.4} parent=31 // pred_fallthru
          _
        // Predicated region
        $region53: #{crossvit_fwd.4} parent=31 // pred_check
          %p569 = pneg %p235
        $region54: #{crossvit_fwd.4} parent=31 // pred_check_branch
          %571 = sbr.rel (%p569) target = $region56
        $region55: #{crossvit_fwd.4} parent=31 // pred_region
          %p572 = scmp.lt.s32.totalorder %s39, 1
          %s573 = scalar_select %p572, %s39, 1
          %s574 = scalar_lea.vmem %s7, %s573
        $region56: #{crossvit_fwd.4} parent=31 // pred_fallthru
          _
        // Predicated region
        $region57: #{crossvit_fwd.4} parent=31 // pred_check
          %p575 = pneg %p261
        $region58: #{crossvit_fwd.4} parent=31 // pred_check_branch
          %577 = sbr.rel (%p575) target = $region60
        $region59: #{crossvit_fwd.4} parent=31 // pred_region
          %p578 = scmp.lt.s32.totalorder %s39, 1
          %s579 = scalar_select %p578, %s39, 1
          %s580 = scalar_lea.vmem %s8, %s579
        $region60: #{crossvit_fwd.4} parent=31 // pred_fallthru
          _
        // Predicated region
        $region61: #{crossvit_fwd.4} parent=31 // pred_check
          %p581 = pneg %p287
        $region62: #{crossvit_fwd.4} parent=31 // pred_check_branch
          %583 = sbr.rel (%p581) target = $region64
        $region63: #{crossvit_fwd.4} parent=31 // pred_region
          %p584 = scmp.lt.s32.totalorder %s39, 1
          %s585 = scalar_select %p584, %s39, 1
          %s586 = scalar_lea.vmem %s9, %s585
        $region64: #{crossvit_fwd.4} parent=31 // pred_fallthru
          _
        // Predicated region
        $region65: #{crossvit_fwd.4} parent=31 // pred_check
          %p587 = pneg %p313
        $region66: #{crossvit_fwd.4} parent=31 // pred_check_branch
          %589 = sbr.rel (%p587) target = $region68
        $region67: #{crossvit_fwd.4} parent=31 // pred_region
          %s590 = sand.u32 %s31, 1
          %s591 = scalar_lea.sflag [#allocation9], %s590
          %s592 = sand.u32 %s303, 1
          %s593 = smul.addr %s592, 64
          %s594 = scalar_lea.vmem [#allocation8], %s593
          %596 = vsyncadd %s591, 0
          %s597 = smul.addr %s39, 8
          %s598 = smul.addr %s597, 8
          %s599 = scalar_lea.hbm %s10, %s598
          %s600 = sshll.u32 %s599, 4
          %s601 = int_to_ptr.hbm [resolvable:$true] %s600
          %s602 = sshll.u32 %s594, 4
          %s603 = int_to_ptr.vmem [resolvable:$true] %s602
          %608 = dma.hbm_to_vmem [thread:$0]  %s601, 1024, %s603, %s591, 128, 128, 8
        $region68: #{crossvit_fwd.4} parent=31 // pred_fallthru
          _
        // Predicated region
        $region69: #{crossvit_fwd.4} parent=31 // pred_check
          %p609 = pneg %p339
        $region70: #{crossvit_fwd.4} parent=31 // pred_check_branch
          %611 = sbr.rel (%p609) target = $region72
        $region71: #{crossvit_fwd.4} parent=31 // pred_region
          %p612 = scmp.lt.s32.totalorder %s39, 1
          %s613 = scalar_select %p612, %s39, 1
          %s614 = scalar_lea.vmem %s11, %s613
        $region72: #{crossvit_fwd.4} parent=31 // pred_fallthru
          _
        // Predicated region
        $region73: #{crossvit_fwd.4} parent=31 // pred_check
          %p615 = pneg %p365
        $region74: #{crossvit_fwd.4} parent=31 // pred_check_branch
          %617 = sbr.rel (%p615) target = $region76
        $region75: #{crossvit_fwd.4} parent=31 // pred_region
          %s618 = sand.u32 %s31, 1
          %s619 = scalar_lea.sflag [#allocation9], %s618
          %s620 = sand.u32 %s355, 1
          %s621 = smul.addr %s620, 64
          %s622 = scalar_lea.vmem [#allocation10], %s621
          %624 = vsyncadd %s619, 0
          %s625 = smul.addr %s39, 8
          %s626 = smul.addr %s625, 8
          %s627 = scalar_lea.hbm %s12, %s626
          %s628 = sshll.u32 %s627, 4
          %s629 = int_to_ptr.hbm [resolvable:$true] %s628
          %s630 = sshll.u32 %s622, 4
          %s631 = int_to_ptr.vmem [resolvable:$true] %s630
          %636 = dma.hbm_to_vmem [thread:$0]  %s629, 1024, %s631, %s619, 128, 128, 8
        $region76: #{crossvit_fwd.4} parent=31 // pred_fallthru
          _
        // Predicated region
        $region77: #{crossvit_fwd.4} parent=31 // pred_check
          %p637 = pneg %p391
        $region78: #{crossvit_fwd.4} parent=31 // pred_check_branch
          %639 = sbr.rel (%p637) target = $region80
        $region79: #{crossvit_fwd.4} parent=31 // pred_region
          %p640 = scmp.lt.s32.totalorder %s39, 1
          %s641 = scalar_select %p640, %s39, 1
          %s642 = scalar_lea.vmem %s13, %s641
        $region80: #{crossvit_fwd.4} parent=31 // pred_fallthru
          _
      $region32: #{crossvit_fwd.4} parent=5 // pred_fallthru
        _
      %p643 = scmp.le.s32.totalorder 1, %s31
      %p644 = scmp.lt.s32.totalorder %s31, 5
      %p645 = pnand %p643, %p644
      %p646 = pneg %p645
      // Predicated region
      $region81: #{crossvit_fwd.4} parent=5 // pred_check
        _
      $region82: #{crossvit_fwd.4} parent=5 // pred_check_branch
        %648 = sbr.rel (%p645) target = $region84
      $region83: #{crossvit_fwd.4} parent=5 // pred_region
        %s649 = ssub.s32 %s31, 1
        %s650 = sand.u32 %s56, 1
        %s651 = scalar_lea.sflag [#allocation4], %s650
        %s652 = sand.u32 %s56, 1
        %s653 = scalar_lea.vmem [#allocation3], %s652
        // Predicated region
        $region85: #{crossvit_fwd.4} parent=83 // pred_check
          %p654 = pneg %p69
        $region86: #{crossvit_fwd.4} parent=83 // pred_check_branch
          %656 = sbr.rel (%p654) target = $region88
        $region87: #{crossvit_fwd.4} parent=83 // pred_region
          %658 = dma.done %s651, 16
        $region88: #{crossvit_fwd.4} parent=83 // pred_fallthru
          _
        %s659 = sand.u32 %s36, 1
        %s660 = scalar_lea.sflag [#allocation6], %s659
        %s661 = sand.u32 %s176, 1
        %s662 = smul.addr %s661, 64
        %s663 = scalar_lea.vmem [#allocation5], %s662
        // Predicated region
        $region89: #{crossvit_fwd.4} parent=83 // pred_check
          %p664 = pneg %p189
        $region90: #{crossvit_fwd.4} parent=83 // pred_check_branch
          %666 = sbr.rel (%p664) target = $region92
        $region91: #{crossvit_fwd.4} parent=83 // pred_region
          %668 = dma.done %s660, 1024
        $region92: #{crossvit_fwd.4} parent=83 // pred_fallthru
          _
        %s669 = sand.u32 %s36, 1
        %s670 = scalar_lea.sflag [#allocation6], %s669
        %s671 = sand.u32 %s202, 1
        %s672 = smul.addr %s671, 16
        %s673 = scalar_lea.vmem [#allocation7], %s672
        // Predicated region
        $region93: #{crossvit_fwd.4} parent=83 // pred_check
          %p674 = pneg %p215
        $region94: #{crossvit_fwd.4} parent=83 // pred_check_branch
          %676 = sbr.rel (%p674) target = $region96
        $region95: #{crossvit_fwd.4} parent=83 // pred_region
          %678 = dma.done %s670, 256
        $region96: #{crossvit_fwd.4} parent=83 // pred_fallthru
          _
        %s679 = sand.u32 %s36, 1
        %s680 = scalar_lea.sflag [#allocation9], %s679
        %s681 = sand.u32 %s306, 1
        %s682 = smul.addr %s681, 64
        %s683 = scalar_lea.vmem [#allocation8], %s682
        // Predicated region
        $region97: #{crossvit_fwd.4} parent=83 // pred_check
          %p684 = pneg %p319
        $region98: #{crossvit_fwd.4} parent=83 // pred_check_branch
          %686 = sbr.rel (%p684) target = $region100
        $region99: #{crossvit_fwd.4} parent=83 // pred_region
          %688 = dma.done %s680, 1024
        $region100: #{crossvit_fwd.4} parent=83 // pred_fallthru
          _
        %s689 = sand.u32 %s36, 1
        %s690 = scalar_lea.sflag [#allocation9], %s689
        %s691 = sand.u32 %s358, 1
        %s692 = smul.addr %s691, 64
        %s693 = scalar_lea.vmem [#allocation10], %s692
        // Predicated region
        $region101: #{crossvit_fwd.4} parent=83 // pred_check
          %p694 = pneg %p371
        $region102: #{crossvit_fwd.4} parent=83 // pred_check_branch
          %696 = sbr.rel (%p694) target = $region104
        $region103: #{crossvit_fwd.4} parent=83 // pred_region
          %698 = dma.done %s690, 1024
        $region104: #{crossvit_fwd.4} parent=83 // pred_fallthru
          _
        %s699 = sand.u32 %s56, 1
        %s700 = scalar_lea.sflag [#allocation4], %s699
        %s701 = sand.u32 %s56, 1
        %s702 = scalar_lea.vmem [#allocation3], %s701
        %p703 = pneg %p69
        %p704 = pneg %p66
        %p705 = pneg %p90
        %p706 = pneg %p87
        %p707 = pneg %p111
        %p708 = pneg %p108
        %p709 = scmp.lt.s32.totalorder %s41, 1
        %s710 = scalar_select %p709, %s41, 1
        %s711 = scalar_lea.vmem %s3, %s710
        %p712 = pneg %p137
        %p713 = pneg %p134
        %p714 = scmp.lt.s32.totalorder %s41, 1
        %s715 = scalar_select %p714, %s41, 1
        %s716 = scalar_lea.vmem %s4, %s715
        %p717 = pneg %p163
        %p718 = pneg %p160
        %s719 = sand.u32 %s36, 1
        %s720 = scalar_lea.sflag [#allocation6], %s719
        %s721 = sand.u32 %s176, 1
        %s722 = smul.addr %s721, 64
        %s723 = scalar_lea.vmem [#allocation5], %s722
        %p724 = pneg %p189
        %p725 = pneg %p186
        %s726 = sand.u32 %s36, 1
        %s727 = scalar_lea.sflag [#allocation6], %s726
        %s728 = sand.u32 %s202, 1
        %s729 = smul.addr %s728, 16
        %s730 = scalar_lea.vmem [#allocation7], %s729
        %p731 = pneg %p215
        %p732 = pneg %p212
        %p733 = scmp.lt.s32.totalorder %s41, 1
        %s734 = scalar_select %p733, %s41, 1
        %s735 = scalar_lea.vmem %s7, %s734
        %p736 = pneg %p241
        %p737 = pneg %p238
        %p738 = scmp.lt.s32.totalorder %s41, 1
        %s739 = scalar_select %p738, %s41, 1
        %s740 = scalar_lea.vmem %s8, %s739
        %p741 = pneg %p267
        %p742 = pneg %p264
        %p743 = scmp.lt.s32.totalorder %s41, 1
        %s744 = scalar_select %p743, %s41, 1
        %s745 = scalar_lea.vmem %s9, %s744
        %p746 = pneg %p293
        %p747 = pneg %p290
        %s748 = sand.u32 %s36, 1
        %s749 = scalar_lea.sflag [#allocation9], %s748
        %s750 = sand.u32 %s306, 1
        %s751 = smul.addr %s750, 64
        %s752 = scalar_lea.vmem [#allocation8], %s751
        %p753 = pneg %p319
        %p754 = pneg %p316
        %p755 = scmp.lt.s32.totalorder %s41, 1
        %s756 = scalar_select %p755, %s41, 1
        %s757 = scalar_lea.vmem %s11, %s756
        %p758 = pneg %p345
        %p759 = pneg %p342
        %s760 = sand.u32 %s36, 1
        %s761 = scalar_lea.sflag [#allocation9], %s760
        %s762 = sand.u32 %s358, 1
        %s763 = smul.addr %s762, 64
        %s764 = scalar_lea.vmem [#allocation10], %s763
        %p765 = pneg %p371
        %p766 = pneg %p368
        %p767 = scmp.lt.s32.totalorder %s41, 1
        %s768 = scalar_select %p767, %s41, 1
        %s769 = scalar_lea.vmem %s13, %s768
        %p770 = pneg %p397
        %p771 = pneg %p394
        %p772 = pneg %p418
        %p773 = pneg %p415
        %p774 = pneg %p439
        %p775 = pneg %p436
        %p776 = pneg %p465
        %p777 = pneg %p462
        %p778 = scmp.lt.s32.totalorder %s40, 1
        %s779 = scalar_select %p778, %s40, 1
        %s780 = smul.addr %s779, 2
        %s781 = scalar_lea.vmem %s16, %s780
        %p782 = scmp.lt.s32.totalorder %s41, 1
        %s783 = scalar_select %p782, %s41, 1
        %s784 = scalar_lea.vmem %s3, %s783
        %p785 = scmp.lt.s32.totalorder %s41, 1
        %s786 = scalar_select %p785, %s41, 1
        %s787 = scalar_lea.vmem %s4, %s786
        %p788 = scmp.lt.s32.totalorder %s41, 1
        %s789 = scalar_select %p788, %s41, 1
        %s790 = scalar_lea.vmem %s7, %s789
        %p791 = scmp.lt.s32.totalorder %s41, 1
        %s792 = scalar_select %p791, %s41, 1
        %s793 = scalar_lea.vmem %s8, %s792
        %p794 = scmp.lt.s32.totalorder %s41, 1
        %s795 = scalar_select %p794, %s41, 1
        %s796 = scalar_lea.vmem %s9, %s795
        %p797 = scmp.lt.s32.totalorder %s41, 1
        %s798 = scalar_select %p797, %s41, 1
        %s799 = scalar_lea.vmem %s11, %s798
        %p800 = scmp.lt.s32.totalorder %s41, 1
        %s801 = scalar_select %p800, %s41, 1
        %s802 = scalar_lea.vmem %s13, %s801
        %p803 = scmp.lt.s32.totalorder %s40, 1
        %s804 = scalar_select %p803, %s40, 1
        %s805 = smul.addr %s804, 2
        %s806 = scalar_lea.vmem %s16, %s805
        %p807 = scmp.eq.s32.totalorder %s41, 0
        // Predicated region
        $region105: #{crossvit_fwd.4} parent=83 // pred_check
          %p808 = pneg %p807
        $region106: #{crossvit_fwd.4} parent=83 // pred_check_branch
          %810 = sbr.rel (%p808) target = $region108
        $region107: #{crossvit_fwd.4} parent=83 // pred_region
          %v811 = vld [vmem:[%s1] sm:$0x1]
          %v812 = vld [vmem:[%s2] sm:$0x1]
          %v813 = vadd.f32 %v811, %v812
          %vm814 = vcmask 516096
          %815 = vst.msk [vmem:[#allocation2] sm:$0x1] %vm814, %v813
          %v816 = vld [vmem:[%s653] sm:$0x1]
          %v817 = vld [vmem:[%s2 + $0x1] sm:$0x1]
          %v818 = vadd.f32 %v816, %v817
          %819 = vst.msk [vmem:[#allocation2 + $0x1] sm:$0x1] %vm814, %v818
        $region108: #{crossvit_fwd.4} parent=83 // pred_fallthru
          _
        %v820 = vld [vmem:[#allocation2] sm:$0x3]
        %v821 = vld [vmem:[%s784] sm:$0x1]
        %v822 = vld [vmem:[%s787] sm:$0x1]
        %vm823 = vcmask 517120
        %v824 = vsel %vm823, %v820, 0.0
        %825 = vadd.xlane.f32.xlu0 %v824
        %v826 = vpop.xlane.xlu0 %825
        %v827 = vrcp.pop 64.0
        %v828 = vmul.f32 64.0, %v827
        %v829 = vsub.f32 1.0, %v828
        %v830 = vmul.f32 %v827, %v829
        %v831 = vadd.f32 %v827, %v830
        %vm832 = vweird.f32 %v827
        %v833 = vsel %vm832, %v827, %v831
        %v834 = vmul.f32 %v826, %v833
        %v835 = vsub.f32 %v820, %v834
        %v836 = vmul.f32 %v835, %v835
        %v837 = vsel %vm823, %v836, 0.0
        %838 = vadd.xlane.f32.xlu0 %v837
        %v839 = vpop.xlane.xlu0 %838
        %v840 = vmul.f32 %v839, %v833
        %v841 = vadd.f32 %v840, 1e-05
        %v842 = vrsqrt.pop %v841
        %v843 = vmul.f32 %v842, %v841
        %v844 = vmul.f32 %v843, %v842
        %v845 = vmul.f32 0.5, %v844
        %v846 = vsub.f32 1.5, %v845
        %v847 = vmul.f32 %v842, %v846
        %vm848 = vweird.f32 %v841
        %vm849 = vweird.f32 %v842
        %vm850 = vmor %vm848, %vm849
        %v851 = vsel %vm850, %v842, %v847
        %v852 = vmul.f32 %v835, %v851
        %v854 = vperm.slane %v821, 0
        %v856 = vmul.f32 %v852, %v854
        %v858 = vperm.slane %v822, 0
        %v860 = vadd.f32 %v856, %v858
        %v861 = vld [vmem:[%s663] sm:$0xff]
        %v862 = vld [vmem:[%s663 + $0x8] sm:$0xff]
        %v863 = vld [vmem:[%s663 + $0x10] sm:$0xff]
        %v864 = vld [vmem:[%s663 + $0x18] sm:$0xff]
        %v865 = vld [vmem:[%s663 + $0x20] sm:$0xff]
        %v866 = vld [vmem:[%s663 + $0x28] sm:$0xff]
        %v867 = vld [vmem:[%s663 + $0x30] sm:$0xff]
        %v868 = vld [vmem:[%s663 + $0x38] sm:$0xff]
        %vm869 = vcmask 523264
        %v871 = vsel %vm869, %v860, 0
        %873 = vmatpush.msra.mxu0 0.0
        %874 = vmatpush.msra.mxu0 0.0
        %875 = vmatpush.msra.mxu0 0.0
        %876 = vmatpush.msra.mxu0 0.0
        %877 = vmatpush.msra.mxu0 0.0
        %878 = vmatpush.msra.mxu0 0.0
        %879 = vmatpush.msra.mxu0 0.0
        %880 = vmatpush.msra.mxu0 0.0
        %881 = vmatpush.msra.mxu0 %v868
        %882 = vmatpush.msra.mxu0 %v867
        %883 = vmatpush.msra.mxu0 %v866
        %884 = vmatpush.msra.mxu0 %v865
        %885 = vmatpush.msra.mxu0 %v864
        %886 = vmatpush.msra.mxu0 %v863
        %887 = vmatpush.msra.mxu0 %v862
        %888 = vmatpush.msra.mxu0 %v861
        %889 = vmatmul.f32.gmra.mxu0 %v871
        %v890 = vpop.f32.mrf.mxu0
        %v891 = vadd.f32 0.0, %v890
        %892 = vdwg.mxu0
        %v893 = vld [vmem:[%s673] sm:$0xff]
        %v894 = vld [vmem:[%s673 + $0x8] sm:$0xff]
        %896 = vrot.lane.b32.xlu0 %v891, 120
        %v897 = vpop.permute.xlu0 %896
        %898 = vrot.lane.b32.xlu0 %v891, 112
        %v899 = vpop.permute.xlu0 %898
        %vm900 = vcmask 64512
        %v901 = vsel %vm900, %v891, 0
        %v903 = vsel %vm900, %v899, 0
        %905 = vmatpush.xpose.msra.mxu0 0.0
        %906 = vmatpush.xpose.msra.mxu0 0.0
        %907 = vmatpush.xpose.msra.mxu0 0.0
        %908 = vmatpush.xpose.msra.mxu0 0.0
        %909 = vmatpush.xpose.msra.mxu0 0.0
        %910 = vmatpush.xpose.msra.mxu0 0.0
        %911 = vmatpush.xpose.msra.mxu0 0.0
        %912 = vmatpush.xpose.msra.mxu0 0.0
        %913 = vmatpush.xpose.msra.mxu0 0.0
        %914 = vmatpush.xpose.msra.mxu0 0.0
        %915 = vmatpush.xpose.msra.mxu0 0.0
        %916 = vmatpush.xpose.msra.mxu0 0.0
        %917 = vmatpush.xpose.msra.mxu0 0.0
        %918 = vmatpush.xpose.msra.mxu0 0.0
        %919 = vmatpush.xpose.msra.mxu0 0.0
        %920 = vmatpush.xpose.msra.mxu0 %v903
        %921 = vmatmul.f32.gmra.mxu0 %v901
        %v922 = vpop.f32.mrf.mxu0
        %v923 = vadd.f32 0.0, %v922
        %924 = vdwg.mxu0
        %925 = vrot.lane.b32.xlu0 %v897, 112
        %v926 = vpop.permute.xlu0 %925
        %v927 = vsel %vm900, %v897, 0
        %v929 = vsel %vm900, %v926, 0
        %931 = vmatpush.xpose.msra.mxu0 0.0
        %932 = vmatpush.xpose.msra.mxu0 0.0
        %933 = vmatpush.xpose.msra.mxu0 0.0
        %934 = vmatpush.xpose.msra.mxu0 0.0
        %935 = vmatpush.xpose.msra.mxu0 0.0
        %936 = vmatpush.xpose.msra.mxu0 0.0
        %937 = vmatpush.xpose.msra.mxu0 0.0
        %938 = vmatpush.xpose.msra.mxu0 0.0
        %939 = vmatpush.xpose.msra.mxu0 0.0
        %940 = vmatpush.xpose.msra.mxu0 0.0
        %941 = vmatpush.xpose.msra.mxu0 0.0
        %942 = vmatpush.xpose.msra.mxu0 0.0
        %943 = vmatpush.xpose.msra.mxu0 0.0
        %944 = vmatpush.xpose.msra.mxu0 0.0
        %945 = vmatpush.xpose.msra.mxu0 0.0
        %946 = vmatpush.xpose.msra.mxu0 %v929
        %947 = vmatmul.f32.gmra.mxu0 %v927
        %v948 = vpop.f32.mrf.mxu0
        %v949 = vadd.f32 0.0, %v948
        %950 = vdwg.mxu0
        %v951 = vmul.f32 %v923, 0.35355338
        %v952 = vmul.f32 %v949, 0.35355338
        %vm953 = vcmask 9216
        %v954 = vsel %vm953, %v951, -inf
        %955 = vmax.xlane.f32.xlu0 %v954
        %v956 = vpop.xlane.xlu0 %955
        %v957 = vsel %vm953, %v952, -inf
        %958 = vmax.xlane.f32.xlu0 %v957
        %v959 = vpop.xlane.xlu0 %958
        %v960 = vsub.f32 %v951, %v956
        %v961 = vsub.f32 %v952, %v959
        %v962 = vmul.f32 %v960, 1.442695
        %v963 = vpow.pop %v962
        %v964 = vmul.f32 %v961, 1.442695
        %v965 = vpow.pop %v964
        %v966 = vsel %vm953, %v963, 0.0
        %967 = vadd.xlane.f32.xlu0 %v966
        %v968 = vpop.xlane.xlu0 %967
        %v969 = vsel %vm953, %v965, 0.0
        %970 = vadd.xlane.f32.xlu0 %v969
        %v971 = vpop.xlane.xlu0 %970
        %972 = vrot.lane.b32.xlu0 %v891, 96
        %v973 = vpop.permute.xlu0 %972
        %vm974 = vcmask 15360
        %v976 = vsel %vm974, %v963, 0
        %vm978 = vcmask 1041408
        %v979 = vsel %vm978, %v973, 0
        %981 = vmatpush.msra.mxu0 0.0
        %982 = vmatpush.msra.mxu0 0.0
        %983 = vmatpush.msra.mxu0 0.0
        %984 = vmatpush.msra.mxu0 0.0
        %985 = vmatpush.msra.mxu0 0.0
        %986 = vmatpush.msra.mxu0 0.0
        %987 = vmatpush.msra.mxu0 0.0
        %988 = vmatpush.msra.mxu0 0.0
        %989 = vmatpush.msra.mxu0 0.0
        %990 = vmatpush.msra.mxu0 0.0
        %991 = vmatpush.msra.mxu0 0.0
        %992 = vmatpush.msra.mxu0 0.0
        %993 = vmatpush.msra.mxu0 0.0
        %994 = vmatpush.msra.mxu0 0.0
        %995 = vmatpush.msra.mxu0 0.0
        %996 = vmatpush.msra.mxu0 %v979
        %997 = vmatmul.f32.gmra.mxu0 %v976
        %v998 = vpop.f32.mrf.mxu0
        %v999 = vadd.f32 0.0, %v998
        %1000 = vdwg.mxu0
        %1001 = vrot.lane.b32.xlu0 %v897, 96
        %v1002 = vpop.permute.xlu0 %1001
        %v1004 = vsel %vm974, %v965, 0
        %v1006 = vsel %vm978, %v1002, 0
        %1008 = vmatpush.msra.mxu0 0.0
        %1009 = vmatpush.msra.mxu0 0.0
        %1010 = vmatpush.msra.mxu0 0.0
        %1011 = vmatpush.msra.mxu0 0.0
        %1012 = vmatpush.msra.mxu0 0.0
        %1013 = vmatpush.msra.mxu0 0.0
        %1014 = vmatpush.msra.mxu0 0.0
        %1015 = vmatpush.msra.mxu0 0.0
        %1016 = vmatpush.msra.mxu0 0.0
        %1017 = vmatpush.msra.mxu0 0.0
        %1018 = vmatpush.msra.mxu0 0.0
        %1019 = vmatpush.msra.mxu0 0.0
        %1020 = vmatpush.msra.mxu0 0.0
        %1021 = vmatpush.msra.mxu0 0.0
        %1022 = vmatpush.msra.mxu0 0.0
        %1023 = vmatpush.msra.mxu0 %v1006
        %1024 = vmatmul.f32.gmra.mxu0 %v1004
        %v1025 = vpop.f32.mrf.mxu0
        %v1026 = vadd.f32 0.0, %v1025
        %1027 = vdwg.mxu0
        %v1028 = vrcp.pop %v968
        %v1029 = vmul.f32 %v968, %v1028
        %v1030 = vsub.f32 1.0, %v1029
        %v1031 = vmul.f32 %v1028, %v1030
        %v1032 = vadd.f32 %v1028, %v1031
        %vm1033 = vweird.f32 %v968
        %vm1034 = vweird.f32 %v1028
        %vm1035 = vmor %vm1033, %vm1034
        %v1036 = vsel %vm1035, %v1028, %v1032
        %v1037 = vand.u32 2147483647, %v968
        %vm1038 = vcmp.eq.f32.partialorder %v1037, 8.507059e+37
        %v1039 = vand.u32 %v968, 2147483648
        %v1040 = vor.u32 1.1754944e-38, %v1039
        %v1041 = vsel %vm1038, %v1040, %v1036
        %v1042 = vmul.f32 %v999, %v1041
        %v1043 = vrcp.pop %v971
        %v1044 = vmul.f32 %v971, %v1043
        %v1045 = vsub.f32 1.0, %v1044
        %v1046 = vmul.f32 %v1043, %v1045
        %v1047 = vadd.f32 %v1043, %v1046
        %vm1048 = vweird.f32 %v971
        %vm1049 = vweird.f32 %v1043
        %vm1050 = vmor %vm1048, %vm1049
        %v1051 = vsel %vm1050, %v1043, %v1047
        %v1052 = vand.u32 2147483647, %v971
        %vm1053 = vcmp.eq.f32.partialorder %v1052, 8.507059e+37
        %v1054 = vand.u32 %v971, 2147483648
        %v1055 = vor.u32 1.1754944e-38, %v1054
        %v1056 = vsel %vm1053, %v1055, %v1051
        %v1057 = vmul.f32 %v1026, %v1056
        %v1059 = vsel %vm900, %v1042, 0
        %1061 = vmatpush.msra.mxu0 0.0
        %1062 = vmatpush.msra.mxu0 0.0
        %1063 = vmatpush.msra.mxu0 0.0
        %1064 = vmatpush.msra.mxu0 0.0
        %1065 = vmatpush.msra.mxu0 0.0
        %1066 = vmatpush.msra.mxu0 0.0
        %1067 = vmatpush.msra.mxu0 0.0
        %1068 = vmatpush.msra.mxu0 0.0
        %1069 = vmatpush.msra.mxu0 0.0
        %1070 = vmatpush.msra.mxu0 0.0
        %1071 = vmatpush.msra.mxu0 0.0
        %1072 = vmatpush.msra.mxu0 0.0
        %1073 = vmatpush.msra.mxu0 0.0
        %1074 = vmatpush.msra.mxu0 0.0
        %1075 = vmatpush.msra.mxu0 0.0
        %1076 = vmatpush.msra.mxu0 %v893
        %1077 = vmatmul.f32.gmra.mxu0 %v1059
        %v1078 = vpop.f32.mrf.mxu0
        %v1079 = vadd.f32 0.0, %v1078
        %1080 = vdwg.mxu0
        %v1082 = vsel %vm900, %v1057, 0
        %1084 = vmatpush.msra.mxu0 0.0
        %1085 = vmatpush.msra.mxu0 0.0
        %1086 = vmatpush.msra.mxu0 0.0
        %1087 = vmatpush.msra.mxu0 0.0
        %1088 = vmatpush.msra.mxu0 0.0
        %1089 = vmatpush.msra.mxu0 0.0
        %1090 = vmatpush.msra.mxu0 0.0
        %1091 = vmatpush.msra.mxu0 0.0
        %1092 = vmatpush.msra.mxu0 0.0
        %1093 = vmatpush.msra.mxu0 0.0
        %1094 = vmatpush.msra.mxu0 0.0
        %1095 = vmatpush.msra.mxu0 0.0
        %1096 = vmatpush.msra.mxu0 0.0
        %1097 = vmatpush.msra.mxu0 0.0
        %1098 = vmatpush.msra.mxu0 0.0
        %1099 = vmatpush.msra.mxu0 %v894
        %1100 = vmatmul.f32.gmra.mxu0 %v1082
        %v1101 = vpop.f32.mrf.mxu0
        %v1102 = vadd.f32 0.0, %v1101
        %1103 = vdwg.mxu0
        %v1104 = vsel %vm823, %v1079, 0.0
        %v1105 = vsel %vm823, %v1102, 0.0
        %v1106 = vadd.f32 %v1104, %v1105
        %v1107 = vadd.f32 %v820, %v1106
        %v1108 = vld [vmem:[%s790] sm:$0x1]
        %v1110 = vperm.slane %v1108, 0
        %v1112 = vadd.f32 %v1107, %v1110
        %v1113 = vld [vmem:[%s793] sm:$0x1]
        %v1114 = vld [vmem:[%s796] sm:$0x1]
        %v1115 = vsel %vm823, %v1112, 0.0
        %1116 = vadd.xlane.f32.xlu0 %v1115
        %v1117 = vpop.xlane.xlu0 %1116
        %v1118 = vmul.f32 %v1117, %v833
        %v1119 = vsub.f32 %v1112, %v1118
        %v1120 = vmul.f32 %v1119, %v1119
        %v1121 = vsel %vm823, %v1120, 0.0
        %1122 = vadd.xlane.f32.xlu0 %v1121
        %v1123 = vpop.xlane.xlu0 %1122
        %v1124 = vmul.f32 %v1123, %v833
        %v1125 = vadd.f32 %v1124, 1e-05
        %v1126 = vrsqrt.pop %v1125
        %v1127 = vmul.f32 %v1126, %v1125
        %v1128 = vmul.f32 %v1127, %v1126
        %v1129 = vmul.f32 0.5, %v1128
        %v1130 = vsub.f32 1.5, %v1129
        %v1131 = vmul.f32 %v1126, %v1130
        %vm1132 = vweird.f32 %v1125
        %vm1133 = vweird.f32 %v1126
        %vm1134 = vmor %vm1132, %vm1133
        %v1135 = vsel %vm1134, %v1126, %v1131
        %v1136 = vmul.f32 %v1119, %v1135
        %v1138 = vperm.slane %v1113, 0
        %v1140 = vmul.f32 %v1136, %v1138
        %v1142 = vperm.slane %v1114, 0
        %v1144 = vadd.f32 %v1140, %v1142
        %v1145 = vld [vmem:[%s683] sm:$0xff]
        %v1146 = vld [vmem:[%s683 + $0x8] sm:$0xff]
        %v1147 = vld [vmem:[%s683 + $0x10] sm:$0xff]
        %v1148 = vld [vmem:[%s683 + $0x18] sm:$0xff]
        %v1149 = vld [vmem:[%s683 + $0x20] sm:$0xff]
        %v1150 = vld [vmem:[%s683 + $0x28] sm:$0xff]
        %v1151 = vld [vmem:[%s683 + $0x30] sm:$0xff]
        %v1152 = vld [vmem:[%s683 + $0x38] sm:$0xff]
        %v1153 = vld [vmem:[%s799] sm:$0x1]
        %v1155 = vperm.slane %v1153, 0
        %v1158 = vsel %vm869, %v1144, 0
        %1160 = vmatpush.msra.mxu0 0.0
        %1161 = vmatpush.msra.mxu0 0.0
        %1162 = vmatpush.msra.mxu0 0.0
        %1163 = vmatpush.msra.mxu0 0.0
        %1164 = vmatpush.msra.mxu0 0.0
        %1165 = vmatpush.msra.mxu0 0.0
        %1166 = vmatpush.msra.mxu0 0.0
        %1167 = vmatpush.msra.mxu0 0.0
        %1168 = vmatpush.msra.mxu0 %v1152
        %1169 = vmatpush.msra.mxu0 %v1151
        %1170 = vmatpush.msra.mxu0 %v1150
        %1171 = vmatpush.msra.mxu0 %v1149
        %1172 = vmatpush.msra.mxu0 %v1148
        %1173 = vmatpush.msra.mxu0 %v1147
        %1174 = vmatpush.msra.mxu0 %v1146
        %1175 = vmatpush.msra.mxu0 %v1145
        %1176 = vmatmul.f32.gmra.mxu0 %v1158
        %v1177 = vpop.f32.mrf.mxu0
        %v1178 = vadd.f32 %v1155, %v1177
        %1179 = vdwg.mxu0
        %v1180 = vmul.f32 %v1178, 0.5
        %v1181 = vmul.f32 %v1178, 0.70710677
        %v1182 = vmul.f32 %v1181, %v1181
        %v1183 = vmin.f32 16.0, %v1182
        %v1184 = vmul.f32 %v1183, 2.1237322e-06
        %v1185 = vadd.f32 %v1184, 0.00028619796
        %v1186 = vmul.f32 %v1183, %v1185
        %v1187 = vadd.f32 %v1186, 0.0036580483
        %v1188 = vmul.f32 %v1183, %v1187
        %v1189 = vadd.f32 %v1188, 0.05243302
        %v1190 = vmul.f32 %v1183, %v1189
        %v1191 = vadd.f32 %v1190, 0.18741608
        %v1192 = vmul.f32 %v1183, %v1191
        %v1193 = vadd.f32 %v1192, 1.1283791
        %v1194 = vmul.f32 %v1181, %v1193
        %v1195 = vmul.f32 %v1183, 3.8918573e-05
        %v1196 = vadd.f32 %v1195, 0.001143296
        %v1197 = vmul.f32 %v1183, %v1196
        %v1198 = vadd.f32 %v1197, 0.014752088
        %v1199 = vmul.f32 %v1183, %v1198
        %v1200 = vadd.f32 %v1199, 0.112945676
        %v1201 = vmul.f32 %v1183, %v1200
        %v1202 = vadd.f32 %v1201, 0.4994258
        %v1203 = vmul.f32 %v1183, %v1202
        %v1204 = vadd.f32 %v1203, 1.0
        %v1205 = vrcp.pop %v1204
        %v1206 = vmul.f32 %v1204, %v1205
        %v1207 = vsub.f32 1.0, %v1206
        %v1208 = vmul.f32 %v1205, %v1207
        %v1209 = vadd.f32 %v1205, %v1208
        %vm1210 = vweird.f32 %v1204
        %vm1211 = vweird.f32 %v1205
        %vm1212 = vmor %vm1210, %vm1211
        %v1213 = vsel %vm1212, %v1205, %v1209
        %v1214 = vand.u32 2147483647, %v1204
        %vm1215 = vcmp.eq.f32.partialorder %v1214, 8.507059e+37
        %v1216 = vand.u32 %v1204, 2147483648
        %v1217 = vor.u32 1.1754944e-38, %v1216
        %v1218 = vsel %vm1215, %v1217, %v1213
        %v1219 = vmul.f32 %v1194, %v1218
        %v1220 = vmin.f32 %v1219, 1.0
        %v1221 = vmax.f32 %v1220, -1.0
        %v1222 = vadd.f32 %v1221, 1.0
        %v1223 = vmul.f32 %v1180, %v1222
        %v1224 = vld [vmem:[%s693] sm:$0xff]
        %v1225 = vld [vmem:[%s693 + $0x8] sm:$0xff]
        %v1226 = vld [vmem:[%s693 + $0x10] sm:$0xff]
        %v1227 = vld [vmem:[%s693 + $0x18] sm:$0xff]
        %v1228 = vld [vmem:[%s693 + $0x20] sm:$0xff]
        %v1229 = vld [vmem:[%s693 + $0x28] sm:$0xff]
        %v1230 = vld [vmem:[%s693 + $0x30] sm:$0xff]
        %v1231 = vld [vmem:[%s693 + $0x38] sm:$0xff]
        %v1233 = vsel %vm869, %v1223, 0
        %1235 = vmatpush.msra.mxu0 0.0
        %1236 = vmatpush.msra.mxu0 0.0
        %1237 = vmatpush.msra.mxu0 0.0
        %1238 = vmatpush.msra.mxu0 0.0
        %1239 = vmatpush.msra.mxu0 0.0
        %1240 = vmatpush.msra.mxu0 0.0
        %1241 = vmatpush.msra.mxu0 0.0
        %1242 = vmatpush.msra.mxu0 0.0
        %1243 = vmatpush.msra.mxu0 %v1231
        %1244 = vmatpush.msra.mxu0 %v1230
        %1245 = vmatpush.msra.mxu0 %v1229
        %1246 = vmatpush.msra.mxu0 %v1228
        %1247 = vmatpush.msra.mxu0 %v1227
        %1248 = vmatpush.msra.mxu0 %v1226
        %1249 = vmatpush.msra.mxu0 %v1225
        %1250 = vmatpush.msra.mxu0 %v1224
        %1251 = vmatmul.f32.gmra.mxu0 %v1233
        %v1252 = vpop.f32.mrf.mxu0
        %v1253 = vadd.f32 0.0, %v1252
        %1254 = vdwg.mxu0
        %v1255 = vadd.f32 %v1112, %v1253
        %v1256 = vld [vmem:[%s802] sm:$0x1]
        %v1258 = vperm.slane %v1256, 0
        %v1260 = vadd.f32 %v1255, %v1258
        %1261 = vst.msk [vmem:[#allocation2] sm:$0x3] %vm823, %v1260
        %p1262 = scmp.eq.s32.totalorder %s41, 1
        // Predicated region
        $region109: #{crossvit_fwd.4} parent=83 // pred_check
          %p1263 = pneg %p1262
        $region110: #{crossvit_fwd.4} parent=83 // pred_check_branch
          %1265 = sbr.rel (%p1263) target = $region112
        $region111: #{crossvit_fwd.4} parent=83 // pred_region
          %v1266 = vld [vmem:[%s14] sm:$0x1]
          %v1267 = vld [vmem:[%s15] sm:$0x1]
          %v1268 = vsel %vm823, %v1260, 0.0
          %1269 = vadd.xlane.f32.xlu0 %v1268
          %v1270 = vpop.xlane.xlu0 %1269
          %v1271 = vmul.f32 %v1270, %v833
          %v1272 = vsub.f32 %v1260, %v1271
          %v1273 = vmul.f32 %v1272, %v1272
          %v1274 = vsel %vm823, %v1273, 0.0
          %1275 = vadd.xlane.f32.xlu0 %v1274
          %v1276 = vpop.xlane.xlu0 %1275
          %v1277 = vmul.f32 %v1276, %v833
          %v1278 = vadd.f32 %v1277, 1e-05
          %v1279 = vrsqrt.pop %v1278
          %v1280 = vmul.f32 %v1279, %v1278
          %v1281 = vmul.f32 %v1280, %v1279
          %v1282 = vmul.f32 0.5, %v1281
          %v1283 = vsub.f32 1.5, %v1282
          %v1284 = vmul.f32 %v1279, %v1283
          %vm1285 = vweird.f32 %v1278
          %vm1286 = vweird.f32 %v1279
          %vm1287 = vmor %vm1285, %vm1286
          %v1288 = vsel %vm1287, %v1279, %v1284
          %v1289 = vmul.f32 %v1272, %v1288
          %v1291 = vperm.slane %v1266, 0
          %v1293 = vmul.f32 %v1289, %v1291
          %v1295 = vperm.slane %v1267, 0
          %v1297 = vadd.f32 %v1293, %v1295
          %1298 = vst.msk [vmem:[%s806] sm:$0x3] %vm823, %v1297
        $region112: #{crossvit_fwd.4} parent=83 // pred_fallthru
          _
        %p1299 = scmp.lt.s32.totalorder %s40, 1
        %s1300 = scalar_select %p1299, %s40, 1
        %s1301 = smul.addr %s1300, 2
        %s1302 = scalar_lea.vmem %s16, %s1301
        // Predicated region
        $region113: #{crossvit_fwd.4} parent=83 // pred_check
          %p1303 = pneg %p462
        $region114: #{crossvit_fwd.4} parent=83 // pred_check_branch
          %1305 = sbr.rel (%p1303) target = $region116
        $region115: #{crossvit_fwd.4} parent=83 // pred_region
          _
        $region116: #{crossvit_fwd.4} parent=83 // pred_fallthru
          _
      $region84: #{crossvit_fwd.4} parent=5 // pred_fallthru
        _
      %p1306 = scmp.le.s32.totalorder 2, %s31
      // Predicated region
      $region117: #{crossvit_fwd.4} parent=5 // pred_check
        %p1307 = pneg %p1306
      $region118: #{crossvit_fwd.4} parent=5 // pred_check_branch
        %1309 = sbr.rel (%p1307) target = $region120
      $region119: #{crossvit_fwd.4} parent=5 // pred_region
        %s1310 = ssub.s32 %s31, 2
        // Predicated region
        $region121: #{crossvit_fwd.4} parent=119 // pred_check
          %p1311 = pneg %p468
        $region122: #{crossvit_fwd.4} parent=119 // pred_check_branch
          %1313 = sbr.rel (%p1311) target = $region124
        $region123: #{crossvit_fwd.4} parent=119 // pred_region
          %p1314 = scmp.lt.s32.totalorder %s42, 1
          %s1315 = scalar_select %p1314, %s42, 1
          %s1316 = smul.addr %s1315, 2
          %s1317 = scalar_lea.vmem %s16, %s1316
        $region124: #{crossvit_fwd.4} parent=119 // pred_fallthru
          _
      $region120: #{crossvit_fwd.4} parent=5 // pred_fallthru
        _
    $region6: #{crossvit_fwd.4} parent=1 // loop_footer
      %s35 = sadd.s32 1, %s31
    $region7: #{crossvit_fwd.4} parent=1 // loop_footer_branch
      %30 = sbr.rel target = $region3
    $region8: #{crossvit_fwd.4} parent=1 // loop_exit
      _
    %1318 = vsyncpa [#allocation4], 1
    %s1319 = scalar_lea.sflag [#allocation4], 1
    %1320 = vsyncpa %s1319, 1
    %1321 = vsyncpa [#allocation6], 1
    %s1322 = scalar_lea.sflag [#allocation6], 1
    %1323 = vsyncpa %s1322, 1
    %1324 = vsyncpa [#allocation9], 1
    %s1325 = scalar_lea.sflag [#allocation9], 1
    %1326 = vsyncpa %s1325, 1

// kernel: crossvit_fwd.5
$region0: #{crossvit_fwd.5}
  #allocation0 [shape = 'u32[]', space=smem, size = 0x4, offset = 0x4, fixed_abs, tag = 'smem constant byte address 0x4 - core index']
  #allocation1 [shape = 'u32[72,128]{1,0:T(1,128)}', space=vmem, size = 0x9000, scoped, tag = 'internal scratch']
  #allocation2 [shape = 'f32[1,32]{1,0:T(1,128)}', space=vmem, size = 0x200, scoped, tag = 'scratch operand']
  #allocation3 [shape = 'f32[1,64]{1,0:T(1,128)}', space=vmem, size = 0x200, scoped, tag = 'scratch operand']
  %s0 = inlined_call_operand.smem [shape: u32[31], index: -1, kind: input, shape index: {}]
  %s1 = sld [smem:[%s0]]
  %s2 = scalar_lea.smem %s0, 1
  %s3 = sld [smem:[%s2]]
  %s4 = scalar_lea.smem %s0, 2
  %s5 = sld [smem:[%s4]]
  %s6 = scalar_lea.smem %s0, 3
  %s7 = sld [smem:[%s6]]
  %s8 = scalar_lea.smem %s0, 4
  %s9 = sld [smem:[%s8]]
  %s10 = scalar_lea.smem %s0, 5
  %s11 = sld [smem:[%s10]]
  %s12 = scalar_lea.smem %s0, 6
  %s13 = sld [smem:[%s12]]
  %s14 = scalar_lea.smem %s0, 7
  %s15 = sld [smem:[%s14]]
  %s16 = scalar_lea.smem %s0, 8
  %s17 = sld [smem:[%s16]]
  %s18 = scalar_lea.smem %s0, 9
  %s19 = sld [smem:[%s18]]
  %s20 = scalar_lea.smem %s0, 10
  %s21 = sld [smem:[%s20]]
  %s22 = scalar_lea.smem %s0, 11
  %s23 = sld [smem:[%s22]]
  %s24 = scalar_lea.smem %s0, 12
  %s25 = sld [smem:[%s24]]
  %s26 = scalar_lea.smem %s0, 13
  %s27 = sld [smem:[%s26]]
  %s28 = scalar_lea.smem %s0, 14
  %s29 = sld [smem:[%s28]]
  %s30 = scalar_lea.smem %s0, 15
  %s31 = sld [smem:[%s30]]
  %s32 = scalar_lea.smem %s0, 16
  %s33 = sld [smem:[%s32]]
  %s34 = scalar_lea.smem %s0, 17
  %s35 = sld [smem:[%s34]]
  %s36 = scalar_lea.smem %s0, 18
  %s37 = sld [smem:[%s36]]
  %s38 = scalar_lea.smem %s0, 19
  %s39 = sld [smem:[%s38]]
  %s40 = scalar_lea.smem %s0, 20
  %s41 = sld [smem:[%s40]]
  %s42 = scalar_lea.smem %s0, 21
  %s43 = sld [smem:[%s42]]
  %s44 = scalar_lea.smem %s0, 22
  %s45 = sld [smem:[%s44]]
  %s46 = scalar_lea.smem %s0, 23
  %s47 = sld [smem:[%s46]]
  %s48 = scalar_lea.smem %s0, 24
  %s49 = sld [smem:[%s48]]
  %s50 = scalar_lea.smem %s0, 25
  %s51 = sld [smem:[%s50]]
  %s52 = scalar_lea.smem %s0, 26
  %s53 = sld [smem:[%s52]]
  %s54 = scalar_lea.smem %s0, 27
  %s55 = sld [smem:[%s54]]
  %s56 = scalar_lea.smem %s0, 28
  %s57 = sld [smem:[%s56]]
  %s58 = scalar_lea.smem %s0, 29
  %s59 = sld [smem:[%s58]]
  %s60 = scalar_lea.smem %s0, 30
  %s61 = sld [smem:[%s60]]
  %s62 = sld [smem:[#allocation0]]
  $region237: #{crossvit_fwd.5} parent=0
    _
  %s64 = ssub.s32 1, %s62
  %s65 = scalar_select 0, %s64, %s62
  $region1: #{crossvit_fwd.5} parent=0
    #allocation4 [shape = 'u8[32768]{0}', space=vmem, size = 0x8000, scoped, tag = 'input window, operand 2']
    #allocation5 [shape = 's32[2]{0}', space=sflag, size = 0x8, scoped, tag = 'scoped memory for crossvit_fwd.5']
    #allocation6 [shape = 's32[2]{0}', space=sflag, size = 0x8, scoped, tag = 'scoped memory for crossvit_fwd.5']
    #allocation7 [shape = 'u8[1024]{0}', space=vmem, size = 0x400, scoped, tag = 'input window, operand 3']
    #allocation8 [shape = 's32[2]{0}', space=sflag, size = 0x8, scoped, tag = 'scoped memory for crossvit_fwd.5']
    #allocation9 [shape = 'u8[65536]{0}', space=vmem, size = 0x10000, scoped, tag = 'input window, operand 6']
    #allocation10 [shape = 'u8[65536]{0}', space=vmem, size = 0x10000, scoped, tag = 'input window, operand 7']
    #allocation11 [shape = 's32[2]{0}', space=sflag, size = 0x8, scoped, tag = 'scoped memory for crossvit_fwd.5']
    #allocation12 [shape = 'u8[16384]{0}', space=vmem, size = 0x4000, scoped, tag = 'input window, operand 8']
    #allocation13 [shape = 'u8[1024]{0}', space=vmem, size = 0x400, scoped, tag = 'input window, operand 9']
    #allocation14 [shape = 's32[2]{0}', space=sflag, size = 0x8, scoped, tag = 'scoped memory for crossvit_fwd.5']
    #allocation15 [shape = 'u8[65536]{0}', space=vmem, size = 0x10000, scoped, tag = 'input window, operand 10']
    #allocation16 [shape = 'u8[1024]{0}', space=vmem, size = 0x400, scoped, tag = 'input window, operand 11']
    #allocation17 [shape = 's32[2]{0}', space=sflag, size = 0x8, scoped, tag = 'scoped memory for crossvit_fwd.5']
    #allocation18 [shape = 'u8[65536]{0}', space=vmem, size = 0x10000, scoped, tag = 'input window, operand 12']
    #allocation19 [shape = 'u8[1024]{0}', space=vmem, size = 0x400, scoped, tag = 'input window, operand 13']
    #allocation20 [shape = 's32[2]{0}', space=sflag, size = 0x8, scoped, tag = 'scoped memory for crossvit_fwd.5']
    #allocation21 [shape = 'u8[32768]{0}', space=vmem, size = 0x8000, scoped, tag = 'input window, operand 16']
    #allocation22 [shape = 'u8[32768]{0}', space=vmem, size = 0x8000, scoped, tag = 'input window, operand 17']
    #allocation23 [shape = 's32[2]{0}', space=sflag, size = 0x8, scoped, tag = 'scoped memory for crossvit_fwd.5']
    #allocation24 [shape = 'u8[16384]{0}', space=vmem, size = 0x4000, scoped, tag = 'input window, operand 18']
    #allocation25 [shape = 'u8[1024]{0}', space=vmem, size = 0x400, scoped, tag = 'input window, operand 19']
    #allocation26 [shape = 's32[2]{0}', space=sflag, size = 0x8, scoped, tag = 'scoped memory for crossvit_fwd.5']
    #allocation27 [shape = 'u8[32768]{0}', space=vmem, size = 0x8000, scoped, tag = 'input window, operand 20']
    #allocation28 [shape = 'u8[1024]{0}', space=vmem, size = 0x400, scoped, tag = 'input window, operand 21']
    #allocation29 [shape = 's32[2]{0}', space=sflag, size = 0x8, scoped, tag = 'scoped memory for crossvit_fwd.5']
    #allocation30 [shape = 'u8[512]{0}', space=vmem, size = 0x400, scoped, tag = 'input window, operand 25, single buffered']
    #allocation31 [shape = 'u8[32768]{0}', space=vmem, size = 0x8000, scoped, tag = 'input window, operand 28, single buffered']
    #allocation32 [shape = 's32[1]{0}', space=sflag, size = 0x4, scoped, tag = 'scoped memory for crossvit_fwd.5']
    #allocation33 [shape = 'u8[512]{0}', space=vmem, size = 0x400, scoped, tag = 'input window, operand 29, single buffered']
    #allocation34 [shape = 'u8[1024]{0}', space=vmem, size = 0x400, scoped, tag = 'output window, operand 0']
    %66 = vsyncpa [#allocation5], 0
    %s67 = scalar_lea.sflag [#allocation5], 1
    %68 = vsyncpa %s67, 0
    %69 = vsyncpa [#allocation8], 0
    %s70 = scalar_lea.sflag [#allocation8], 1
    %71 = vsyncpa %s70, 0
    %72 = vsyncpa [#allocation11], 0
    %s73 = scalar_lea.sflag [#allocation11], 1
    %74 = vsyncpa %s73, 0
    %75 = vsyncpa [#allocation14], 0
    %s76 = scalar_lea.sflag [#allocation14], 1
    %77 = vsyncpa %s76, 0
    %78 = vsyncpa [#allocation17], 0
    %s79 = scalar_lea.sflag [#allocation17], 1
    %80 = vsyncpa %s79, 0
    %81 = vsyncpa [#allocation20], 0
    %s82 = scalar_lea.sflag [#allocation20], 1
    %83 = vsyncpa %s82, 0
    %84 = vsyncpa [#allocation23], 0
    %s85 = scalar_lea.sflag [#allocation23], 1
    %86 = vsyncpa %s85, 0
    %87 = vsyncpa [#allocation26], 0
    %s88 = scalar_lea.sflag [#allocation26], 1
    %89 = vsyncpa %s88, 0
    %90 = vsyncpa [#allocation29], 0
    %s91 = scalar_lea.sflag [#allocation29], 1
    %92 = vsyncpa %s91, 0
    %93 = vsyncpa [#allocation32], 0
    %94 = vsyncpa [#allocation6], 0
    %s95 = scalar_lea.sflag [#allocation6], 1
    %96 = vsyncpa %s95, 0
    loop: start=0, step=1, limit=6
    $region2: #{crossvit_fwd.5} parent=1 // loop_pre_header
      _
    $region3: #{crossvit_fwd.5} parent=1 // loop_header
      %s98 = sphi 0, %s102
      %p99 = scmp.ge.s32.totalorder %s98, 6
      %s105 = sphi 0, %s117
      %s106 = sphi 0, %s113
      %s107 = sphi 0, %s105
      %s108 = sphi 0, %s106
      %s109 = sphi 0, %s107
      %s110 = sphi 0, %s108
      %s120 = sphi 0, %s122
      %s123 = sphi 0, %s120
      %s124 = sphi 0, %s123
      %s140 = sphi 0, %s124
      %s146 = sphi 0, %s148
      %s149 = sphi 0, %s146
      %s150 = sphi 0, %s149
      %s166 = sphi 0, %s150
      %s172 = sphi 0, %s174
      %s175 = sphi 0, %s172
      %s176 = sphi 0, %s175
      %s192 = sphi 0, %s176
      %s198 = sphi 0, %s200
      %s201 = sphi 0, %s198
      %s202 = sphi 0, %s201
      %s218 = sphi 0, %s202
      %s224 = sphi 0, %s226
      %s227 = sphi 0, %s224
      %s228 = sphi 0, %s227
      %s244 = sphi 0, %s228
      %s250 = sphi 0, %s252
      %s253 = sphi 0, %s250
      %s254 = sphi 0, %s253
      %s270 = sphi 0, %s254
      %s276 = sphi 0, %s278
      %s279 = sphi 0, %s276
      %s280 = sphi 0, %s279
      %s296 = sphi 0, %s280
      %s302 = sphi 0, %s304
      %s305 = sphi 0, %s302
      %s306 = sphi 0, %s305
      %s322 = sphi 0, %s306
      %s328 = sphi 0, %s330
      %s331 = sphi 0, %s328
      %s332 = sphi 0, %s331
      %s348 = sphi 0, %s332
      %s354 = sphi 0, %s356
      %s357 = sphi 0, %s354
      %s358 = sphi 0, %s357
      %s374 = sphi 0, %s358
      %s380 = sphi 0, %s382
      %s383 = sphi 0, %s380
      %s384 = sphi 0, %s383
      %s400 = sphi 0, %s384
      %s406 = sphi 0, %s408
      %s409 = sphi 0, %s406
      %s410 = sphi 0, %s409
      %s426 = sphi 0, %s410
      %s432 = sphi 0, %s434
      %s435 = sphi 0, %s432
      %s436 = sphi 0, %s435
      %s452 = sphi 0, %s436
      %s458 = sphi 0, %s460
      %s461 = sphi 0, %s458
      %s462 = sphi 0, %s461
      %s478 = sphi 0, %s462
      %s484 = sphi 0, %s486
      %s487 = sphi 0, %s484
      %s488 = sphi 0, %s487
      %s504 = sphi 0, %s488
      %s510 = sphi 0, %s512
      %s513 = sphi 0, %s510
      %s514 = sphi 0, %s513
      %s530 = sphi 0, %s514
      %s536 = sphi 0, %s538
      %s539 = sphi 0, %s536
      %s540 = sphi 0, %s539
      %s556 = sphi 0, %s540
      %s562 = sphi 0, %s564
      %s565 = sphi 0, %s562
      %s566 = sphi 0, %s565
      %s582 = sphi 0, %s566
      %s588 = sphi 0, %s590
      %s591 = sphi 0, %s588
      %s592 = sphi 0, %s591
      %s608 = sphi 0, %s592
      %s614 = sphi 0, %s616
      %s617 = sphi 0, %s614
      %s618 = sphi 0, %s617
      %s634 = sphi 0, %s618
      %s640 = sphi 0, %s642
      %s643 = sphi 0, %s640
      %s644 = sphi 0, %s643
      %s660 = sphi 0, %s644
      %s666 = sphi 0, %s668
      %s669 = sphi 0, %s666
      %s670 = sphi 0, %s669
      %s686 = sphi 0, %s670
      %s690 = sphi 0, %s690
      %s692 = sphi 0, %s690
      %s693 = sphi 0, %s692
      %s707 = sphi 0, %s693
      %s711 = sphi 0, %s711
      %s713 = sphi 0, %s711
      %s714 = sphi 0, %s713
      %s728 = sphi 0, %s714
      %s732 = sphi 0, %s732
      %s734 = sphi 0, %s732
      %s735 = sphi 0, %s734
      %s749 = sphi 0, %s735
      %s753 = sphi 0, %s753
      %s755 = sphi 0, %s753
      %s756 = sphi 0, %s755
      %s770 = sphi 0, %s756
      %s774 = sphi 0, %s774
      %s776 = sphi 0, %s774
      %s777 = sphi 0, %s776
      %s791 = sphi 0, %s777
      %s795 = sphi 0, %s795
      %s797 = sphi 0, %s795
      %s798 = sphi 0, %s797
      %s812 = sphi 0, %s798
      %s816 = sphi 0, %s816
      %s818 = sphi 0, %s816
      %s819 = sphi 0, %s818
      %s833 = sphi 0, %s819
      %s837 = sphi 0, %s837
      %s839 = sphi 0, %s837
      %s840 = sphi 0, %s839
      %s854 = sphi 0, %s840
      %s860 = sphi 0, %s862
      %s863 = sphi 0, %s860
      %s864 = sphi 0, %s863
      %s880 = sphi 0, %s864
    $region4: #{crossvit_fwd.5} parent=1 // loop_header_branch
      %101 = sbr.rel (%p99) target = $region8
    $region5: #{crossvit_fwd.5} parent=1 // loop_body
      %s103 = ssub.s32 %s98, 1
      %s104 = ssub.s32 %s98, 2
      %s111 = sadd.s32 1, %s106
      %p112 = scmp.ge.s32.totalorder %s111, 2
      %s113 = scalar_select %p112, 0, %s111
      %s114 = sadd.s32 1, %s105
      %s115 = scalar_select %p112, %s114, %s105
      %p116 = scmp.ge.s32.totalorder %s115, 2
      %s117 = scalar_select %p116, 0, %s115
      %s118 = ssub.s32 %s105, %s117
      %p119 = scmp.eq.s32.totalorder %s118, 0
      %s121 = sadd.s32 %s120, 1
      %s122 = scalar_select %p119, %s120, %s121
      %p125 = pneg %p119
      %p126 = scmp.eq.s32.totalorder %s98, 3
      %p127 = por %p125, %p126
      %p128 = scmp.ne.s32.totalorder %s120, %s123
      %p129 = scmp.eq.s32.totalorder %s98, 0
      %p130 = por %p128, %p129
      %p131 = scmp.ne.s32.totalorder %s120, %s123
      %p132 = scmp.eq.s32.totalorder %s103, 3
      %p133 = por %p131, %p132
      %p134 = scmp.ne.s32.totalorder %s123, %s124
      %p135 = scmp.eq.s32.totalorder %s103, 0
      %p136 = por %p134, %p135
      %p137 = scmp.ne.s32.totalorder %s123, %s124
      %p138 = scmp.eq.s32.totalorder %s104, 3
      %p139 = por %p137, %p138
      %p141 = scmp.ne.s32.totalorder %s124, %s140
      %p142 = scmp.eq.s32.totalorder %s104, 0
      %p143 = por %p141, %p142
      %s144 = ssub.s32 %s105, %s117
      %p145 = scmp.eq.s32.totalorder %s144, 0
      %s147 = sadd.s32 %s146, 1
      %s148 = scalar_select %p145, %s146, %s147
      %p151 = pneg %p145
      %p152 = scmp.eq.s32.totalorder %s98, 3
      %p153 = por %p151, %p152
      %p154 = scmp.ne.s32.totalorder %s146, %s149
      %p155 = scmp.eq.s32.totalorder %s98, 0
      %p156 = por %p154, %p155
      %p157 = scmp.ne.s32.totalorder %s146, %s149
      %p158 = scmp.eq.s32.totalorder %s103, 3
      %p159 = por %p157, %p158
      %p160 = scmp.ne.s32.totalorder %s149, %s150
      %p161 = scmp.eq.s32.totalorder %s103, 0
      %p162 = por %p160, %p161
      %p163 = scmp.ne.s32.totalorder %s149, %s150
      %p164 = scmp.eq.s32.totalorder %s104, 3
      %p165 = por %p163, %p164
      %p167 = scmp.ne.s32.totalorder %s150, %s166
      %p168 = scmp.eq.s32.totalorder %s104, 0
      %p169 = por %p167, %p168
      %s170 = ssub.s32 %s106, %s113
      %p171 = scmp.eq.s32.totalorder %s170, 0
      %s173 = sadd.s32 %s172, 1
      %s174 = scalar_select %p171, %s172, %s173
      %p177 = pneg %p171
      %p178 = scmp.eq.s32.totalorder %s98, 3
      %p179 = por %p177, %p178
      %p180 = scmp.ne.s32.totalorder %s172, %s175
      %p181 = scmp.eq.s32.totalorder %s98, 0
      %p182 = por %p180, %p181
      %p183 = scmp.ne.s32.totalorder %s172, %s175
      %p184 = scmp.eq.s32.totalorder %s103, 3
      %p185 = por %p183, %p184
      %p186 = scmp.ne.s32.totalorder %s175, %s176
      %p187 = scmp.eq.s32.totalorder %s103, 0
      %p188 = por %p186, %p187
      %p189 = scmp.ne.s32.totalorder %s175, %s176
      %p190 = scmp.eq.s32.totalorder %s104, 3
      %p191 = por %p189, %p190
      %p193 = scmp.ne.s32.totalorder %s176, %s192
      %p194 = scmp.eq.s32.totalorder %s104, 0
      %p195 = por %p193, %p194
      %s196 = ssub.s32 %s106, %s113
      %p197 = scmp.eq.s32.totalorder %s196, 0
      %s199 = sadd.s32 %s198, 1
      %s200 = scalar_select %p197, %s198, %s199
      %p203 = pneg %p197
      %p204 = scmp.eq.s32.totalorder %s98, 3
      %p205 = por %p203, %p204
      %p206 = scmp.ne.s32.totalorder %s198, %s201
      %p207 = scmp.eq.s32.totalorder %s98, 0
      %p208 = por %p206, %p207
      %p209 = scmp.ne.s32.totalorder %s198, %s201
      %p210 = scmp.eq.s32.totalorder %s103, 3
      %p211 = por %p209, %p210
      %p212 = scmp.ne.s32.totalorder %s201, %s202
      %p213 = scmp.eq.s32.totalorder %s103, 0
      %p214 = por %p212, %p213
      %p215 = scmp.ne.s32.totalorder %s201, %s202
      %p216 = scmp.eq.s32.totalorder %s104, 3
      %p217 = por %p215, %p216
      %p219 = scmp.ne.s32.totalorder %s202, %s218
      %p220 = scmp.eq.s32.totalorder %s104, 0
      %p221 = por %p219, %p220
      %s222 = ssub.s32 %s106, %s113
      %p223 = scmp.eq.s32.totalorder %s222, 0
      %s225 = sadd.s32 %s224, 1
      %s226 = scalar_select %p223, %s224, %s225
      %p229 = pneg %p223
      %p230 = scmp.eq.s32.totalorder %s98, 3
      %p231 = por %p229, %p230
      %p232 = scmp.ne.s32.totalorder %s224, %s227
      %p233 = scmp.eq.s32.totalorder %s98, 0
      %p234 = por %p232, %p233
      %p235 = scmp.ne.s32.totalorder %s224, %s227
      %p236 = scmp.eq.s32.totalorder %s103, 3
      %p237 = por %p235, %p236
      %p238 = scmp.ne.s32.totalorder %s227, %s228
      %p239 = scmp.eq.s32.totalorder %s103, 0
      %p240 = por %p238, %p239
      %p241 = scmp.ne.s32.totalorder %s227, %s228
      %p242 = scmp.eq.s32.totalorder %s104, 3
      %p243 = por %p241, %p242
      %p245 = scmp.ne.s32.totalorder %s228, %s244
      %p246 = scmp.eq.s32.totalorder %s104, 0
      %p247 = por %p245, %p246
      %s248 = ssub.s32 %s106, %s113
      %p249 = scmp.eq.s32.totalorder %s248, 0
      %s251 = sadd.s32 %s250, 1
      %s252 = scalar_select %p249, %s250, %s251
      %p255 = pneg %p249
      %p256 = scmp.eq.s32.totalorder %s98, 3
      %p257 = por %p255, %p256
      %p258 = scmp.ne.s32.totalorder %s250, %s253
      %p259 = scmp.eq.s32.totalorder %s98, 0
      %p260 = por %p258, %p259
      %p261 = scmp.ne.s32.totalorder %s250, %s253
      %p262 = scmp.eq.s32.totalorder %s103, 3
      %p263 = por %p261, %p262
      %p264 = scmp.ne.s32.totalorder %s253, %s254
      %p265 = scmp.eq.s32.totalorder %s103, 0
      %p266 = por %p264, %p265
      %p267 = scmp.ne.s32.totalorder %s253, %s254
      %p268 = scmp.eq.s32.totalorder %s104, 3
      %p269 = por %p267, %p268
      %p271 = scmp.ne.s32.totalorder %s254, %s270
      %p272 = scmp.eq.s32.totalorder %s104, 0
      %p273 = por %p271, %p272
      %s274 = ssub.s32 %s106, %s113
      %p275 = scmp.eq.s32.totalorder %s274, 0
      %s277 = sadd.s32 %s276, 1
      %s278 = scalar_select %p275, %s276, %s277
      %p281 = pneg %p275
      %p282 = scmp.eq.s32.totalorder %s98, 3
      %p283 = por %p281, %p282
      %p284 = scmp.ne.s32.totalorder %s276, %s279
      %p285 = scmp.eq.s32.totalorder %s98, 0
      %p286 = por %p284, %p285
      %p287 = scmp.ne.s32.totalorder %s276, %s279
      %p288 = scmp.eq.s32.totalorder %s103, 3
      %p289 = por %p287, %p288
      %p290 = scmp.ne.s32.totalorder %s279, %s280
      %p291 = scmp.eq.s32.totalorder %s103, 0
      %p292 = por %p290, %p291
      %p293 = scmp.ne.s32.totalorder %s279, %s280
      %p294 = scmp.eq.s32.totalorder %s104, 3
      %p295 = por %p293, %p294
      %p297 = scmp.ne.s32.totalorder %s280, %s296
      %p298 = scmp.eq.s32.totalorder %s104, 0
      %p299 = por %p297, %p298
      %s300 = ssub.s32 %s106, %s113
      %p301 = scmp.eq.s32.totalorder %s300, 0
      %s303 = sadd.s32 %s302, 1
      %s304 = scalar_select %p301, %s302, %s303
      %p307 = pneg %p301
      %p308 = scmp.eq.s32.totalorder %s98, 3
      %p309 = por %p307, %p308
      %p310 = scmp.ne.s32.totalorder %s302, %s305
      %p311 = scmp.eq.s32.totalorder %s98, 0
      %p312 = por %p310, %p311
      %p313 = scmp.ne.s32.totalorder %s302, %s305
      %p314 = scmp.eq.s32.totalorder %s103, 3
      %p315 = por %p313, %p314
      %p316 = scmp.ne.s32.totalorder %s305, %s306
      %p317 = scmp.eq.s32.totalorder %s103, 0
      %p318 = por %p316, %p317
      %p319 = scmp.ne.s32.totalorder %s305, %s306
      %p320 = scmp.eq.s32.totalorder %s104, 3
      %p321 = por %p319, %p320
      %p323 = scmp.ne.s32.totalorder %s306, %s322
      %p324 = scmp.eq.s32.totalorder %s104, 0
      %p325 = por %p323, %p324
      %s326 = ssub.s32 %s106, %s113
      %p327 = scmp.eq.s32.totalorder %s326, 0
      %s329 = sadd.s32 %s328, 1
      %s330 = scalar_select %p327, %s328, %s329
      %p333 = pneg %p327
      %p334 = scmp.eq.s32.totalorder %s98, 3
      %p335 = por %p333, %p334
      %p336 = scmp.ne.s32.totalorder %s328, %s331
      %p337 = scmp.eq.s32.totalorder %s98, 0
      %p338 = por %p336, %p337
      %p339 = scmp.ne.s32.totalorder %s328, %s331
      %p340 = scmp.eq.s32.totalorder %s103, 3
      %p341 = por %p339, %p340
      %p342 = scmp.ne.s32.totalorder %s331, %s332
      %p343 = scmp.eq.s32.totalorder %s103, 0
      %p344 = por %p342, %p343
      %p345 = scmp.ne.s32.totalorder %s331, %s332
      %p346 = scmp.eq.s32.totalorder %s104, 3
      %p347 = por %p345, %p346
      %p349 = scmp.ne.s32.totalorder %s332, %s348
      %p350 = scmp.eq.s32.totalorder %s104, 0
      %p351 = por %p349, %p350
      %s352 = ssub.s32 %s106, %s113
      %p353 = scmp.eq.s32.totalorder %s352, 0
      %s355 = sadd.s32 %s354, 1
      %s356 = scalar_select %p353, %s354, %s355
      %p359 = pneg %p353
      %p360 = scmp.eq.s32.totalorder %s98, 3
      %p361 = por %p359, %p360
      %p362 = scmp.ne.s32.totalorder %s354, %s357
      %p363 = scmp.eq.s32.totalorder %s98, 0
      %p364 = por %p362, %p363
      %p365 = scmp.ne.s32.totalorder %s354, %s357
      %p366 = scmp.eq.s32.totalorder %s103, 3
      %p367 = por %p365, %p366
      %p368 = scmp.ne.s32.totalorder %s357, %s358
      %p369 = scmp.eq.s32.totalorder %s103, 0
      %p370 = por %p368, %p369
      %p371 = scmp.ne.s32.totalorder %s357, %s358
      %p372 = scmp.eq.s32.totalorder %s104, 3
      %p373 = por %p371, %p372
      %p375 = scmp.ne.s32.totalorder %s358, %s374
      %p376 = scmp.eq.s32.totalorder %s104, 0
      %p377 = por %p375, %p376
      %s378 = ssub.s32 %s106, %s113
      %p379 = scmp.eq.s32.totalorder %s378, 0
      %s381 = sadd.s32 %s380, 1
      %s382 = scalar_select %p379, %s380, %s381
      %p385 = pneg %p379
      %p386 = scmp.eq.s32.totalorder %s98, 3
      %p387 = por %p385, %p386
      %p388 = scmp.ne.s32.totalorder %s380, %s383
      %p389 = scmp.eq.s32.totalorder %s98, 0
      %p390 = por %p388, %p389
      %p391 = scmp.ne.s32.totalorder %s380, %s383
      %p392 = scmp.eq.s32.totalorder %s103, 3
      %p393 = por %p391, %p392
      %p394 = scmp.ne.s32.totalorder %s383, %s384
      %p395 = scmp.eq.s32.totalorder %s103, 0
      %p396 = por %p394, %p395
      %p397 = scmp.ne.s32.totalorder %s383, %s384
      %p398 = scmp.eq.s32.totalorder %s104, 3
      %p399 = por %p397, %p398
      %p401 = scmp.ne.s32.totalorder %s384, %s400
      %p402 = scmp.eq.s32.totalorder %s104, 0
      %p403 = por %p401, %p402
      %s404 = ssub.s32 %s106, %s113
      %p405 = scmp.eq.s32.totalorder %s404, 0
      %s407 = sadd.s32 %s406, 1
      %s408 = scalar_select %p405, %s406, %s407
      %p411 = pneg %p405
      %p412 = scmp.eq.s32.totalorder %s98, 3
      %p413 = por %p411, %p412
      %p414 = scmp.ne.s32.totalorder %s406, %s409
      %p415 = scmp.eq.s32.totalorder %s98, 0
      %p416 = por %p414, %p415
      %p417 = scmp.ne.s32.totalorder %s406, %s409
      %p418 = scmp.eq.s32.totalorder %s103, 3
      %p419 = por %p417, %p418
      %p420 = scmp.ne.s32.totalorder %s409, %s410
      %p421 = scmp.eq.s32.totalorder %s103, 0
      %p422 = por %p420, %p421
      %p423 = scmp.ne.s32.totalorder %s409, %s410
      %p424 = scmp.eq.s32.totalorder %s104, 3
      %p425 = por %p423, %p424
      %p427 = scmp.ne.s32.totalorder %s410, %s426
      %p428 = scmp.eq.s32.totalorder %s104, 0
      %p429 = por %p427, %p428
      %s430 = ssub.s32 %s106, %s113
      %p431 = scmp.eq.s32.totalorder %s430, 0
      %s433 = sadd.s32 %s432, 1
      %s434 = scalar_select %p431, %s432, %s433
      %p437 = pneg %p431
      %p438 = scmp.eq.s32.totalorder %s98, 3
      %p439 = por %p437, %p438
      %p440 = scmp.ne.s32.totalorder %s432, %s435
      %p441 = scmp.eq.s32.totalorder %s98, 0
      %p442 = por %p440, %p441
      %p443 = scmp.ne.s32.totalorder %s432, %s435
      %p444 = scmp.eq.s32.totalorder %s103, 3
      %p445 = por %p443, %p444
      %p446 = scmp.ne.s32.totalorder %s435, %s436
      %p447 = scmp.eq.s32.totalorder %s103, 0
      %p448 = por %p446, %p447
      %p449 = scmp.ne.s32.totalorder %s435, %s436
      %p450 = scmp.eq.s32.totalorder %s104, 3
      %p451 = por %p449, %p450
      %p453 = scmp.ne.s32.totalorder %s436, %s452
      %p454 = scmp.eq.s32.totalorder %s104, 0
      %p455 = por %p453, %p454
      %s456 = ssub.s32 %s106, %s113
      %p457 = scmp.eq.s32.totalorder %s456, 0
      %s459 = sadd.s32 %s458, 1
      %s460 = scalar_select %p457, %s458, %s459
      %p463 = pneg %p457
      %p464 = scmp.eq.s32.totalorder %s98, 3
      %p465 = por %p463, %p464
      %p466 = scmp.ne.s32.totalorder %s458, %s461
      %p467 = scmp.eq.s32.totalorder %s98, 0
      %p468 = por %p466, %p467
      %p469 = scmp.ne.s32.totalorder %s458, %s461
      %p470 = scmp.eq.s32.totalorder %s103, 3
      %p471 = por %p469, %p470
      %p472 = scmp.ne.s32.totalorder %s461, %s462
      %p473 = scmp.eq.s32.totalorder %s103, 0
      %p474 = por %p472, %p473
      %p475 = scmp.ne.s32.totalorder %s461, %s462
      %p476 = scmp.eq.s32.totalorder %s104, 3
      %p477 = por %p475, %p476
      %p479 = scmp.ne.s32.totalorder %s462, %s478
      %p480 = scmp.eq.s32.totalorder %s104, 0
      %p481 = por %p479, %p480
      %s482 = ssub.s32 %s106, %s113
      %p483 = scmp.eq.s32.totalorder %s482, 0
      %s485 = sadd.s32 %s484, 1
      %s486 = scalar_select %p483, %s484, %s485
      %p489 = pneg %p483
      %p490 = scmp.eq.s32.totalorder %s98, 3
      %p491 = por %p489, %p490
      %p492 = scmp.ne.s32.totalorder %s484, %s487
      %p493 = scmp.eq.s32.totalorder %s98, 0
      %p494 = por %p492, %p493
      %p495 = scmp.ne.s32.totalorder %s484, %s487
      %p496 = scmp.eq.s32.totalorder %s103, 3
      %p497 = por %p495, %p496
      %p498 = scmp.ne.s32.totalorder %s487, %s488
      %p499 = scmp.eq.s32.totalorder %s103, 0
      %p500 = por %p498, %p499
      %p501 = scmp.ne.s32.totalorder %s487, %s488
      %p502 = scmp.eq.s32.totalorder %s104, 3
      %p503 = por %p501, %p502
      %p505 = scmp.ne.s32.totalorder %s488, %s504
      %p506 = scmp.eq.s32.totalorder %s104, 0
      %p507 = por %p505, %p506
      %s508 = ssub.s32 %s106, %s113
      %p509 = scmp.eq.s32.totalorder %s508, 0
      %s511 = sadd.s32 %s510, 1
      %s512 = scalar_select %p509, %s510, %s511
      %p515 = pneg %p509
      %p516 = scmp.eq.s32.totalorder %s98, 3
      %p517 = por %p515, %p516
      %p518 = scmp.ne.s32.totalorder %s510, %s513
      %p519 = scmp.eq.s32.totalorder %s98, 0
      %p520 = por %p518, %p519
      %p521 = scmp.ne.s32.totalorder %s510, %s513
      %p522 = scmp.eq.s32.totalorder %s103, 3
      %p523 = por %p521, %p522
      %p524 = scmp.ne.s32.totalorder %s513, %s514
      %p525 = scmp.eq.s32.totalorder %s103, 0
      %p526 = por %p524, %p525
      %p527 = scmp.ne.s32.totalorder %s513, %s514
      %p528 = scmp.eq.s32.totalorder %s104, 3
      %p529 = por %p527, %p528
      %p531 = scmp.ne.s32.totalorder %s514, %s530
      %p532 = scmp.eq.s32.totalorder %s104, 0
      %p533 = por %p531, %p532
      %s534 = ssub.s32 %s106, %s113
      %p535 = scmp.eq.s32.totalorder %s534, 0
      %s537 = sadd.s32 %s536, 1
      %s538 = scalar_select %p535, %s536, %s537
      %p541 = pneg %p535
      %p542 = scmp.eq.s32.totalorder %s98, 3
      %p543 = por %p541, %p542
      %p544 = scmp.ne.s32.totalorder %s536, %s539
      %p545 = scmp.eq.s32.totalorder %s98, 0
      %p546 = por %p544, %p545
      %p547 = scmp.ne.s32.totalorder %s536, %s539
      %p548 = scmp.eq.s32.totalorder %s103, 3
      %p549 = por %p547, %p548
      %p550 = scmp.ne.s32.totalorder %s539, %s540
      %p551 = scmp.eq.s32.totalorder %s103, 0
      %p552 = por %p550, %p551
      %p553 = scmp.ne.s32.totalorder %s539, %s540
      %p554 = scmp.eq.s32.totalorder %s104, 3
      %p555 = por %p553, %p554
      %p557 = scmp.ne.s32.totalorder %s540, %s556
      %p558 = scmp.eq.s32.totalorder %s104, 0
      %p559 = por %p557, %p558
      %s560 = ssub.s32 %s106, %s113
      %p561 = scmp.eq.s32.totalorder %s560, 0
      %s563 = sadd.s32 %s562, 1
      %s564 = scalar_select %p561, %s562, %s563
      %p567 = pneg %p561
      %p568 = scmp.eq.s32.totalorder %s98, 3
      %p569 = por %p567, %p568
      %p570 = scmp.ne.s32.totalorder %s562, %s565
      %p571 = scmp.eq.s32.totalorder %s98, 0
      %p572 = por %p570, %p571
      %p573 = scmp.ne.s32.totalorder %s562, %s565
      %p574 = scmp.eq.s32.totalorder %s103, 3
      %p575 = por %p573, %p574
      %p576 = scmp.ne.s32.totalorder %s565, %s566
      %p577 = scmp.eq.s32.totalorder %s103, 0
      %p578 = por %p576, %p577
      %p579 = scmp.ne.s32.totalorder %s565, %s566
      %p580 = scmp.eq.s32.totalorder %s104, 3
      %p581 = por %p579, %p580
      %p583 = scmp.ne.s32.totalorder %s566, %s582
      %p584 = scmp.eq.s32.totalorder %s104, 0
      %p585 = por %p583, %p584
      %s586 = ssub.s32 %s106, %s113
      %p587 = scmp.eq.s32.totalorder %s586, 0
      %s589 = sadd.s32 %s588, 1
      %s590 = scalar_select %p587, %s588, %s589
      %p593 = pneg %p587
      %p594 = scmp.eq.s32.totalorder %s98, 3
      %p595 = por %p593, %p594
      %p596 = scmp.ne.s32.totalorder %s588, %s591
      %p597 = scmp.eq.s32.totalorder %s98, 0
      %p598 = por %p596, %p597
      %p599 = scmp.ne.s32.totalorder %s588, %s591
      %p600 = scmp.eq.s32.totalorder %s103, 3
      %p601 = por %p599, %p600
      %p602 = scmp.ne.s32.totalorder %s591, %s592
      %p603 = scmp.eq.s32.totalorder %s103, 0
      %p604 = por %p602, %p603
      %p605 = scmp.ne.s32.totalorder %s591, %s592
      %p606 = scmp.eq.s32.totalorder %s104, 3
      %p607 = por %p605, %p606
      %p609 = scmp.ne.s32.totalorder %s592, %s608
      %p610 = scmp.eq.s32.totalorder %s104, 0
      %p611 = por %p609, %p610
      %s612 = ssub.s32 %s106, %s113
      %p613 = scmp.eq.s32.totalorder %s612, 0
      %s615 = sadd.s32 %s614, 1
      %s616 = scalar_select %p613, %s614, %s615
      %p619 = pneg %p613
      %p620 = scmp.eq.s32.totalorder %s98, 3
      %p621 = por %p619, %p620
      %p622 = scmp.ne.s32.totalorder %s614, %s617
      %p623 = scmp.eq.s32.totalorder %s98, 0
      %p624 = por %p622, %p623
      %p625 = scmp.ne.s32.totalorder %s614, %s617
      %p626 = scmp.eq.s32.totalorder %s103, 3
      %p627 = por %p625, %p626
      %p628 = scmp.ne.s32.totalorder %s617, %s618
      %p629 = scmp.eq.s32.totalorder %s103, 0
      %p630 = por %p628, %p629
      %p631 = scmp.ne.s32.totalorder %s617, %s618
      %p632 = scmp.eq.s32.totalorder %s104, 3
      %p633 = por %p631, %p632
      %p635 = scmp.ne.s32.totalorder %s618, %s634
      %p636 = scmp.eq.s32.totalorder %s104, 0
      %p637 = por %p635, %p636
      %s638 = ssub.s32 %s106, %s113
      %p639 = scmp.eq.s32.totalorder %s638, 0
      %s641 = sadd.s32 %s640, 1
      %s642 = scalar_select %p639, %s640, %s641
      %p645 = pneg %p639
      %p646 = scmp.eq.s32.totalorder %s98, 3
      %p647 = por %p645, %p646
      %p648 = scmp.ne.s32.totalorder %s640, %s643
      %p649 = scmp.eq.s32.totalorder %s98, 0
      %p650 = por %p648, %p649
      %p651 = scmp.ne.s32.totalorder %s640, %s643
      %p652 = scmp.eq.s32.totalorder %s103, 3
      %p653 = por %p651, %p652
      %p654 = scmp.ne.s32.totalorder %s643, %s644
      %p655 = scmp.eq.s32.totalorder %s103, 0
      %p656 = por %p654, %p655
      %p657 = scmp.ne.s32.totalorder %s643, %s644
      %p658 = scmp.eq.s32.totalorder %s104, 3
      %p659 = por %p657, %p658
      %p661 = scmp.ne.s32.totalorder %s644, %s660
      %p662 = scmp.eq.s32.totalorder %s104, 0
      %p663 = por %p661, %p662
      %s664 = ssub.s32 %s106, %s113
      %p665 = scmp.eq.s32.totalorder %s664, 0
      %s667 = sadd.s32 %s666, 1
      %s668 = scalar_select %p665, %s666, %s667
      %p671 = pneg %p665
      %p672 = scmp.eq.s32.totalorder %s98, 3
      %p673 = por %p671, %p672
      %p674 = scmp.ne.s32.totalorder %s666, %s669
      %p675 = scmp.eq.s32.totalorder %s98, 0
      %p676 = por %p674, %p675
      %p677 = scmp.ne.s32.totalorder %s666, %s669
      %p678 = scmp.eq.s32.totalorder %s103, 3
      %p679 = por %p677, %p678
      %p680 = scmp.ne.s32.totalorder %s669, %s670
      %p681 = scmp.eq.s32.totalorder %s103, 0
      %p682 = por %p680, %p681
      %p683 = scmp.ne.s32.totalorder %s669, %s670
      %p684 = scmp.eq.s32.totalorder %s104, 3
      %p685 = por %p683, %p684
      %p687 = scmp.ne.s32.totalorder %s670, %s686
      %p688 = scmp.eq.s32.totalorder %s104, 0
      %p689 = por %p687, %p688
      %s691 = sadd.s32 %s690, 1
      %p694 = scmp.eq.s32.totalorder %s98, 3
      %p695 = scmp.ne.s32.totalorder %s690, %s692
      %p696 = scmp.eq.s32.totalorder %s98, 0
      %p697 = por %p695, %p696
      %p698 = scmp.ne.s32.totalorder %s690, %s692
      %p699 = scmp.eq.s32.totalorder %s103, 3
      %p700 = por %p698, %p699
      %p701 = scmp.ne.s32.totalorder %s692, %s693
      %p702 = scmp.eq.s32.totalorder %s103, 0
      %p703 = por %p701, %p702
      %p704 = scmp.ne.s32.totalorder %s692, %s693
      %p705 = scmp.eq.s32.totalorder %s104, 3
      %p706 = por %p704, %p705
      %p708 = scmp.ne.s32.totalorder %s693, %s707
      %p709 = scmp.eq.s32.totalorder %s104, 0
      %p710 = por %p708, %p709
      %s712 = sadd.s32 %s711, 1
      %p715 = scmp.eq.s32.totalorder %s98, 3
      %p716 = scmp.ne.s32.totalorder %s711, %s713
      %p717 = scmp.eq.s32.totalorder %s98, 0
      %p718 = por %p716, %p717
      %p719 = scmp.ne.s32.totalorder %s711, %s713
      %p720 = scmp.eq.s32.totalorder %s103, 3
      %p721 = por %p719, %p720
      %p722 = scmp.ne.s32.totalorder %s713, %s714
      %p723 = scmp.eq.s32.totalorder %s103, 0
      %p724 = por %p722, %p723
      %p725 = scmp.ne.s32.totalorder %s713, %s714
      %p726 = scmp.eq.s32.totalorder %s104, 3
      %p727 = por %p725, %p726
      %p729 = scmp.ne.s32.totalorder %s714, %s728
      %p730 = scmp.eq.s32.totalorder %s104, 0
      %p731 = por %p729, %p730
      %s733 = sadd.s32 %s732, 1
      %p736 = scmp.eq.s32.totalorder %s98, 3
      %p737 = scmp.ne.s32.totalorder %s732, %s734
      %p738 = scmp.eq.s32.totalorder %s98, 0
      %p739 = por %p737, %p738
      %p740 = scmp.ne.s32.totalorder %s732, %s734
      %p741 = scmp.eq.s32.totalorder %s103, 3
      %p742 = por %p740, %p741
      %p743 = scmp.ne.s32.totalorder %s734, %s735
      %p744 = scmp.eq.s32.totalorder %s103, 0
      %p745 = por %p743, %p744
      %p746 = scmp.ne.s32.totalorder %s734, %s735
      %p747 = scmp.eq.s32.totalorder %s104, 3
      %p748 = por %p746, %p747
      %p750 = scmp.ne.s32.totalorder %s735, %s749
      %p751 = scmp.eq.s32.totalorder %s104, 0
      %p752 = por %p750, %p751
      %s754 = sadd.s32 %s753, 1
      %p757 = scmp.eq.s32.totalorder %s98, 3
      %p758 = scmp.ne.s32.totalorder %s753, %s755
      %p759 = scmp.eq.s32.totalorder %s98, 0
      %p760 = por %p758, %p759
      %p761 = scmp.ne.s32.totalorder %s753, %s755
      %p762 = scmp.eq.s32.totalorder %s103, 3
      %p763 = por %p761, %p762
      %p764 = scmp.ne.s32.totalorder %s755, %s756
      %p765 = scmp.eq.s32.totalorder %s103, 0
      %p766 = por %p764, %p765
      %p767 = scmp.ne.s32.totalorder %s755, %s756
      %p768 = scmp.eq.s32.totalorder %s104, 3
      %p769 = por %p767, %p768
      %p771 = scmp.ne.s32.totalorder %s756, %s770
      %p772 = scmp.eq.s32.totalorder %s104, 0
      %p773 = por %p771, %p772
      %s775 = sadd.s32 %s774, 1
      %p778 = scmp.eq.s32.totalorder %s98, 3
      %p779 = scmp.ne.s32.totalorder %s774, %s776
      %p780 = scmp.eq.s32.totalorder %s98, 0
      %p781 = por %p779, %p780
      %p782 = scmp.ne.s32.totalorder %s774, %s776
      %p783 = scmp.eq.s32.totalorder %s103, 3
      %p784 = por %p782, %p783
      %p785 = scmp.ne.s32.totalorder %s776, %s777
      %p786 = scmp.eq.s32.totalorder %s103, 0
      %p787 = por %p785, %p786
      %p788 = scmp.ne.s32.totalorder %s776, %s777
      %p789 = scmp.eq.s32.totalorder %s104, 3
      %p790 = por %p788, %p789
      %p792 = scmp.ne.s32.totalorder %s777, %s791
      %p793 = scmp.eq.s32.totalorder %s104, 0
      %p794 = por %p792, %p793
      %s796 = sadd.s32 %s795, 1
      %p799 = scmp.eq.s32.totalorder %s98, 3
      %p800 = scmp.ne.s32.totalorder %s795, %s797
      %p801 = scmp.eq.s32.totalorder %s98, 0
      %p802 = por %p800, %p801
      %p803 = scmp.ne.s32.totalorder %s795, %s797
      %p804 = scmp.eq.s32.totalorder %s103, 3
      %p805 = por %p803, %p804
      %p806 = scmp.ne.s32.totalorder %s797, %s798
      %p807 = scmp.eq.s32.totalorder %s103, 0
      %p808 = por %p806, %p807
      %p809 = scmp.ne.s32.totalorder %s797, %s798
      %p810 = scmp.eq.s32.totalorder %s104, 3
      %p811 = por %p809, %p810
      %p813 = scmp.ne.s32.totalorder %s798, %s812
      %p814 = scmp.eq.s32.totalorder %s104, 0
      %p815 = por %p813, %p814
      %s817 = sadd.s32 %s816, 1
      %p820 = scmp.eq.s32.totalorder %s98, 3
      %p821 = scmp.ne.s32.totalorder %s816, %s818
      %p822 = scmp.eq.s32.totalorder %s98, 0
      %p823 = por %p821, %p822
      %p824 = scmp.ne.s32.totalorder %s816, %s818
      %p825 = scmp.eq.s32.totalorder %s103, 3
      %p826 = por %p824, %p825
      %p827 = scmp.ne.s32.totalorder %s818, %s819
      %p828 = scmp.eq.s32.totalorder %s103, 0
      %p829 = por %p827, %p828
      %p830 = scmp.ne.s32.totalorder %s818, %s819
      %p831 = scmp.eq.s32.totalorder %s104, 3
      %p832 = por %p830, %p831
      %p834 = scmp.ne.s32.totalorder %s819, %s833
      %p835 = scmp.eq.s32.totalorder %s104, 0
      %p836 = por %p834, %p835
      %s838 = sadd.s32 %s837, 1
      %p841 = scmp.eq.s32.totalorder %s98, 3
      %p842 = scmp.ne.s32.totalorder %s837, %s839
      %p843 = scmp.eq.s32.totalorder %s98, 0
      %p844 = por %p842, %p843
      %p845 = scmp.ne.s32.totalorder %s837, %s839
      %p846 = scmp.eq.s32.totalorder %s103, 3
      %p847 = por %p845, %p846
      %p848 = scmp.ne.s32.totalorder %s839, %s840
      %p849 = scmp.eq.s32.totalorder %s103, 0
      %p850 = por %p848, %p849
      %p851 = scmp.ne.s32.totalorder %s839, %s840
      %p852 = scmp.eq.s32.totalorder %s104, 3
      %p853 = por %p851, %p852
      %p855 = scmp.ne.s32.totalorder %s840, %s854
      %p856 = scmp.eq.s32.totalorder %s104, 0
      %p857 = por %p855, %p856
      %s858 = ssub.s32 %s105, %s117
      %p859 = scmp.eq.s32.totalorder %s858, 0
      %s861 = sadd.s32 %s860, 1
      %s862 = scalar_select %p859, %s860, %s861
      %p865 = pneg %p859
      %p866 = scmp.eq.s32.totalorder %s98, 3
      %p867 = por %p865, %p866
      %p868 = scmp.ne.s32.totalorder %s860, %s863
      %p869 = scmp.eq.s32.totalorder %s98, 0
      %p870 = por %p868, %p869
      %p871 = scmp.ne.s32.totalorder %s860, %s863
      %p872 = scmp.eq.s32.totalorder %s103, 3
      %p873 = por %p871, %p872
      %p874 = scmp.ne.s32.totalorder %s863, %s864
      %p875 = scmp.eq.s32.totalorder %s103, 0
      %p876 = por %p874, %p875
      %p877 = scmp.ne.s32.totalorder %s863, %s864
      %p878 = scmp.eq.s32.totalorder %s104, 3
      %p879 = por %p877, %p878
      %p881 = scmp.ne.s32.totalorder %s864, %s880
      %p882 = scmp.eq.s32.totalorder %s104, 0
      %p883 = por %p881, %p882
      %p884 = scmp.le.s32.totalorder 1, %s98
      %p885 = scmp.lt.s32.totalorder %s98, 5
      %p886 = pnand %p884, %p885
      %p887 = pneg %p886
      // Predicated region
      $region9: #{crossvit_fwd.5} parent=5 // pred_check
        _
      $region10: #{crossvit_fwd.5} parent=5 // pred_check_branch
        %889 = sbr.rel (%p886) target = $region12
      $region11: #{crossvit_fwd.5} parent=5 // pred_region
        %s890 = ssub.s32 %s98, 1
        // Predicated region
        $region13: #{crossvit_fwd.5} parent=11 // pred_check
          %p891 = pneg %p703
        $region14: #{crossvit_fwd.5} parent=11 // pred_check_branch
          %893 = sbr.rel (%p891) target = $region16
        $region15: #{crossvit_fwd.5} parent=11 // pred_region
          _
        $region16: #{crossvit_fwd.5} parent=11 // pred_fallthru
          _
        // Predicated region
        $region17: #{crossvit_fwd.5} parent=11 // pred_check
          %p894 = pneg %p724
        $region18: #{crossvit_fwd.5} parent=11 // pred_check_branch
          %896 = sbr.rel (%p894) target = $region20
        $region19: #{crossvit_fwd.5} parent=11 // pred_region
          _
        $region20: #{crossvit_fwd.5} parent=11 // pred_fallthru
          _
        // Predicated region
        $region21: #{crossvit_fwd.5} parent=11 // pred_check
          %p897 = pneg %p745
        $region22: #{crossvit_fwd.5} parent=11 // pred_check_branch
          %899 = sbr.rel (%p897) target = $region24
        $region23: #{crossvit_fwd.5} parent=11 // pred_region
          _
        $region24: #{crossvit_fwd.5} parent=11 // pred_fallthru
          _
        // Predicated region
        $region25: #{crossvit_fwd.5} parent=11 // pred_check
          %p900 = pneg %p766
        $region26: #{crossvit_fwd.5} parent=11 // pred_check_branch
          %902 = sbr.rel (%p900) target = $region28
        $region27: #{crossvit_fwd.5} parent=11 // pred_region
          %904 = vsyncadd [#allocation29], 0
          %s906 = sshll.u32 %s51, 4
          %s907 = int_to_ptr.hbm [resolvable:$true] %s906
          %s908 = sshll.u32 [#allocation30], 4
          %s909 = int_to_ptr.vmem [resolvable:$true] %s908
          %911 = dma.hbm_to_vmem [thread:$0]  %s907, 16, %s909, [#allocation29]
        $region28: #{crossvit_fwd.5} parent=11 // pred_fallthru
          _
        // Predicated region
        $region29: #{crossvit_fwd.5} parent=11 // pred_check
          %p912 = pneg %p787
        $region30: #{crossvit_fwd.5} parent=11 // pred_check_branch
          %914 = sbr.rel (%p912) target = $region32
        $region31: #{crossvit_fwd.5} parent=11 // pred_region
          _
        $region32: #{crossvit_fwd.5} parent=11 // pred_fallthru
          _
        // Predicated region
        $region33: #{crossvit_fwd.5} parent=11 // pred_check
          %p915 = pneg %p808
        $region34: #{crossvit_fwd.5} parent=11 // pred_check_branch
          %917 = sbr.rel (%p915) target = $region36
        $region35: #{crossvit_fwd.5} parent=11 // pred_region
          _
        $region36: #{crossvit_fwd.5} parent=11 // pred_fallthru
          _
        // Predicated region
        $region37: #{crossvit_fwd.5} parent=11 // pred_check
          %p918 = pneg %p829
        $region38: #{crossvit_fwd.5} parent=11 // pred_check_branch
          %920 = sbr.rel (%p918) target = $region40
        $region39: #{crossvit_fwd.5} parent=11 // pred_region
          %922 = vsyncadd [#allocation32], 0
          %s923 = sshll.u32 %s57, 4
          %s924 = int_to_ptr.hbm [resolvable:$true] %s923
          %s925 = sshll.u32 [#allocation31], 4
          %s926 = int_to_ptr.vmem [resolvable:$true] %s925
          %931 = dma.hbm_to_vmem [thread:$0]  %s924, 1024, %s926, [#allocation32], 128, 128, 8
        $region40: #{crossvit_fwd.5} parent=11 // pred_fallthru
          _
        // Predicated region
        $region41: #{crossvit_fwd.5} parent=11 // pred_check
          %p932 = pneg %p850
        $region42: #{crossvit_fwd.5} parent=11 // pred_check_branch
          %934 = sbr.rel (%p932) target = $region44
        $region43: #{crossvit_fwd.5} parent=11 // pred_region
          %936 = vsyncadd [#allocation32], 0
          %s938 = sshll.u32 %s59, 4
          %s939 = int_to_ptr.hbm [resolvable:$true] %s938
          %s940 = sshll.u32 [#allocation33], 4
          %s941 = int_to_ptr.vmem [resolvable:$true] %s940
          %943 = dma.hbm_to_vmem [thread:$0]  %s939, 16, %s941, [#allocation32]
        $region44: #{crossvit_fwd.5} parent=11 // pred_fallthru
          _
      $region12: #{crossvit_fwd.5} parent=5 // pred_fallthru
        _
      %p944 = scmp.lt.s32.totalorder %s98, 4
      // Predicated region
      $region45: #{crossvit_fwd.5} parent=5 // pred_check
        %p945 = pneg %p944
      $region46: #{crossvit_fwd.5} parent=5 // pred_check_branch
        %947 = sbr.rel (%p945) target = $region48
      $region47: #{crossvit_fwd.5} parent=5 // pred_region
        // Predicated region
        $region49: #{crossvit_fwd.5} parent=47 // pred_check
          %p948 = pneg %p130
        $region50: #{crossvit_fwd.5} parent=47 // pred_check_branch
          %950 = sbr.rel (%p948) target = $region52
        $region51: #{crossvit_fwd.5} parent=47 // pred_region
          %p951 = scmp.lt.s32.totalorder %s105, 1
          %s952 = scalar_select %p951, %s105, 1
          %s953 = smul.addr %s952, 2
          %s954 = smul.addr %s953, 8
          %s955 = scalar_lea.vmem %s1, %s954
        $region52: #{crossvit_fwd.5} parent=47 // pred_fallthru
          _
        // Predicated region
        $region53: #{crossvit_fwd.5} parent=47 // pred_check
          %p956 = pneg %p156
        $region54: #{crossvit_fwd.5} parent=47 // pred_check_branch
          %958 = sbr.rel (%p956) target = $region56
        $region55: #{crossvit_fwd.5} parent=47 // pred_region
          %p959 = scmp.lt.s32.totalorder %s105, 1
          %s960 = scalar_select %p959, %s105, 1
          %s961 = smul.addr %s960, 2
          %s962 = scalar_lea.vmem %s3, %s961
        $region56: #{crossvit_fwd.5} parent=47 // pred_fallthru
          _
        // Predicated region
        $region57: #{crossvit_fwd.5} parent=47 // pred_check
          %p963 = pneg %p182
        $region58: #{crossvit_fwd.5} parent=47 // pred_check_branch
          %965 = sbr.rel (%p963) target = $region60
        $region59: #{crossvit_fwd.5} parent=47 // pred_region
          %s966 = sand.u32 %s172, 1
          %s967 = scalar_lea.sflag [#allocation5], %s966
          %s968 = sand.u32 %s172, 1
          %s969 = smul.addr %s968, 32
          %s970 = scalar_lea.vmem [#allocation4], %s969
          %972 = vsyncadd %s967, 0
          %s973 = smul.addr %s106, 4
          %s974 = smul.addr %s973, 8
          %s975 = scalar_lea.hbm %s5, %s974
          %s976 = sshll.u32 %s975, 4
          %s977 = int_to_ptr.hbm [resolvable:$true] %s976
          %s978 = sshll.u32 %s970, 4
          %s979 = int_to_ptr.vmem [resolvable:$true] %s978
          %984 = dma.hbm_to_vmem [thread:$0]  %s977, 512, %s979, %s967, 128, 128, 8
        $region60: #{crossvit_fwd.5} parent=47 // pred_fallthru
          _
        // Predicated region
        $region61: #{crossvit_fwd.5} parent=47 // pred_check
          %p985 = pneg %p208
        $region62: #{crossvit_fwd.5} parent=47 // pred_check_branch
          %987 = sbr.rel (%p985) target = $region64
        $region63: #{crossvit_fwd.5} parent=47 // pred_region
          %s988 = sand.u32 %s98, 1
          %s989 = scalar_lea.sflag [#allocation8], %s988
          %s990 = sand.u32 %s198, 1
          %s991 = scalar_lea.vmem [#allocation7], %s990
          %993 = vsyncadd %s989, 0
          %s994 = scalar_lea.hbm %s7, %s106
          %s996 = sshll.u32 %s994, 4
          %s997 = int_to_ptr.hbm [resolvable:$true] %s996
          %s998 = sshll.u32 %s991, 4
          %s999 = int_to_ptr.vmem [resolvable:$true] %s998
          %1001 = dma.hbm_to_vmem [thread:$0]  %s997, 16, %s999, %s989
        $region64: #{crossvit_fwd.5} parent=47 // pred_fallthru
          _
        // Predicated region
        $region65: #{crossvit_fwd.5} parent=47 // pred_check
          %p1002 = pneg %p234
        $region66: #{crossvit_fwd.5} parent=47 // pred_check_branch
          %1004 = sbr.rel (%p1002) target = $region68
        $region67: #{crossvit_fwd.5} parent=47 // pred_region
          %p1005 = scmp.lt.s32.totalorder %s106, 1
          %s1006 = scalar_select %p1005, %s106, 1
          %s1007 = scalar_lea.vmem %s9, %s1006
        $region68: #{crossvit_fwd.5} parent=47 // pred_fallthru
          _
        // Predicated region
        $region69: #{crossvit_fwd.5} parent=47 // pred_check
          %p1008 = pneg %p260
        $region70: #{crossvit_fwd.5} parent=47 // pred_check_branch
          %1010 = sbr.rel (%p1008) target = $region72
        $region71: #{crossvit_fwd.5} parent=47 // pred_region
          %p1011 = scmp.lt.s32.totalorder %s106, 1
          %s1012 = scalar_select %p1011, %s106, 1
          %s1013 = scalar_lea.vmem %s11, %s1012
        $region72: #{crossvit_fwd.5} parent=47 // pred_fallthru
          _
        // Predicated region
        $region73: #{crossvit_fwd.5} parent=47 // pred_check
          %p1014 = pneg %p286
        $region74: #{crossvit_fwd.5} parent=47 // pred_check_branch
          %1016 = sbr.rel (%p1014) target = $region76
        $region75: #{crossvit_fwd.5} parent=47 // pred_region
          %s1017 = sand.u32 %s98, 1
          %s1018 = scalar_lea.sflag [#allocation8], %s1017
          %s1019 = sand.u32 %s276, 1
          %s1020 = smul.addr %s1019, 64
          %s1021 = scalar_lea.vmem [#allocation9], %s1020
          %1023 = vsyncadd %s1018, 0
          %s1024 = smul.addr %s106, 8
          %s1025 = smul.addr %s1024, 8
          %s1026 = scalar_lea.hbm %s13, %s1025
          %s1027 = sshll.u32 %s1026, 4
          %s1028 = int_to_ptr.hbm [resolvable:$true] %s1027
          %s1029 = sshll.u32 %s1021, 4
          %s1030 = int_to_ptr.vmem [resolvable:$true] %s1029
          %1035 = dma.hbm_to_vmem [thread:$0]  %s1028, 1024, %s1030, %s1018, 128, 128, 8
        $region76: #{crossvit_fwd.5} parent=47 // pred_fallthru
          _
        // Predicated region
        $region77: #{crossvit_fwd.5} parent=47 // pred_check
          %p1036 = pneg %p312
        $region78: #{crossvit_fwd.5} parent=47 // pred_check_branch
          %1038 = sbr.rel (%p1036) target = $region80
        $region79: #{crossvit_fwd.5} parent=47 // pred_region
          %s1039 = sand.u32 %s98, 1
          %s1040 = scalar_lea.sflag [#allocation11], %s1039
          %s1041 = sand.u32 %s302, 1
          %s1042 = smul.addr %s1041, 64
          %s1043 = scalar_lea.vmem [#allocation10], %s1042
          %1045 = vsyncadd %s1040, 0
          %s1046 = smul.addr %s106, 8
          %s1047 = smul.addr %s1046, 8
          %s1048 = scalar_lea.hbm %s15, %s1047
          %s1049 = sshll.u32 %s1048, 4
          %s1050 = int_to_ptr.hbm [resolvable:$true] %s1049
          %s1051 = sshll.u32 %s1043, 4
          %s1052 = int_to_ptr.vmem [resolvable:$true] %s1051
          %1057 = dma.hbm_to_vmem [thread:$0]  %s1050, 1024, %s1052, %s1040, 128, 128, 8
        $region80: #{crossvit_fwd.5} parent=47 // pred_fallthru
          _
        // Predicated region
        $region81: #{crossvit_fwd.5} parent=47 // pred_check
          %p1058 = pneg %p338
        $region82: #{crossvit_fwd.5} parent=47 // pred_check_branch
          %1060 = sbr.rel (%p1058) target = $region84
        $region83: #{crossvit_fwd.5} parent=47 // pred_region
          %s1061 = sand.u32 %s98, 1
          %s1062 = scalar_lea.sflag [#allocation11], %s1061
          %s1063 = sand.u32 %s328, 1
          %s1064 = smul.addr %s1063, 16
          %s1065 = scalar_lea.vmem [#allocation12], %s1064
          %1067 = vsyncadd %s1062, 0
          %s1068 = smul.addr %s106, 2
          %s1069 = smul.addr %s1068, 8
          %s1070 = scalar_lea.hbm %s17, %s1069
          %s1071 = sshll.u32 %s1070, 4
          %s1072 = int_to_ptr.hbm [resolvable:$true] %s1071
          %s1073 = sshll.u32 %s1065, 4
          %s1074 = int_to_ptr.vmem [resolvable:$true] %s1073
          %1079 = dma.hbm_to_vmem [thread:$0]  %s1072, 256, %s1074, %s1062, 128, 128, 8
        $region84: #{crossvit_fwd.5} parent=47 // pred_fallthru
          _
        // Predicated region
        $region85: #{crossvit_fwd.5} parent=47 // pred_check
          %p1080 = pneg %p364
        $region86: #{crossvit_fwd.5} parent=47 // pred_check_branch
          %1082 = sbr.rel (%p1080) target = $region88
        $region87: #{crossvit_fwd.5} parent=47 // pred_region
          %s1083 = sand.u32 %s98, 1
          %s1084 = scalar_lea.sflag [#allocation14], %s1083
          %s1085 = sand.u32 %s354, 1
          %s1086 = scalar_lea.vmem [#allocation13], %s1085
          %1088 = vsyncadd %s1084, 0
          %s1089 = scalar_lea.hbm %s19, %s106
          %s1091 = sshll.u32 %s1089, 4
          %s1092 = int_to_ptr.hbm [resolvable:$true] %s1091
          %s1093 = sshll.u32 %s1086, 4
          %s1094 = int_to_ptr.vmem [resolvable:$true] %s1093
          %1096 = dma.hbm_to_vmem [thread:$0]  %s1092, 16, %s1094, %s1084
        $region88: #{crossvit_fwd.5} parent=47 // pred_fallthru
          _
        // Predicated region
        $region89: #{crossvit_fwd.5} parent=47 // pred_check
          %p1097 = pneg %p390
        $region90: #{crossvit_fwd.5} parent=47 // pred_check_branch
          %1099 = sbr.rel (%p1097) target = $region92
        $region91: #{crossvit_fwd.5} parent=47 // pred_region
          %s1100 = sand.u32 %s98, 1
          %s1101 = scalar_lea.sflag [#allocation14], %s1100
          %s1102 = sand.u32 %s380, 1
          %s1103 = smul.addr %s1102, 64
          %s1104 = scalar_lea.vmem [#allocation15], %s1103
          %1106 = vsyncadd %s1101, 0
          %s1107 = smul.addr %s106, 8
          %s1108 = smul.addr %s1107, 8
          %s1109 = scalar_lea.hbm %s21, %s1108
          %s1110 = sshll.u32 %s1109, 4
          %s1111 = int_to_ptr.hbm [resolvable:$true] %s1110
          %s1112 = sshll.u32 %s1104, 4
          %s1113 = int_to_ptr.vmem [resolvable:$true] %s1112
          %1118 = dma.hbm_to_vmem [thread:$0]  %s1111, 1024, %s1113, %s1101, 128, 128, 8
        $region92: #{crossvit_fwd.5} parent=47 // pred_fallthru
          _
        // Predicated region
        $region93: #{crossvit_fwd.5} parent=47 // pred_check
          %p1119 = pneg %p416
        $region94: #{crossvit_fwd.5} parent=47 // pred_check_branch
          %1121 = sbr.rel (%p1119) target = $region96
        $region95: #{crossvit_fwd.5} parent=47 // pred_region
          %s1122 = sand.u32 %s98, 1
          %s1123 = scalar_lea.sflag [#allocation17], %s1122
          %s1124 = sand.u32 %s406, 1
          %s1125 = scalar_lea.vmem [#allocation16], %s1124
          %1127 = vsyncadd %s1123, 0
          %s1128 = scalar_lea.hbm %s23, %s106
          %s1130 = sshll.u32 %s1128, 4
          %s1131 = int_to_ptr.hbm [resolvable:$true] %s1130
          %s1132 = sshll.u32 %s1125, 4
          %s1133 = int_to_ptr.vmem [resolvable:$true] %s1132
          %1135 = dma.hbm_to_vmem [thread:$0]  %s1131, 16, %s1133, %s1123
        $region96: #{crossvit_fwd.5} parent=47 // pred_fallthru
          _
        // Predicated region
        $region97: #{crossvit_fwd.5} parent=47 // pred_check
          %p1136 = pneg %p442
        $region98: #{crossvit_fwd.5} parent=47 // pred_check_branch
          %1138 = sbr.rel (%p1136) target = $region100
        $region99: #{crossvit_fwd.5} parent=47 // pred_region
          %s1139 = sand.u32 %s98, 1
          %s1140 = scalar_lea.sflag [#allocation17], %s1139
          %s1141 = sand.u32 %s432, 1
          %s1142 = smul.addr %s1141, 64
          %s1143 = scalar_lea.vmem [#allocation18], %s1142
          %1145 = vsyncadd %s1140, 0
          %s1146 = smul.addr %s106, 8
          %s1147 = smul.addr %s1146, 8
          %s1148 = scalar_lea.hbm %s25, %s1147
          %s1149 = sshll.u32 %s1148, 4
          %s1150 = int_to_ptr.hbm [resolvable:$true] %s1149
          %s1151 = sshll.u32 %s1143, 4
          %s1152 = int_to_ptr.vmem [resolvable:$true] %s1151
          %1157 = dma.hbm_to_vmem [thread:$0]  %s1150, 1024, %s1152, %s1140, 128, 128, 8
        $region100: #{crossvit_fwd.5} parent=47 // pred_fallthru
          _
        // Predicated region
        $region101: #{crossvit_fwd.5} parent=47 // pred_check
          %p1158 = pneg %p468
        $region102: #{crossvit_fwd.5} parent=47 // pred_check_branch
          %1160 = sbr.rel (%p1158) target = $region104
        $region103: #{crossvit_fwd.5} parent=47 // pred_region
          %s1161 = sand.u32 %s98, 1
          %s1162 = scalar_lea.sflag [#allocation20], %s1161
          %s1163 = sand.u32 %s458, 1
          %s1164 = scalar_lea.vmem [#allocation19], %s1163
          %1166 = vsyncadd %s1162, 0
          %s1167 = scalar_lea.hbm %s27, %s106
          %s1169 = sshll.u32 %s1167, 4
          %s1170 = int_to_ptr.hbm [resolvable:$true] %s1169
          %s1171 = sshll.u32 %s1164, 4
          %s1172 = int_to_ptr.vmem [resolvable:$true] %s1171
          %1174 = dma.hbm_to_vmem [thread:$0]  %s1170, 16, %s1172, %s1162
        $region104: #{crossvit_fwd.5} parent=47 // pred_fallthru
          _
        // Predicated region
        $region105: #{crossvit_fwd.5} parent=47 // pred_check
          %p1175 = pneg %p494
        $region106: #{crossvit_fwd.5} parent=47 // pred_check_branch
          %1177 = sbr.rel (%p1175) target = $region108
        $region107: #{crossvit_fwd.5} parent=47 // pred_region
          %p1178 = scmp.lt.s32.totalorder %s106, 1
          %s1179 = scalar_select %p1178, %s106, 1
          %s1180 = scalar_lea.vmem %s29, %s1179
        $region108: #{crossvit_fwd.5} parent=47 // pred_fallthru
          _
        // Predicated region
        $region109: #{crossvit_fwd.5} parent=47 // pred_check
          %p1181 = pneg %p520
        $region110: #{crossvit_fwd.5} parent=47 // pred_check_branch
          %1183 = sbr.rel (%p1181) target = $region112
        $region111: #{crossvit_fwd.5} parent=47 // pred_region
          %p1184 = scmp.lt.s32.totalorder %s106, 1
          %s1185 = scalar_select %p1184, %s106, 1
          %s1186 = scalar_lea.vmem %s31, %s1185
        $region112: #{crossvit_fwd.5} parent=47 // pred_fallthru
          _
        // Predicated region
        $region113: #{crossvit_fwd.5} parent=47 // pred_check
          %p1187 = pneg %p546
        $region114: #{crossvit_fwd.5} parent=47 // pred_check_branch
          %1189 = sbr.rel (%p1187) target = $region116
        $region115: #{crossvit_fwd.5} parent=47 // pred_region
          %s1190 = sand.u32 %s98, 1
          %s1191 = scalar_lea.sflag [#allocation20], %s1190
          %s1192 = sand.u32 %s536, 1
          %s1193 = smul.addr %s1192, 32
          %s1194 = scalar_lea.vmem [#allocation21], %s1193
          %1196 = vsyncadd %s1191, 0
          %s1197 = smul.addr %s106, 4
          %s1198 = smul.addr %s1197, 8
          %s1199 = scalar_lea.hbm %s33, %s1198
          %s1200 = sshll.u32 %s1199, 4
          %s1201 = int_to_ptr.hbm [resolvable:$true] %s1200
          %s1202 = sshll.u32 %s1194, 4
          %s1203 = int_to_ptr.vmem [resolvable:$true] %s1202
          %1208 = dma.hbm_to_vmem [thread:$0]  %s1201, 512, %s1203, %s1191, 128, 128, 8
        $region116: #{crossvit_fwd.5} parent=47 // pred_fallthru
          _
        // Predicated region
        $region117: #{crossvit_fwd.5} parent=47 // pred_check
          %p1209 = pneg %p572
        $region118: #{crossvit_fwd.5} parent=47 // pred_check_branch
          %1211 = sbr.rel (%p1209) target = $region120
        $region119: #{crossvit_fwd.5} parent=47 // pred_region
          %s1212 = sand.u32 %s98, 1
          %s1213 = scalar_lea.sflag [#allocation23], %s1212
          %s1214 = sand.u32 %s562, 1
          %s1215 = smul.addr %s1214, 32
          %s1216 = scalar_lea.vmem [#allocation22], %s1215
          %1218 = vsyncadd %s1213, 0
          %s1219 = smul.addr %s106, 4
          %s1220 = smul.addr %s1219, 8
          %s1221 = scalar_lea.hbm %s35, %s1220
          %s1222 = sshll.u32 %s1221, 4
          %s1223 = int_to_ptr.hbm [resolvable:$true] %s1222
          %s1224 = sshll.u32 %s1216, 4
          %s1225 = int_to_ptr.vmem [resolvable:$true] %s1224
          %1230 = dma.hbm_to_vmem [thread:$0]  %s1223, 512, %s1225, %s1213, 128, 128, 8
        $region120: #{crossvit_fwd.5} parent=47 // pred_fallthru
          _
        // Predicated region
        $region121: #{crossvit_fwd.5} parent=47 // pred_check
          %p1231 = pneg %p598
        $region122: #{crossvit_fwd.5} parent=47 // pred_check_branch
          %1233 = sbr.rel (%p1231) target = $region124
        $region123: #{crossvit_fwd.5} parent=47 // pred_region
          %s1234 = sand.u32 %s98, 1
          %s1235 = scalar_lea.sflag [#allocation23], %s1234
          %s1236 = sand.u32 %s588, 1
          %s1237 = smul.addr %s1236, 16
          %s1238 = scalar_lea.vmem [#allocation24], %s1237
          %1240 = vsyncadd %s1235, 0
          %s1241 = smul.addr %s106, 2
          %s1242 = smul.addr %s1241, 8
          %s1243 = scalar_lea.hbm %s37, %s1242
          %s1244 = sshll.u32 %s1243, 4
          %s1245 = int_to_ptr.hbm [resolvable:$true] %s1244
          %s1246 = sshll.u32 %s1238, 4
          %s1247 = int_to_ptr.vmem [resolvable:$true] %s1246
          %1252 = dma.hbm_to_vmem [thread:$0]  %s1245, 256, %s1247, %s1235, 128, 128, 8
        $region124: #{crossvit_fwd.5} parent=47 // pred_fallthru
          _
        // Predicated region
        $region125: #{crossvit_fwd.5} parent=47 // pred_check
          %p1253 = pneg %p624
        $region126: #{crossvit_fwd.5} parent=47 // pred_check_branch
          %1255 = sbr.rel (%p1253) target = $region128
        $region127: #{crossvit_fwd.5} parent=47 // pred_region
          %s1256 = sand.u32 %s98, 1
          %s1257 = scalar_lea.sflag [#allocation26], %s1256
          %s1258 = sand.u32 %s614, 1
          %s1259 = scalar_lea.vmem [#allocation25], %s1258
          %1261 = vsyncadd %s1257, 0
          %s1262 = scalar_lea.hbm %s39, %s106
          %s1264 = sshll.u32 %s1262, 4
          %s1265 = int_to_ptr.hbm [resolvable:$true] %s1264
          %s1266 = sshll.u32 %s1259, 4
          %s1267 = int_to_ptr.vmem [resolvable:$true] %s1266
          %1269 = dma.hbm_to_vmem [thread:$0]  %s1265, 16, %s1267, %s1257
        $region128: #{crossvit_fwd.5} parent=47 // pred_fallthru
          _
        // Predicated region
        $region129: #{crossvit_fwd.5} parent=47 // pred_check
          %p1270 = pneg %p650
        $region130: #{crossvit_fwd.5} parent=47 // pred_check_branch
          %1272 = sbr.rel (%p1270) target = $region132
        $region131: #{crossvit_fwd.5} parent=47 // pred_region
          %s1273 = sand.u32 %s98, 1
          %s1274 = scalar_lea.sflag [#allocation26], %s1273
          %s1275 = sand.u32 %s640, 1
          %s1276 = smul.addr %s1275, 32
          %s1277 = scalar_lea.vmem [#allocation27], %s1276
          %1279 = vsyncadd %s1274, 0
          %s1280 = smul.addr %s106, 4
          %s1281 = smul.addr %s1280, 8
          %s1282 = scalar_lea.hbm %s41, %s1281
          %s1283 = sshll.u32 %s1282, 4
          %s1284 = int_to_ptr.hbm [resolvable:$true] %s1283
          %s1285 = sshll.u32 %s1277, 4
          %s1286 = int_to_ptr.vmem [resolvable:$true] %s1285
          %1291 = dma.hbm_to_vmem [thread:$0]  %s1284, 512, %s1286, %s1274, 128, 128, 8
        $region132: #{crossvit_fwd.5} parent=47 // pred_fallthru
          _
        // Predicated region
        $region133: #{crossvit_fwd.5} parent=47 // pred_check
          %p1292 = pneg %p676
        $region134: #{crossvit_fwd.5} parent=47 // pred_check_branch
          %1294 = sbr.rel (%p1292) target = $region136
        $region135: #{crossvit_fwd.5} parent=47 // pred_region
          %s1295 = sand.u32 %s98, 1
          %s1296 = scalar_lea.sflag [#allocation29], %s1295
          %s1297 = sand.u32 %s666, 1
          %s1298 = scalar_lea.vmem [#allocation28], %s1297
          %1300 = vsyncadd %s1296, 0
          %s1301 = scalar_lea.hbm %s43, %s106
          %s1303 = sshll.u32 %s1301, 4
          %s1304 = int_to_ptr.hbm [resolvable:$true] %s1303
          %s1305 = sshll.u32 %s1298, 4
          %s1306 = int_to_ptr.vmem [resolvable:$true] %s1305
          %1308 = dma.hbm_to_vmem [thread:$0]  %s1304, 16, %s1306, %s1296
        $region136: #{crossvit_fwd.5} parent=47 // pred_fallthru
          _
      $region48: #{crossvit_fwd.5} parent=5 // pred_fallthru
        _
      %p1309 = scmp.le.s32.totalorder 1, %s98
      %p1310 = scmp.lt.s32.totalorder %s98, 5
      %p1311 = pnand %p1309, %p1310
      %p1312 = pneg %p1311
      // Predicated region
      $region137: #{crossvit_fwd.5} parent=5 // pred_check
        _
      $region138: #{crossvit_fwd.5} parent=5 // pred_check_branch
        %1314 = sbr.rel (%p1311) target = $region140
      $region139: #{crossvit_fwd.5} parent=5 // pred_region
        %s1315 = ssub.s32 %s98, 1
        %s1316 = sand.u32 %s175, 1
        %s1317 = scalar_lea.sflag [#allocation5], %s1316
        %s1318 = sand.u32 %s175, 1
        %s1319 = smul.addr %s1318, 32
        %s1320 = scalar_lea.vmem [#allocation4], %s1319
        // Predicated region
        $region141: #{crossvit_fwd.5} parent=139 // pred_check
          %p1321 = pneg %p188
        $region142: #{crossvit_fwd.5} parent=139 // pred_check_branch
          %1323 = sbr.rel (%p1321) target = $region144
        $region143: #{crossvit_fwd.5} parent=139 // pred_region
          %1325 = dma.done %s1317, 512
        $region144: #{crossvit_fwd.5} parent=139 // pred_fallthru
          _
        %s1326 = sand.u32 %s103, 1
        %s1327 = scalar_lea.sflag [#allocation8], %s1326
        %s1328 = sand.u32 %s201, 1
        %s1329 = scalar_lea.vmem [#allocation7], %s1328
        // Predicated region
        $region145: #{crossvit_fwd.5} parent=139 // pred_check
          %p1330 = pneg %p214
        $region146: #{crossvit_fwd.5} parent=139 // pred_check_branch
          %1332 = sbr.rel (%p1330) target = $region148
        $region147: #{crossvit_fwd.5} parent=139 // pred_region
          %1334 = dma.done %s1327, 16
        $region148: #{crossvit_fwd.5} parent=139 // pred_fallthru
          _
        %s1335 = sand.u32 %s103, 1
        %s1336 = scalar_lea.sflag [#allocation8], %s1335
        %s1337 = sand.u32 %s279, 1
        %s1338 = smul.addr %s1337, 64
        %s1339 = scalar_lea.vmem [#allocation9], %s1338
        // Predicated region
        $region149: #{crossvit_fwd.5} parent=139 // pred_check
          %p1340 = pneg %p292
        $region150: #{crossvit_fwd.5} parent=139 // pred_check_branch
          %1342 = sbr.rel (%p1340) target = $region152
        $region151: #{crossvit_fwd.5} parent=139 // pred_region
          %1344 = dma.done %s1336, 1024
        $region152: #{crossvit_fwd.5} parent=139 // pred_fallthru
          _
        %s1345 = sand.u32 %s103, 1
        %s1346 = scalar_lea.sflag [#allocation11], %s1345
        %s1347 = sand.u32 %s305, 1
        %s1348 = smul.addr %s1347, 64
        %s1349 = scalar_lea.vmem [#allocation10], %s1348
        // Predicated region
        $region153: #{crossvit_fwd.5} parent=139 // pred_check
          %p1350 = pneg %p318
        $region154: #{crossvit_fwd.5} parent=139 // pred_check_branch
          %1352 = sbr.rel (%p1350) target = $region156
        $region155: #{crossvit_fwd.5} parent=139 // pred_region
          %1354 = dma.done %s1346, 1024
        $region156: #{crossvit_fwd.5} parent=139 // pred_fallthru
          _
        %s1355 = sand.u32 %s103, 1
        %s1356 = scalar_lea.sflag [#allocation11], %s1355
        %s1357 = sand.u32 %s331, 1
        %s1358 = smul.addr %s1357, 16
        %s1359 = scalar_lea.vmem [#allocation12], %s1358
        // Predicated region
        $region157: #{crossvit_fwd.5} parent=139 // pred_check
          %p1360 = pneg %p344
        $region158: #{crossvit_fwd.5} parent=139 // pred_check_branch
          %1362 = sbr.rel (%p1360) target = $region160
        $region159: #{crossvit_fwd.5} parent=139 // pred_region
          %1364 = dma.done %s1356, 256
        $region160: #{crossvit_fwd.5} parent=139 // pred_fallthru
          _
        %s1365 = sand.u32 %s103, 1
        %s1366 = scalar_lea.sflag [#allocation14], %s1365
        %s1367 = sand.u32 %s357, 1
        %s1368 = scalar_lea.vmem [#allocation13], %s1367
        // Predicated region
        $region161: #{crossvit_fwd.5} parent=139 // pred_check
          %p1369 = pneg %p370
        $region162: #{crossvit_fwd.5} parent=139 // pred_check_branch
          %1371 = sbr.rel (%p1369) target = $region164
        $region163: #{crossvit_fwd.5} parent=139 // pred_region
          %1373 = dma.done %s1366, 16
        $region164: #{crossvit_fwd.5} parent=139 // pred_fallthru
          _
        %s1374 = sand.u32 %s103, 1
        %s1375 = scalar_lea.sflag [#allocation14], %s1374
        %s1376 = sand.u32 %s383, 1
        %s1377 = smul.addr %s1376, 64
        %s1378 = scalar_lea.vmem [#allocation15], %s1377
        // Predicated region
        $region165: #{crossvit_fwd.5} parent=139 // pred_check
          %p1379 = pneg %p396
        $region166: #{crossvit_fwd.5} parent=139 // pred_check_branch
          %1381 = sbr.rel (%p1379) target = $region168
        $region167: #{crossvit_fwd.5} parent=139 // pred_region
          %1383 = dma.done %s1375, 1024
        $region168: #{crossvit_fwd.5} parent=139 // pred_fallthru
          _
        %s1384 = sand.u32 %s103, 1
        %s1385 = scalar_lea.sflag [#allocation17], %s1384
        %s1386 = sand.u32 %s409, 1
        %s1387 = scalar_lea.vmem [#allocation16], %s1386
        // Predicated region
        $region169: #{crossvit_fwd.5} parent=139 // pred_check
          %p1388 = pneg %p422
        $region170: #{crossvit_fwd.5} parent=139 // pred_check_branch
          %1390 = sbr.rel (%p1388) target = $region172
        $region171: #{crossvit_fwd.5} parent=139 // pred_region
          %1392 = dma.done %s1385, 16
        $region172: #{crossvit_fwd.5} parent=139 // pred_fallthru
          _
        %s1393 = sand.u32 %s103, 1
        %s1394 = scalar_lea.sflag [#allocation17], %s1393
        %s1395 = sand.u32 %s435, 1
        %s1396 = smul.addr %s1395, 64
        %s1397 = scalar_lea.vmem [#allocation18], %s1396
        // Predicated region
        $region173: #{crossvit_fwd.5} parent=139 // pred_check
          %p1398 = pneg %p448
        $region174: #{crossvit_fwd.5} parent=139 // pred_check_branch
          %1400 = sbr.rel (%p1398) target = $region176
        $region175: #{crossvit_fwd.5} parent=139 // pred_region
          %1402 = dma.done %s1394, 1024
        $region176: #{crossvit_fwd.5} parent=139 // pred_fallthru
          _
        %s1403 = sand.u32 %s103, 1
        %s1404 = scalar_lea.sflag [#allocation20], %s1403
        %s1405 = sand.u32 %s461, 1
        %s1406 = scalar_lea.vmem [#allocation19], %s1405
        // Predicated region
        $region177: #{crossvit_fwd.5} parent=139 // pred_check
          %p1407 = pneg %p474
        $region178: #{crossvit_fwd.5} parent=139 // pred_check_branch
          %1409 = sbr.rel (%p1407) target = $region180
        $region179: #{crossvit_fwd.5} parent=139 // pred_region
          %1411 = dma.done %s1404, 16
        $region180: #{crossvit_fwd.5} parent=139 // pred_fallthru
          _
        %s1412 = sand.u32 %s103, 1
        %s1413 = scalar_lea.sflag [#allocation20], %s1412
        %s1414 = sand.u32 %s539, 1
        %s1415 = smul.addr %s1414, 32
        %s1416 = scalar_lea.vmem [#allocation21], %s1415
        // Predicated region
        $region181: #{crossvit_fwd.5} parent=139 // pred_check
          %p1417 = pneg %p552
        $region182: #{crossvit_fwd.5} parent=139 // pred_check_branch
          %1419 = sbr.rel (%p1417) target = $region184
        $region183: #{crossvit_fwd.5} parent=139 // pred_region
          %1421 = dma.done %s1413, 512
        $region184: #{crossvit_fwd.5} parent=139 // pred_fallthru
          _
        %s1422 = sand.u32 %s103, 1
        %s1423 = scalar_lea.sflag [#allocation23], %s1422
        %s1424 = sand.u32 %s565, 1
        %s1425 = smul.addr %s1424, 32
        %s1426 = scalar_lea.vmem [#allocation22], %s1425
        // Predicated region
        $region185: #{crossvit_fwd.5} parent=139 // pred_check
          %p1427 = pneg %p578
        $region186: #{crossvit_fwd.5} parent=139 // pred_check_branch
          %1429 = sbr.rel (%p1427) target = $region188
        $region187: #{crossvit_fwd.5} parent=139 // pred_region
          %1431 = dma.done %s1423, 512
        $region188: #{crossvit_fwd.5} parent=139 // pred_fallthru
          _
        %s1432 = sand.u32 %s103, 1
        %s1433 = scalar_lea.sflag [#allocation23], %s1432
        %s1434 = sand.u32 %s591, 1
        %s1435 = smul.addr %s1434, 16
        %s1436 = scalar_lea.vmem [#allocation24], %s1435
        // Predicated region
        $region189: #{crossvit_fwd.5} parent=139 // pred_check
          %p1437 = pneg %p604
        $region190: #{crossvit_fwd.5} parent=139 // pred_check_branch
          %1439 = sbr.rel (%p1437) target = $region192
        $region191: #{crossvit_fwd.5} parent=139 // pred_region
          %1441 = dma.done %s1433, 256
        $region192: #{crossvit_fwd.5} parent=139 // pred_fallthru
          _
        %s1442 = sand.u32 %s103, 1
        %s1443 = scalar_lea.sflag [#allocation26], %s1442
        %s1444 = sand.u32 %s617, 1
        %s1445 = scalar_lea.vmem [#allocation25], %s1444
        // Predicated region
        $region193: #{crossvit_fwd.5} parent=139 // pred_check
          %p1446 = pneg %p630
        $region194: #{crossvit_fwd.5} parent=139 // pred_check_branch
          %1448 = sbr.rel (%p1446) target = $region196
        $region195: #{crossvit_fwd.5} parent=139 // pred_region
          %1450 = dma.done %s1443, 16
        $region196: #{crossvit_fwd.5} parent=139 // pred_fallthru
          _
        %s1451 = sand.u32 %s103, 1
        %s1452 = scalar_lea.sflag [#allocation26], %s1451
        %s1453 = sand.u32 %s643, 1
        %s1454 = smul.addr %s1453, 32
        %s1455 = scalar_lea.vmem [#allocation27], %s1454
        // Predicated region
        $region197: #{crossvit_fwd.5} parent=139 // pred_check
          %p1456 = pneg %p656
        $region198: #{crossvit_fwd.5} parent=139 // pred_check_branch
          %1458 = sbr.rel (%p1456) target = $region200
        $region199: #{crossvit_fwd.5} parent=139 // pred_region
          %1460 = dma.done %s1452, 512
        $region200: #{crossvit_fwd.5} parent=139 // pred_fallthru
          _
        %s1461 = sand.u32 %s103, 1
        %s1462 = scalar_lea.sflag [#allocation29], %s1461
        %s1463 = sand.u32 %s669, 1
        %s1464 = scalar_lea.vmem [#allocation28], %s1463
        // Predicated region
        $region201: #{crossvit_fwd.5} parent=139 // pred_check
          %p1465 = pneg %p682
        $region202: #{crossvit_fwd.5} parent=139 // pred_check_branch
          %1467 = sbr.rel (%p1465) target = $region204
        $region203: #{crossvit_fwd.5} parent=139 // pred_region
          %1469 = dma.done %s1462, 16
        $region204: #{crossvit_fwd.5} parent=139 // pred_fallthru
          _
        // Predicated region
        $region205: #{crossvit_fwd.5} parent=139 // pred_check
          %p1470 = pneg %p766
        $region206: #{crossvit_fwd.5} parent=139 // pred_check_branch
          %1472 = sbr.rel (%p1470) target = $region208
        $region207: #{crossvit_fwd.5} parent=139 // pred_region
          %1474 = dma.done [#allocation29], 16
        $region208: #{crossvit_fwd.5} parent=139 // pred_fallthru
          _
        // Predicated region
        $region209: #{crossvit_fwd.5} parent=139 // pred_check
          %p1475 = pneg %p829
        $region210: #{crossvit_fwd.5} parent=139 // pred_check_branch
          %1477 = sbr.rel (%p1475) target = $region212
        $region211: #{crossvit_fwd.5} parent=139 // pred_region
          %1479 = dma.done [#allocation32], 1024
        $region212: #{crossvit_fwd.5} parent=139 // pred_fallthru
          _
        // Predicated region
        $region213: #{crossvit_fwd.5} parent=139 // pred_check
          %p1480 = pneg %p850
        $region214: #{crossvit_fwd.5} parent=139 // pred_check_branch
          %1482 = sbr.rel (%p1480) target = $region216
        $region215: #{crossvit_fwd.5} parent=139 // pred_region
          %1484 = dma.done [#allocation32], 16
        $region216: #{crossvit_fwd.5} parent=139 // pred_fallthru
          _
        %p1485 = scmp.lt.s32.totalorder %s107, 1
        %s1486 = scalar_select %p1485, %s107, 1
        %s1487 = smul.addr %s1486, 2
        %s1488 = smul.addr %s1487, 8
        %s1489 = scalar_lea.vmem %s1, %s1488
        %p1490 = pneg %p136
        %p1491 = pneg %p133
        %p1492 = scmp.lt.s32.totalorder %s107, 1
        %s1493 = scalar_select %p1492, %s107, 1
        %s1494 = smul.addr %s1493, 2
        %s1495 = scalar_lea.vmem %s3, %s1494
        %p1496 = pneg %p162
        %p1497 = pneg %p159
        %s1498 = sand.u32 %s175, 1
        %s1499 = scalar_lea.sflag [#allocation5], %s1498
        %s1500 = sand.u32 %s175, 1
        %s1501 = smul.addr %s1500, 32
        %s1502 = scalar_lea.vmem [#allocation4], %s1501
        %p1503 = pneg %p188
        %p1504 = pneg %p185
        %s1505 = sand.u32 %s103, 1
        %s1506 = scalar_lea.sflag [#allocation8], %s1505
        %s1507 = sand.u32 %s201, 1
        %s1508 = scalar_lea.vmem [#allocation7], %s1507
        %p1509 = pneg %p214
        %p1510 = pneg %p211
        %p1511 = scmp.lt.s32.totalorder %s108, 1
        %s1512 = scalar_select %p1511, %s108, 1
        %s1513 = scalar_lea.vmem %s9, %s1512
        %p1514 = pneg %p240
        %p1515 = pneg %p237
        %p1516 = scmp.lt.s32.totalorder %s108, 1
        %s1517 = scalar_select %p1516, %s108, 1
        %s1518 = scalar_lea.vmem %s11, %s1517
        %p1519 = pneg %p266
        %p1520 = pneg %p263
        %s1521 = sand.u32 %s103, 1
        %s1522 = scalar_lea.sflag [#allocation8], %s1521
        %s1523 = sand.u32 %s279, 1
        %s1524 = smul.addr %s1523, 64
        %s1525 = scalar_lea.vmem [#allocation9], %s1524
        %p1526 = pneg %p292
        %p1527 = pneg %p289
        %s1528 = sand.u32 %s103, 1
        %s1529 = scalar_lea.sflag [#allocation11], %s1528
        %s1530 = sand.u32 %s305, 1
        %s1531 = smul.addr %s1530, 64
        %s1532 = scalar_lea.vmem [#allocation10], %s1531
        %p1533 = pneg %p318
        %p1534 = pneg %p315
        %s1535 = sand.u32 %s103, 1
        %s1536 = scalar_lea.sflag [#allocation11], %s1535
        %s1537 = sand.u32 %s331, 1
        %s1538 = smul.addr %s1537, 16
        %s1539 = scalar_lea.vmem [#allocation12], %s1538
        %p1540 = pneg %p344
        %p1541 = pneg %p341
        %s1542 = sand.u32 %s103, 1
        %s1543 = scalar_lea.sflag [#allocation14], %s1542
        %s1544 = sand.u32 %s357, 1
        %s1545 = scalar_lea.vmem [#allocation13], %s1544
        %p1546 = pneg %p370
        %p1547 = pneg %p367
        %s1548 = sand.u32 %s103, 1
        %s1549 = scalar_lea.sflag [#allocation14], %s1548
        %s1550 = sand.u32 %s383, 1
        %s1551 = smul.addr %s1550, 64
        %s1552 = scalar_lea.vmem [#allocation15], %s1551
        %p1553 = pneg %p396
        %p1554 = pneg %p393
        %s1555 = sand.u32 %s103, 1
        %s1556 = scalar_lea.sflag [#allocation17], %s1555
        %s1557 = sand.u32 %s409, 1
        %s1558 = scalar_lea.vmem [#allocation16], %s1557
        %p1559 = pneg %p422
        %p1560 = pneg %p419
        %s1561 = sand.u32 %s103, 1
        %s1562 = scalar_lea.sflag [#allocation17], %s1561
        %s1563 = sand.u32 %s435, 1
        %s1564 = smul.addr %s1563, 64
        %s1565 = scalar_lea.vmem [#allocation18], %s1564
        %p1566 = pneg %p448
        %p1567 = pneg %p445
        %s1568 = sand.u32 %s103, 1
        %s1569 = scalar_lea.sflag [#allocation20], %s1568
        %s1570 = sand.u32 %s461, 1
        %s1571 = scalar_lea.vmem [#allocation19], %s1570
        %p1572 = pneg %p474
        %p1573 = pneg %p471
        %p1574 = scmp.lt.s32.totalorder %s108, 1
        %s1575 = scalar_select %p1574, %s108, 1
        %s1576 = scalar_lea.vmem %s29, %s1575
        %p1577 = pneg %p500
        %p1578 = pneg %p497
        %p1579 = scmp.lt.s32.totalorder %s108, 1
        %s1580 = scalar_select %p1579, %s108, 1
        %s1581 = scalar_lea.vmem %s31, %s1580
        %p1582 = pneg %p526
        %p1583 = pneg %p523
        %s1584 = sand.u32 %s103, 1
        %s1585 = scalar_lea.sflag [#allocation20], %s1584
        %s1586 = sand.u32 %s539, 1
        %s1587 = smul.addr %s1586, 32
        %s1588 = scalar_lea.vmem [#allocation21], %s1587
        %p1589 = pneg %p552
        %p1590 = pneg %p549
        %s1591 = sand.u32 %s103, 1
        %s1592 = scalar_lea.sflag [#allocation23], %s1591
        %s1593 = sand.u32 %s565, 1
        %s1594 = smul.addr %s1593, 32
        %s1595 = scalar_lea.vmem [#allocation22], %s1594
        %p1596 = pneg %p578
        %p1597 = pneg %p575
        %s1598 = sand.u32 %s103, 1
        %s1599 = scalar_lea.sflag [#allocation23], %s1598
        %s1600 = sand.u32 %s591, 1
        %s1601 = smul.addr %s1600, 16
        %s1602 = scalar_lea.vmem [#allocation24], %s1601
        %p1603 = pneg %p604
        %p1604 = pneg %p601
        %s1605 = sand.u32 %s103, 1
        %s1606 = scalar_lea.sflag [#allocation26], %s1605
        %s1607 = sand.u32 %s617, 1
        %s1608 = scalar_lea.vmem [#allocation25], %s1607
        %p1609 = pneg %p630
        %p1610 = pneg %p627
        %s1611 = sand.u32 %s103, 1
        %s1612 = scalar_lea.sflag [#allocation26], %s1611
        %s1613 = sand.u32 %s643, 1
        %s1614 = smul.addr %s1613, 32
        %s1615 = scalar_lea.vmem [#allocation27], %s1614
        %p1616 = pneg %p656
        %p1617 = pneg %p653
        %s1618 = sand.u32 %s103, 1
        %s1619 = scalar_lea.sflag [#allocation29], %s1618
        %s1620 = sand.u32 %s669, 1
        %s1621 = scalar_lea.vmem [#allocation28], %s1620
        %p1622 = pneg %p682
        %p1623 = pneg %p679
        %p1624 = pneg %p703
        %p1625 = pneg %p700
        %p1626 = pneg %p724
        %p1627 = pneg %p721
        %p1628 = pneg %p745
        %p1629 = pneg %p742
        %p1630 = pneg %p766
        %p1631 = pneg %p763
        %p1632 = pneg %p787
        %p1633 = pneg %p784
        %p1634 = pneg %p808
        %p1635 = pneg %p805
        %p1636 = pneg %p829
        %p1637 = pneg %p826
        %p1638 = pneg %p850
        %p1639 = pneg %p847
        %p1640 = pneg %p876
        %p1641 = pneg %p873
        %s1642 = sand.u32 %s863, 1
        %s1643 = scalar_lea.sflag [#allocation6], %s1642
        %s1644 = sand.u32 %s863, 1
        %s1645 = scalar_lea.vmem [#allocation34], %s1644
        %p1646 = scmp.lt.s32.totalorder %s107, 1
        %s1647 = scalar_select %p1646, %s107, 1
        %s1648 = smul.addr %s1647, 2
        %s1649 = smul.addr %s1648, 8
        %s1650 = scalar_lea.vmem %s1, %s1649
        %p1651 = scmp.lt.s32.totalorder %s107, 1
        %s1652 = scalar_select %p1651, %s107, 1
        %s1653 = smul.addr %s1652, 2
        %s1654 = scalar_lea.vmem %s3, %s1653
        %p1655 = scmp.lt.s32.totalorder %s108, 1
        %s1656 = scalar_select %p1655, %s108, 1
        %s1657 = scalar_lea.vmem %s9, %s1656
        %p1658 = scmp.lt.s32.totalorder %s108, 1
        %s1659 = scalar_select %p1658, %s108, 1
        %s1660 = scalar_lea.vmem %s11, %s1659
        %p1661 = scmp.lt.s32.totalorder %s108, 1
        %s1662 = scalar_select %p1661, %s108, 1
        %s1663 = scalar_lea.vmem %s29, %s1662
        %p1664 = scmp.lt.s32.totalorder %s108, 1
        %s1665 = scalar_select %p1664, %s108, 1
        %s1666 = scalar_lea.vmem %s31, %s1665
        %p1667 = scmp.eq.s32.totalorder %s108, 0
        // Predicated region
        $region217: #{crossvit_fwd.5} parent=139 // pred_check
          %p1668 = pneg %p1667
        $region218: #{crossvit_fwd.5} parent=139 // pred_check_branch
          %1670 = sbr.rel (%p1668) target = $region220
        $region219: #{crossvit_fwd.5} parent=139 // pred_region
          %v1671 = vld [vmem:[%s1650] sm:$0x1]
          %vm1672 = vcmask 253952
          %1673 = vst.msk [vmem:[#allocation2] sm:$0x1] %vm1672, %v1671
          %v1674 = vld [vmem:[%s1654] sm:$0x1]
          %vm1675 = vcmask 516096
          %1676 = vst.msk [vmem:[#allocation3] sm:$0x1] %vm1675, %v1674
        $region220: #{crossvit_fwd.5} parent=139 // pred_fallthru
          _
        %v1677 = vld [vmem:[%s1650 + $0x1] sm:$0xff]
        %v1678 = vld [vmem:[%s1654 + $0x1] sm:$0x1]
        %v1679 = vld [vmem:[#allocation2] sm:$0x1]
        %v1680 = vld [vmem:[%s1320] sm:$0xff]
        %v1681 = vld [vmem:[%s1320 + $0x8] sm:$0xff]
        %v1682 = vld [vmem:[%s1320 + $0x10] sm:$0xff]
        %v1683 = vld [vmem:[%s1320 + $0x18] sm:$0xff]
        %v1684 = vld [vmem:[%s1329] sm:$0x1]
        %vm1685 = vcmask 261120
        %v1687 = vsel %vm1685, %v1679, 0
        %1689 = vmatpush.msra.mxu0 0.0
        %1690 = vmatpush.msra.mxu0 0.0
        %1691 = vmatpush.msra.mxu0 0.0
        %1692 = vmatpush.msra.mxu0 0.0
        %1693 = vmatpush.msra.mxu0 0.0
        %1694 = vmatpush.msra.mxu0 0.0
        %1695 = vmatpush.msra.mxu0 0.0
        %1696 = vmatpush.msra.mxu0 0.0
        %1697 = vmatpush.msra.mxu0 0.0
        %1698 = vmatpush.msra.mxu0 0.0
        %1699 = vmatpush.msra.mxu0 0.0
        %1700 = vmatpush.msra.mxu0 0.0
        %1701 = vmatpush.msra.mxu0 %v1683
        %1702 = vmatpush.msra.mxu0 %v1682
        %1703 = vmatpush.msra.mxu0 %v1681
        %1704 = vmatpush.msra.mxu0 %v1680
        %1705 = vmatmul.f32.gmra.mxu0 %v1687
        %v1706 = vpop.f32.mrf.mxu0
        %v1707 = vadd.f32 %v1684, %v1706
        %1708 = vdwg.mxu0
        %v1709 = vld [vmem:[%s1657] sm:$0x1]
        %v1710 = vld [vmem:[%s1660] sm:$0x1]
        %vm1711 = vcmask 516096
        %v1712 = vsel %vm1711, %v1707, 0.0
        %1713 = vadd.xlane.f32.xlu0 %v1712
        %v1714 = vpop.xlane.xlu0 %1713
        %v1715 = vrcp.pop 64.0
        %v1716 = vmul.f32 64.0, %v1715
        %v1717 = vsub.f32 1.0, %v1716
        %v1718 = vmul.f32 %v1715, %v1717
        %v1719 = vadd.f32 %v1715, %v1718
        %vm1720 = vweird.f32 %v1715
        %v1721 = vsel %vm1720, %v1715, %v1719
        %v1722 = vmul.f32 %v1714, %v1721
        %v1723 = vsub.f32 %v1707, %v1722
        %v1724 = vmul.f32 %v1723, %v1723
        %v1725 = vsel %vm1711, %v1724, 0.0
        %1726 = vadd.xlane.f32.xlu0 %v1725
        %v1727 = vpop.xlane.xlu0 %1726
        %v1728 = vmul.f32 %v1727, %v1721
        %v1729 = vadd.f32 %v1728, 1e-05
        %v1730 = vrsqrt.pop %v1729
        %v1731 = vmul.f32 %v1730, %v1729
        %v1732 = vmul.f32 %v1731, %v1730
        %v1733 = vmul.f32 0.5, %v1732
        %v1734 = vsub.f32 1.5, %v1733
        %v1735 = vmul.f32 %v1730, %v1734
        %vm1736 = vweird.f32 %v1729
        %vm1737 = vweird.f32 %v1730
        %vm1738 = vmor %vm1736, %vm1737
        %v1739 = vsel %vm1738, %v1730, %v1735
        %v1740 = vmul.f32 %v1723, %v1739
        %v1741 = vmul.f32 %v1740, %v1709
        %v1742 = vadd.f32 %v1741, %v1710
        %v1743 = vld [vmem:[%s1339] sm:$0xff]
        %v1744 = vld [vmem:[%s1339 + $0x8] sm:$0xff]
        %v1745 = vld [vmem:[%s1339 + $0x10] sm:$0xff]
        %v1746 = vld [vmem:[%s1339 + $0x18] sm:$0xff]
        %v1747 = vld [vmem:[%s1339 + $0x20] sm:$0xff]
        %v1748 = vld [vmem:[%s1339 + $0x28] sm:$0xff]
        %v1749 = vld [vmem:[%s1339 + $0x30] sm:$0xff]
        %v1750 = vld [vmem:[%s1339 + $0x38] sm:$0xff]
        %vm1751 = vcmask 523264
        %v1753 = vsel %vm1751, %v1742, 0
        %1755 = vmatpush.msra.mxu0 0.0
        %1756 = vmatpush.msra.mxu0 0.0
        %1757 = vmatpush.msra.mxu0 0.0
        %1758 = vmatpush.msra.mxu0 0.0
        %1759 = vmatpush.msra.mxu0 0.0
        %1760 = vmatpush.msra.mxu0 0.0
        %1761 = vmatpush.msra.mxu0 0.0
        %1762 = vmatpush.msra.mxu0 0.0
        %1763 = vmatpush.msra.mxu0 %v1750
        %1764 = vmatpush.msra.mxu0 %v1749
        %1765 = vmatpush.msra.mxu0 %v1748
        %1766 = vmatpush.msra.mxu0 %v1747
        %1767 = vmatpush.msra.mxu0 %v1746
        %1768 = vmatpush.msra.mxu0 %v1745
        %1769 = vmatpush.msra.mxu0 %v1744
        %1770 = vmatpush.msra.mxu0 %v1743
        %1771 = vmatmul.f32.gmra.mxu0 %v1753
        %v1772 = vpop.f32.mrf.mxu0
        %v1773 = vadd.f32 0.0, %v1772
        %1774 = vdwg.mxu0
        %v1775 = vld [vmem:[%s1349] sm:$0xff]
        %v1776 = vld [vmem:[%s1349 + $0x8] sm:$0xff]
        %v1777 = vld [vmem:[%s1349 + $0x10] sm:$0xff]
        %v1778 = vld [vmem:[%s1349 + $0x18] sm:$0xff]
        %v1779 = vld [vmem:[%s1349 + $0x20] sm:$0xff]
        %v1780 = vld [vmem:[%s1349 + $0x28] sm:$0xff]
        %v1781 = vld [vmem:[%s1349 + $0x30] sm:$0xff]
        %v1782 = vld [vmem:[%s1349 + $0x38] sm:$0xff]
        %1783 = vmatpush.msra.mxu0 0.0
        %1784 = vmatpush.msra.mxu0 0.0
        %1785 = vmatpush.msra.mxu0 0.0
        %1786 = vmatpush.msra.mxu0 0.0
        %1787 = vmatpush.msra.mxu0 0.0
        %1788 = vmatpush.msra.mxu0 0.0
        %1789 = vmatpush.msra.mxu0 0.0
        %1790 = vmatpush.msra.mxu0 0.0
        %1791 = vmatpush.msra.mxu0 %v1782
        %1792 = vmatpush.msra.mxu0 %v1781
        %1793 = vmatpush.msra.mxu0 %v1780
        %1794 = vmatpush.msra.mxu0 %v1779
        %1795 = vmatpush.msra.mxu0 %v1778
        %1796 = vmatpush.msra.mxu0 %v1777
        %1797 = vmatpush.msra.mxu0 %v1776
        %1798 = vmatpush.msra.mxu0 %v1775
        %1799 = vmatmul.f32.gmra.mxu0 %v1753
        %v1800 = vpop.f32.mrf.mxu0
        %v1801 = vadd.f32 0.0, %v1800
        %1802 = vdwg.mxu0
        %v1804 = vsel %vm1751, %v1678, 0
        %1806 = vmatpush.msra.mxu0 0.0
        %1807 = vmatpush.msra.mxu0 0.0
        %1808 = vmatpush.msra.mxu0 0.0
        %1809 = vmatpush.msra.mxu0 0.0
        %1810 = vmatpush.msra.mxu0 0.0
        %1811 = vmatpush.msra.mxu0 0.0
        %1812 = vmatpush.msra.mxu0 0.0
        %1813 = vmatpush.msra.mxu0 0.0
        %1814 = vmatpush.msra.mxu0 %v1782
        %1815 = vmatpush.msra.mxu0 %v1781
        %1816 = vmatpush.msra.mxu0 %v1780
        %1817 = vmatpush.msra.mxu0 %v1779
        %1818 = vmatpush.msra.mxu0 %v1778
        %1819 = vmatpush.msra.mxu0 %v1777
        %1820 = vmatpush.msra.mxu0 %v1776
        %1821 = vmatpush.msra.mxu0 %v1775
        %1822 = vmatmul.f32.gmra.mxu0 %v1804
        %v1823 = vpop.f32.mrf.mxu0
        %v1824 = vadd.f32 0.0, %v1823
        %1825 = vdwg.mxu0
        %v1826 = vld [vmem:[%s1359] sm:$0xff]
        %v1827 = vld [vmem:[%s1359 + $0x8] sm:$0xff]
        %1829 = vrot.lane.b32.xlu0 %v1773, 120
        %v1830 = vpop.permute.xlu0 %1829
        %1833 = vrot.lane.b32.xlu0 %v1801, 120
        %v1834 = vpop.permute.xlu0 %1833
        %v1836 = vmul.f32 %v1773, %v1801
        %vm1837 = vcmask 57344
        %v1838 = vsel %vm1837, %v1836, 0.0
        %1839 = vadd.xlane.f32.xlu0 %v1838
        %v1840 = vpop.xlane.xlu0 %1839
        %v1841 = vmul.f32 %v1830, %v1834
        %v1842 = vsel %vm1837, %v1841, 0.0
        %1843 = vadd.xlane.f32.xlu0 %v1842
        %v1844 = vpop.xlane.xlu0 %1843
        %v1845 = vmul.f32 %v1840, 0.35355338
        %v1846 = vmul.f32 %v1844, 0.35355338
        %1848 = vrot.lane.b32.xlu0 %v1824, 120
        %v1849 = vpop.permute.xlu0 %1848
        %v1851 = vmul.f32 %v1773, %v1824
        %v1852 = vsel %vm1837, %v1851, 0.0
        %1853 = vadd.xlane.f32.xlu0 %v1852
        %v1854 = vpop.xlane.xlu0 %1853
        %v1855 = vmul.f32 %v1830, %v1849
        %v1856 = vsel %vm1837, %v1855, 0.0
        %1857 = vadd.xlane.f32.xlu0 %v1856
        %v1858 = vpop.xlane.xlu0 %1857
        %v1859 = vmul.f32 %v1854, 0.35355338
        %v1860 = vmul.f32 %v1858, 0.35355338
        %v1861 = vmax.f32 %v1845, %v1859
        %v1862 = vmax.f32 %v1846, %v1860
        %v1863 = vsub.f32 %v1845, %v1861
        %v1864 = vsub.f32 %v1846, %v1862
        %v1865 = vmul.f32 %v1863, 1.442695
        %v1866 = vpow.pop %v1865
        %v1867 = vmul.f32 %v1864, 1.442695
        %v1868 = vpow.pop %v1867
        %v1869 = vsub.f32 %v1859, %v1861
        %v1870 = vsub.f32 %v1860, %v1862
        %v1871 = vmul.f32 %v1869, 1.442695
        %v1872 = vpow.pop %v1871
        %v1873 = vmul.f32 %v1870, 1.442695
        %v1874 = vpow.pop %v1873
        %v1875 = vadd.f32 %v1866, 0.0
        %v1876 = vadd.f32 %v1868, 0.0
        %v1877 = vadd.f32 %v1872, 0.0
        %v1878 = vadd.f32 %v1874, 0.0
        %v1879 = vadd.f32 %v1875, %v1877
        %v1880 = vadd.f32 %v1876, %v1878
        %1881 = vrot.lane.b32.xlu0 %v1824, 112
        %v1882 = vpop.permute.xlu0 %1881
        %vm1883 = vcmask 7168
        %v1885 = vsel %vm1883, %v1872, 0
        %vm1887 = vcmask 1040384
        %v1888 = vsel %vm1887, %v1882, 0
        %1890 = vmatpush.msra.mxu0 0.0
        %1891 = vmatpush.msra.mxu0 0.0
        %1892 = vmatpush.msra.mxu0 0.0
        %1893 = vmatpush.msra.mxu0 0.0
        %1894 = vmatpush.msra.mxu0 0.0
        %1895 = vmatpush.msra.mxu0 0.0
        %1896 = vmatpush.msra.mxu0 0.0
        %1897 = vmatpush.msra.mxu0 0.0
        %1898 = vmatpush.msra.mxu0 0.0
        %1899 = vmatpush.msra.mxu0 0.0
        %1900 = vmatpush.msra.mxu0 0.0
        %1901 = vmatpush.msra.mxu0 0.0
        %1902 = vmatpush.msra.mxu0 0.0
        %1903 = vmatpush.msra.mxu0 0.0
        %1904 = vmatpush.msra.mxu0 0.0
        %1905 = vmatpush.msra.mxu0 %v1888
        %1906 = vmatmul.f32.gmra.mxu0 %v1885
        %v1907 = vpop.f32.mrf.mxu0
        %v1908 = vadd.f32 0.0, %v1907
        %1909 = vdwg.mxu0
        %1910 = vrot.lane.b32.xlu0 %v1849, 112
        %v1911 = vpop.permute.xlu0 %1910
        %v1913 = vsel %vm1883, %v1874, 0
        %v1915 = vsel %vm1887, %v1911, 0
        %1917 = vmatpush.msra.mxu0 0.0
        %1918 = vmatpush.msra.mxu0 0.0
        %1919 = vmatpush.msra.mxu0 0.0
        %1920 = vmatpush.msra.mxu0 0.0
        %1921 = vmatpush.msra.mxu0 0.0
        %1922 = vmatpush.msra.mxu0 0.0
        %1923 = vmatpush.msra.mxu0 0.0
        %1924 = vmatpush.msra.mxu0 0.0
        %1925 = vmatpush.msra.mxu0 0.0
        %1926 = vmatpush.msra.mxu0 0.0
        %1927 = vmatpush.msra.mxu0 0.0
        %1928 = vmatpush.msra.mxu0 0.0
        %1929 = vmatpush.msra.mxu0 0.0
        %1930 = vmatpush.msra.mxu0 0.0
        %1931 = vmatpush.msra.mxu0 0.0
        %1932 = vmatpush.msra.mxu0 %v1915
        %1933 = vmatmul.f32.gmra.mxu0 %v1913
        %v1934 = vpop.f32.mrf.mxu0
        %v1935 = vadd.f32 0.0, %v1934
        %1936 = vdwg.mxu0
        %1937 = vrot.lane.b32.xlu0 %v1801, 112
        %v1938 = vpop.permute.xlu0 %1937
        %v1940 = vsel %vm1883, %v1866, 0
        %v1942 = vsel %vm1887, %v1938, 0
        %1944 = vmatpush.msra.mxu0 0.0
        %1945 = vmatpush.msra.mxu0 0.0
        %1946 = vmatpush.msra.mxu0 0.0
        %1947 = vmatpush.msra.mxu0 0.0
        %1948 = vmatpush.msra.mxu0 0.0
        %1949 = vmatpush.msra.mxu0 0.0
        %1950 = vmatpush.msra.mxu0 0.0
        %1951 = vmatpush.msra.mxu0 0.0
        %1952 = vmatpush.msra.mxu0 0.0
        %1953 = vmatpush.msra.mxu0 0.0
        %1954 = vmatpush.msra.mxu0 0.0
        %1955 = vmatpush.msra.mxu0 0.0
        %1956 = vmatpush.msra.mxu0 0.0
        %1957 = vmatpush.msra.mxu0 0.0
        %1958 = vmatpush.msra.mxu0 0.0
        %1959 = vmatpush.msra.mxu0 %v1942
        %1960 = vmatmul.f32.gmra.mxu0 %v1940
        %v1961 = vpop.f32.mrf.mxu0
        %v1962 = vadd.f32 %v1908, %v1961
        %1963 = vdwg.mxu0
        %1964 = vrot.lane.b32.xlu0 %v1834, 112
        %v1965 = vpop.permute.xlu0 %1964
        %v1967 = vsel %vm1883, %v1868, 0
        %v1969 = vsel %vm1887, %v1965, 0
        %1971 = vmatpush.msra.mxu0 0.0
        %1972 = vmatpush.msra.mxu0 0.0
        %1973 = vmatpush.msra.mxu0 0.0
        %1974 = vmatpush.msra.mxu0 0.0
        %1975 = vmatpush.msra.mxu0 0.0
        %1976 = vmatpush.msra.mxu0 0.0
        %1977 = vmatpush.msra.mxu0 0.0
        %1978 = vmatpush.msra.mxu0 0.0
        %1979 = vmatpush.msra.mxu0 0.0
        %1980 = vmatpush.msra.mxu0 0.0
        %1981 = vmatpush.msra.mxu0 0.0
        %1982 = vmatpush.msra.mxu0 0.0
        %1983 = vmatpush.msra.mxu0 0.0
        %1984 = vmatpush.msra.mxu0 0.0
        %1985 = vmatpush.msra.mxu0 0.0
        %1986 = vmatpush.msra.mxu0 %v1969
        %1987 = vmatmul.f32.gmra.mxu0 %v1967
        %v1988 = vpop.f32.mrf.mxu0
        %v1989 = vadd.f32 %v1935, %v1988
        %1990 = vdwg.mxu0
        %1992 = vset.pattern.permute.xlu0 0
        %1993 = vperm.xlu0 %1992, %v1879
        %v1994 = vpop.permute.xlu0 %1993
        %1997 = vset.pattern.permute.xlu0 0
        %1998 = vperm.xlu0 %1997, %v1880
        %v1999 = vpop.permute.xlu0 %1998
        %v2001 = vrcp.pop %v1994
        %v2002 = vmul.f32 %v1994, %v2001
        %v2003 = vsub.f32 1.0, %v2002
        %v2004 = vmul.f32 %v2001, %v2003
        %v2005 = vadd.f32 %v2001, %v2004
        %vm2006 = vweird.f32 %v1994
        %vm2007 = vweird.f32 %v2001
        %vm2008 = vmor %vm2006, %vm2007
        %v2009 = vsel %vm2008, %v2001, %v2005
        %v2010 = vand.u32 2147483647, %v1994
        %vm2011 = vcmp.eq.f32.partialorder %v2010, 8.507059e+37
        %v2012 = vand.u32 %v1994, 2147483648
        %v2013 = vor.u32 1.1754944e-38, %v2012
        %v2014 = vsel %vm2011, %v2013, %v2009
        %v2015 = vmul.f32 %v1962, %v2014
        %v2016 = vrcp.pop %v1999
        %v2017 = vmul.f32 %v1999, %v2016
        %v2018 = vsub.f32 1.0, %v2017
        %v2019 = vmul.f32 %v2016, %v2018
        %v2020 = vadd.f32 %v2016, %v2019
        %vm2021 = vweird.f32 %v1999
        %vm2022 = vweird.f32 %v2016
        %vm2023 = vmor %vm2021, %vm2022
        %v2024 = vsel %vm2023, %v2016, %v2020
        %v2025 = vand.u32 2147483647, %v1999
        %vm2026 = vcmp.eq.f32.partialorder %v2025, 8.507059e+37
        %v2027 = vand.u32 %v1999, 2147483648
        %v2028 = vor.u32 1.1754944e-38, %v2027
        %v2029 = vsel %vm2026, %v2028, %v2024
        %v2030 = vmul.f32 %v1989, %v2029
        %vm2031 = vcmask 64512
        %v2033 = vsel %vm2031, %v2015, 0
        %2035 = vmatpush.msra.mxu0 0.0
        %2036 = vmatpush.msra.mxu0 0.0
        %2037 = vmatpush.msra.mxu0 0.0
        %2038 = vmatpush.msra.mxu0 0.0
        %2039 = vmatpush.msra.mxu0 0.0
        %2040 = vmatpush.msra.mxu0 0.0
        %2041 = vmatpush.msra.mxu0 0.0
        %2042 = vmatpush.msra.mxu0 0.0
        %2043 = vmatpush.msra.mxu0 0.0
        %2044 = vmatpush.msra.mxu0 0.0
        %2045 = vmatpush.msra.mxu0 0.0
        %2046 = vmatpush.msra.mxu0 0.0
        %2047 = vmatpush.msra.mxu0 0.0
        %2048 = vmatpush.msra.mxu0 0.0
        %2049 = vmatpush.msra.mxu0 0.0
        %2050 = vmatpush.msra.mxu0 %v1826
        %2051 = vmatmul.f32.gmra.mxu0 %v2033
        %v2052 = vpop.f32.mrf.mxu0
        %v2053 = vadd.f32 0.0, %v2052
        %2054 = vdwg.mxu0
        %v2056 = vsel %vm2031, %v2030, 0
        %2058 = vmatpush.msra.mxu0 0.0
        %2059 = vmatpush.msra.mxu0 0.0
        %2060 = vmatpush.msra.mxu0 0.0
        %2061 = vmatpush.msra.mxu0 0.0
        %2062 = vmatpush.msra.mxu0 0.0
        %2063 = vmatpush.msra.mxu0 0.0
        %2064 = vmatpush.msra.mxu0 0.0
        %2065 = vmatpush.msra.mxu0 0.0
        %2066 = vmatpush.msra.mxu0 0.0
        %2067 = vmatpush.msra.mxu0 0.0
        %2068 = vmatpush.msra.mxu0 0.0
        %2069 = vmatpush.msra.mxu0 0.0
        %2070 = vmatpush.msra.mxu0 0.0
        %2071 = vmatpush.msra.mxu0 0.0
        %2072 = vmatpush.msra.mxu0 0.0
        %2073 = vmatpush.msra.mxu0 %v1827
        %2074 = vmatmul.f32.gmra.mxu0 %v2056
        %v2075 = vpop.f32.mrf.mxu0
        %v2076 = vadd.f32 0.0, %v2075
        %2077 = vdwg.mxu0
        %v2078 = vsel %vm1711, %v2053, 0.0
        %v2079 = vsel %vm1711, %v2076, 0.0
        %v2080 = vadd.f32 %v2078, %v2079
        %v2081 = vld [vmem:[%s1368] sm:$0x1]
        %v2082 = vadd.f32 %v2080, %v2081
        %v2083 = vld [vmem:[%s1378] sm:$0xff]
        %v2084 = vld [vmem:[%s1378 + $0x8] sm:$0xff]
        %v2085 = vld [vmem:[%s1378 + $0x10] sm:$0xff]
        %v2086 = vld [vmem:[%s1378 + $0x18] sm:$0xff]
        %v2087 = vld [vmem:[%s1378 + $0x20] sm:$0xff]
        %v2088 = vld [vmem:[%s1378 + $0x28] sm:$0xff]
        %v2089 = vld [vmem:[%s1378 + $0x30] sm:$0xff]
        %v2090 = vld [vmem:[%s1378 + $0x38] sm:$0xff]
        %v2091 = vld [vmem:[%s1387] sm:$0x1]
        %v2093 = vsel %vm1751, %v2082, 0
        %2095 = vmatpush.msra.mxu0 0.0
        %2096 = vmatpush.msra.mxu0 0.0
        %2097 = vmatpush.msra.mxu0 0.0
        %2098 = vmatpush.msra.mxu0 0.0
        %2099 = vmatpush.msra.mxu0 0.0
        %2100 = vmatpush.msra.mxu0 0.0
        %2101 = vmatpush.msra.mxu0 0.0
        %2102 = vmatpush.msra.mxu0 0.0
        %2103 = vmatpush.msra.mxu0 %v2090
        %2104 = vmatpush.msra.mxu0 %v2089
        %2105 = vmatpush.msra.mxu0 %v2088
        %2106 = vmatpush.msra.mxu0 %v2087
        %2107 = vmatpush.msra.mxu0 %v2086
        %2108 = vmatpush.msra.mxu0 %v2085
        %2109 = vmatpush.msra.mxu0 %v2084
        %2110 = vmatpush.msra.mxu0 %v2083
        %2111 = vmatmul.f32.gmra.mxu0 %v2093
        %v2112 = vpop.f32.mrf.mxu0
        %v2113 = vadd.f32 %v2091, %v2112
        %2114 = vdwg.mxu0
        %v2115 = vadd.f32 %v2113, %v1679
        %vm2116 = vcmask 253952
        %2117 = vst.msk [vmem:[#allocation2] sm:$0x1] %vm2116, %v2115
        %v2118 = vld [vmem:[#allocation3] sm:$0x1]
        %v2119 = vld [vmem:[%s1397] sm:$0xff]
        %v2120 = vld [vmem:[%s1397 + $0x8] sm:$0xff]
        %v2121 = vld [vmem:[%s1397 + $0x10] sm:$0xff]
        %v2122 = vld [vmem:[%s1397 + $0x18] sm:$0xff]
        %v2123 = vld [vmem:[%s1397 + $0x20] sm:$0xff]
        %v2124 = vld [vmem:[%s1397 + $0x28] sm:$0xff]
        %v2125 = vld [vmem:[%s1397 + $0x30] sm:$0xff]
        %v2126 = vld [vmem:[%s1397 + $0x38] sm:$0xff]
        %v2127 = vld [vmem:[%s1406] sm:$0x1]
        %v2129 = vsel %vm1751, %v2118, 0
        %2131 = vmatpush.msra.mxu0 0.0
        %2132 = vmatpush.msra.mxu0 0.0
        %2133 = vmatpush.msra.mxu0 0.0
        %2134 = vmatpush.msra.mxu0 0.0
        %2135 = vmatpush.msra.mxu0 0.0
        %2136 = vmatpush.msra.mxu0 0.0
        %2137 = vmatpush.msra.mxu0 0.0
        %2138 = vmatpush.msra.mxu0 0.0
        %2139 = vmatpush.msra.mxu0 %v2126
        %2140 = vmatpush.msra.mxu0 %v2125
        %2141 = vmatpush.msra.mxu0 %v2124
        %2142 = vmatpush.msra.mxu0 %v2123
        %2143 = vmatpush.msra.mxu0 %v2122
        %2144 = vmatpush.msra.mxu0 %v2121
        %2145 = vmatpush.msra.mxu0 %v2120
        %2146 = vmatpush.msra.mxu0 %v2119
        %2147 = vmatmul.f32.gmra.mxu0 %v2129
        %v2148 = vpop.f32.mrf.mxu0
        %v2149 = vadd.f32 %v2127, %v2148
        %2150 = vdwg.mxu0
        %v2151 = vld [vmem:[%s1663] sm:$0x1]
        %v2152 = vld [vmem:[%s1666] sm:$0x1]
        %v2153 = vsel %vm2116, %v2149, 0.0
        %2154 = vadd.xlane.f32.xlu0 %v2153
        %v2155 = vpop.xlane.xlu0 %2154
        %v2156 = vrcp.pop 32.0
        %v2157 = vmul.f32 32.0, %v2156
        %v2158 = vsub.f32 1.0, %v2157
        %v2159 = vmul.f32 %v2156, %v2158
        %v2160 = vadd.f32 %v2156, %v2159
        %vm2161 = vweird.f32 %v2156
        %v2162 = vsel %vm2161, %v2156, %v2160
        %v2163 = vmul.f32 %v2155, %v2162
        %v2164 = vsub.f32 %v2149, %v2163
        %v2165 = vmul.f32 %v2164, %v2164
        %v2166 = vsel %vm2116, %v2165, 0.0
        %2167 = vadd.xlane.f32.xlu0 %v2166
        %v2168 = vpop.xlane.xlu0 %2167
        %v2169 = vmul.f32 %v2168, %v2162
        %v2170 = vadd.f32 %v2169, 1e-05
        %v2171 = vrsqrt.pop %v2170
        %v2172 = vmul.f32 %v2171, %v2170
        %v2173 = vmul.f32 %v2172, %v2171
        %v2174 = vmul.f32 0.5, %v2173
        %v2175 = vsub.f32 1.5, %v2174
        %v2176 = vmul.f32 %v2171, %v2175
        %vm2177 = vweird.f32 %v2170
        %vm2178 = vweird.f32 %v2171
        %vm2179 = vmor %vm2177, %vm2178
        %v2180 = vsel %vm2179, %v2171, %v2176
        %v2181 = vmul.f32 %v2164, %v2180
        %v2182 = vmul.f32 %v2181, %v2151
        %v2183 = vadd.f32 %v2182, %v2152
        %v2184 = vld [vmem:[%s1416] sm:$0xff]
        %v2185 = vld [vmem:[%s1416 + $0x8] sm:$0xff]
        %v2186 = vld [vmem:[%s1416 + $0x10] sm:$0xff]
        %v2187 = vld [vmem:[%s1416 + $0x18] sm:$0xff]
        %v2189 = vsel %vm1685, %v2183, 0
        %2191 = vmatpush.msra.mxu0 0.0
        %2192 = vmatpush.msra.mxu0 0.0
        %2193 = vmatpush.msra.mxu0 0.0
        %2194 = vmatpush.msra.mxu0 0.0
        %2195 = vmatpush.msra.mxu0 0.0
        %2196 = vmatpush.msra.mxu0 0.0
        %2197 = vmatpush.msra.mxu0 0.0
        %2198 = vmatpush.msra.mxu0 0.0
        %2199 = vmatpush.msra.mxu0 0.0
        %2200 = vmatpush.msra.mxu0 0.0
        %2201 = vmatpush.msra.mxu0 0.0
        %2202 = vmatpush.msra.mxu0 0.0
        %2203 = vmatpush.msra.mxu0 %v2187
        %2204 = vmatpush.msra.mxu0 %v2186
        %2205 = vmatpush.msra.mxu0 %v2185
        %2206 = vmatpush.msra.mxu0 %v2184
        %2207 = vmatmul.f32.gmra.mxu0 %v2189
        %v2208 = vpop.f32.mrf.mxu0
        %v2209 = vadd.f32 0.0, %v2208
        %2210 = vdwg.mxu0
        %v2211 = vld [vmem:[%s1426] sm:$0xff]
        %v2212 = vld [vmem:[%s1426 + $0x8] sm:$0xff]
        %v2213 = vld [vmem:[%s1426 + $0x10] sm:$0xff]
        %v2214 = vld [vmem:[%s1426 + $0x18] sm:$0xff]
        %2215 = vmatpush.msra.mxu0 0.0
        %2216 = vmatpush.msra.mxu0 0.0
        %2217 = vmatpush.msra.mxu0 0.0
        %2218 = vmatpush.msra.mxu0 0.0
        %2219 = vmatpush.msra.mxu0 0.0
        %2220 = vmatpush.msra.mxu0 0.0
        %2221 = vmatpush.msra.mxu0 0.0
        %2222 = vmatpush.msra.mxu0 0.0
        %2223 = vmatpush.msra.mxu0 0.0
        %2224 = vmatpush.msra.mxu0 0.0
        %2225 = vmatpush.msra.mxu0 0.0
        %2226 = vmatpush.msra.mxu0 0.0
        %2227 = vmatpush.msra.mxu0 %v2214
        %2228 = vmatpush.msra.mxu0 %v2213
        %2229 = vmatpush.msra.mxu0 %v2212
        %2230 = vmatpush.msra.mxu0 %v2211
        %2231 = vmatmul.f32.gmra.mxu0 %v2189
        %v2232 = vpop.f32.mrf.mxu0
        %v2233 = vadd.f32 0.0, %v2232
        %2234 = vdwg.mxu0
        %v2236 = vsel %vm1685, %v1677, 0
        %2238 = vmatpush.msra.mxu0 0.0
        %2239 = vmatpush.msra.mxu0 0.0
        %2240 = vmatpush.msra.mxu0 0.0
        %2241 = vmatpush.msra.mxu0 0.0
        %2242 = vmatpush.msra.mxu0 0.0
        %2243 = vmatpush.msra.mxu0 0.0
        %2244 = vmatpush.msra.mxu0 0.0
        %2245 = vmatpush.msra.mxu0 0.0
        %2246 = vmatpush.msra.mxu0 0.0
        %2247 = vmatpush.msra.mxu0 0.0
        %2248 = vmatpush.msra.mxu0 0.0
        %2249 = vmatpush.msra.mxu0 0.0
        %2250 = vmatpush.msra.mxu0 %v2214
        %2251 = vmatpush.msra.mxu0 %v2213
        %2252 = vmatpush.msra.mxu0 %v2212
        %2253 = vmatpush.msra.mxu0 %v2211
        %2254 = vmatmul.f32.gmra.mxu0 %v2236
        %v2255 = vpop.f32.mrf.mxu0
        %v2256 = vadd.f32 0.0, %v2255
        %2257 = vdwg.mxu0
        %v2258 = vld [vmem:[%s1436] sm:$0xff]
        %v2259 = vld [vmem:[%s1436 + $0x8] sm:$0xff]
        %2261 = vrot.lane.b32.xlu0 %v2209, 120
        %v2262 = vpop.permute.xlu0 %2261
        %2265 = vrot.lane.b32.xlu0 %v2233, 120
        %v2266 = vpop.permute.xlu0 %2265
        %v2268 = vmul.f32 %v2209, %v2233
        %v2269 = vsel %vm1837, %v2268, 0.0
        %2270 = vadd.xlane.f32.xlu0 %v2269
        %v2271 = vpop.xlane.xlu0 %2270
        %v2272 = vmul.f32 %v2262, %v2266
        %v2273 = vsel %vm1837, %v2272, 0.0
        %2274 = vadd.xlane.f32.xlu0 %v2273
        %v2275 = vpop.xlane.xlu0 %2274
        %v2276 = vmul.f32 %v2271, 0.35355338
        %v2277 = vmul.f32 %v2275, 0.35355338
        %2279 = vrot.lane.b32.xlu0 %v2256, 120
        %v2280 = vpop.permute.xlu0 %2279
        %v2281 = vsel %vm2031, %v2209, 0
        %v2283 = vsel %vm2031, %v2256, 0
        %2285 = vmatpush.xpose.msra.mxu0 0.0
        %2286 = vmatpush.xpose.msra.mxu0 0.0
        %2287 = vmatpush.xpose.msra.mxu0 0.0
        %2288 = vmatpush.xpose.msra.mxu0 0.0
        %2289 = vmatpush.xpose.msra.mxu0 0.0
        %2290 = vmatpush.xpose.msra.mxu0 0.0
        %2291 = vmatpush.xpose.msra.mxu0 0.0
        %2292 = vmatpush.xpose.msra.mxu0 0.0
        %2293 = vmatpush.xpose.msra.mxu0 0.0
        %2294 = vmatpush.xpose.msra.mxu0 0.0
        %2295 = vmatpush.xpose.msra.mxu0 0.0
        %2296 = vmatpush.xpose.msra.mxu0 0.0
        %2297 = vmatpush.xpose.msra.mxu0 0.0
        %2298 = vmatpush.xpose.msra.mxu0 0.0
        %2299 = vmatpush.xpose.msra.mxu0 0.0
        %2300 = vmatpush.xpose.msra.mxu0 %v2283
        %2301 = vmatmul.f32.gmra.mxu0 %v2281
        %v2302 = vpop.f32.mrf.mxu0
        %v2303 = vadd.f32 0.0, %v2302
        %2304 = vdwg.mxu0
        %v2305 = vsel %vm2031, %v2262, 0
        %v2307 = vsel %vm2031, %v2280, 0
        %2309 = vmatpush.xpose.msra.mxu0 0.0
        %2310 = vmatpush.xpose.msra.mxu0 0.0
        %2311 = vmatpush.xpose.msra.mxu0 0.0
        %2312 = vmatpush.xpose.msra.mxu0 0.0
        %2313 = vmatpush.xpose.msra.mxu0 0.0
        %2314 = vmatpush.xpose.msra.mxu0 0.0
        %2315 = vmatpush.xpose.msra.mxu0 0.0
        %2316 = vmatpush.xpose.msra.mxu0 0.0
        %2317 = vmatpush.xpose.msra.mxu0 0.0
        %2318 = vmatpush.xpose.msra.mxu0 0.0
        %2319 = vmatpush.xpose.msra.mxu0 0.0
        %2320 = vmatpush.xpose.msra.mxu0 0.0
        %2321 = vmatpush.xpose.msra.mxu0 0.0
        %2322 = vmatpush.xpose.msra.mxu0 0.0
        %2323 = vmatpush.xpose.msra.mxu0 0.0
        %2324 = vmatpush.xpose.msra.mxu0 %v2307
        %2325 = vmatmul.f32.gmra.mxu0 %v2305
        %v2326 = vpop.f32.mrf.mxu0
        %v2327 = vadd.f32 0.0, %v2326
        %2328 = vdwg.mxu0
        %v2329 = vmul.f32 %v2303, 0.35355338
        %v2330 = vmul.f32 %v2327, 0.35355338
        %v2331 = vsel %vm1837, %v2329, -inf
        %2332 = vmax.xlane.f32.xlu0 %v2331
        %v2333 = vpop.xlane.xlu0 %2332
        %v2334 = vsel %vm1837, %v2330, -inf
        %2335 = vmax.xlane.f32.xlu0 %v2334
        %v2336 = vpop.xlane.xlu0 %2335
        %v2337 = vmax.f32 %v2276, %v2333
        %v2338 = vmax.f32 %v2277, %v2336
        %v2339 = vsub.f32 %v2276, %v2337
        %v2340 = vsub.f32 %v2277, %v2338
        %v2341 = vmul.f32 %v2339, 1.442695
        %v2342 = vpow.pop %v2341
        %v2343 = vmul.f32 %v2340, 1.442695
        %v2344 = vpow.pop %v2343
        %2346 = vset.pattern.permute.xlu0 0
        %2347 = vperm.xlu0 %2346, %v2337
        %v2348 = vpop.permute.xlu0 %2347
        %2351 = vset.pattern.permute.xlu0 0
        %2352 = vperm.xlu0 %2351, %v2338
        %v2353 = vpop.permute.xlu0 %2352
        %v2355 = vsub.f32 %v2329, %v2348
        %v2356 = vsub.f32 %v2330, %v2353
        %v2357 = vmul.f32 %v2355, 1.442695
        %v2358 = vpow.pop %v2357
        %v2359 = vmul.f32 %v2356, 1.442695
        %v2360 = vpow.pop %v2359
        %v2361 = vadd.f32 %v2342, 0.0
        %v2362 = vadd.f32 %v2344, 0.0
        %v2363 = vsel %vm1837, %v2358, 0.0
        %2364 = vadd.xlane.f32.xlu0 %v2363
        %v2365 = vpop.xlane.xlu0 %2364
        %v2366 = vsel %vm1837, %v2360, 0.0
        %2367 = vadd.xlane.f32.xlu0 %v2366
        %v2368 = vpop.xlane.xlu0 %2367
        %v2369 = vadd.f32 %v2361, %v2365
        %v2370 = vadd.f32 %v2362, %v2368
        %2371 = vrot.lane.b32.xlu0 %v2256, 112
        %v2372 = vpop.permute.xlu0 %2371
        %v2375 = vsel %vm2031, %v2358, 0
        %2377 = vmatpush.msra.mxu0 0.0
        %2378 = vmatpush.msra.mxu0 0.0
        %2379 = vmatpush.msra.mxu0 0.0
        %2380 = vmatpush.msra.mxu0 0.0
        %2381 = vmatpush.msra.mxu0 0.0
        %2382 = vmatpush.msra.mxu0 0.0
        %2383 = vmatpush.msra.mxu0 0.0
        %2384 = vmatpush.msra.mxu0 0.0
        %2385 = vmatpush.msra.mxu0 0.0
        %2386 = vmatpush.msra.mxu0 0.0
        %2387 = vmatpush.msra.mxu0 0.0
        %2388 = vmatpush.msra.mxu0 0.0
        %2389 = vmatpush.msra.mxu0 0.0
        %2390 = vmatpush.msra.mxu0 0.0
        %2391 = vmatpush.msra.mxu0 0.0
        %2392 = vmatpush.msra.mxu0 %v2372
        %2393 = vmatmul.f32.gmra.mxu0 %v2375
        %v2394 = vpop.f32.mrf.mxu0
        %v2395 = vadd.f32 0.0, %v2394
        %2396 = vdwg.mxu0
        %2397 = vrot.lane.b32.xlu0 %v2280, 112
        %v2398 = vpop.permute.xlu0 %2397
        %v2401 = vsel %vm2031, %v2360, 0
        %2403 = vmatpush.msra.mxu0 0.0
        %2404 = vmatpush.msra.mxu0 0.0
        %2405 = vmatpush.msra.mxu0 0.0
        %2406 = vmatpush.msra.mxu0 0.0
        %2407 = vmatpush.msra.mxu0 0.0
        %2408 = vmatpush.msra.mxu0 0.0
        %2409 = vmatpush.msra.mxu0 0.0
        %2410 = vmatpush.msra.mxu0 0.0
        %2411 = vmatpush.msra.mxu0 0.0
        %2412 = vmatpush.msra.mxu0 0.0
        %2413 = vmatpush.msra.mxu0 0.0
        %2414 = vmatpush.msra.mxu0 0.0
        %2415 = vmatpush.msra.mxu0 0.0
        %2416 = vmatpush.msra.mxu0 0.0
        %2417 = vmatpush.msra.mxu0 0.0
        %2418 = vmatpush.msra.mxu0 %v2398
        %2419 = vmatmul.f32.gmra.mxu0 %v2401
        %v2420 = vpop.f32.mrf.mxu0
        %v2421 = vadd.f32 0.0, %v2420
        %2422 = vdwg.mxu0
        %2423 = vrot.lane.b32.xlu0 %v2233, 112
        %v2424 = vpop.permute.xlu0 %2423
        %v2426 = vsel %vm1883, %v2342, 0
        %v2428 = vsel %vm1887, %v2424, 0
        %2430 = vmatpush.msra.mxu0 0.0
        %2431 = vmatpush.msra.mxu0 0.0
        %2432 = vmatpush.msra.mxu0 0.0
        %2433 = vmatpush.msra.mxu0 0.0
        %2434 = vmatpush.msra.mxu0 0.0
        %2435 = vmatpush.msra.mxu0 0.0
        %2436 = vmatpush.msra.mxu0 0.0
        %2437 = vmatpush.msra.mxu0 0.0
        %2438 = vmatpush.msra.mxu0 0.0
        %2439 = vmatpush.msra.mxu0 0.0
        %2440 = vmatpush.msra.mxu0 0.0
        %2441 = vmatpush.msra.mxu0 0.0
        %2442 = vmatpush.msra.mxu0 0.0
        %2443 = vmatpush.msra.mxu0 0.0
        %2444 = vmatpush.msra.mxu0 0.0
        %2445 = vmatpush.msra.mxu0 %v2428
        %2446 = vmatmul.f32.gmra.mxu0 %v2426
        %v2447 = vpop.f32.mrf.mxu0
        %v2448 = vadd.f32 %v2395, %v2447
        %2449 = vdwg.mxu0
        %2450 = vrot.lane.b32.xlu0 %v2266, 112
        %v2451 = vpop.permute.xlu0 %2450
        %v2453 = vsel %vm1883, %v2344, 0
        %v2455 = vsel %vm1887, %v2451, 0
        %2457 = vmatpush.msra.mxu0 0.0
        %2458 = vmatpush.msra.mxu0 0.0
        %2459 = vmatpush.msra.mxu0 0.0
        %2460 = vmatpush.msra.mxu0 0.0
        %2461 = vmatpush.msra.mxu0 0.0
        %2462 = vmatpush.msra.mxu0 0.0
        %2463 = vmatpush.msra.mxu0 0.0
        %2464 = vmatpush.msra.mxu0 0.0
        %2465 = vmatpush.msra.mxu0 0.0
        %2466 = vmatpush.msra.mxu0 0.0
        %2467 = vmatpush.msra.mxu0 0.0
        %2468 = vmatpush.msra.mxu0 0.0
        %2469 = vmatpush.msra.mxu0 0.0
        %2470 = vmatpush.msra.mxu0 0.0
        %2471 = vmatpush.msra.mxu0 0.0
        %2472 = vmatpush.msra.mxu0 %v2455
        %2473 = vmatmul.f32.gmra.mxu0 %v2453
        %v2474 = vpop.f32.mrf.mxu0
        %v2475 = vadd.f32 %v2421, %v2474
        %2476 = vdwg.mxu0
        %2478 = vset.pattern.permute.xlu0 0
        %2479 = vperm.xlu0 %2478, %v2369
        %v2480 = vpop.permute.xlu0 %2479
        %2483 = vset.pattern.permute.xlu0 0
        %2484 = vperm.xlu0 %2483, %v2370
        %v2485 = vpop.permute.xlu0 %2484
        %v2487 = vrcp.pop %v2480
        %v2488 = vmul.f32 %v2480, %v2487
        %v2489 = vsub.f32 1.0, %v2488
        %v2490 = vmul.f32 %v2487, %v2489
        %v2491 = vadd.f32 %v2487, %v2490
        %vm2492 = vweird.f32 %v2480
        %vm2493 = vweird.f32 %v2487
        %vm2494 = vmor %vm2492, %vm2493
        %v2495 = vsel %vm2494, %v2487, %v2491
        %v2496 = vand.u32 2147483647, %v2480
        %vm2497 = vcmp.eq.f32.partialorder %v2496, 8.507059e+37
        %v2498 = vand.u32 %v2480, 2147483648
        %v2499 = vor.u32 1.1754944e-38, %v2498
        %v2500 = vsel %vm2497, %v2499, %v2495
        %v2501 = vmul.f32 %v2448, %v2500
        %v2502 = vrcp.pop %v2485
        %v2503 = vmul.f32 %v2485, %v2502
        %v2504 = vsub.f32 1.0, %v2503
        %v2505 = vmul.f32 %v2502, %v2504
        %v2506 = vadd.f32 %v2502, %v2505
        %vm2507 = vweird.f32 %v2485
        %vm2508 = vweird.f32 %v2502
        %vm2509 = vmor %vm2507, %vm2508
        %v2510 = vsel %vm2509, %v2502, %v2506
        %v2511 = vand.u32 2147483647, %v2485
        %vm2512 = vcmp.eq.f32.partialorder %v2511, 8.507059e+37
        %v2513 = vand.u32 %v2485, 2147483648
        %v2514 = vor.u32 1.1754944e-38, %v2513
        %v2515 = vsel %vm2512, %v2514, %v2510
        %v2516 = vmul.f32 %v2475, %v2515
        %v2518 = vsel %vm2031, %v2501, 0
        %2520 = vmatpush.msra.mxu0 0.0
        %2521 = vmatpush.msra.mxu0 0.0
        %2522 = vmatpush.msra.mxu0 0.0
        %2523 = vmatpush.msra.mxu0 0.0
        %2524 = vmatpush.msra.mxu0 0.0
        %2525 = vmatpush.msra.mxu0 0.0
        %2526 = vmatpush.msra.mxu0 0.0
        %2527 = vmatpush.msra.mxu0 0.0
        %2528 = vmatpush.msra.mxu0 0.0
        %2529 = vmatpush.msra.mxu0 0.0
        %2530 = vmatpush.msra.mxu0 0.0
        %2531 = vmatpush.msra.mxu0 0.0
        %2532 = vmatpush.msra.mxu0 0.0
        %2533 = vmatpush.msra.mxu0 0.0
        %2534 = vmatpush.msra.mxu0 0.0
        %2535 = vmatpush.msra.mxu0 %v2258
        %2536 = vmatmul.f32.gmra.mxu0 %v2518
        %v2537 = vpop.f32.mrf.mxu0
        %v2538 = vadd.f32 0.0, %v2537
        %2539 = vdwg.mxu0
        %v2541 = vsel %vm2031, %v2516, 0
        %2543 = vmatpush.msra.mxu0 0.0
        %2544 = vmatpush.msra.mxu0 0.0
        %2545 = vmatpush.msra.mxu0 0.0
        %2546 = vmatpush.msra.mxu0 0.0
        %2547 = vmatpush.msra.mxu0 0.0
        %2548 = vmatpush.msra.mxu0 0.0
        %2549 = vmatpush.msra.mxu0 0.0
        %2550 = vmatpush.msra.mxu0 0.0
        %2551 = vmatpush.msra.mxu0 0.0
        %2552 = vmatpush.msra.mxu0 0.0
        %2553 = vmatpush.msra.mxu0 0.0
        %2554 = vmatpush.msra.mxu0 0.0
        %2555 = vmatpush.msra.mxu0 0.0
        %2556 = vmatpush.msra.mxu0 0.0
        %2557 = vmatpush.msra.mxu0 0.0
        %2558 = vmatpush.msra.mxu0 %v2259
        %2559 = vmatmul.f32.gmra.mxu0 %v2541
        %v2560 = vpop.f32.mrf.mxu0
        %v2561 = vadd.f32 0.0, %v2560
        %2562 = vdwg.mxu0
        %v2563 = vsel %vm2116, %v2538, 0.0
        %v2564 = vsel %vm2116, %v2561, 0.0
        %v2565 = vadd.f32 %v2563, %v2564
        %v2566 = vld [vmem:[%s1445] sm:$0x1]
        %v2567 = vadd.f32 %v2565, %v2566
        %v2568 = vld [vmem:[%s1455] sm:$0xff]
        %v2569 = vld [vmem:[%s1455 + $0x8] sm:$0xff]
        %v2570 = vld [vmem:[%s1455 + $0x10] sm:$0xff]
        %v2571 = vld [vmem:[%s1455 + $0x18] sm:$0xff]
        %v2572 = vld [vmem:[%s1464] sm:$0x1]
        %v2574 = vsel %vm1685, %v2567, 0
        %2576 = vmatpush.msra.mxu0 0.0
        %2577 = vmatpush.msra.mxu0 0.0
        %2578 = vmatpush.msra.mxu0 0.0
        %2579 = vmatpush.msra.mxu0 0.0
        %2580 = vmatpush.msra.mxu0 0.0
        %2581 = vmatpush.msra.mxu0 0.0
        %2582 = vmatpush.msra.mxu0 0.0
        %2583 = vmatpush.msra.mxu0 0.0
        %2584 = vmatpush.msra.mxu0 0.0
        %2585 = vmatpush.msra.mxu0 0.0
        %2586 = vmatpush.msra.mxu0 0.0
        %2587 = vmatpush.msra.mxu0 0.0
        %2588 = vmatpush.msra.mxu0 %v2571
        %2589 = vmatpush.msra.mxu0 %v2570
        %2590 = vmatpush.msra.mxu0 %v2569
        %2591 = vmatpush.msra.mxu0 %v2568
        %2592 = vmatmul.f32.gmra.mxu0 %v2574
        %v2593 = vpop.f32.mrf.mxu0
        %v2594 = vadd.f32 %v2572, %v2593
        %2595 = vdwg.mxu0
        %v2596 = vadd.f32 %v2594, %v2118
        %2597 = vst.msk [vmem:[#allocation3] sm:$0x1] %vm1711, %v2596
        %p2598 = scmp.eq.s32.totalorder %s108, 1
        // Predicated region
        $region221: #{crossvit_fwd.5} parent=139 // pred_check
          %p2599 = pneg %p2598
        $region222: #{crossvit_fwd.5} parent=139 // pred_check_branch
          %2601 = sbr.rel (%p2599) target = $region224
        $region223: #{crossvit_fwd.5} parent=139 // pred_region
          %v2602 = vld [vmem:[%s45] sm:$0x1]
          %v2603 = vld [vmem:[%s47] sm:$0x1]
          %v2604 = vsel %vm2116, %v2115, 0.0
          %2605 = vadd.xlane.f32.xlu0 %v2604
          %v2606 = vpop.xlane.xlu0 %2605
          %v2607 = vmul.f32 %v2606, %v2162
          %v2608 = vsub.f32 %v2115, %v2607
          %v2609 = vmul.f32 %v2608, %v2608
          %v2610 = vsel %vm2116, %v2609, 0.0
          %2611 = vadd.xlane.f32.xlu0 %v2610
          %v2612 = vpop.xlane.xlu0 %2611
          %v2613 = vmul.f32 %v2612, %v2162
          %v2614 = vadd.f32 %v2613, 1e-05
          %v2615 = vrsqrt.pop %v2614
          %v2616 = vmul.f32 %v2615, %v2614
          %v2617 = vmul.f32 %v2616, %v2615
          %v2618 = vmul.f32 0.5, %v2617
          %v2619 = vsub.f32 1.5, %v2618
          %v2620 = vmul.f32 %v2615, %v2619
          %vm2621 = vweird.f32 %v2614
          %vm2622 = vweird.f32 %v2615
          %vm2623 = vmor %vm2621, %vm2622
          %v2624 = vsel %vm2623, %v2615, %v2620
          %v2625 = vmul.f32 %v2608, %v2624
          %v2626 = vmul.f32 %v2625, %v2602
          %v2627 = vadd.f32 %v2626, %v2603
          %v2628 = vld [vmem:[%s53] sm:$0x1]
          %v2629 = vld [vmem:[%s55] sm:$0x1]
          %v2630 = vsel %vm1711, %v2596, 0.0
          %2631 = vadd.xlane.f32.xlu0 %v2630
          %v2632 = vpop.xlane.xlu0 %2631
          %v2633 = vmul.f32 %v2632, %v1721
          %v2634 = vsub.f32 %v2596, %v2633
          %v2635 = vmul.f32 %v2634, %v2634
          %v2636 = vsel %vm1711, %v2635, 0.0
          %2637 = vadd.xlane.f32.xlu0 %v2636
          %v2638 = vpop.xlane.xlu0 %2637
          %v2639 = vmul.f32 %v2638, %v1721
          %v2640 = vadd.f32 %v2639, 1e-05
          %v2641 = vrsqrt.pop %v2640
          %v2642 = vmul.f32 %v2641, %v2640
          %v2643 = vmul.f32 %v2642, %v2641
          %v2644 = vmul.f32 0.5, %v2643
          %v2645 = vsub.f32 1.5, %v2644
          %v2646 = vmul.f32 %v2641, %v2645
          %vm2647 = vweird.f32 %v2640
          %vm2648 = vweird.f32 %v2641
          %vm2649 = vmor %vm2647, %vm2648
          %v2650 = vsel %vm2649, %v2641, %v2646
          %v2651 = vmul.f32 %v2634, %v2650
          %v2652 = vmul.f32 %v2651, %v2628
          %v2653 = vadd.f32 %v2652, %v2629
          %v2654 = vld [vmem:[%s49] sm:$0xff]
          %v2655 = vld [vmem:[%s49 + $0x8] sm:$0xff]
          %v2656 = vld [vmem:[%s49 + $0x10] sm:$0xff]
          %v2657 = vld [vmem:[%s49 + $0x18] sm:$0xff]
          %v2658 = vld [vmem:[#allocation30] sm:$0x1]
          %v2660 = vsel %vm1685, %v2627, 0
          %2662 = vmatpush.msra.mxu0 0.0
          %2663 = vmatpush.msra.mxu0 0.0
          %2664 = vmatpush.msra.mxu0 0.0
          %2665 = vmatpush.msra.mxu0 0.0
          %2666 = vmatpush.msra.mxu0 0.0
          %2667 = vmatpush.msra.mxu0 0.0
          %2668 = vmatpush.msra.mxu0 0.0
          %2669 = vmatpush.msra.mxu0 0.0
          %2670 = vmatpush.msra.mxu0 0.0
          %2671 = vmatpush.msra.mxu0 0.0
          %2672 = vmatpush.msra.mxu0 0.0
          %2673 = vmatpush.msra.mxu0 0.0
          %2674 = vmatpush.msra.mxu0 %v2657
          %2675 = vmatpush.msra.mxu0 %v2656
          %2676 = vmatpush.msra.mxu0 %v2655
          %2677 = vmatpush.msra.mxu0 %v2654
          %2678 = vmatmul.f32.gmra.mxu0 %v2660
          %v2679 = vpop.f32.mrf.mxu0
          %v2680 = vadd.f32 %v2658, %v2679
          %2681 = vdwg.mxu0
          %v2682 = vld [vmem:[#allocation31] sm:$0xff]
          %v2683 = vld [vmem:[#allocation31 + $0x8] sm:$0xff]
          %v2684 = vld [vmem:[#allocation31 + $0x10] sm:$0xff]
          %v2685 = vld [vmem:[#allocation31 + $0x18] sm:$0xff]
          %v2686 = vld [vmem:[#allocation31 + $0x20] sm:$0xff]
          %v2687 = vld [vmem:[#allocation31 + $0x28] sm:$0xff]
          %v2688 = vld [vmem:[#allocation31 + $0x30] sm:$0xff]
          %v2689 = vld [vmem:[#allocation31 + $0x38] sm:$0xff]
          %v2691 = vsel %vm1751, %v2653, 0
          %2693 = vmatpush.msra.mxu0 0.0
          %2694 = vmatpush.msra.mxu0 0.0
          %2695 = vmatpush.msra.mxu0 0.0
          %2696 = vmatpush.msra.mxu0 0.0
          %2697 = vmatpush.msra.mxu0 0.0
          %2698 = vmatpush.msra.mxu0 0.0
          %2699 = vmatpush.msra.mxu0 0.0
          %2700 = vmatpush.msra.mxu0 0.0
          %2701 = vmatpush.msra.mxu0 %v2689
          %2702 = vmatpush.msra.mxu0 %v2688
          %2703 = vmatpush.msra.mxu0 %v2687
          %2704 = vmatpush.msra.mxu0 %v2686
          %2705 = vmatpush.msra.mxu0 %v2685
          %2706 = vmatpush.msra.mxu0 %v2684
          %2707 = vmatpush.msra.mxu0 %v2683
          %2708 = vmatpush.msra.mxu0 %v2682
          %2709 = vmatmul.f32.gmra.mxu0 %v2691
          %v2710 = vpop.f32.mrf.mxu0
          %v2711 = vadd.f32 0.0, %v2710
          %2712 = vdwg.mxu0
          %v2713 = vadd.f32 %v2680, %v2711
          %v2714 = vld [vmem:[#allocation33] sm:$0x1]
          %v2715 = vadd.f32 %v2713, %v2714
          %vm2716 = vcmask 122880
          %2717 = vst.msk [vmem:[%s1645] sm:$0x1] %vm2716, %v2715
        $region224: #{crossvit_fwd.5} parent=139 // pred_fallthru
          _
        %s2718 = sand.u32 %s863, 1
        %s2719 = scalar_lea.sflag [#allocation6], %s2718
        %s2720 = sand.u32 %s863, 1
        %s2721 = scalar_lea.vmem [#allocation34], %s2720
        // Predicated region
        $region225: #{crossvit_fwd.5} parent=139 // pred_check
          %p2722 = pneg %p873
        $region226: #{crossvit_fwd.5} parent=139 // pred_check_branch
          %2724 = sbr.rel (%p2722) target = $region228
        $region227: #{crossvit_fwd.5} parent=139 // pred_region
          %2726 = vsyncadd %s2719, 0
          %s2727 = scalar_lea.hbm %s61, %s107
          %s2729 = sshll.u32 %s2721, 4
          %s2730 = int_to_ptr.vmem [resolvable:$true] %s2729
          %s2731 = sshll.u32 %s2727, 4
          %s2732 = int_to_ptr.hbm [resolvable:$true] %s2731
          %2734 = dma.vmem_to_hbm [thread:$0]  %s2730, 16, %s2732, %s2719
        $region228: #{crossvit_fwd.5} parent=139 // pred_fallthru
          _
      $region140: #{crossvit_fwd.5} parent=5 // pred_fallthru
        _
      %p2735 = scmp.le.s32.totalorder 2, %s98
      // Predicated region
      $region229: #{crossvit_fwd.5} parent=5 // pred_check
        %p2736 = pneg %p2735
      $region230: #{crossvit_fwd.5} parent=5 // pred_check_branch
        %2738 = sbr.rel (%p2736) target = $region232
      $region231: #{crossvit_fwd.5} parent=5 // pred_region
        %s2739 = ssub.s32 %s98, 2
        // Predicated region
        $region233: #{crossvit_fwd.5} parent=231 // pred_check
          %p2740 = pneg %p879
        $region234: #{crossvit_fwd.5} parent=231 // pred_check_branch
          %2742 = sbr.rel (%p2740) target = $region236
        $region235: #{crossvit_fwd.5} parent=231 // pred_region
          %s2743 = sand.u32 %s864, 1
          %s2744 = scalar_lea.sflag [#allocation6], %s2743
          %s2745 = sand.u32 %s864, 1
          %s2746 = scalar_lea.vmem [#allocation34], %s2745
          %2748 = dma.done %s2744, 16
        $region236: #{crossvit_fwd.5} parent=231 // pred_fallthru
          _
      $region232: #{crossvit_fwd.5} parent=5 // pred_fallthru
        _
    $region6: #{crossvit_fwd.5} parent=1 // loop_footer
      %s102 = sadd.s32 1, %s98
    $region7: #{crossvit_fwd.5} parent=1 // loop_footer_branch
      %97 = sbr.rel target = $region3
    $region8: #{crossvit_fwd.5} parent=1 // loop_exit
      _
    %2749 = vsyncpa [#allocation5], 1
    %s2750 = scalar_lea.sflag [#allocation5], 1
    %2751 = vsyncpa %s2750, 1
    %2752 = vsyncpa [#allocation8], 1
    %s2753 = scalar_lea.sflag [#allocation8], 1
    %2754 = vsyncpa %s2753, 1
    %2755 = vsyncpa [#allocation11], 1
    %s2756 = scalar_lea.sflag [#allocation11], 1
    %2757 = vsyncpa %s2756, 1
    %2758 = vsyncpa [#allocation14], 1
    %s2759 = scalar_lea.sflag [#allocation14], 1
    %2760 = vsyncpa %s2759, 1
    %2761 = vsyncpa [#allocation17], 1
    %s2762 = scalar_lea.sflag [#allocation17], 1
    %2763 = vsyncpa %s2762, 1
    %2764 = vsyncpa [#allocation20], 1
    %s2765 = scalar_lea.sflag [#allocation20], 1
    %2766 = vsyncpa %s2765, 1
    %2767 = vsyncpa [#allocation23], 1
    %s2768 = scalar_lea.sflag [#allocation23], 1
    %2769 = vsyncpa %s2768, 1
    %2770 = vsyncpa [#allocation26], 1
    %s2771 = scalar_lea.sflag [#allocation26], 1
    %2772 = vsyncpa %s2771, 1
    %2773 = vsyncpa [#allocation29], 1
    %s2774 = scalar_lea.sflag [#allocation29], 1
    %2775 = vsyncpa %s2774, 1
    %2776 = vsyncpa [#allocation32], 1
    %2777 = vsyncpa [#allocation6], 1
    %s2778 = scalar_lea.sflag [#allocation6], 1
    %2779 = vsyncpa %s2778, 1

</llo_original>
